<compile_context>
chip_gen: v7x
topology: tpu7x:2x2x1
jax: 0.10.0
libtpu: 0.0.40
codegen_flags: <defaults>
</compile_context>

<pallas_src>
import functools

import jax
import jax.numpy as jnp
from jax.experimental import pallas as pl
from jax.experimental.pallas import tpu as pltpu


# ----------------------------------------------------------------------------
# Pallas kernels: tiled GEMM + fused bias (+ residual) (+ ReLU) epilogue
# ----------------------------------------------------------------------------
def _gemm_bias_kernel(p_ref, w_ref, b_ref, o_ref, acc_ref, *, relu):
    """(tm,tk)@(tk,tn) accumulate; bias(+ReLU) epilogue at the last K step."""
    k = pl.program_id(2)

    @pl.when(k == 0)
    def _():
        acc_ref[...] = jnp.zeros_like(acc_ref)

    acc_ref[...] += jnp.dot(p_ref[...], w_ref[...],
                            preferred_element_type=jnp.float32)

    @pl.when(k == pl.num_programs(2) - 1)
    def _():
        y = acc_ref[...] + b_ref[...]
        if relu:
            y = jnp.maximum(y, 0.0)
        o_ref[...] = y.astype(o_ref.dtype)


def _gemm_bias_res_kernel(p_ref, w_ref, b_ref, r_ref, o_ref, acc_ref):
    """Same as above + bf16 residual add before ReLU (bottleneck tail)."""
    k = pl.program_id(2)

    @pl.when(k == 0)
    def _():
        acc_ref[...] = jnp.zeros_like(acc_ref)

    acc_ref[...] += jnp.dot(p_ref[...], w_ref[...],
                            preferred_element_type=jnp.float32)

    @pl.when(k == pl.num_programs(2) - 1)
    def _():
        y = acc_ref[...] + b_ref[...] + r_ref[...].astype(jnp.float32)
        o_ref[...] = jnp.maximum(y, 0.0).astype(o_ref.dtype)


# ----------------------------------------------------------------------------
# Tiled GEMM wrapper
# ----------------------------------------------------------------------------
def _round_up(x, m):
    return (x + m - 1) // m * m


def _pallas_gemm(patches, w_mat, bias, residual=None, relu=True):
    """out = epilogue(patches @ w_mat); returns the padded (m_pad, n_pad) bf16 slab."""
    m, kdim = patches.shape
    k_pad, n_pad = w_mat.shape          # weights are pre-padded (prep time)

    # ---- tile selection -----------------------------------------------------
    tm = 256 if m >= 256 else _round_up(m, 16)
    m_pad = _round_up(m, tm)
    tn = 256 if n_pad % 256 == 0 else 128
    tk = k_pad if k_pad <= 1024 else 512     # small K: single full-extent block

    gm, gn = m_pad // tm, n_pad // tn
    if gm * gn == 1:                         # v7x: keep both TensorCores busy
        if tn == 256:
            tn = 128
        elif tm >= 256:
            tm = 128
    gm, gn, gk = m_pad // tm, n_pad // tn, k_pad // tk

    # ---- pad activations only (weights/bias already prepared) ---------------
    p = jnp.pad(patches.astype(jnp.bfloat16),
                ((0, m_pad - m), (0, k_pad - kdim)))

    in_specs = [
        pl.BlockSpec((tm, tk), lambda i, j, k: (i, k)),
        pl.BlockSpec((tk, tn), lambda i, j, k: (k, j)),
        pl.BlockSpec((1, tn), lambda i, j, k: (0, j)),
    ]
    args = [p, w_mat, bias]

    if residual is None:
        kern = functools.partial(_gemm_bias_kernel, relu=relu)
    else:
        r = jnp.pad(residual.astype(jnp.bfloat16),
                    ((0, m_pad - m), (0, n_pad - residual.shape[1])))
        in_specs.append(pl.BlockSpec((tm, tn), lambda i, j, k: (i, j)))
        args.append(r)
        kern = _gemm_bias_res_kernel

    flops = 2 * m_pad * n_pad * k_pad
    bytes_accessed = (m_pad * k_pad * 2 + k_pad * n_pad * 2 + n_pad * 4
                      + m_pad * n_pad * 2
                      + (m_pad * n_pad * 2 if residual is not None else 0))

    out = pl.pallas_call(
        kern,
        out_shape=jax.ShapeDtypeStruct((m_pad, n_pad), jnp.bfloat16),
        grid_spec=pltpu.PrefetchScalarGridSpec(
            num_scalar_prefetch=0,
            grid=(gm, gn, gk),
            in_specs=in_specs,
            out_specs=pl.BlockSpec((tm, tn), lambda i, j, k: (i, j)),
            scratch_shapes=[pltpu.VMEM((tm, tn), jnp.float32)],
        ),
        compiler_params=pltpu.CompilerParams(
            dimension_semantics=("parallel", "parallel", "arbitrary"),
            vmem_limit_bytes=48 * 1024 * 1024,   # safe on v7x's 64 MiB VMEM
        ),
        cost_estimate=pl.CostEstimate(flops=flops, transcendentals=0,
                                      bytes_accessed=bytes_accessed),
    )(*args)
    return out


# ----------------------------------------------------------------------------
# Conv / pooling wrappers (layout glue in plain JAX, compute in Pallas)
# ----------------------------------------------------------------------------
def _im2col(x_nhwc, k, stride, pad):
    """Build (M, kh*kw*Cin) bf16 patches.  k/stride/pad are static Python ints."""
    n, h, w, c = x_nhwc.shape
    oh = (h + 2 * pad - k) // stride + 1
    ow = (w + 2 * pad - k) // stride + 1
    x_bf = x_nhwc.astype(jnp.bfloat16)
    if k == 1 and pad == 0:
        # 1x1 conv: no patch expansion, just a (strided) view + reshape.
        patches = x_bf[:, ::stride, ::stride, :].reshape(n * oh * ow, c)
        return patches, (n, oh, ow)
    # TODO(synk): a direct conv kernel accumulating the kxk shifted views from a
    # VMEM-resident tile would avoid materializing patches in HBM entirely; the
    # bf16 patches below already halve that traffic vs. the previous f32 path.
    xp = jnp.pad(x_bf, ((0, 0), (pad, pad), (pad, pad), (0, 0)))
    cols = [xp[:, di:di + oh * stride:stride, dj:dj + ow * stride:stride, :]
            for di in range(k) for dj in range(k)]
    patches = jnp.stack(cols, axis=-2)          # (N, OH, OW, k*k, C)
    patches = patches.reshape(n * oh * ow, k * k * c)
    return patches, (n, oh, ow)


def conv_gemm(x_nhwc, cp, *, k, stride, pad, cout, relu=True, residual=None):
    """Conv2d (no bias) + folded BN (+ residual) (+ ReLU) via a tiled Pallas GEMM."""
    patches, (n, oh, ow) = _im2col(x_nhwc, k, stride, pad)
    m = patches.shape[0]
    res = None if residual is None else residual.reshape(m, cout)
    out = _pallas_gemm(patches, cp["w"], cp["b"], residual=res, relu=relu)
    return out[:m, :cout].reshape(n, oh, ow, cout)


def maxpool_3x3_s2(x_nhwc):
    # TODO(synk): bandwidth-bound 3x3/s2 max-pool left to XLA fusion (a Pallas
    # version only added extra HBM round-trips at these sizes).
    n, h, w, c = x_nhwc.shape
    k, s, p = 3, 2, 1
    xp = jnp.pad(x_nhwc, ((0, 0), (p, p), (p, p), (0, 0)),
                 constant_values=-jnp.inf)
    oh = (h + 2 * p - k) // s + 1
    ow = (w + 2 * p - k) // s + 1
    out = xp[:, 0:oh * s:s, 0:ow * s:s, :]
    for di in range(k):
        for dj in range(k):
            if di == 0 and dj == 0:
                continue
            out = jnp.maximum(out, xp[:, di:di + oh * s:s,
                                      dj:dj + ow * s:s, :])
    return out


# ----------------------------------------------------------------------------
# Parameter construction (deterministic, synthetic) + one-time GEMM prep
# ----------------------------------------------------------------------------
_EPS = 1e-5


def _prep_conv(w_oihw, scale, bias):
    """Fold BN scale into weights (f32), transpose to (K, Cout), pad, cast bf16."""
    cout, cin, kh, kw = w_oihw.shape
    kdim = kh * kw * cin
    w_mat = jnp.transpose(w_oihw, (2, 3, 1, 0)).reshape(kdim, cout)
    w_mat = w_mat * scale[None, :]                       # fold BN scale in f32
    n_pad = _round_up(cout, 128)                         # lane-dense outputs
    k_pad = _round_up(kdim, 16) if kdim <= 1024 else _round_up(kdim, 512)
    w_mat = jnp.pad(w_mat, ((0, k_pad - kdim), (0, n_pad - cout)))
    w_mat = w_mat.astype(jnp.bfloat16)
    b = jnp.pad(bias.astype(jnp.float32), (0, n_pad - cout)).reshape(1, n_pad)
    return {"w": w_mat, "b": b}


def _make_conv_bn(key, cin, cout, k):
    kw_, kg, kb, km, kv = jax.random.split(key, 5)
    w = 0.1 * jax.random.normal(kw_, (cout, cin, k, k), jnp.float32)
    gamma = 1.0 + 0.1 * jax.random.normal(kg, (cout,), jnp.float32)
    beta = 0.1 * jax.random.normal(kb, (cout,), jnp.float32)
    mean = 0.1 * jax.random.normal(km, (cout,), jnp.float32)
    var = 1.0 + 0.1 * jax.random.uniform(kv, (cout,), jnp.float32)
    scale = gamma / jnp.sqrt(var + _EPS)                 # fold BN (eval mode)
    bias = beta - mean * scale
    return _prep_conv(w, scale, bias)


def make_resnet_params(key, planes=(8, 16, 32, 64), blocks=(1, 1, 1, 1),
                       strides=(1, 2, 2, 2), expansion=4):
    """Deep-stem ResNet (mit_semseg style) with small synthetic widths.

    Returns (params, arch): params is an arrays-only pytree (jit-traceable),
    arch is static Python metadata (kernel sizes / strides / channel counts).
    """
    keys = jax.random.split(key, 3 + len(planes))
    stem_cfg = [
        {"k": 3, "stride": 2, "pad": 1, "cin": 3, "cout": 8},
        {"k": 3, "stride": 1, "pad": 1, "cin": 8, "cout": 8},
        {"k": 3, "stride": 1, "pad": 1, "cin": 8, "cout": 16},
    ]
    params = {
        "stem": [_make_conv_bn(keys[i], c["cin"], c["cout"], c["k"])
                 for i, c in enumerate(stem_cfg)],
        "layers": [],
    }
    arch = {"stem": stem_cfg, "layers": []}

    inplanes = 16
    for li, (pln, nb, st) in enumerate(zip(planes, blocks, strides)):
        bkeys = jax.random.split(keys[3 + li], nb)
        layer_p, layer_a = [], []
        for bi in range(nb):
            stride = st if bi == 0 else 1
            has_ds = stride != 1 or inplanes != pln * expansion
            ck = jax.random.split(bkeys[bi], 4)
            bp = {
                "c1": _make_conv_bn(ck[0], inplanes, pln, 1),
                "c2": _make_conv_bn(ck[1], pln, pln, 3),
                "c3": _make_conv_bn(ck[2], pln, pln * expansion, 1),
            }
            if has_ds:
                bp["ds"] = _make_conv_bn(ck[3], inplanes, pln * expansion, 1)
            layer_p.append(bp)
            layer_a.append({"stride": stride, "planes": pln,
                            "expansion": expansion, "has_ds": has_ds})
            inplanes = pln * expansion
        params["layers"].append(layer_p)
        arch["layers"].append(layer_a)
    return params, arch


# ----------------------------------------------------------------------------
# Forward pass (mirrors Resnet.forward)
# ----------------------------------------------------------------------------
def _bottleneck_forward(x, bp, ba):
    pln, exp, stride = ba["planes"], ba["expansion"], ba["stride"]
    out = conv_gemm(x, bp["c1"], k=1, stride=1, pad=0, cout=pln, relu=True)
    out = conv_gemm(out, bp["c2"], k=3, stride=stride, pad=1, cout=pln,
                    relu=True)
    if ba["has_ds"]:
        identity = conv_gemm(x, bp["ds"], k=1, stride=stride, pad=0,
                             cout=pln * exp, relu=False)
    else:
        identity = x
    # relu(bn3(conv3(out)) + identity) fused into one GEMM epilogue.
    out = conv_gemm(out, bp["c3"], k=1, stride=1, pad=0, cout=pln * exp,
                    relu=True, residual=identity)
    return out


def resnet_forward(params, x_nchw, arch, return_feature_maps=False):
    # NCHW (PyTorch) -> NHWC (kernel layout); activations flow in bf16.
    x = jnp.transpose(x_nchw, (0, 2, 3, 1)).astype(jnp.bfloat16)

    conv_out = []
    for cp, ca in zip(params["stem"], arch["stem"]):
        x = conv_gemm(x, cp, k=ca["k"], stride=ca["stride"], pad=ca["pad"],
                      cout=ca["cout"], relu=True)
    x = maxpool_3x3_s2(x)

    for lp, la in zip(params["layers"], arch["layers"]):
        for bp, ba in zip(lp, la):
            x = _bottleneck_forward(x, bp, ba)
        # back to NCHW / f32 to match the PyTorch module's interface
        conv_out.append(jnp.transpose(x, (0, 3, 1, 2)).astype(jnp.float32))

    if return_feature_maps:
        return conv_out
    return [conv_out[-1]]


# ----------------------------------------------------------------------------
# Demo
# ----------------------------------------------------------------------------
if __name__ == "__main__":
    key = jax.random.PRNGKey(0)
    kp, kx = jax.random.split(key)
    params, arch = make_resnet_params(kp)

    # Small input consistent with the module: NCHW, 3 input channels.
    x = jax.random.normal(kx, (2, 3, 32, 32), jnp.float32)

    fwd_feats = jax.jit(lambda p, xx: resnet_forward(p, xx, arch,
                                                     return_feature_maps=True))
    fwd_last = jax.jit(lambda p, xx: resnet_forward(p, xx, arch,
                                                    return_feature_maps=False))

    feats = jax.block_until_ready(fwd_feats(params, x))

    # expected NCHW shapes: (2,32,8,8) (2,64,4,4) (2,128,2,2) (2,256,1,1)
    assert feats[0].shape == (2, 32, 8, 8)
    assert feats[1].shape == (2, 64, 4, 4)
    assert feats[2].shape == (2, 128, 2, 2)
    assert feats[3].shape == (2, 256, 1, 1)
    assert all(bool(jnp.isfinite(f).all()) for f in feats)

    out = jax.block_until_ready(fwd_last(params, x))
    assert out[0].shape == (2, 256, 1, 1)

    print("KERNEL_OK")
</pallas_src>

<mosaic_0001>
module attributes {stable_mosaic.version = 11 : i64} {
  func.func @_gemm_bias_kernel(%arg0: i32, %arg1: i32, %arg2: i32, %arg3: memref<256x32xbf16, #tpu.memory_space<vmem>>, %arg4: memref<32x128xbf16, #tpu.memory_space<vmem>>, %arg5: memref<1x128xf32, #tpu.memory_space<vmem>>, %arg6: memref<256x128xbf16, #tpu.memory_space<vmem>>, %arg7: memref<256x128xf32, #tpu.memory_space<vmem>>) attributes {dimension_semantics = [#tpu.dimension_semantics<parallel>, #tpu.dimension_semantics<parallel>, #tpu.dimension_semantics<arbitrary>], iteration_bounds = array<i64: 2, 1, 1>, scalar_prefetch = 0 : i64, scratch_operands = 1 : i64, tpu.core_type = #tpu.core_type<tc>, window_params = [{transform_indices = @transform_0, window_bounds = array<i64: 256, 32>}, {transform_indices = @transform_1, window_bounds = array<i64: 32, 128>}, {transform_indices = @transform_2, window_bounds = array<i64: 1, 128>}, {transform_indices = @transform_3, window_bounds = array<i64: 256, 128>}]} {
    %c0_i32 = arith.constant 0 : i32
    %0 = arith.cmpi eq, %arg2, %c0_i32 : i32
    %1 = arith.extui %0 : i1 to i32
    %c0_i32_0 = arith.constant 0 : i32
    %2 = arith.cmpi ne, %1, %c0_i32_0 : i32
    scf.if %2 {
      %cst_10 = arith.constant 0.000000e+00 : f32
      %12 = vector.broadcast %cst_10 : f32 to vector<256x128xf32>
      %c0_11 = arith.constant 0 : index
      %c0_12 = arith.constant 0 : index
      %13 = vector.load %arg7[%c0_11, %c0_12] : memref<256x128xf32, #tpu.memory_space<vmem>>, vector<256x128xf32>
      tpu.vector_store %arg7[%c0_11, %c0_12], %12 {strides = array<i32>} : memref<256x128xf32, #tpu.memory_space<vmem>>, vector<256x128xf32>,
    } else {
    }
    %c0 = arith.constant 0 : index
    %c0_1 = arith.constant 0 : index
    %3 = vector.load %arg7[%c0, %c0_1] : memref<256x128xf32, #tpu.memory_space<vmem>>, vector<256x128xf32>
    %c0_2 = arith.constant 0 : index
    %c0_3 = arith.constant 0 : index
    %4 = vector.load %arg3[%c0_2, %c0_3] : memref<256x32xbf16, #tpu.memory_space<vmem>>, vector<256x32xbf16>
    %c0_4 = arith.constant 0 : index
    %c0_5 = arith.constant 0 : index
    %5 = vector.load %arg4[%c0_4, %c0_5] : memref<32x128xbf16, #tpu.memory_space<vmem>>, vector<32x128xbf16>
    %cst = arith.constant dense<0.000000e+00> : vector<256x128xf32>
    %6 = tpu.matmul %4, %5, %cst {dimension_numbers = #tpu.dot_dimension_numbers<[1], [0], [0], [1], [0, 0, 1, 1], [], []>} : vector<256x32xbf16>, vector<32x128xbf16>, vector<256x128xf32> -> vector<256x128xf32>
    %7 = arith.addf %3, %6 : vector<256x128xf32>
    %c0_6 = arith.constant 0 : index
    %c0_7 = arith.constant 0 : index
    %8 = vector.load %arg7[%c0_6, %c0_7] : memref<256x128xf32, #tpu.memory_space<vmem>>, vector<256x128xf32>
    tpu.vector_store %arg7[%c0_6, %c0_7], %7 {strides = array<i32>} : memref<256x128xf32, #tpu.memory_space<vmem>>, vector<256x128xf32>,
    %c0_i32_8 = arith.constant 0 : i32
    %9 = arith.cmpi eq, %arg2, %c0_i32_8 : i32
    %10 = arith.extui %9 : i1 to i32
    %c0_i32_9 = arith.constant 0 : i32
    %11 = arith.cmpi ne, %10, %c0_i32_9 : i32
    scf.if %11 {
      %c0_10 = arith.constant 0 : index
      %c0_11 = arith.constant 0 : index
      %12 = vector.load %arg7[%c0_10, %c0_11] : memref<256x128xf32, #tpu.memory_space<vmem>>, vector<256x128xf32>
      %c0_12 = arith.constant 0 : index
      %c0_13 = arith.constant 0 : index
      %13 = vector.load %arg5[%c0_12, %c0_13] : memref<1x128xf32, #tpu.memory_space<vmem>>, vector<1x128xf32>
      %14 = vector.broadcast %13 : vector<1x128xf32> to vector<256x128xf32>
      %15 = arith.addf %12, %14 : vector<256x128xf32>
      %cst_14 = arith.constant 0.000000e+00 : f32
      %16 = vector.broadcast %cst_14 : f32 to vector<256x128xf32>
      %17 = arith.maximumf %15, %16 : vector<256x128xf32>
      %18 = arith.truncf %17 : vector<256x128xf32> to vector<256x128xbf16>
      %c0_15 = arith.constant 0 : index
      %c0_16 = arith.constant 0 : index
      %19 = vector.load %arg6[%c0_15, %c0_16] : memref<256x128xbf16, #tpu.memory_space<vmem>>, vector<256x128xbf16>
      tpu.vector_store %arg6[%c0_15, %c0_16], %18 {strides = array<i32>} : memref<256x128xbf16, #tpu.memory_space<vmem>>, vector<256x128xbf16>,
    } else {
    }
    return
  }
  func.func @transform_0(%arg0: i32, %arg1: i32, %arg2: i32) -> (i32, i32) {
    %c0_i32 = arith.constant 0 : i32
    return %arg0, %arg2 : i32, i32
  }
  func.func @transform_1(%arg0: i32, %arg1: i32, %arg2: i32) -> (i32, i32) {
    %c0_i32 = arith.constant 0 : i32
    return %arg2, %arg1 : i32, i32
  }
  func.func @transform_2(%arg0: i32, %arg1: i32, %arg2: i32) -> (i32, i32) {
    %c0_i32 = arith.constant 0 : i32
    %c0_i32_0 = arith.constant 0 : i32
    return %c0_i32, %arg1 : i32, i32
  }
  func.func @transform_3(%arg0: i32, %arg1: i32, %arg2: i32) -> (i32, i32) {
    %c0_i32 = arith.constant 0 : i32
    return %arg0, %arg1 : i32, i32
  }
}

module attributes {stable_mosaic.version = 11 : i64} {
  func.func @_gemm_bias_kernel(%arg0: i32, %arg1: i32, %arg2: i32, %arg3: memref<256x80xbf16, #tpu.memory_space<vmem>>, %arg4: memref<80x128xbf16, #tpu.memory_space<vmem>>, %arg5: memref<1x128xf32, #tpu.memory_space<vmem>>, %arg6: memref<256x128xbf16, #tpu.memory_space<vmem>>, %arg7: memref<256x128xf32, #tpu.memory_space<vmem>>) attributes {dimension_semantics = [#tpu.dimension_semantics<parallel>, #tpu.dimension_semantics<parallel>, #tpu.dimension_semantics<arbitrary>], iteration_bounds = array<i64: 2, 1, 1>, scalar_prefetch = 0 : i64, scratch_operands = 1 : i64, tpu.core_type = #tpu.core_type<tc>, window_params = [{transform_indices = @transform_0, window_bounds = array<i64: 256, 80>}, {transform_indices = @transform_1, window_bounds = array<i64: 80, 128>}, {transform_indices = @transform_2, window_bounds = array<i64: 1, 128>}, {transform_indices = @transform_3, window_bounds = array<i64: 256, 128>}]} {
    %c0_i32 = arith.constant 0 : i32
    %0 = arith.cmpi eq, %arg2, %c0_i32 : i32
    %1 = arith.extui %0 : i1 to i32
    %c0_i32_0 = arith.constant 0 : i32
    %2 = arith.cmpi ne, %1, %c0_i32_0 : i32
    scf.if %2 {
      %cst_10 = arith.constant 0.000000e+00 : f32
      %12 = vector.broadcast %cst_10 : f32 to vector<256x128xf32>
      %c0_11 = arith.constant 0 : index
      %c0_12 = arith.constant 0 : index
      %13 = vector.load %arg7[%c0_11, %c0_12] : memref<256x128xf32, #tpu.memory_space<vmem>>, vector<256x128xf32>
      tpu.vector_store %arg7[%c0_11, %c0_12], %12 {strides = array<i32>} : memref<256x128xf32, #tpu.memory_space<vmem>>, vector<256x128xf32>,
    } else {
    }
    %c0 = arith.constant 0 : index
    %c0_1 = arith.constant 0 : index
    %3 = vector.load %arg7[%c0, %c0_1] : memref<256x128xf32, #tpu.memory_space<vmem>>, vector<256x128xf32>
    %c0_2 = arith.constant 0 : index
    %c0_3 = arith.constant 0 : index
    %4 = vector.load %arg3[%c0_2, %c0_3] : memref<256x80xbf16, #tpu.memory_space<vmem>>, vector<256x80xbf16>
    %c0_4 = arith.constant 0 : index
    %c0_5 = arith.constant 0 : index
    %5 = vector.load %arg4[%c0_4, %c0_5] : memref<80x128xbf16, #tpu.memory_space<vmem>>, vector<80x128xbf16>
    %cst = arith.constant dense<0.000000e+00> : vector<256x128xf32>
    %6 = tpu.matmul %4, %5, %cst {dimension_numbers = #tpu.dot_dimension_numbers<[1], [0], [0], [1], [0, 0, 1, 1], [], []>} : vector<256x80xbf16>, vector<80x128xbf16>, vector<256x128xf32> -> vector<256x128xf32>
    %7 = arith.addf %3, %6 : vector<256x128xf32>
    %c0_6 = arith.constant 0 : index
    %c0_7 = arith.constant 0 : index
    %8 = vector.load %arg7[%c0_6, %c0_7] : memref<256x128xf32, #tpu.memory_space<vmem>>, vector<256x128xf32>
    tpu.vector_store %arg7[%c0_6, %c0_7], %7 {strides = array<i32>} : memref<256x128xf32, #tpu.memory_space<vmem>>, vector<256x128xf32>,
    %c0_i32_8 = arith.constant 0 : i32
    %9 = arith.cmpi eq, %arg2, %c0_i32_8 : i32
    %10 = arith.extui %9 : i1 to i32
    %c0_i32_9 = arith.constant 0 : i32
    %11 = arith.cmpi ne, %10, %c0_i32_9 : i32
    scf.if %11 {
      %c0_10 = arith.constant 0 : index
      %c0_11 = arith.constant 0 : index
      %12 = vector.load %arg7[%c0_10, %c0_11] : memref<256x128xf32, #tpu.memory_space<vmem>>, vector<256x128xf32>
      %c0_12 = arith.constant 0 : index
      %c0_13 = arith.constant 0 : index
      %13 = vector.load %arg5[%c0_12, %c0_13] : memref<1x128xf32, #tpu.memory_space<vmem>>, vector<1x128xf32>
      %14 = vector.broadcast %13 : vector<1x128xf32> to vector<256x128xf32>
      %15 = arith.addf %12, %14 : vector<256x128xf32>
      %cst_14 = arith.constant 0.000000e+00 : f32
      %16 = vector.broadcast %cst_14 : f32 to vector<256x128xf32>
      %17 = arith.maximumf %15, %16 : vector<256x128xf32>
      %18 = arith.truncf %17 : vector<256x128xf32> to vector<256x128xbf16>
      %c0_15 = arith.constant 0 : index
      %c0_16 = arith.constant 0 : index
      %19 = vector.load %arg6[%c0_15, %c0_16] : memref<256x128xbf16, #tpu.memory_space<vmem>>, vector<256x128xbf16>
      tpu.vector_store %arg6[%c0_15, %c0_16], %18 {strides = array<i32>} : memref<256x128xbf16, #tpu.memory_space<vmem>>, vector<256x128xbf16>,
    } else {
    }
    return
  }
  func.func @transform_0(%arg0: i32, %arg1: i32, %arg2: i32) -> (i32, i32) {
    %c0_i32 = arith.constant 0 : i32
    return %arg0, %arg2 : i32, i32
  }
  func.func @transform_1(%arg0: i32, %arg1: i32, %arg2: i32) -> (i32, i32) {
    %c0_i32 = arith.constant 0 : i32
    return %arg2, %arg1 : i32, i32
  }
  func.func @transform_2(%arg0: i32, %arg1: i32, %arg2: i32) -> (i32, i32) {
    %c0_i32 = arith.constant 0 : i32
    %c0_i32_0 = arith.constant 0 : i32
    return %c0_i32, %arg1 : i32, i32
  }
  func.func @transform_3(%arg0: i32, %arg1: i32, %arg2: i32) -> (i32, i32) {
    %c0_i32 = arith.constant 0 : i32
    return %arg0, %arg1 : i32, i32
  }
}

module attributes {stable_mosaic.version = 11 : i64} {
  func.func @_gemm_bias_kernel(%arg0: i32, %arg1: i32, %arg2: i32, %arg3: memref<128x16xbf16, #tpu.memory_space<vmem>>, %arg4: memref<16x128xbf16, #tpu.memory_space<vmem>>, %arg5: memref<1x128xf32, #tpu.memory_space<vmem>>, %arg6: memref<128x128xbf16, #tpu.memory_space<vmem>>, %arg7: memref<128x128xf32, #tpu.memory_space<vmem>>) attributes {dimension_semantics = [#tpu.dimension_semantics<parallel>, #tpu.dimension_semantics<parallel>, #tpu.dimension_semantics<arbitrary>], iteration_bounds = array<i64: 1, 1, 1>, scalar_prefetch = 0 : i64, scratch_operands = 1 : i64, tpu.core_type = #tpu.core_type<tc>, window_params = [{transform_indices = @transform_0, window_bounds = array<i64: 128, 16>}, {transform_indices = @transform_1, window_bounds = array<i64: 16, 128>}, {transform_indices = @transform_2, window_bounds = array<i64: 1, 128>}, {transform_indices = @transform_3, window_bounds = array<i64: 128, 128>}]} {
    %c0_i32 = arith.constant 0 : i32
    %0 = arith.cmpi eq, %arg2, %c0_i32 : i32
    %1 = arith.extui %0 : i1 to i32
    %c0_i32_0 = arith.constant 0 : i32
    %2 = arith.cmpi ne, %1, %c0_i32_0 : i32
    scf.if %2 {
      %cst_10 = arith.constant 0.000000e+00 : f32
      %12 = vector.broadcast %cst_10 : f32 to vector<128x128xf32>
      %c0_11 = arith.constant 0 : index
      %c0_12 = arith.constant 0 : index
      %13 = vector.load %arg7[%c0_11, %c0_12] : memref<128x128xf32, #tpu.memory_space<vmem>>, vector<128x128xf32>
      tpu.vector_store %arg7[%c0_11, %c0_12], %12 {strides = array<i32>} : memref<128x128xf32, #tpu.memory_space<vmem>>, vector<128x128xf32>,
    } else {
    }
    %c0 = arith.constant 0 : index
    %c0_1 = arith.constant 0 : index
    %3 = vector.load %arg7[%c0, %c0_1] : memref<128x128xf32, #tpu.memory_space<vmem>>, vector<128x128xf32>
    %c0_2 = arith.constant 0 : index
    %c0_3 = arith.constant 0 : index
    %4 = vector.load %arg3[%c0_2, %c0_3] : memref<128x16xbf16, #tpu.memory_space<vmem>>, vector<128x16xbf16>
    %c0_4 = arith.constant 0 : index
    %c0_5 = arith.constant 0 : index
    %5 = vector.load %arg4[%c0_4, %c0_5] : memref<16x128xbf16, #tpu.memory_space<vmem>>, vector<16x128xbf16>
    %cst = arith.constant dense<0.000000e+00> : vector<128x128xf32>
    %6 = tpu.matmul %4, %5, %cst {dimension_numbers = #tpu.dot_dimension_numbers<[1], [0], [0], [1], [0, 0, 1, 1], [], []>} : vector<128x16xbf16>, vector<16x128xbf16>, vector<128x128xf32> -> vector<128x128xf32>
    %7 = arith.addf %3, %6 : vector<128x128xf32>
    %c0_6 = arith.constant 0 : index
    %c0_7 = arith.constant 0 : index
    %8 = vector.load %arg7[%c0_6, %c0_7] : memref<128x128xf32, #tpu.memory_space<vmem>>, vector<128x128xf32>
    tpu.vector_store %arg7[%c0_6, %c0_7], %7 {strides = array<i32>} : memref<128x128xf32, #tpu.memory_space<vmem>>, vector<128x128xf32>,
    %c0_i32_8 = arith.constant 0 : i32
    %9 = arith.cmpi eq, %arg2, %c0_i32_8 : i32
    %10 = arith.extui %9 : i1 to i32
    %c0_i32_9 = arith.constant 0 : i32
    %11 = arith.cmpi ne, %10, %c0_i32_9 : i32
    scf.if %11 {
      %c0_10 = arith.constant 0 : index
      %c0_11 = arith.constant 0 : index
      %12 = vector.load %arg7[%c0_10, %c0_11] : memref<128x128xf32, #tpu.memory_space<vmem>>, vector<128x128xf32>
      %c0_12 = arith.constant 0 : index
      %c0_13 = arith.constant 0 : index
      %13 = vector.load %arg5[%c0_12, %c0_13] : memref<1x128xf32, #tpu.memory_space<vmem>>, vector<1x128xf32>
      %14 = vector.broadcast %13 : vector<1x128xf32> to vector<128x128xf32>
      %15 = arith.addf %12, %14 : vector<128x128xf32>
      %16 = arith.truncf %15 : vector<128x128xf32> to vector<128x128xbf16>
      %c0_14 = arith.constant 0 : index
      %c0_15 = arith.constant 0 : index
      %17 = vector.load %arg6[%c0_14, %c0_15] : memref<128x128xbf16, #tpu.memory_space<vmem>>, vector<128x128xbf16>
      tpu.vector_store %arg6[%c0_14, %c0_15], %16 {strides = array<i32>} : memref<128x128xbf16, #tpu.memory_space<vmem>>, vector<128x128xbf16>,
    } else {
    }
    return
  }
  func.func @transform_0(%arg0: i32, %arg1: i32, %arg2: i32) -> (i32, i32) {
    %c0_i32 = arith.constant 0 : i32
    return %arg0, %arg2 : i32, i32
  }
  func.func @transform_1(%arg0: i32, %arg1: i32, %arg2: i32) -> (i32, i32) {
    %c0_i32 = arith.constant 0 : i32
    return %arg2, %arg1 : i32, i32
  }
  func.func @transform_2(%arg0: i32, %arg1: i32, %arg2: i32) -> (i32, i32) {
    %c0_i32 = arith.constant 0 : i32
    %c0_i32_0 = arith.constant 0 : i32
    return %c0_i32, %arg1 : i32, i32
  }
  func.func @transform_3(%arg0: i32, %arg1: i32, %arg2: i32) -> (i32, i32) {
    %c0_i32 = arith.constant 0 : i32
    return %arg0, %arg1 : i32, i32
  }
}

module attributes {stable_mosaic.version = 11 : i64} {
  func.func @_gemm_bias_kernel(%arg0: i32, %arg1: i32, %arg2: i32, %arg3: memref<128x16xbf16, #tpu.memory_space<vmem>>, %arg4: memref<16x128xbf16, #tpu.memory_space<vmem>>, %arg5: memref<1x128xf32, #tpu.memory_space<vmem>>, %arg6: memref<128x128xbf16, #tpu.memory_space<vmem>>, %arg7: memref<128x128xf32, #tpu.memory_space<vmem>>) attributes {dimension_semantics = [#tpu.dimension_semantics<parallel>, #tpu.dimension_semantics<parallel>, #tpu.dimension_semantics<arbitrary>], iteration_bounds = array<i64: 1, 1, 1>, scalar_prefetch = 0 : i64, scratch_operands = 1 : i64, tpu.core_type = #tpu.core_type<tc>, window_params = [{transform_indices = @transform_0, window_bounds = array<i64: 128, 16>}, {transform_indices = @transform_1, window_bounds = array<i64: 16, 128>}, {transform_indices = @transform_2, window_bounds = array<i64: 1, 128>}, {transform_indices = @transform_3, window_bounds = array<i64: 128, 128>}]} {
    %c0_i32 = arith.constant 0 : i32
    %0 = arith.cmpi eq, %arg2, %c0_i32 : i32
    %1 = arith.extui %0 : i1 to i32
    %c0_i32_0 = arith.constant 0 : i32
    %2 = arith.cmpi ne, %1, %c0_i32_0 : i32
    scf.if %2 {
      %cst_10 = arith.constant 0.000000e+00 : f32
      %12 = vector.broadcast %cst_10 : f32 to vector<128x128xf32>
      %c0_11 = arith.constant 0 : index
      %c0_12 = arith.constant 0 : index
      %13 = vector.load %arg7[%c0_11, %c0_12] : memref<128x128xf32, #tpu.memory_space<vmem>>, vector<128x128xf32>
      tpu.vector_store %arg7[%c0_11, %c0_12], %12 {strides = array<i32>} : memref<128x128xf32, #tpu.memory_space<vmem>>, vector<128x128xf32>,
    } else {
    }
    %c0 = arith.constant 0 : index
    %c0_1 = arith.constant 0 : index
    %3 = vector.load %arg7[%c0, %c0_1] : memref<128x128xf32, #tpu.memory_space<vmem>>, vector<128x128xf32>
    %c0_2 = arith.constant 0 : index
    %c0_3 = arith.constant 0 : index
    %4 = vector.load %arg3[%c0_2, %c0_3] : memref<128x16xbf16, #tpu.memory_space<vmem>>, vector<128x16xbf16>
    %c0_4 = arith.constant 0 : index
    %c0_5 = arith.constant 0 : index
    %5 = vector.load %arg4[%c0_4, %c0_5] : memref<16x128xbf16, #tpu.memory_space<vmem>>, vector<16x128xbf16>
    %cst = arith.constant dense<0.000000e+00> : vector<128x128xf32>
    %6 = tpu.matmul %4, %5, %cst {dimension_numbers = #tpu.dot_dimension_numbers<[1], [0], [0], [1], [0, 0, 1, 1], [], []>} : vector<128x16xbf16>, vector<16x128xbf16>, vector<128x128xf32> -> vector<128x128xf32>
    %7 = arith.addf %3, %6 : vector<128x128xf32>
    %c0_6 = arith.constant 0 : index
    %c0_7 = arith.constant 0 : index
    %8 = vector.load %arg7[%c0_6, %c0_7] : memref<128x128xf32, #tpu.memory_space<vmem>>, vector<128x128xf32>
    tpu.vector_store %arg7[%c0_6, %c0_7], %7 {strides = array<i32>} : memref<128x128xf32, #tpu.memory_space<vmem>>, vector<128x128xf32>,
    %c0_i32_8 = arith.constant 0 : i32
    %9 = arith.cmpi eq, %arg2, %c0_i32_8 : i32
    %10 = arith.extui %9 : i1 to i32
    %c0_i32_9 = arith.constant 0 : i32
    %11 = arith.cmpi ne, %10, %c0_i32_9 : i32
    scf.if %11 {
      %c0_10 = arith.constant 0 : index
      %c0_11 = arith.constant 0 : index
      %12 = vector.load %arg7[%c0_10, %c0_11] : memref<128x128xf32, #tpu.memory_space<vmem>>, vector<128x128xf32>
      %c0_12 = arith.constant 0 : index
      %c0_13 = arith.constant 0 : index
      %13 = vector.load %arg5[%c0_12, %c0_13] : memref<1x128xf32, #tpu.memory_space<vmem>>, vector<1x128xf32>
      %14 = vector.broadcast %13 : vector<1x128xf32> to vector<128x128xf32>
      %15 = arith.addf %12, %14 : vector<128x128xf32>
      %cst_14 = arith.constant 0.000000e+00 : f32
      %16 = vector.broadcast %cst_14 : f32 to vector<128x128xf32>
      %17 = arith.maximumf %15, %16 : vector<128x128xf32>
      %18 = arith.truncf %17 : vector<128x128xf32> to vector<128x128xbf16>
      %c0_15 = arith.constant 0 : index
      %c0_16 = arith.constant 0 : index
      %19 = vector.load %arg6[%c0_15, %c0_16] : memref<128x128xbf16, #tpu.memory_space<vmem>>, vector<128x128xbf16>
      tpu.vector_store %arg6[%c0_15, %c0_16], %18 {strides = array<i32>} : memref<128x128xbf16, #tpu.memory_space<vmem>>, vector<128x128xbf16>,
    } else {
    }
    return
  }
  func.func @transform_0(%arg0: i32, %arg1: i32, %arg2: i32) -> (i32, i32) {
    %c0_i32 = arith.constant 0 : i32
    return %arg0, %arg2 : i32, i32
  }
  func.func @transform_1(%arg0: i32, %arg1: i32, %arg2: i32) -> (i32, i32) {
    %c0_i32 = arith.constant 0 : i32
    return %arg2, %arg1 : i32, i32
  }
  func.func @transform_2(%arg0: i32, %arg1: i32, %arg2: i32) -> (i32, i32) {
    %c0_i32 = arith.constant 0 : i32
    %c0_i32_0 = arith.constant 0 : i32
    return %c0_i32, %arg1 : i32, i32
  }
  func.func @transform_3(%arg0: i32, %arg1: i32, %arg2: i32) -> (i32, i32) {
    %c0_i32 = arith.constant 0 : i32
    return %arg0, %arg1 : i32, i32
  }
}

module attributes {stable_mosaic.version = 11 : i64} {
  func.func @_gemm_bias_kernel(%arg0: i32, %arg1: i32, %arg2: i32, %arg3: memref<128x80xbf16, #tpu.memory_space<vmem>>, %arg4: memref<80x128xbf16, #tpu.memory_space<vmem>>, %arg5: memref<1x128xf32, #tpu.memory_space<vmem>>, %arg6: memref<128x128xbf16, #tpu.memory_space<vmem>>, %arg7: memref<128x128xf32, #tpu.memory_space<vmem>>) attributes {dimension_semantics = [#tpu.dimension_semantics<parallel>, #tpu.dimension_semantics<parallel>, #tpu.dimension_semantics<arbitrary>], iteration_bounds = array<i64: 1, 1, 1>, scalar_prefetch = 0 : i64, scratch_operands = 1 : i64, tpu.core_type = #tpu.core_type<tc>, window_params = [{transform_indices = @transform_0, window_bounds = array<i64: 128, 80>}, {transform_indices = @transform_1, window_bounds = array<i64: 80, 128>}, {transform_indices = @transform_2, window_bounds = array<i64: 1, 128>}, {transform_indices = @transform_3, window_bounds = array<i64: 128, 128>}]} {
    %c0_i32 = arith.constant 0 : i32
    %0 = arith.cmpi eq, %arg2, %c0_i32 : i32
    %1 = arith.extui %0 : i1 to i32
    %c0_i32_0 = arith.constant 0 : i32
    %2 = arith.cmpi ne, %1, %c0_i32_0 : i32
    scf.if %2 {
      %cst_10 = arith.constant 0.000000e+00 : f32
      %12 = vector.broadcast %cst_10 : f32 to vector<128x128xf32>
      %c0_11 = arith.constant 0 : index
      %c0_12 = arith.constant 0 : index
      %13 = vector.load %arg7[%c0_11, %c0_12] : memref<128x128xf32, #tpu.memory_space<vmem>>, vector<128x128xf32>
      tpu.vector_store %arg7[%c0_11, %c0_12], %12 {strides = array<i32>} : memref<128x128xf32, #tpu.memory_space<vmem>>, vector<128x128xf32>,
    } else {
    }
    %c0 = arith.constant 0 : index
    %c0_1 = arith.constant 0 : index
    %3 = vector.load %arg7[%c0, %c0_1] : memref<128x128xf32, #tpu.memory_space<vmem>>, vector<128x128xf32>
    %c0_2 = arith.constant 0 : index
    %c0_3 = arith.constant 0 : index
    %4 = vector.load %arg3[%c0_2, %c0_3] : memref<128x80xbf16, #tpu.memory_space<vmem>>, vector<128x80xbf16>
    %c0_4 = arith.constant 0 : index
    %c0_5 = arith.constant 0 : index
    %5 = vector.load %arg4[%c0_4, %c0_5] : memref<80x128xbf16, #tpu.memory_space<vmem>>, vector<80x128xbf16>
    %cst = arith.constant dense<0.000000e+00> : vector<128x128xf32>
    %6 = tpu.matmul %4, %5, %cst {dimension_numbers = #tpu.dot_dimension_numbers<[1], [0], [0], [1], [0, 0, 1, 1], [], []>} : vector<128x80xbf16>, vector<80x128xbf16>, vector<128x128xf32> -> vector<128x128xf32>
    %7 = arith.addf %3, %6 : vector<128x128xf32>
    %c0_6 = arith.constant 0 : index
    %c0_7 = arith.constant 0 : index
    %8 = vector.load %arg7[%c0_6, %c0_7] : memref<128x128xf32, #tpu.memory_space<vmem>>, vector<128x128xf32>
    tpu.vector_store %arg7[%c0_6, %c0_7], %7 {strides = array<i32>} : memref<128x128xf32, #tpu.memory_space<vmem>>, vector<128x128xf32>,
    %c0_i32_8 = arith.constant 0 : i32
    %9 = arith.cmpi eq, %arg2, %c0_i32_8 : i32
    %10 = arith.extui %9 : i1 to i32
    %c0_i32_9 = arith.constant 0 : i32
    %11 = arith.cmpi ne, %10, %c0_i32_9 : i32
    scf.if %11 {
      %c0_10 = arith.constant 0 : index
      %c0_11 = arith.constant 0 : index
      %12 = vector.load %arg7[%c0_10, %c0_11] : memref<128x128xf32, #tpu.memory_space<vmem>>, vector<128x128xf32>
      %c0_12 = arith.constant 0 : index
      %c0_13 = arith.constant 0 : index
      %13 = vector.load %arg5[%c0_12, %c0_13] : memref<1x128xf32, #tpu.memory_space<vmem>>, vector<1x128xf32>
      %14 = vector.broadcast %13 : vector<1x128xf32> to vector<128x128xf32>
      %15 = arith.addf %12, %14 : vector<128x128xf32>
      %cst_14 = arith.constant 0.000000e+00 : f32
      %16 = vector.broadcast %cst_14 : f32 to vector<128x128xf32>
      %17 = arith.maximumf %15, %16 : vector<128x128xf32>
      %18 = arith.truncf %17 : vector<128x128xf32> to vector<128x128xbf16>
      %c0_15 = arith.constant 0 : index
      %c0_16 = arith.constant 0 : index
      %19 = vector.load %arg6[%c0_15, %c0_16] : memref<128x128xbf16, #tpu.memory_space<vmem>>, vector<128x128xbf16>
      tpu.vector_store %arg6[%c0_15, %c0_16], %18 {strides = array<i32>} : memref<128x128xbf16, #tpu.memory_space<vmem>>, vector<128x128xbf16>,
    } else {
    }
    return
  }
  func.func @transform_0(%arg0: i32, %arg1: i32, %arg2: i32) -> (i32, i32) {
    %c0_i32 = arith.constant 0 : i32
    return %arg0, %arg2 : i32, i32
  }
  func.func @transform_1(%arg0: i32, %arg1: i32, %arg2: i32) -> (i32, i32) {
    %c0_i32 = arith.constant 0 : i32
    return %arg2, %arg1 : i32, i32
  }
  func.func @transform_2(%arg0: i32, %arg1: i32, %arg2: i32) -> (i32, i32) {
    %c0_i32 = arith.constant 0 : i32
    %c0_i32_0 = arith.constant 0 : i32
    return %c0_i32, %arg1 : i32, i32
  }
  func.func @transform_3(%arg0: i32, %arg1: i32, %arg2: i32) -> (i32, i32) {
    %c0_i32 = arith.constant 0 : i32
    return %arg0, %arg1 : i32, i32
  }
}

module attributes {stable_mosaic.version = 11 : i64} {
  func.func @_gemm_bias_res_kernel(%arg0: i32, %arg1: i32, %arg2: i32, %arg3: memref<128x16xbf16, #tpu.memory_space<vmem>>, %arg4: memref<16x128xbf16, #tpu.memory_space<vmem>>, %arg5: memref<1x128xf32, #tpu.memory_space<vmem>>, %arg6: memref<128x128xbf16, #tpu.memory_space<vmem>>, %arg7: memref<128x128xbf16, #tpu.memory_space<vmem>>, %arg8: memref<128x128xf32, #tpu.memory_space<vmem>>) attributes {dimension_semantics = [#tpu.dimension_semantics<parallel>, #tpu.dimension_semantics<parallel>, #tpu.dimension_semantics<arbitrary>], iteration_bounds = array<i64: 1, 1, 1>, scalar_prefetch = 0 : i64, scratch_operands = 1 : i64, tpu.core_type = #tpu.core_type<tc>, window_params = [{transform_indices = @transform_0, window_bounds = array<i64: 128, 16>}, {transform_indices = @transform_1, window_bounds = array<i64: 16, 128>}, {transform_indices = @transform_2, window_bounds = array<i64: 1, 128>}, {transform_indices = @transform_3, window_bounds = array<i64: 128, 128>}, {transform_indices = @transform_4, window_bounds = array<i64: 128, 128>}]} {
    %c0_i32 = arith.constant 0 : i32
    %0 = arith.cmpi eq, %arg2, %c0_i32 : i32
    %1 = arith.extui %0 : i1 to i32
    %c0_i32_0 = arith.constant 0 : i32
    %2 = arith.cmpi ne, %1, %c0_i32_0 : i32
    scf.if %2 {
      %cst_10 = arith.constant 0.000000e+00 : f32
      %12 = vector.broadcast %cst_10 : f32 to vector<128x128xf32>
      %c0_11 = arith.constant 0 : index
      %c0_12 = arith.constant 0 : index
      %13 = vector.load %arg8[%c0_11, %c0_12] : memref<128x128xf32, #tpu.memory_space<vmem>>, vector<128x128xf32>
      tpu.vector_store %arg8[%c0_11, %c0_12], %12 {strides = array<i32>} : memref<128x128xf32, #tpu.memory_space<vmem>>, vector<128x128xf32>,
    } else {
    }
    %c0 = arith.constant 0 : index
    %c0_1 = arith.constant 0 : index
    %3 = vector.load %arg8[%c0, %c0_1] : memref<128x128xf32, #tpu.memory_space<vmem>>, vector<128x128xf32>
    %c0_2 = arith.constant 0 : index
    %c0_3 = arith.constant 0 : index
    %4 = vector.load %arg3[%c0_2, %c0_3] : memref<128x16xbf16, #tpu.memory_space<vmem>>, vector<128x16xbf16>
    %c0_4 = arith.constant 0 : index
    %c0_5 = arith.constant 0 : index
    %5 = vector.load %arg4[%c0_4, %c0_5] : memref<16x128xbf16, #tpu.memory_space<vmem>>, vector<16x128xbf16>
    %cst = arith.constant dense<0.000000e+00> : vector<128x128xf32>
    %6 = tpu.matmul %4, %5, %cst {dimension_numbers = #tpu.dot_dimension_numbers<[1], [0], [0], [1], [0, 0, 1, 1], [], []>} : vector<128x16xbf16>, vector<16x128xbf16>, vector<128x128xf32> -> vector<128x128xf32>
    %7 = arith.addf %3, %6 : vector<128x128xf32>
    %c0_6 = arith.constant 0 : index
    %c0_7 = arith.constant 0 : index
    %8 = vector.load %arg8[%c0_6, %c0_7] : memref<128x128xf32, #tpu.memory_space<vmem>>, vector<128x128xf32>
    tpu.vector_store %arg8[%c0_6, %c0_7], %7 {strides = array<i32>} : memref<128x128xf32, #tpu.memory_space<vmem>>, vector<128x128xf32>,
    %c0_i32_8 = arith.constant 0 : i32
    %9 = arith.cmpi eq, %arg2, %c0_i32_8 : i32
    %10 = arith.extui %9 : i1 to i32
    %c0_i32_9 = arith.constant 0 : i32
    %11 = arith.cmpi ne, %10, %c0_i32_9 : i32
    scf.if %11 {
      %c0_10 = arith.constant 0 : index
      %c0_11 = arith.constant 0 : index
      %12 = vector.load %arg8[%c0_10, %c0_11] : memref<128x128xf32, #tpu.memory_space<vmem>>, vector<128x128xf32>
      %c0_12 = arith.constant 0 : index
      %c0_13 = arith.constant 0 : index
      %13 = vector.load %arg5[%c0_12, %c0_13] : memref<1x128xf32, #tpu.memory_space<vmem>>, vector<1x128xf32>
      %14 = vector.broadcast %13 : vector<1x128xf32> to vector<128x128xf32>
      %15 = arith.addf %12, %14 : vector<128x128xf32>
      %c0_14 = arith.constant 0 : index
      %c0_15 = arith.constant 0 : index
      %16 = vector.load %arg6[%c0_14, %c0_15] : memref<128x128xbf16, #tpu.memory_space<vmem>>, vector<128x128xbf16>
      %17 = arith.extf %16 : vector<128x128xbf16> to vector<128x128xf32>
      %18 = arith.addf %15, %17 : vector<128x128xf32>
      %cst_16 = arith.constant 0.000000e+00 : f32
      %19 = vector.broadcast %cst_16 : f32 to vector<128x128xf32>
      %20 = arith.maximumf %18, %19 : vector<128x128xf32>
      %21 = arith.truncf %20 : vector<128x128xf32> to vector<128x128xbf16>
      %c0_17 = arith.constant 0 : index
      %c0_18 = arith.constant 0 : index
      %22 = vector.load %arg7[%c0_17, %c0_18] : memref<128x128xbf16, #tpu.memory_space<vmem>>, vector<128x128xbf16>
      tpu.vector_store %arg7[%c0_17, %c0_18], %21 {strides = array<i32>} : memref<128x128xbf16, #tpu.memory_space<vmem>>, vector<128x128xbf16>,
    } else {
    }
    return
  }
  func.func @transform_0(%arg0: i32, %arg1: i32, %arg2: i32) -> (i32, i32) {
    %c0_i32 = arith.constant 0 : i32
    return %arg0, %arg2 : i32, i32
  }
  func.func @transform_1(%arg0: i32, %arg1: i32, %arg2: i32) -> (i32, i32) {
    %c0_i32 = arith.constant 0 : i32
    return %arg2, %arg1 : i32, i32
  }
  func.func @transform_2(%arg0: i32, %arg1: i32, %arg2: i32) -> (i32, i32) {
    %c0_i32 = arith.constant 0 : i32
    %c0_i32_0 = arith.constant 0 : i32
    return %c0_i32, %arg1 : i32, i32
  }
  func.func @transform_3(%arg0: i32, %arg1: i32, %arg2: i32) -> (i32, i32) {
    %c0_i32 = arith.constant 0 : i32
    return %arg0, %arg1 : i32, i32
  }
  func.func @transform_4(%arg0: i32, %arg1: i32, %arg2: i32) -> (i32, i32) {
    %c0_i32 = arith.constant 0 : i32
    return %arg0, %arg1 : i32, i32
  }
}

module attributes {stable_mosaic.version = 11 : i64} {
  func.func @_gemm_bias_kernel(%arg0: i32, %arg1: i32, %arg2: i32, %arg3: memref<32x32xbf16, #tpu.memory_space<vmem>>, %arg4: memref<32x128xbf16, #tpu.memory_space<vmem>>, %arg5: memref<1x128xf32, #tpu.memory_space<vmem>>, %arg6: memref<32x128xbf16, #tpu.memory_space<vmem>>, %arg7: memref<32x128xf32, #tpu.memory_space<vmem>>) attributes {dimension_semantics = [#tpu.dimension_semantics<parallel>, #tpu.dimension_semantics<parallel>, #tpu.dimension_semantics<arbitrary>], iteration_bounds = array<i64: 1, 1, 1>, scalar_prefetch = 0 : i64, scratch_operands = 1 : i64, tpu.core_type = #tpu.core_type<tc>, window_params = [{transform_indices = @transform_0, window_bounds = array<i64: 32, 32>}, {transform_indices = @transform_1, window_bounds = array<i64: 32, 128>}, {transform_indices = @transform_2, window_bounds = array<i64: 1, 128>}, {transform_indices = @transform_3, window_bounds = array<i64: 32, 128>}]} {
    %c0_i32 = arith.constant 0 : i32
    %0 = arith.cmpi eq, %arg2, %c0_i32 : i32
    %1 = arith.extui %0 : i1 to i32
    %c0_i32_0 = arith.constant 0 : i32
    %2 = arith.cmpi ne, %1, %c0_i32_0 : i32
    scf.if %2 {
      %cst_10 = arith.constant 0.000000e+00 : f32
      %12 = vector.broadcast %cst_10 : f32 to vector<32x128xf32>
      %c0_11 = arith.constant 0 : index
      %c0_12 = arith.constant 0 : index
      %13 = vector.load %arg7[%c0_11, %c0_12] : memref<32x128xf32, #tpu.memory_space<vmem>>, vector<32x128xf32>
      tpu.vector_store %arg7[%c0_11, %c0_12], %12 {strides = array<i32>} : memref<32x128xf32, #tpu.memory_space<vmem>>, vector<32x128xf32>,
    } else {
    }
    %c0 = arith.constant 0 : index
    %c0_1 = arith.constant 0 : index
    %3 = vector.load %arg7[%c0, %c0_1] : memref<32x128xf32, #tpu.memory_space<vmem>>, vector<32x128xf32>
    %c0_2 = arith.constant 0 : index
    %c0_3 = arith.constant 0 : index
    %4 = vector.load %arg3[%c0_2, %c0_3] : memref<32x32xbf16, #tpu.memory_space<vmem>>, vector<32x32xbf16>
    %c0_4 = arith.constant 0 : index
    %c0_5 = arith.constant 0 : index
    %5 = vector.load %arg4[%c0_4, %c0_5] : memref<32x128xbf16, #tpu.memory_space<vmem>>, vector<32x128xbf16>
    %cst = arith.constant dense<0.000000e+00> : vector<32x128xf32>
    %6 = tpu.matmul %4, %5, %cst {dimension_numbers = #tpu.dot_dimension_numbers<[1], [0], [0], [1], [0, 0, 1, 1], [], []>} : vector<32x32xbf16>, vector<32x128xbf16>, vector<32x128xf32> -> vector<32x128xf32>
    %7 = arith.addf %3, %6 : vector<32x128xf32>
    %c0_6 = arith.constant 0 : index
    %c0_7 = arith.constant 0 : index
    %8 = vector.load %arg7[%c0_6, %c0_7] : memref<32x128xf32, #tpu.memory_space<vmem>>, vector<32x128xf32>
    tpu.vector_store %arg7[%c0_6, %c0_7], %7 {strides = array<i32>} : memref<32x128xf32, #tpu.memory_space<vmem>>, vector<32x128xf32>,
    %c0_i32_8 = arith.constant 0 : i32
    %9 = arith.cmpi eq, %arg2, %c0_i32_8 : i32
    %10 = arith.extui %9 : i1 to i32
    %c0_i32_9 = arith.constant 0 : i32
    %11 = arith.cmpi ne, %10, %c0_i32_9 : i32
    scf.if %11 {
      %c0_10 = arith.constant 0 : index
      %c0_11 = arith.constant 0 : index
      %12 = vector.load %arg7[%c0_10, %c0_11] : memref<32x128xf32, #tpu.memory_space<vmem>>, vector<32x128xf32>
      %c0_12 = arith.constant 0 : index
      %c0_13 = arith.constant 0 : index
      %13 = vector.load %arg5[%c0_12, %c0_13] : memref<1x128xf32, #tpu.memory_space<vmem>>, vector<1x128xf32>
      %14 = vector.broadcast %13 : vector<1x128xf32> to vector<32x128xf32>
      %15 = arith.addf %12, %14 : vector<32x128xf32>
      %16 = arith.truncf %15 : vector<32x128xf32> to vector<32x128xbf16>
      %c0_14 = arith.constant 0 : index
      %c0_15 = arith.constant 0 : index
      %17 = vector.load %arg6[%c0_14, %c0_15] : memref<32x128xbf16, #tpu.memory_space<vmem>>, vector<32x128xbf16>
      tpu.vector_store %arg6[%c0_14, %c0_15], %16 {strides = array<i32>} : memref<32x128xbf16, #tpu.memory_space<vmem>>, vector<32x128xbf16>,
    } else {
    }
    return
  }
  func.func @transform_0(%arg0: i32, %arg1: i32, %arg2: i32) -> (i32, i32) {
    %c0_i32 = arith.constant 0 : i32
    return %arg0, %arg2 : i32, i32
  }
  func.func @transform_1(%arg0: i32, %arg1: i32, %arg2: i32) -> (i32, i32) {
    %c0_i32 = arith.constant 0 : i32
    return %arg2, %arg1 : i32, i32
  }
  func.func @transform_2(%arg0: i32, %arg1: i32, %arg2: i32) -> (i32, i32) {
    %c0_i32 = arith.constant 0 : i32
    %c0_i32_0 = arith.constant 0 : i32
    return %c0_i32, %arg1 : i32, i32
  }
  func.func @transform_3(%arg0: i32, %arg1: i32, %arg2: i32) -> (i32, i32) {
    %c0_i32 = arith.constant 0 : i32
    return %arg0, %arg1 : i32, i32
  }
}

module attributes {stable_mosaic.version = 11 : i64} {
  func.func @_gemm_bias_kernel(%arg0: i32, %arg1: i32, %arg2: i32, %arg3: memref<128x32xbf16, #tpu.memory_space<vmem>>, %arg4: memref<32x128xbf16, #tpu.memory_space<vmem>>, %arg5: memref<1x128xf32, #tpu.memory_space<vmem>>, %arg6: memref<128x128xbf16, #tpu.memory_space<vmem>>, %arg7: memref<128x128xf32, #tpu.memory_space<vmem>>) attributes {dimension_semantics = [#tpu.dimension_semantics<parallel>, #tpu.dimension_semantics<parallel>, #tpu.dimension_semantics<arbitrary>], iteration_bounds = array<i64: 1, 1, 1>, scalar_prefetch = 0 : i64, scratch_operands = 1 : i64, tpu.core_type = #tpu.core_type<tc>, window_params = [{transform_indices = @transform_0, window_bounds = array<i64: 128, 32>}, {transform_indices = @transform_1, window_bounds = array<i64: 32, 128>}, {transform_indices = @transform_2, window_bounds = array<i64: 1, 128>}, {transform_indices = @transform_3, window_bounds = array<i64: 128, 128>}]} {
    %c0_i32 = arith.constant 0 : i32
    %0 = arith.cmpi eq, %arg2, %c0_i32 : i32
    %1 = arith.extui %0 : i1 to i32
    %c0_i32_0 = arith.constant 0 : i32
    %2 = arith.cmpi ne, %1, %c0_i32_0 : i32
    scf.if %2 {
      %cst_10 = arith.constant 0.000000e+00 : f32
      %12 = vector.broadcast %cst_10 : f32 to vector<128x128xf32>
      %c0_11 = arith.constant 0 : index
      %c0_12 = arith.constant 0 : index
      %13 = vector.load %arg7[%c0_11, %c0_12] : memref<128x128xf32, #tpu.memory_space<vmem>>, vector<128x128xf32>
      tpu.vector_store %arg7[%c0_11, %c0_12], %12 {strides = array<i32>} : memref<128x128xf32, #tpu.memory_space<vmem>>, vector<128x128xf32>,
    } else {
    }
    %c0 = arith.constant 0 : index
    %c0_1 = arith.constant 0 : index
    %3 = vector.load %arg7[%c0, %c0_1] : memref<128x128xf32, #tpu.memory_space<vmem>>, vector<128x128xf32>
    %c0_2 = arith.constant 0 : index
    %c0_3 = arith.constant 0 : index
    %4 = vector.load %arg3[%c0_2, %c0_3] : memref<128x32xbf16, #tpu.memory_space<vmem>>, vector<128x32xbf16>
    %c0_4 = arith.constant 0 : index
    %c0_5 = arith.constant 0 : index
    %5 = vector.load %arg4[%c0_4, %c0_5] : memref<32x128xbf16, #tpu.memory_space<vmem>>, vector<32x128xbf16>
    %cst = arith.constant dense<0.000000e+00> : vector<128x128xf32>
    %6 = tpu.matmul %4, %5, %cst {dimension_numbers = #tpu.dot_dimension_numbers<[1], [0], [0], [1], [0, 0, 1, 1], [], []>} : vector<128x32xbf16>, vector<32x128xbf16>, vector<128x128xf32> -> vector<128x128xf32>
    %7 = arith.addf %3, %6 : vector<128x128xf32>
    %c0_6 = arith.constant 0 : index
    %c0_7 = arith.constant 0 : index
    %8 = vector.load %arg7[%c0_6, %c0_7] : memref<128x128xf32, #tpu.memory_space<vmem>>, vector<128x128xf32>
    tpu.vector_store %arg7[%c0_6, %c0_7], %7 {strides = array<i32>} : memref<128x128xf32, #tpu.memory_space<vmem>>, vector<128x128xf32>,
    %c0_i32_8 = arith.constant 0 : i32
    %9 = arith.cmpi eq, %arg2, %c0_i32_8 : i32
    %10 = arith.extui %9 : i1 to i32
    %c0_i32_9 = arith.constant 0 : i32
    %11 = arith.cmpi ne, %10, %c0_i32_9 : i32
    scf.if %11 {
      %c0_10 = arith.constant 0 : index
      %c0_11 = arith.constant 0 : index
      %12 = vector.load %arg7[%c0_10, %c0_11] : memref<128x128xf32, #tpu.memory_space<vmem>>, vector<128x128xf32>
      %c0_12 = arith.constant 0 : index
      %c0_13 = arith.constant 0 : index
      %13 = vector.load %arg5[%c0_12, %c0_13] : memref<1x128xf32, #tpu.memory_space<vmem>>, vector<1x128xf32>
      %14 = vector.broadcast %13 : vector<1x128xf32> to vector<128x128xf32>
      %15 = arith.addf %12, %14 : vector<128x128xf32>
      %cst_14 = arith.constant 0.000000e+00 : f32
      %16 = vector.broadcast %cst_14 : f32 to vector<128x128xf32>
      %17 = arith.maximumf %15, %16 : vector<128x128xf32>
      %18 = arith.truncf %17 : vector<128x128xf32> to vector<128x128xbf16>
      %c0_15 = arith.constant 0 : index
      %c0_16 = arith.constant 0 : index
      %19 = vector.load %arg6[%c0_15, %c0_16] : memref<128x128xbf16, #tpu.memory_space<vmem>>, vector<128x128xbf16>
      tpu.vector_store %arg6[%c0_15, %c0_16], %18 {strides = array<i32>} : memref<128x128xbf16, #tpu.memory_space<vmem>>, vector<128x128xbf16>,
    } else {
    }
    return
  }
  func.func @transform_0(%arg0: i32, %arg1: i32, %arg2: i32) -> (i32, i32) {
    %c0_i32 = arith.constant 0 : i32
    return %arg0, %arg2 : i32, i32
  }
  func.func @transform_1(%arg0: i32, %arg1: i32, %arg2: i32) -> (i32, i32) {
    %c0_i32 = arith.constant 0 : i32
    return %arg2, %arg1 : i32, i32
  }
  func.func @transform_2(%arg0: i32, %arg1: i32, %arg2: i32) -> (i32, i32) {
    %c0_i32 = arith.constant 0 : i32
    %c0_i32_0 = arith.constant 0 : i32
    return %c0_i32, %arg1 : i32, i32
  }
  func.func @transform_3(%arg0: i32, %arg1: i32, %arg2: i32) -> (i32, i32) {
    %c0_i32 = arith.constant 0 : i32
    return %arg0, %arg1 : i32, i32
  }
}

module attributes {stable_mosaic.version = 11 : i64} {
  func.func @_gemm_bias_kernel(%arg0: i32, %arg1: i32, %arg2: i32, %arg3: memref<32x144xbf16, #tpu.memory_space<vmem>>, %arg4: memref<144x128xbf16, #tpu.memory_space<vmem>>, %arg5: memref<1x128xf32, #tpu.memory_space<vmem>>, %arg6: memref<32x128xbf16, #tpu.memory_space<vmem>>, %arg7: memref<32x128xf32, #tpu.memory_space<vmem>>) attributes {dimension_semantics = [#tpu.dimension_semantics<parallel>, #tpu.dimension_semantics<parallel>, #tpu.dimension_semantics<arbitrary>], iteration_bounds = array<i64: 1, 1, 1>, scalar_prefetch = 0 : i64, scratch_operands = 1 : i64, tpu.core_type = #tpu.core_type<tc>, window_params = [{transform_indices = @transform_0, window_bounds = array<i64: 32, 144>}, {transform_indices = @transform_1, window_bounds = array<i64: 144, 128>}, {transform_indices = @transform_2, window_bounds = array<i64: 1, 128>}, {transform_indices = @transform_3, window_bounds = array<i64: 32, 128>}]} {
    %c0_i32 = arith.constant 0 : i32
    %0 = arith.cmpi eq, %arg2, %c0_i32 : i32
    %1 = arith.extui %0 : i1 to i32
    %c0_i32_0 = arith.constant 0 : i32
    %2 = arith.cmpi ne, %1, %c0_i32_0 : i32
    scf.if %2 {
      %cst_10 = arith.constant 0.000000e+00 : f32
      %12 = vector.broadcast %cst_10 : f32 to vector<32x128xf32>
      %c0_11 = arith.constant 0 : index
      %c0_12 = arith.constant 0 : index
      %13 = vector.load %arg7[%c0_11, %c0_12] : memref<32x128xf32, #tpu.memory_space<vmem>>, vector<32x128xf32>
      tpu.vector_store %arg7[%c0_11, %c0_12], %12 {strides = array<i32>} : memref<32x128xf32, #tpu.memory_space<vmem>>, vector<32x128xf32>,
    } else {
    }
    %c0 = arith.constant 0 : index
    %c0_1 = arith.constant 0 : index
    %3 = vector.load %arg7[%c0, %c0_1] : memref<32x128xf32, #tpu.memory_space<vmem>>, vector<32x128xf32>
    %c0_2 = arith.constant 0 : index
    %c0_3 = arith.constant 0 : index
    %4 = vector.load %arg3[%c0_2, %c0_3] : memref<32x144xbf16, #tpu.memory_space<vmem>>, vector<32x144xbf16>
    %c0_4 = arith.constant 0 : index
    %c0_5 = arith.constant 0 : index
    %5 = vector.load %arg4[%c0_4, %c0_5] : memref<144x128xbf16, #tpu.memory_space<vmem>>, vector<144x128xbf16>
    %cst = arith.constant dense<0.000000e+00> : vector<32x128xf32>
    %6 = tpu.matmul %4, %5, %cst {dimension_numbers = #tpu.dot_dimension_numbers<[1], [0], [0], [1], [0, 0, 1, 1], [], []>} : vector<32x144xbf16>, vector<144x128xbf16>, vector<32x128xf32> -> vector<32x128xf32>
    %7 = arith.addf %3, %6 : vector<32x128xf32>
    %c0_6 = arith.constant 0 : index
    %c0_7 = arith.constant 0 : index
    %8 = vector.load %arg7[%c0_6, %c0_7] : memref<32x128xf32, #tpu.memory_space<vmem>>, vector<32x128xf32>
    tpu.vector_store %arg7[%c0_6, %c0_7], %7 {strides = array<i32>} : memref<32x128xf32, #tpu.memory_space<vmem>>, vector<32x128xf32>,
    %c0_i32_8 = arith.constant 0 : i32
    %9 = arith.cmpi eq, %arg2, %c0_i32_8 : i32
    %10 = arith.extui %9 : i1 to i32
    %c0_i32_9 = arith.constant 0 : i32
    %11 = arith.cmpi ne, %10, %c0_i32_9 : i32
    scf.if %11 {
      %c0_10 = arith.constant 0 : index
      %c0_11 = arith.constant 0 : index
      %12 = vector.load %arg7[%c0_10, %c0_11] : memref<32x128xf32, #tpu.memory_space<vmem>>, vector<32x128xf32>
      %c0_12 = arith.constant 0 : index
      %c0_13 = arith.constant 0 : index
      %13 = vector.load %arg5[%c0_12, %c0_13] : memref<1x128xf32, #tpu.memory_space<vmem>>, vector<1x128xf32>
      %14 = vector.broadcast %13 : vector<1x128xf32> to vector<32x128xf32>
      %15 = arith.addf %12, %14 : vector<32x128xf32>
      %cst_14 = arith.constant 0.000000e+00 : f32
      %16 = vector.broadcast %cst_14 : f32 to vector<32x128xf32>
      %17 = arith.maximumf %15, %16 : vector<32x128xf32>
      %18 = arith.truncf %17 : vector<32x128xf32> to vector<32x128xbf16>
      %c0_15 = arith.constant 0 : index
      %c0_16 = arith.constant 0 : index
      %19 = vector.load %arg6[%c0_15, %c0_16] : memref<32x128xbf16, #tpu.memory_space<vmem>>, vector<32x128xbf16>
      tpu.vector_store %arg6[%c0_15, %c0_16], %18 {strides = array<i32>} : memref<32x128xbf16, #tpu.memory_space<vmem>>, vector<32x128xbf16>,
    } else {
    }
    return
  }
  func.func @transform_0(%arg0: i32, %arg1: i32, %arg2: i32) -> (i32, i32) {
    %c0_i32 = arith.constant 0 : i32
    return %arg0, %arg2 : i32, i32
  }
  func.func @transform_1(%arg0: i32, %arg1: i32, %arg2: i32) -> (i32, i32) {
    %c0_i32 = arith.constant 0 : i32
    return %arg2, %arg1 : i32, i32
  }
  func.func @transform_2(%arg0: i32, %arg1: i32, %arg2: i32) -> (i32, i32) {
    %c0_i32 = arith.constant 0 : i32
    %c0_i32_0 = arith.constant 0 : i32
    return %c0_i32, %arg1 : i32, i32
  }
  func.func @transform_3(%arg0: i32, %arg1: i32, %arg2: i32) -> (i32, i32) {
    %c0_i32 = arith.constant 0 : i32
    return %arg0, %arg1 : i32, i32
  }
}

module attributes {stable_mosaic.version = 11 : i64} {
  func.func @_gemm_bias_res_kernel(%arg0: i32, %arg1: i32, %arg2: i32, %arg3: memref<32x16xbf16, #tpu.memory_space<vmem>>, %arg4: memref<16x128xbf16, #tpu.memory_space<vmem>>, %arg5: memref<1x128xf32, #tpu.memory_space<vmem>>, %arg6: memref<32x128xbf16, #tpu.memory_space<vmem>>, %arg7: memref<32x128xbf16, #tpu.memory_space<vmem>>, %arg8: memref<32x128xf32, #tpu.memory_space<vmem>>) attributes {dimension_semantics = [#tpu.dimension_semantics<parallel>, #tpu.dimension_semantics<parallel>, #tpu.dimension_semantics<arbitrary>], iteration_bounds = array<i64: 1, 1, 1>, scalar_prefetch = 0 : i64, scratch_operands = 1 : i64, tpu.core_type = #tpu.core_type<tc>, window_params = [{transform_indices = @transform_0, window_bounds = array<i64: 32, 16>}, {transform_indices = @transform_1, window_bounds = array<i64: 16, 128>}, {transform_indices = @transform_2, window_bounds = array<i64: 1, 128>}, {transform_indices = @transform_3, window_bounds = array<i64: 32, 128>}, {transform_indices = @transform_4, window_bounds = array<i64: 32, 128>}]} {
    %c0_i32 = arith.constant 0 : i32
    %0 = arith.cmpi eq, %arg2, %c0_i32 : i32
    %1 = arith.extui %0 : i1 to i32
    %c0_i32_0 = arith.constant 0 : i32
    %2 = arith.cmpi ne, %1, %c0_i32_0 : i32
    scf.if %2 {
      %cst_10 = arith.constant 0.000000e+00 : f32
      %12 = vector.broadcast %cst_10 : f32 to vector<32x128xf32>
      %c0_11 = arith.constant 0 : index
      %c0_12 = arith.constant 0 : index
      %13 = vector.load %arg8[%c0_11, %c0_12] : memref<32x128xf32, #tpu.memory_space<vmem>>, vector<32x128xf32>
      tpu.vector_store %arg8[%c0_11, %c0_12], %12 {strides = array<i32>} : memref<32x128xf32, #tpu.memory_space<vmem>>, vector<32x128xf32>,
    } else {
    }
    %c0 = arith.constant 0 : index
    %c0_1 = arith.constant 0 : index
    %3 = vector.load %arg8[%c0, %c0_1] : memref<32x128xf32, #tpu.memory_space<vmem>>, vector<32x128xf32>
    %c0_2 = arith.constant 0 : index
    %c0_3 = arith.constant 0 : index
    %4 = vector.load %arg3[%c0_2, %c0_3] : memref<32x16xbf16, #tpu.memory_space<vmem>>, vector<32x16xbf16>
    %c0_4 = arith.constant 0 : index
    %c0_5 = arith.constant 0 : index
    %5 = vector.load %arg4[%c0_4, %c0_5] : memref<16x128xbf16, #tpu.memory_space<vmem>>, vector<16x128xbf16>
    %cst = arith.constant dense<0.000000e+00> : vector<32x128xf32>
    %6 = tpu.matmul %4, %5, %cst {dimension_numbers = #tpu.dot_dimension_numbers<[1], [0], [0], [1], [0, 0, 1, 1], [], []>} : vector<32x16xbf16>, vector<16x128xbf16>, vector<32x128xf32> -> vector<32x128xf32>
    %7 = arith.addf %3, %6 : vector<32x128xf32>
    %c0_6 = arith.constant 0 : index
    %c0_7 = arith.constant 0 : index
    %8 = vector.load %arg8[%c0_6, %c0_7] : memref<32x128xf32, #tpu.memory_space<vmem>>, vector<32x128xf32>
    tpu.vector_store %arg8[%c0_6, %c0_7], %7 {strides = array<i32>} : memref<32x128xf32, #tpu.memory_space<vmem>>, vector<32x128xf32>,
    %c0_i32_8 = arith.constant 0 : i32
    %9 = arith.cmpi eq, %arg2, %c0_i32_8 : i32
    %10 = arith.extui %9 : i1 to i32
    %c0_i32_9 = arith.constant 0 : i32
    %11 = arith.cmpi ne, %10, %c0_i32_9 : i32
    scf.if %11 {
      %c0_10 = arith.constant 0 : index
      %c0_11 = arith.constant 0 : index
      %12 = vector.load %arg8[%c0_10, %c0_11] : memref<32x128xf32, #tpu.memory_space<vmem>>, vector<32x128xf32>
      %c0_12 = arith.constant 0 : index
      %c0_13 = arith.constant 0 : index
      %13 = vector.load %arg5[%c0_12, %c0_13] : memref<1x128xf32, #tpu.memory_space<vmem>>, vector<1x128xf32>
      %14 = vector.broadcast %13 : vector<1x128xf32> to vector<32x128xf32>
      %15 = arith.addf %12, %14 : vector<32x128xf32>
      %c0_14 = arith.constant 0 : index
      %c0_15 = arith.constant 0 : index
      %16 = vector.load %arg6[%c0_14, %c0_15] : memref<32x128xbf16, #tpu.memory_space<vmem>>, vector<32x128xbf16>
      %17 = arith.extf %16 : vector<32x128xbf16> to vector<32x128xf32>
      %18 = arith.addf %15, %17 : vector<32x128xf32>
      %cst_16 = arith.constant 0.000000e+00 : f32
      %19 = vector.broadcast %cst_16 : f32 to vector<32x128xf32>
      %20 = arith.maximumf %18, %19 : vector<32x128xf32>
      %21 = arith.truncf %20 : vector<32x128xf32> to vector<32x128xbf16>
      %c0_17 = arith.constant 0 : index
      %c0_18 = arith.constant 0 : index
      %22 = vector.load %arg7[%c0_17, %c0_18] : memref<32x128xbf16, #tpu.memory_space<vmem>>, vector<32x128xbf16>
      tpu.vector_store %arg7[%c0_17, %c0_18], %21 {strides = array<i32>} : memref<32x128xbf16, #tpu.memory_space<vmem>>, vector<32x128xbf16>,
    } else {
    }
    return
  }
  func.func @transform_0(%arg0: i32, %arg1: i32, %arg2: i32) -> (i32, i32) {
    %c0_i32 = arith.constant 0 : i32
    return %arg0, %arg2 : i32, i32
  }
  func.func @transform_1(%arg0: i32, %arg1: i32, %arg2: i32) -> (i32, i32) {
    %c0_i32 = arith.constant 0 : i32
    return %arg2, %arg1 : i32, i32
  }
  func.func @transform_2(%arg0: i32, %arg1: i32, %arg2: i32) -> (i32, i32) {
    %c0_i32 = arith.constant 0 : i32
    %c0_i32_0 = arith.constant 0 : i32
    return %c0_i32, %arg1 : i32, i32
  }
  func.func @transform_3(%arg0: i32, %arg1: i32, %arg2: i32) -> (i32, i32) {
    %c0_i32 = arith.constant 0 : i32
    return %arg0, %arg1 : i32, i32
  }
  func.func @transform_4(%arg0: i32, %arg1: i32, %arg2: i32) -> (i32, i32) {
    %c0_i32 = arith.constant 0 : i32
    return %arg0, %arg1 : i32, i32
  }
}

module attributes {stable_mosaic.version = 11 : i64} {
  func.func @_gemm_bias_kernel(%arg0: i32, %arg1: i32, %arg2: i32, %arg3: memref<16x64xbf16, #tpu.memory_space<vmem>>, %arg4: memref<64x128xbf16, #tpu.memory_space<vmem>>, %arg5: memref<1x128xf32, #tpu.memory_space<vmem>>, %arg6: memref<16x128xbf16, #tpu.memory_space<vmem>>, %arg7: memref<16x128xf32, #tpu.memory_space<vmem>>) attributes {dimension_semantics = [#tpu.dimension_semantics<parallel>, #tpu.dimension_semantics<parallel>, #tpu.dimension_semantics<arbitrary>], iteration_bounds = array<i64: 1, 1, 1>, scalar_prefetch = 0 : i64, scratch_operands = 1 : i64, tpu.core_type = #tpu.core_type<tc>, window_params = [{transform_indices = @transform_0, window_bounds = array<i64: 16, 64>}, {transform_indices = @transform_1, window_bounds = array<i64: 64, 128>}, {transform_indices = @transform_2, window_bounds = array<i64: 1, 128>}, {transform_indices = @transform_3, window_bounds = array<i64: 16, 128>}]} {
    %c0_i32 = arith.constant 0 : i32
    %0 = arith.cmpi eq, %arg2, %c0_i32 : i32
    %1 = arith.extui %0 : i1 to i32
    %c0_i32_0 = arith.constant 0 : i32
    %2 = arith.cmpi ne, %1, %c0_i32_0 : i32
    scf.if %2 {
      %cst_10 = arith.constant 0.000000e+00 : f32
      %12 = vector.broadcast %cst_10 : f32 to vector<16x128xf32>
      %c0_11 = arith.constant 0 : index
      %c0_12 = arith.constant 0 : index
      %13 = vector.load %arg7[%c0_11, %c0_12] : memref<16x128xf32, #tpu.memory_space<vmem>>, vector<16x128xf32>
      tpu.vector_store %arg7[%c0_11, %c0_12], %12 {strides = array<i32>} : memref<16x128xf32, #tpu.memory_space<vmem>>, vector<16x128xf32>,
    } else {
    }
    %c0 = arith.constant 0 : index
    %c0_1 = arith.constant 0 : index
    %3 = vector.load %arg7[%c0, %c0_1] : memref<16x128xf32, #tpu.memory_space<vmem>>, vector<16x128xf32>
    %c0_2 = arith.constant 0 : index
    %c0_3 = arith.constant 0 : index
    %4 = vector.load %arg3[%c0_2, %c0_3] : memref<16x64xbf16, #tpu.memory_space<vmem>>, vector<16x64xbf16>
    %c0_4 = arith.constant 0 : index
    %c0_5 = arith.constant 0 : index
    %5 = vector.load %arg4[%c0_4, %c0_5] : memref<64x128xbf16, #tpu.memory_space<vmem>>, vector<64x128xbf16>
    %cst = arith.constant dense<0.000000e+00> : vector<16x128xf32>
    %6 = tpu.matmul %4, %5, %cst {dimension_numbers = #tpu.dot_dimension_numbers<[1], [0], [0], [1], [0, 0, 1, 1], [], []>} : vector<16x64xbf16>, vector<64x128xbf16>, vector<16x128xf32> -> vector<16x128xf32>
    %7 = arith.addf %3, %6 : vector<16x128xf32>
    %c0_6 = arith.constant 0 : index
    %c0_7 = arith.constant 0 : index
    %8 = vector.load %arg7[%c0_6, %c0_7] : memref<16x128xf32, #tpu.memory_space<vmem>>, vector<16x128xf32>
    tpu.vector_store %arg7[%c0_6, %c0_7], %7 {strides = array<i32>} : memref<16x128xf32, #tpu.memory_space<vmem>>, vector<16x128xf32>,
    %c0_i32_8 = arith.constant 0 : i32
    %9 = arith.cmpi eq, %arg2, %c0_i32_8 : i32
    %10 = arith.extui %9 : i1 to i32
    %c0_i32_9 = arith.constant 0 : i32
    %11 = arith.cmpi ne, %10, %c0_i32_9 : i32
    scf.if %11 {
      %c0_10 = arith.constant 0 : index
      %c0_11 = arith.constant 0 : index
      %12 = vector.load %arg7[%c0_10, %c0_11] : memref<16x128xf32, #tpu.memory_space<vmem>>, vector<16x128xf32>
      %c0_12 = arith.constant 0 : index
      %c0_13 = arith.constant 0 : index
      %13 = vector.load %arg5[%c0_12, %c0_13] : memref<1x128xf32, #tpu.memory_space<vmem>>, vector<1x128xf32>
      %14 = vector.broadcast %13 : vector<1x128xf32> to vector<16x128xf32>
      %15 = arith.addf %12, %14 : vector<16x128xf32>
      %16 = arith.truncf %15 : vector<16x128xf32> to vector<16x128xbf16>
      %c0_14 = arith.constant 0 : index
      %c0_15 = arith.constant 0 : index
      %17 = vector.load %arg6[%c0_14, %c0_15] : memref<16x128xbf16, #tpu.memory_space<vmem>>, vector<16x128xbf16>
      tpu.vector_store %arg6[%c0_14, %c0_15], %16 {strides = array<i32>} : memref<16x128xbf16, #tpu.memory_space<vmem>>, vector<16x128xbf16>,
    } else {
    }
    return
  }
  func.func @transform_0(%arg0: i32, %arg1: i32, %arg2: i32) -> (i32, i32) {
    %c0_i32 = arith.constant 0 : i32
    return %arg0, %arg2 : i32, i32
  }
  func.func @transform_1(%arg0: i32, %arg1: i32, %arg2: i32) -> (i32, i32) {
    %c0_i32 = arith.constant 0 : i32
    return %arg2, %arg1 : i32, i32
  }
  func.func @transform_2(%arg0: i32, %arg1: i32, %arg2: i32) -> (i32, i32) {
    %c0_i32 = arith.constant 0 : i32
    %c0_i32_0 = arith.constant 0 : i32
    return %c0_i32, %arg1 : i32, i32
  }
  func.func @transform_3(%arg0: i32, %arg1: i32, %arg2: i32) -> (i32, i32) {
    %c0_i32 = arith.constant 0 : i32
    return %arg0, %arg1 : i32, i32
  }
}

module attributes {stable_mosaic.version = 11 : i64} {
  func.func @_gemm_bias_kernel(%arg0: i32, %arg1: i32, %arg2: i32, %arg3: memref<32x64xbf16, #tpu.memory_space<vmem>>, %arg4: memref<64x128xbf16, #tpu.memory_space<vmem>>, %arg5: memref<1x128xf32, #tpu.memory_space<vmem>>, %arg6: memref<32x128xbf16, #tpu.memory_space<vmem>>, %arg7: memref<32x128xf32, #tpu.memory_space<vmem>>) attributes {dimension_semantics = [#tpu.dimension_semantics<parallel>, #tpu.dimension_semantics<parallel>, #tpu.dimension_semantics<arbitrary>], iteration_bounds = array<i64: 1, 1, 1>, scalar_prefetch = 0 : i64, scratch_operands = 1 : i64, tpu.core_type = #tpu.core_type<tc>, window_params = [{transform_indices = @transform_0, window_bounds = array<i64: 32, 64>}, {transform_indices = @transform_1, window_bounds = array<i64: 64, 128>}, {transform_indices = @transform_2, window_bounds = array<i64: 1, 128>}, {transform_indices = @transform_3, window_bounds = array<i64: 32, 128>}]} {
    %c0_i32 = arith.constant 0 : i32
    %0 = arith.cmpi eq, %arg2, %c0_i32 : i32
    %1 = arith.extui %0 : i1 to i32
    %c0_i32_0 = arith.constant 0 : i32
    %2 = arith.cmpi ne, %1, %c0_i32_0 : i32
    scf.if %2 {
      %cst_10 = arith.constant 0.000000e+00 : f32
      %12 = vector.broadcast %cst_10 : f32 to vector<32x128xf32>
      %c0_11 = arith.constant 0 : index
      %c0_12 = arith.constant 0 : index
      %13 = vector.load %arg7[%c0_11, %c0_12] : memref<32x128xf32, #tpu.memory_space<vmem>>, vector<32x128xf32>
      tpu.vector_store %arg7[%c0_11, %c0_12], %12 {strides = array<i32>} : memref<32x128xf32, #tpu.memory_space<vmem>>, vector<32x128xf32>,
    } else {
    }
    %c0 = arith.constant 0 : index
    %c0_1 = arith.constant 0 : index
    %3 = vector.load %arg7[%c0, %c0_1] : memref<32x128xf32, #tpu.memory_space<vmem>>, vector<32x128xf32>
    %c0_2 = arith.constant 0 : index
    %c0_3 = arith.constant 0 : index
    %4 = vector.load %arg3[%c0_2, %c0_3] : memref<32x64xbf16, #tpu.memory_space<vmem>>, vector<32x64xbf16>
    %c0_4 = arith.constant 0 : index
    %c0_5 = arith.constant 0 : index
    %5 = vector.load %arg4[%c0_4, %c0_5] : memref<64x128xbf16, #tpu.memory_space<vmem>>, vector<64x128xbf16>
    %cst = arith.constant dense<0.000000e+00> : vector<32x128xf32>
    %6 = tpu.matmul %4, %5, %cst {dimension_numbers = #tpu.dot_dimension_numbers<[1], [0], [0], [1], [0, 0, 1, 1], [], []>} : vector<32x64xbf16>, vector<64x128xbf16>, vector<32x128xf32> -> vector<32x128xf32>
    %7 = arith.addf %3, %6 : vector<32x128xf32>
    %c0_6 = arith.constant 0 : index
    %c0_7 = arith.constant 0 : index
    %8 = vector.load %arg7[%c0_6, %c0_7] : memref<32x128xf32, #tpu.memory_space<vmem>>, vector<32x128xf32>
    tpu.vector_store %arg7[%c0_6, %c0_7], %7 {strides = array<i32>} : memref<32x128xf32, #tpu.memory_space<vmem>>, vector<32x128xf32>,
    %c0_i32_8 = arith.constant 0 : i32
    %9 = arith.cmpi eq, %arg2, %c0_i32_8 : i32
    %10 = arith.extui %9 : i1 to i32
    %c0_i32_9 = arith.constant 0 : i32
    %11 = arith.cmpi ne, %10, %c0_i32_9 : i32
    scf.if %11 {
      %c0_10 = arith.constant 0 : index
      %c0_11 = arith.constant 0 : index
      %12 = vector.load %arg7[%c0_10, %c0_11] : memref<32x128xf32, #tpu.memory_space<vmem>>, vector<32x128xf32>
      %c0_12 = arith.constant 0 : index
      %c0_13 = arith.constant 0 : index
      %13 = vector.load %arg5[%c0_12, %c0_13] : memref<1x128xf32, #tpu.memory_space<vmem>>, vector<1x128xf32>
      %14 = vector.broadcast %13 : vector<1x128xf32> to vector<32x128xf32>
      %15 = arith.addf %12, %14 : vector<32x128xf32>
      %cst_14 = arith.constant 0.000000e+00 : f32
      %16 = vector.broadcast %cst_14 : f32 to vector<32x128xf32>
      %17 = arith.maximumf %15, %16 : vector<32x128xf32>
      %18 = arith.truncf %17 : vector<32x128xf32> to vector<32x128xbf16>
      %c0_15 = arith.constant 0 : index
      %c0_16 = arith.constant 0 : index
      %19 = vector.load %arg6[%c0_15, %c0_16] : memref<32x128xbf16, #tpu.memory_space<vmem>>, vector<32x128xbf16>
      tpu.vector_store %arg6[%c0_15, %c0_16], %18 {strides = array<i32>} : memref<32x128xbf16, #tpu.memory_space<vmem>>, vector<32x128xbf16>,
    } else {
    }
    return
  }
  func.func @transform_0(%arg0: i32, %arg1: i32, %arg2: i32) -> (i32, i32) {
    %c0_i32 = arith.constant 0 : i32
    return %arg0, %arg2 : i32, i32
  }
  func.func @transform_1(%arg0: i32, %arg1: i32, %arg2: i32) -> (i32, i32) {
    %c0_i32 = arith.constant 0 : i32
    return %arg2, %arg1 : i32, i32
  }
  func.func @transform_2(%arg0: i32, %arg1: i32, %arg2: i32) -> (i32, i32) {
    %c0_i32 = arith.constant 0 : i32
    %c0_i32_0 = arith.constant 0 : i32
    return %c0_i32, %arg1 : i32, i32
  }
  func.func @transform_3(%arg0: i32, %arg1: i32, %arg2: i32) -> (i32, i32) {
    %c0_i32 = arith.constant 0 : i32
    return %arg0, %arg1 : i32, i32
  }
}

module attributes {stable_mosaic.version = 11 : i64} {
  func.func @_gemm_bias_kernel(%arg0: i32, %arg1: i32, %arg2: i32, %arg3: memref<16x288xbf16, #tpu.memory_space<vmem>>, %arg4: memref<288x128xbf16, #tpu.memory_space<vmem>>, %arg5: memref<1x128xf32, #tpu.memory_space<vmem>>, %arg6: memref<16x128xbf16, #tpu.memory_space<vmem>>, %arg7: memref<16x128xf32, #tpu.memory_space<vmem>>) attributes {dimension_semantics = [#tpu.dimension_semantics<parallel>, #tpu.dimension_semantics<parallel>, #tpu.dimension_semantics<arbitrary>], iteration_bounds = array<i64: 1, 1, 1>, scalar_prefetch = 0 : i64, scratch_operands = 1 : i64, tpu.core_type = #tpu.core_type<tc>, window_params = [{transform_indices = @transform_0, window_bounds = array<i64: 16, 288>}, {transform_indices = @transform_1, window_bounds = array<i64: 288, 128>}, {transform_indices = @transform_2, window_bounds = array<i64: 1, 128>}, {transform_indices = @transform_3, window_bounds = array<i64: 16, 128>}]} {
    %c0_i32 = arith.constant 0 : i32
    %0 = arith.cmpi eq, %arg2, %c0_i32 : i32
    %1 = arith.extui %0 : i1 to i32
    %c0_i32_0 = arith.constant 0 : i32
    %2 = arith.cmpi ne, %1, %c0_i32_0 : i32
    scf.if %2 {
      %cst_10 = arith.constant 0.000000e+00 : f32
      %12 = vector.broadcast %cst_10 : f32 to vector<16x128xf32>
      %c0_11 = arith.constant 0 : index
      %c0_12 = arith.constant 0 : index
      %13 = vector.load %arg7[%c0_11, %c0_12] : memref<16x128xf32, #tpu.memory_space<vmem>>, vector<16x128xf32>
      tpu.vector_store %arg7[%c0_11, %c0_12], %12 {strides = array<i32>} : memref<16x128xf32, #tpu.memory_space<vmem>>, vector<16x128xf32>,
    } else {
    }
    %c0 = arith.constant 0 : index
    %c0_1 = arith.constant 0 : index
    %3 = vector.load %arg7[%c0, %c0_1] : memref<16x128xf32, #tpu.memory_space<vmem>>, vector<16x128xf32>
    %c0_2 = arith.constant 0 : index
    %c0_3 = arith.constant 0 : index
    %4 = vector.load %arg3[%c0_2, %c0_3] : memref<16x288xbf16, #tpu.memory_space<vmem>>, vector<16x288xbf16>
    %c0_4 = arith.constant 0 : index
    %c0_5 = arith.constant 0 : index
    %5 = vector.load %arg4[%c0_4, %c0_5] : memref<288x128xbf16, #tpu.memory_space<vmem>>, vector<288x128xbf16>
    %cst = arith.constant dense<0.000000e+00> : vector<16x128xf32>
    %6 = tpu.matmul %4, %5, %cst {dimension_numbers = #tpu.dot_dimension_numbers<[1], [0], [0], [1], [0, 0, 1, 1], [], []>} : vector<16x288xbf16>, vector<288x128xbf16>, vector<16x128xf32> -> vector<16x128xf32>
    %7 = arith.addf %3, %6 : vector<16x128xf32>
    %c0_6 = arith.constant 0 : index
    %c0_7 = arith.constant 0 : index
    %8 = vector.load %arg7[%c0_6, %c0_7] : memref<16x128xf32, #tpu.memory_space<vmem>>, vector<16x128xf32>
    tpu.vector_store %arg7[%c0_6, %c0_7], %7 {strides = array<i32>} : memref<16x128xf32, #tpu.memory_space<vmem>>, vector<16x128xf32>,
    %c0_i32_8 = arith.constant 0 : i32
    %9 = arith.cmpi eq, %arg2, %c0_i32_8 : i32
    %10 = arith.extui %9 : i1 to i32
    %c0_i32_9 = arith.constant 0 : i32
    %11 = arith.cmpi ne, %10, %c0_i32_9 : i32
    scf.if %11 {
      %c0_10 = arith.constant 0 : index
      %c0_11 = arith.constant 0 : index
      %12 = vector.load %arg7[%c0_10, %c0_11] : memref<16x128xf32, #tpu.memory_space<vmem>>, vector<16x128xf32>
      %c0_12 = arith.constant 0 : index
      %c0_13 = arith.constant 0 : index
      %13 = vector.load %arg5[%c0_12, %c0_13] : memref<1x128xf32, #tpu.memory_space<vmem>>, vector<1x128xf32>
      %14 = vector.broadcast %13 : vector<1x128xf32> to vector<16x128xf32>
      %15 = arith.addf %12, %14 : vector<16x128xf32>
      %cst_14 = arith.constant 0.000000e+00 : f32
      %16 = vector.broadcast %cst_14 : f32 to vector<16x128xf32>
      %17 = arith.maximumf %15, %16 : vector<16x128xf32>
      %18 = arith.truncf %17 : vector<16x128xf32> to vector<16x128xbf16>
      %c0_15 = arith.constant 0 : index
      %c0_16 = arith.constant 0 : index
      %19 = vector.load %arg6[%c0_15, %c0_16] : memref<16x128xbf16, #tpu.memory_space<vmem>>, vector<16x128xbf16>
      tpu.vector_store %arg6[%c0_15, %c0_16], %18 {strides = array<i32>} : memref<16x128xbf16, #tpu.memory_space<vmem>>, vector<16x128xbf16>,
    } else {
    }
    return
  }
  func.func @transform_0(%arg0: i32, %arg1: i32, %arg2: i32) -> (i32, i32) {
    %c0_i32 = arith.constant 0 : i32
    return %arg0, %arg2 : i32, i32
  }
  func.func @transform_1(%arg0: i32, %arg1: i32, %arg2: i32) -> (i32, i32) {
    %c0_i32 = arith.constant 0 : i32
    return %arg2, %arg1 : i32, i32
  }
  func.func @transform_2(%arg0: i32, %arg1: i32, %arg2: i32) -> (i32, i32) {
    %c0_i32 = arith.constant 0 : i32
    %c0_i32_0 = arith.constant 0 : i32
    return %c0_i32, %arg1 : i32, i32
  }
  func.func @transform_3(%arg0: i32, %arg1: i32, %arg2: i32) -> (i32, i32) {
    %c0_i32 = arith.constant 0 : i32
    return %arg0, %arg1 : i32, i32
  }
}

module attributes {stable_mosaic.version = 11 : i64} {
  func.func @_gemm_bias_res_kernel(%arg0: i32, %arg1: i32, %arg2: i32, %arg3: memref<16x32xbf16, #tpu.memory_space<vmem>>, %arg4: memref<32x128xbf16, #tpu.memory_space<vmem>>, %arg5: memref<1x128xf32, #tpu.memory_space<vmem>>, %arg6: memref<16x128xbf16, #tpu.memory_space<vmem>>, %arg7: memref<16x128xbf16, #tpu.memory_space<vmem>>, %arg8: memref<16x128xf32, #tpu.memory_space<vmem>>) attributes {dimension_semantics = [#tpu.dimension_semantics<parallel>, #tpu.dimension_semantics<parallel>, #tpu.dimension_semantics<arbitrary>], iteration_bounds = array<i64: 1, 1, 1>, scalar_prefetch = 0 : i64, scratch_operands = 1 : i64, tpu.core_type = #tpu.core_type<tc>, window_params = [{transform_indices = @transform_0, window_bounds = array<i64: 16, 32>}, {transform_indices = @transform_1, window_bounds = array<i64: 32, 128>}, {transform_indices = @transform_2, window_bounds = array<i64: 1, 128>}, {transform_indices = @transform_3, window_bounds = array<i64: 16, 128>}, {transform_indices = @transform_4, window_bounds = array<i64: 16, 128>}]} {
    %c0_i32 = arith.constant 0 : i32
    %0 = arith.cmpi eq, %arg2, %c0_i32 : i32
    %1 = arith.extui %0 : i1 to i32
    %c0_i32_0 = arith.constant 0 : i32
    %2 = arith.cmpi ne, %1, %c0_i32_0 : i32
    scf.if %2 {
      %cst_10 = arith.constant 0.000000e+00 : f32
      %12 = vector.broadcast %cst_10 : f32 to vector<16x128xf32>
      %c0_11 = arith.constant 0 : index
      %c0_12 = arith.constant 0 : index
      %13 = vector.load %arg8[%c0_11, %c0_12] : memref<16x128xf32, #tpu.memory_space<vmem>>, vector<16x128xf32>
      tpu.vector_store %arg8[%c0_11, %c0_12], %12 {strides = array<i32>} : memref<16x128xf32, #tpu.memory_space<vmem>>, vector<16x128xf32>,
    } else {
    }
    %c0 = arith.constant 0 : index
    %c0_1 = arith.constant 0 : index
    %3 = vector.load %arg8[%c0, %c0_1] : memref<16x128xf32, #tpu.memory_space<vmem>>, vector<16x128xf32>
    %c0_2 = arith.constant 0 : index
    %c0_3 = arith.constant 0 : index
    %4 = vector.load %arg3[%c0_2, %c0_3] : memref<16x32xbf16, #tpu.memory_space<vmem>>, vector<16x32xbf16>
    %c0_4 = arith.constant 0 : index
    %c0_5 = arith.constant 0 : index
    %5 = vector.load %arg4[%c0_4, %c0_5] : memref<32x128xbf16, #tpu.memory_space<vmem>>, vector<32x128xbf16>
    %cst = arith.constant dense<0.000000e+00> : vector<16x128xf32>
    %6 = tpu.matmul %4, %5, %cst {dimension_numbers = #tpu.dot_dimension_numbers<[1], [0], [0], [1], [0, 0, 1, 1], [], []>} : vector<16x32xbf16>, vector<32x128xbf16>, vector<16x128xf32> -> vector<16x128xf32>
    %7 = arith.addf %3, %6 : vector<16x128xf32>
    %c0_6 = arith.constant 0 : index
    %c0_7 = arith.constant 0 : index
    %8 = vector.load %arg8[%c0_6, %c0_7] : memref<16x128xf32, #tpu.memory_space<vmem>>, vector<16x128xf32>
    tpu.vector_store %arg8[%c0_6, %c0_7], %7 {strides = array<i32>} : memref<16x128xf32, #tpu.memory_space<vmem>>, vector<16x128xf32>,
    %c0_i32_8 = arith.constant 0 : i32
    %9 = arith.cmpi eq, %arg2, %c0_i32_8 : i32
    %10 = arith.extui %9 : i1 to i32
    %c0_i32_9 = arith.constant 0 : i32
    %11 = arith.cmpi ne, %10, %c0_i32_9 : i32
    scf.if %11 {
      %c0_10 = arith.constant 0 : index
      %c0_11 = arith.constant 0 : index
      %12 = vector.load %arg8[%c0_10, %c0_11] : memref<16x128xf32, #tpu.memory_space<vmem>>, vector<16x128xf32>
      %c0_12 = arith.constant 0 : index
      %c0_13 = arith.constant 0 : index
      %13 = vector.load %arg5[%c0_12, %c0_13] : memref<1x128xf32, #tpu.memory_space<vmem>>, vector<1x128xf32>
      %14 = vector.broadcast %13 : vector<1x128xf32> to vector<16x128xf32>
      %15 = arith.addf %12, %14 : vector<16x128xf32>
      %c0_14 = arith.constant 0 : index
      %c0_15 = arith.constant 0 : index
      %16 = vector.load %arg6[%c0_14, %c0_15] : memref<16x128xbf16, #tpu.memory_space<vmem>>, vector<16x128xbf16>
      %17 = arith.extf %16 : vector<16x128xbf16> to vector<16x128xf32>
      %18 = arith.addf %15, %17 : vector<16x128xf32>
      %cst_16 = arith.constant 0.000000e+00 : f32
      %19 = vector.broadcast %cst_16 : f32 to vector<16x128xf32>
      %20 = arith.maximumf %18, %19 : vector<16x128xf32>
      %21 = arith.truncf %20 : vector<16x128xf32> to vector<16x128xbf16>
      %c0_17 = arith.constant 0 : index
      %c0_18 = arith.constant 0 : index
      %22 = vector.load %arg7[%c0_17, %c0_18] : memref<16x128xbf16, #tpu.memory_space<vmem>>, vector<16x128xbf16>
      tpu.vector_store %arg7[%c0_17, %c0_18], %21 {strides = array<i32>} : memref<16x128xbf16, #tpu.memory_space<vmem>>, vector<16x128xbf16>,
    } else {
    }
    return
  }
  func.func @transform_0(%arg0: i32, %arg1: i32, %arg2: i32) -> (i32, i32) {
    %c0_i32 = arith.constant 0 : i32
    return %arg0, %arg2 : i32, i32
  }
  func.func @transform_1(%arg0: i32, %arg1: i32, %arg2: i32) -> (i32, i32) {
    %c0_i32 = arith.constant 0 : i32
    return %arg2, %arg1 : i32, i32
  }
  func.func @transform_2(%arg0: i32, %arg1: i32, %arg2: i32) -> (i32, i32) {
    %c0_i32 = arith.constant 0 : i32
    %c0_i32_0 = arith.constant 0 : i32
    return %c0_i32, %arg1 : i32, i32
  }
  func.func @transform_3(%arg0: i32, %arg1: i32, %arg2: i32) -> (i32, i32) {
    %c0_i32 = arith.constant 0 : i32
    return %arg0, %arg1 : i32, i32
  }
  func.func @transform_4(%arg0: i32, %arg1: i32, %arg2: i32) -> (i32, i32) {
    %c0_i32 = arith.constant 0 : i32
    return %arg0, %arg1 : i32, i32
  }
}

module attributes {stable_mosaic.version = 11 : i64} {
  func.func @_gemm_bias_kernel(%arg0: i32, %arg1: i32, %arg2: i32, %arg3: memref<16x128xbf16, #tpu.memory_space<vmem>>, %arg4: memref<128x128xbf16, #tpu.memory_space<vmem>>, %arg5: memref<1x128xf32, #tpu.memory_space<vmem>>, %arg6: memref<16x128xbf16, #tpu.memory_space<vmem>>, %arg7: memref<16x128xf32, #tpu.memory_space<vmem>>) attributes {dimension_semantics = [#tpu.dimension_semantics<parallel>, #tpu.dimension_semantics<parallel>, #tpu.dimension_semantics<arbitrary>], iteration_bounds = array<i64: 1, 1, 1>, scalar_prefetch = 0 : i64, scratch_operands = 1 : i64, tpu.core_type = #tpu.core_type<tc>, window_params = [{transform_indices = @transform_0, window_bounds = array<i64: 16, 128>}, {transform_indices = @transform_1, window_bounds = array<i64: 128, 128>}, {transform_indices = @transform_2, window_bounds = array<i64: 1, 128>}, {transform_indices = @transform_3, window_bounds = array<i64: 16, 128>}]} {
    %c0_i32 = arith.constant 0 : i32
    %0 = arith.cmpi eq, %arg2, %c0_i32 : i32
    %1 = arith.extui %0 : i1 to i32
    %c0_i32_0 = arith.constant 0 : i32
    %2 = arith.cmpi ne, %1, %c0_i32_0 : i32
    scf.if %2 {
      %cst_10 = arith.constant 0.000000e+00 : f32
      %12 = vector.broadcast %cst_10 : f32 to vector<16x128xf32>
      %c0_11 = arith.constant 0 : index
      %c0_12 = arith.constant 0 : index
      %13 = vector.load %arg7[%c0_11, %c0_12] : memref<16x128xf32, #tpu.memory_space<vmem>>, vector<16x128xf32>
      tpu.vector_store %arg7[%c0_11, %c0_12], %12 {strides = array<i32>} : memref<16x128xf32, #tpu.memory_space<vmem>>, vector<16x128xf32>,
    } else {
    }
    %c0 = arith.constant 0 : index
    %c0_1 = arith.constant 0 : index
    %3 = vector.load %arg7[%c0, %c0_1] : memref<16x128xf32, #tpu.memory_space<vmem>>, vector<16x128xf32>
    %c0_2 = arith.constant 0 : index
    %c0_3 = arith.constant 0 : index
    %4 = vector.load %arg3[%c0_2, %c0_3] : memref<16x128xbf16, #tpu.memory_space<vmem>>, vector<16x128xbf16>
    %c0_4 = arith.constant 0 : index
    %c0_5 = arith.constant 0 : index
    %5 = vector.load %arg4[%c0_4, %c0_5] : memref<128x128xbf16, #tpu.memory_space<vmem>>, vector<128x128xbf16>
    %cst = arith.constant dense<0.000000e+00> : vector<16x128xf32>
    %6 = tpu.matmul %4, %5, %cst {dimension_numbers = #tpu.dot_dimension_numbers<[1], [0], [0], [1], [0, 0, 1, 1], [], []>} : vector<16x128xbf16>, vector<128x128xbf16>, vector<16x128xf32> -> vector<16x128xf32>
    %7 = arith.addf %3, %6 : vector<16x128xf32>
    %c0_6 = arith.constant 0 : index
    %c0_7 = arith.constant 0 : index
    %8 = vector.load %arg7[%c0_6, %c0_7] : memref<16x128xf32, #tpu.memory_space<vmem>>, vector<16x128xf32>
    tpu.vector_store %arg7[%c0_6, %c0_7], %7 {strides = array<i32>} : memref<16x128xf32, #tpu.memory_space<vmem>>, vector<16x128xf32>,
    %c0_i32_8 = arith.constant 0 : i32
    %9 = arith.cmpi eq, %arg2, %c0_i32_8 : i32
    %10 = arith.extui %9 : i1 to i32
    %c0_i32_9 = arith.constant 0 : i32
    %11 = arith.cmpi ne, %10, %c0_i32_9 : i32
    scf.if %11 {
      %c0_10 = arith.constant 0 : index
      %c0_11 = arith.constant 0 : index
      %12 = vector.load %arg7[%c0_10, %c0_11] : memref<16x128xf32, #tpu.memory_space<vmem>>, vector<16x128xf32>
      %c0_12 = arith.constant 0 : index
      %c0_13 = arith.constant 0 : index
      %13 = vector.load %arg5[%c0_12, %c0_13] : memref<1x128xf32, #tpu.memory_space<vmem>>, vector<1x128xf32>
      %14 = vector.broadcast %13 : vector<1x128xf32> to vector<16x128xf32>
      %15 = arith.addf %12, %14 : vector<16x128xf32>
      %cst_14 = arith.constant 0.000000e+00 : f32
      %16 = vector.broadcast %cst_14 : f32 to vector<16x128xf32>
      %17 = arith.maximumf %15, %16 : vector<16x128xf32>
      %18 = arith.truncf %17 : vector<16x128xf32> to vector<16x128xbf16>
      %c0_15 = arith.constant 0 : index
      %c0_16 = arith.constant 0 : index
      %19 = vector.load %arg6[%c0_15, %c0_16] : memref<16x128xbf16, #tpu.memory_space<vmem>>, vector<16x128xbf16>
      tpu.vector_store %arg6[%c0_15, %c0_16], %18 {strides = array<i32>} : memref<16x128xbf16, #tpu.memory_space<vmem>>, vector<16x128xbf16>,
    } else {
    }
    return
  }
  func.func @transform_0(%arg0: i32, %arg1: i32, %arg2: i32) -> (i32, i32) {
    %c0_i32 = arith.constant 0 : i32
    return %arg0, %arg2 : i32, i32
  }
  func.func @transform_1(%arg0: i32, %arg1: i32, %arg2: i32) -> (i32, i32) {
    %c0_i32 = arith.constant 0 : i32
    return %arg2, %arg1 : i32, i32
  }
  func.func @transform_2(%arg0: i32, %arg1: i32, %arg2: i32) -> (i32, i32) {
    %c0_i32 = arith.constant 0 : i32
    %c0_i32_0 = arith.constant 0 : i32
    return %c0_i32, %arg1 : i32, i32
  }
  func.func @transform_3(%arg0: i32, %arg1: i32, %arg2: i32) -> (i32, i32) {
    %c0_i32 = arith.constant 0 : i32
    return %arg0, %arg1 : i32, i32
  }
}

module attributes {stable_mosaic.version = 11 : i64} {
  func.func @_gemm_bias_kernel(%arg0: i32, %arg1: i32, %arg2: i32, %arg3: memref<16x128xbf16, #tpu.memory_space<vmem>>, %arg4: memref<128x128xbf16, #tpu.memory_space<vmem>>, %arg5: memref<1x128xf32, #tpu.memory_space<vmem>>, %arg6: memref<16x128xbf16, #tpu.memory_space<vmem>>, %arg7: memref<16x128xf32, #tpu.memory_space<vmem>>) attributes {dimension_semantics = [#tpu.dimension_semantics<parallel>, #tpu.dimension_semantics<parallel>, #tpu.dimension_semantics<arbitrary>], iteration_bounds = array<i64: 1, 2, 1>, scalar_prefetch = 0 : i64, scratch_operands = 1 : i64, tpu.core_type = #tpu.core_type<tc>, window_params = [{transform_indices = @transform_0, window_bounds = array<i64: 16, 128>}, {transform_indices = @transform_1, window_bounds = array<i64: 128, 128>}, {transform_indices = @transform_2, window_bounds = array<i64: 1, 128>}, {transform_indices = @transform_3, window_bounds = array<i64: 16, 128>}]} {
    %c0_i32 = arith.constant 0 : i32
    %0 = arith.cmpi eq, %arg2, %c0_i32 : i32
    %1 = arith.extui %0 : i1 to i32
    %c0_i32_0 = arith.constant 0 : i32
    %2 = arith.cmpi ne, %1, %c0_i32_0 : i32
    scf.if %2 {
      %cst_10 = arith.constant 0.000000e+00 : f32
      %12 = vector.broadcast %cst_10 : f32 to vector<16x128xf32>
      %c0_11 = arith.constant 0 : index
      %c0_12 = arith.constant 0 : index
      %13 = vector.load %arg7[%c0_11, %c0_12] : memref<16x128xf32, #tpu.memory_space<vmem>>, vector<16x128xf32>
      tpu.vector_store %arg7[%c0_11, %c0_12], %12 {strides = array<i32>} : memref<16x128xf32, #tpu.memory_space<vmem>>, vector<16x128xf32>,
    } else {
    }
    %c0 = arith.constant 0 : index
    %c0_1 = arith.constant 0 : index
    %3 = vector.load %arg7[%c0, %c0_1] : memref<16x128xf32, #tpu.memory_space<vmem>>, vector<16x128xf32>
    %c0_2 = arith.constant 0 : index
    %c0_3 = arith.constant 0 : index
    %4 = vector.load %arg3[%c0_2, %c0_3] : memref<16x128xbf16, #tpu.memory_space<vmem>>, vector<16x128xbf16>
    %c0_4 = arith.constant 0 : index
    %c0_5 = arith.constant 0 : index
    %5 = vector.load %arg4[%c0_4, %c0_5] : memref<128x128xbf16, #tpu.memory_space<vmem>>, vector<128x128xbf16>
    %cst = arith.constant dense<0.000000e+00> : vector<16x128xf32>
    %6 = tpu.matmul %4, %5, %cst {dimension_numbers = #tpu.dot_dimension_numbers<[1], [0], [0], [1], [0, 0, 1, 1], [], []>} : vector<16x128xbf16>, vector<128x128xbf16>, vector<16x128xf32> -> vector<16x128xf32>
    %7 = arith.addf %3, %6 : vector<16x128xf32>
    %c0_6 = arith.constant 0 : index
    %c0_7 = arith.constant 0 : index
    %8 = vector.load %arg7[%c0_6, %c0_7] : memref<16x128xf32, #tpu.memory_space<vmem>>, vector<16x128xf32>
    tpu.vector_store %arg7[%c0_6, %c0_7], %7 {strides = array<i32>} : memref<16x128xf32, #tpu.memory_space<vmem>>, vector<16x128xf32>,
    %c0_i32_8 = arith.constant 0 : i32
    %9 = arith.cmpi eq, %arg2, %c0_i32_8 : i32
    %10 = arith.extui %9 : i1 to i32
    %c0_i32_9 = arith.constant 0 : i32
    %11 = arith.cmpi ne, %10, %c0_i32_9 : i32
    scf.if %11 {
      %c0_10 = arith.constant 0 : index
      %c0_11 = arith.constant 0 : index
      %12 = vector.load %arg7[%c0_10, %c0_11] : memref<16x128xf32, #tpu.memory_space<vmem>>, vector<16x128xf32>
      %c0_12 = arith.constant 0 : index
      %c0_13 = arith.constant 0 : index
      %13 = vector.load %arg5[%c0_12, %c0_13] : memref<1x128xf32, #tpu.memory_space<vmem>>, vector<1x128xf32>
      %14 = vector.broadcast %13 : vector<1x128xf32> to vector<16x128xf32>
      %15 = arith.addf %12, %14 : vector<16x128xf32>
      %16 = arith.truncf %15 : vector<16x128xf32> to vector<16x128xbf16>
      %c0_14 = arith.constant 0 : index
      %c0_15 = arith.constant 0 : index
      %17 = vector.load %arg6[%c0_14, %c0_15] : memref<16x128xbf16, #tpu.memory_space<vmem>>, vector<16x128xbf16>
      tpu.vector_store %arg6[%c0_14, %c0_15], %16 {strides = array<i32>} : memref<16x128xbf16, #tpu.memory_space<vmem>>, vector<16x128xbf16>,
    } else {
    }
    return
  }
  func.func @transform_0(%arg0: i32, %arg1: i32, %arg2: i32) -> (i32, i32) {
    %c0_i32 = arith.constant 0 : i32
    return %arg0, %arg2 : i32, i32
  }
  func.func @transform_1(%arg0: i32, %arg1: i32, %arg2: i32) -> (i32, i32) {
    %c0_i32 = arith.constant 0 : i32
    return %arg2, %arg1 : i32, i32
  }
  func.func @transform_2(%arg0: i32, %arg1: i32, %arg2: i32) -> (i32, i32) {
    %c0_i32 = arith.constant 0 : i32
    %c0_i32_0 = arith.constant 0 : i32
    return %c0_i32, %arg1 : i32, i32
  }
  func.func @transform_3(%arg0: i32, %arg1: i32, %arg2: i32) -> (i32, i32) {
    %c0_i32 = arith.constant 0 : i32
    return %arg0, %arg1 : i32, i32
  }
}

module attributes {stable_mosaic.version = 11 : i64} {
  func.func @_gemm_bias_kernel(%arg0: i32, %arg1: i32, %arg2: i32, %arg3: memref<16x576xbf16, #tpu.memory_space<vmem>>, %arg4: memref<576x128xbf16, #tpu.memory_space<vmem>>, %arg5: memref<1x128xf32, #tpu.memory_space<vmem>>, %arg6: memref<16x128xbf16, #tpu.memory_space<vmem>>, %arg7: memref<16x128xf32, #tpu.memory_space<vmem>>) attributes {dimension_semantics = [#tpu.dimension_semantics<parallel>, #tpu.dimension_semantics<parallel>, #tpu.dimension_semantics<arbitrary>], iteration_bounds = array<i64: 1, 1, 1>, scalar_prefetch = 0 : i64, scratch_operands = 1 : i64, tpu.core_type = #tpu.core_type<tc>, window_params = [{transform_indices = @transform_0, window_bounds = array<i64: 16, 576>}, {transform_indices = @transform_1, window_bounds = array<i64: 576, 128>}, {transform_indices = @transform_2, window_bounds = array<i64: 1, 128>}, {transform_indices = @transform_3, window_bounds = array<i64: 16, 128>}]} {
    %c0_i32 = arith.constant 0 : i32
    %0 = arith.cmpi eq, %arg2, %c0_i32 : i32
    %1 = arith.extui %0 : i1 to i32
    %c0_i32_0 = arith.constant 0 : i32
    %2 = arith.cmpi ne, %1, %c0_i32_0 : i32
    scf.if %2 {
      %cst_10 = arith.constant 0.000000e+00 : f32
      %12 = vector.broadcast %cst_10 : f32 to vector<16x128xf32>
      %c0_11 = arith.constant 0 : index
      %c0_12 = arith.constant 0 : index
      %13 = vector.load %arg7[%c0_11, %c0_12] : memref<16x128xf32, #tpu.memory_space<vmem>>, vector<16x128xf32>
      tpu.vector_store %arg7[%c0_11, %c0_12], %12 {strides = array<i32>} : memref<16x128xf32, #tpu.memory_space<vmem>>, vector<16x128xf32>,
    } else {
    }
    %c0 = arith.constant 0 : index
    %c0_1 = arith.constant 0 : index
    %3 = vector.load %arg7[%c0, %c0_1] : memref<16x128xf32, #tpu.memory_space<vmem>>, vector<16x128xf32>
    %c0_2 = arith.constant 0 : index
    %c0_3 = arith.constant 0 : index
    %4 = vector.load %arg3[%c0_2, %c0_3] : memref<16x576xbf16, #tpu.memory_space<vmem>>, vector<16x576xbf16>
    %c0_4 = arith.constant 0 : index
    %c0_5 = arith.constant 0 : index
    %5 = vector.load %arg4[%c0_4, %c0_5] : memref<576x128xbf16, #tpu.memory_space<vmem>>, vector<576x128xbf16>
    %cst = arith.constant dense<0.000000e+00> : vector<16x128xf32>
    %6 = tpu.matmul %4, %5, %cst {dimension_numbers = #tpu.dot_dimension_numbers<[1], [0], [0], [1], [0, 0, 1, 1], [], []>} : vector<16x576xbf16>, vector<576x128xbf16>, vector<16x128xf32> -> vector<16x128xf32>
    %7 = arith.addf %3, %6 : vector<16x128xf32>
    %c0_6 = arith.constant 0 : index
    %c0_7 = arith.constant 0 : index
    %8 = vector.load %arg7[%c0_6, %c0_7] : memref<16x128xf32, #tpu.memory_space<vmem>>, vector<16x128xf32>
    tpu.vector_store %arg7[%c0_6, %c0_7], %7 {strides = array<i32>} : memref<16x128xf32, #tpu.memory_space<vmem>>, vector<16x128xf32>,
    %c0_i32_8 = arith.constant 0 : i32
    %9 = arith.cmpi eq, %arg2, %c0_i32_8 : i32
    %10 = arith.extui %9 : i1 to i32
    %c0_i32_9 = arith.constant 0 : i32
    %11 = arith.cmpi ne, %10, %c0_i32_9 : i32
    scf.if %11 {
      %c0_10 = arith.constant 0 : index
      %c0_11 = arith.constant 0 : index
      %12 = vector.load %arg7[%c0_10, %c0_11] : memref<16x128xf32, #tpu.memory_space<vmem>>, vector<16x128xf32>
      %c0_12 = arith.constant 0 : index
      %c0_13 = arith.constant 0 : index
      %13 = vector.load %arg5[%c0_12, %c0_13] : memref<1x128xf32, #tpu.memory_space<vmem>>, vector<1x128xf32>
      %14 = vector.broadcast %13 : vector<1x128xf32> to vector<16x128xf32>
      %15 = arith.addf %12, %14 : vector<16x128xf32>
      %cst_14 = arith.constant 0.000000e+00 : f32
      %16 = vector.broadcast %cst_14 : f32 to vector<16x128xf32>
      %17 = arith.maximumf %15, %16 : vector<16x128xf32>
      %18 = arith.truncf %17 : vector<16x128xf32> to vector<16x128xbf16>
      %c0_15 = arith.constant 0 : index
      %c0_16 = arith.constant 0 : index
      %19 = vector.load %arg6[%c0_15, %c0_16] : memref<16x128xbf16, #tpu.memory_space<vmem>>, vector<16x128xbf16>
      tpu.vector_store %arg6[%c0_15, %c0_16], %18 {strides = array<i32>} : memref<16x128xbf16, #tpu.memory_space<vmem>>, vector<16x128xbf16>,
    } else {
    }
    return
  }
  func.func @transform_0(%arg0: i32, %arg1: i32, %arg2: i32) -> (i32, i32) {
    %c0_i32 = arith.constant 0 : i32
    return %arg0, %arg2 : i32, i32
  }
  func.func @transform_1(%arg0: i32, %arg1: i32, %arg2: i32) -> (i32, i32) {
    %c0_i32 = arith.constant 0 : i32
    return %arg2, %arg1 : i32, i32
  }
  func.func @transform_2(%arg0: i32, %arg1: i32, %arg2: i32) -> (i32, i32) {
    %c0_i32 = arith.constant 0 : i32
    %c0_i32_0 = arith.constant 0 : i32
    return %c0_i32, %arg1 : i32, i32
  }
  func.func @transform_3(%arg0: i32, %arg1: i32, %arg2: i32) -> (i32, i32) {
    %c0_i32 = arith.constant 0 : i32
    return %arg0, %arg1 : i32, i32
  }
}

module attributes {stable_mosaic.version = 11 : i64} {
  func.func @_gemm_bias_res_kernel(%arg0: i32, %arg1: i32, %arg2: i32, %arg3: memref<16x64xbf16, #tpu.memory_space<vmem>>, %arg4: memref<64x128xbf16, #tpu.memory_space<vmem>>, %arg5: memref<1x128xf32, #tpu.memory_space<vmem>>, %arg6: memref<16x128xbf16, #tpu.memory_space<vmem>>, %arg7: memref<16x128xbf16, #tpu.memory_space<vmem>>, %arg8: memref<16x128xf32, #tpu.memory_space<vmem>>) attributes {dimension_semantics = [#tpu.dimension_semantics<parallel>, #tpu.dimension_semantics<parallel>, #tpu.dimension_semantics<arbitrary>], iteration_bounds = array<i64: 1, 2, 1>, scalar_prefetch = 0 : i64, scratch_operands = 1 : i64, tpu.core_type = #tpu.core_type<tc>, window_params = [{transform_indices = @transform_0, window_bounds = array<i64: 16, 64>}, {transform_indices = @transform_1, window_bounds = array<i64: 64, 128>}, {transform_indices = @transform_2, window_bounds = array<i64: 1, 128>}, {transform_indices = @transform_3, window_bounds = array<i64: 16, 128>}, {transform_indices = @transform_4, window_bounds = array<i64: 16, 128>}]} {
    %c0_i32 = arith.constant 0 : i32
    %0 = arith.cmpi eq, %arg2, %c0_i32 : i32
    %1 = arith.extui %0 : i1 to i32
    %c0_i32_0 = arith.constant 0 : i32
    %2 = arith.cmpi ne, %1, %c0_i32_0 : i32
    scf.if %2 {
      %cst_10 = arith.constant 0.000000e+00 : f32
      %12 = vector.broadcast %cst_10 : f32 to vector<16x128xf32>
      %c0_11 = arith.constant 0 : index
      %c0_12 = arith.constant 0 : index
      %13 = vector.load %arg8[%c0_11, %c0_12] : memref<16x128xf32, #tpu.memory_space<vmem>>, vector<16x128xf32>
      tpu.vector_store %arg8[%c0_11, %c0_12], %12 {strides = array<i32>} : memref<16x128xf32, #tpu.memory_space<vmem>>, vector<16x128xf32>,
    } else {
    }
    %c0 = arith.constant 0 : index
    %c0_1 = arith.constant 0 : index
    %3 = vector.load %arg8[%c0, %c0_1] : memref<16x128xf32, #tpu.memory_space<vmem>>, vector<16x128xf32>
    %c0_2 = arith.constant 0 : index
    %c0_3 = arith.constant 0 : index
    %4 = vector.load %arg3[%c0_2, %c0_3] : memref<16x64xbf16, #tpu.memory_space<vmem>>, vector<16x64xbf16>
    %c0_4 = arith.constant 0 : index
    %c0_5 = arith.constant 0 : index
    %5 = vector.load %arg4[%c0_4, %c0_5] : memref<64x128xbf16, #tpu.memory_space<vmem>>, vector<64x128xbf16>
    %cst = arith.constant dense<0.000000e+00> : vector<16x128xf32>
    %6 = tpu.matmul %4, %5, %cst {dimension_numbers = #tpu.dot_dimension_numbers<[1], [0], [0], [1], [0, 0, 1, 1], [], []>} : vector<16x64xbf16>, vector<64x128xbf16>, vector<16x128xf32> -> vector<16x128xf32>
    %7 = arith.addf %3, %6 : vector<16x128xf32>
    %c0_6 = arith.constant 0 : index
    %c0_7 = arith.constant 0 : index
    %8 = vector.load %arg8[%c0_6, %c0_7] : memref<16x128xf32, #tpu.memory_space<vmem>>, vector<16x128xf32>
    tpu.vector_store %arg8[%c0_6, %c0_7], %7 {strides = array<i32>} : memref<16x128xf32, #tpu.memory_space<vmem>>, vector<16x128xf32>,
    %c0_i32_8 = arith.constant 0 : i32
    %9 = arith.cmpi eq, %arg2, %c0_i32_8 : i32
    %10 = arith.extui %9 : i1 to i32
    %c0_i32_9 = arith.constant 0 : i32
    %11 = arith.cmpi ne, %10, %c0_i32_9 : i32
    scf.if %11 {
      %c0_10 = arith.constant 0 : index
      %c0_11 = arith.constant 0 : index
      %12 = vector.load %arg8[%c0_10, %c0_11] : memref<16x128xf32, #tpu.memory_space<vmem>>, vector<16x128xf32>
      %c0_12 = arith.constant 0 : index
      %c0_13 = arith.constant 0 : index
      %13 = vector.load %arg5[%c0_12, %c0_13] : memref<1x128xf32, #tpu.memory_space<vmem>>, vector<1x128xf32>
      %14 = vector.broadcast %13 : vector<1x128xf32> to vector<16x128xf32>
      %15 = arith.addf %12, %14 : vector<16x128xf32>
      %c0_14 = arith.constant 0 : index
      %c0_15 = arith.constant 0 : index
      %16 = vector.load %arg6[%c0_14, %c0_15] : memref<16x128xbf16, #tpu.memory_space<vmem>>, vector<16x128xbf16>
      %17 = arith.extf %16 : vector<16x128xbf16> to vector<16x128xf32>
      %18 = arith.addf %15, %17 : vector<16x128xf32>
      %cst_16 = arith.constant 0.000000e+00 : f32
      %19 = vector.broadcast %cst_16 : f32 to vector<16x128xf32>
      %20 = arith.maximumf %18, %19 : vector<16x128xf32>
      %21 = arith.truncf %20 : vector<16x128xf32> to vector<16x128xbf16>
      %c0_17 = arith.constant 0 : index
      %c0_18 = arith.constant 0 : index
      %22 = vector.load %arg7[%c0_17, %c0_18] : memref<16x128xbf16, #tpu.memory_space<vmem>>, vector<16x128xbf16>
      tpu.vector_store %arg7[%c0_17, %c0_18], %21 {strides = array<i32>} : memref<16x128xbf16, #tpu.memory_space<vmem>>, vector<16x128xbf16>,
    } else {
    }
    return
  }
  func.func @transform_0(%arg0: i32, %arg1: i32, %arg2: i32) -> (i32, i32) {
    %c0_i32 = arith.constant 0 : i32
    return %arg0, %arg2 : i32, i32
  }
  func.func @transform_1(%arg0: i32, %arg1: i32, %arg2: i32) -> (i32, i32) {
    %c0_i32 = arith.constant 0 : i32
    return %arg2, %arg1 : i32, i32
  }
  func.func @transform_2(%arg0: i32, %arg1: i32, %arg2: i32) -> (i32, i32) {
    %c0_i32 = arith.constant 0 : i32
    %c0_i32_0 = arith.constant 0 : i32
    return %c0_i32, %arg1 : i32, i32
  }
  func.func @transform_3(%arg0: i32, %arg1: i32, %arg2: i32) -> (i32, i32) {
    %c0_i32 = arith.constant 0 : i32
    return %arg0, %arg1 : i32, i32
  }
  func.func @transform_4(%arg0: i32, %arg1: i32, %arg2: i32) -> (i32, i32) {
    %c0_i32 = arith.constant 0 : i32
    return %arg0, %arg1 : i32, i32
  }
}

</mosaic_0001>

<llo_original>
// kernel: _lambda_.19
$region0: #{_lambda_.19}
  #allocation0 [shape = 'u32[]', space=smem, size = 0x4, offset = 0x4, fixed_abs, tag = 'smem constant byte address 0x4 - core index']
  #allocation1 [shape = 'u32[144,128]{1,0:T(1,128)}', space=vmem, size = 0x12000, scoped, tag = 'internal scratch']
  #allocation2 [shape = 'f32[256,128]{1,0:T(8,128)}', space=vmem, size = 0x20000, scoped, tag = 'scratch operand']
  %s0 = inlined_call_operand.vmem [shape: bf16[512,32], index: 0, kind: input, shape index: {}]
  %s1 = inlined_call_operand.vmem [shape: bf16[32,128], index: 1, kind: input, shape index: {}]
  %s2 = inlined_call_operand.vmem [shape: f32[1,128], index: 2, kind: input, shape index: {}]
  %s3 = inlined_call_operand.vmem [shape: bf16[512,128], index: 3, kind: output, shape index: {}]
  %s4 = sld [smem:[#allocation0]]
  $region53: #{_lambda_.19} parent=0
    _
  %s6 = ssub.s32 1, %s4
  %s7 = scalar_select 0, %s6, %s4
  loop: start=0, step=1, limit=4
  $region2: #{_lambda_.19} parent=0 // loop_pre_header
    _
  $region3: #{_lambda_.19} parent=0 // loop_header
    %s9 = sphi 0, %s13
    %p10 = scmp.ge.s32.totalorder %s9, 4
    %s16 = sphi 0, %s35
    %s17 = sphi 0, %s31
    %s18 = sphi 0, %s27
    %s19 = sphi 0, %s16
    %s20 = sphi 0, %s17
    %s21 = sphi 0, %s18
    %s22 = sphi 0, %s19
    %s23 = sphi 0, %s20
    %s24 = sphi 0, %s21
    %s40 = sphi 0, %s42
    %s43 = sphi 0, %s40
    %s44 = sphi 0, %s43
    %s60 = sphi 0, %s44
    %s68 = sphi 0, %s70
    %s71 = sphi 0, %s68
    %s72 = sphi 0, %s71
    %s88 = sphi 0, %s72
    %s94 = sphi 0, %s96
    %s97 = sphi 0, %s94
    %s98 = sphi 0, %s97
    %s114 = sphi 0, %s98
    %s122 = sphi 0, %s124
    %s125 = sphi 0, %s122
    %s126 = sphi 0, %s125
    %s142 = sphi 0, %s126
  $region4: #{_lambda_.19} parent=0 // loop_header_branch
    %12 = sbr.rel (%p10) target = $region8
  $region5: #{_lambda_.19} parent=0 // loop_body
    %s14 = ssub.s32 %s9, 1
    %s15 = ssub.s32 %s9, 2
    %s25 = sadd.s32 1, %s18
    %p26 = scmp.ge.s32.totalorder %s25, 1
    %s27 = scalar_select %p26, 0, %s25
    %s28 = sadd.s32 1, %s17
    %s29 = scalar_select %p26, %s28, %s17
    %p30 = scmp.ge.s32.totalorder %s29, 1
    %s31 = scalar_select %p30, 0, %s29
    %s32 = sadd.s32 1, %s16
    %s33 = scalar_select %p30, %s32, %s16
    %p34 = scmp.ge.s32.totalorder %s33, 2
    %s35 = scalar_select %p34, 0, %s33
    %s36 = ssub.s32 %s16, %s35
    %s37 = ssub.s32 %s18, %s27
    %s38 = sor.u32 %s36, %s37
    %p39 = scmp.eq.s32.totalorder %s38, 0
    %s41 = sadd.s32 %s40, 1
    %s42 = scalar_select %p39, %s40, %s41
    %p45 = pneg %p39
    %p46 = scmp.eq.s32.totalorder %s9, 1
    %p47 = por %p45, %p46
    %p48 = scmp.ne.s32.totalorder %s40, %s43
    %p49 = scmp.eq.s32.totalorder %s9, 0
    %p50 = por %p48, %p49
    %p51 = scmp.ne.s32.totalorder %s40, %s43
    %p52 = scmp.eq.s32.totalorder %s14, 1
    %p53 = por %p51, %p52
    %p54 = scmp.ne.s32.totalorder %s43, %s44
    %p55 = scmp.eq.s32.totalorder %s14, 0
    %p56 = por %p54, %p55
    %p57 = scmp.ne.s32.totalorder %s43, %s44
    %p58 = scmp.eq.s32.totalorder %s15, 1
    %p59 = por %p57, %p58
    %p61 = scmp.ne.s32.totalorder %s44, %s60
    %p62 = scmp.eq.s32.totalorder %s15, 0
    %p63 = por %p61, %p62
    %s64 = ssub.s32 %s18, %s27
    %s65 = ssub.s32 %s17, %s31
    %s66 = sor.u32 %s64, %s65
    %p67 = scmp.eq.s32.totalorder %s66, 0
    %s69 = sadd.s32 %s68, 1
    %s70 = scalar_select %p67, %s68, %s69
    %p73 = pneg %p67
    %p74 = scmp.eq.s32.totalorder %s9, 1
    %p75 = por %p73, %p74
    %p76 = scmp.ne.s32.totalorder %s68, %s71
    %p77 = scmp.eq.s32.totalorder %s9, 0
    %p78 = por %p76, %p77
    %p79 = scmp.ne.s32.totalorder %s68, %s71
    %p80 = scmp.eq.s32.totalorder %s14, 1
    %p81 = por %p79, %p80
    %p82 = scmp.ne.s32.totalorder %s71, %s72
    %p83 = scmp.eq.s32.totalorder %s14, 0
    %p84 = por %p82, %p83
    %p85 = scmp.ne.s32.totalorder %s71, %s72
    %p86 = scmp.eq.s32.totalorder %s15, 1
    %p87 = por %p85, %p86
    %p89 = scmp.ne.s32.totalorder %s72, %s88
    %p90 = scmp.eq.s32.totalorder %s15, 0
    %p91 = por %p89, %p90
    %s92 = ssub.s32 %s17, %s31
    %p93 = scmp.eq.s32.totalorder %s92, 0
    %s95 = sadd.s32 %s94, 1
    %s96 = scalar_select %p93, %s94, %s95
    %p99 = pneg %p93
    %p100 = scmp.eq.s32.totalorder %s9, 1
    %p101 = por %p99, %p100
    %p102 = scmp.ne.s32.totalorder %s94, %s97
    %p103 = scmp.eq.s32.totalorder %s9, 0
    %p104 = por %p102, %p103
    %p105 = scmp.ne.s32.totalorder %s94, %s97
    %p106 = scmp.eq.s32.totalorder %s14, 1
    %p107 = por %p105, %p106
    %p108 = scmp.ne.s32.totalorder %s97, %s98
    %p109 = scmp.eq.s32.totalorder %s14, 0
    %p110 = por %p108, %p109
    %p111 = scmp.ne.s32.totalorder %s97, %s98
    %p112 = scmp.eq.s32.totalorder %s15, 1
    %p113 = por %p111, %p112
    %p115 = scmp.ne.s32.totalorder %s98, %s114
    %p116 = scmp.eq.s32.totalorder %s15, 0
    %p117 = por %p115, %p116
    %s118 = ssub.s32 %s16, %s35
    %s119 = ssub.s32 %s17, %s31
    %s120 = sor.u32 %s118, %s119
    %p121 = scmp.eq.s32.totalorder %s120, 0
    %s123 = sadd.s32 %s122, 1
    %s124 = scalar_select %p121, %s122, %s123
    %p127 = pneg %p121
    %p128 = scmp.eq.s32.totalorder %s9, 1
    %p129 = por %p127, %p128
    %p130 = scmp.ne.s32.totalorder %s122, %s125
    %p131 = scmp.eq.s32.totalorder %s9, 0
    %p132 = por %p130, %p131
    %p133 = scmp.ne.s32.totalorder %s122, %s125
    %p134 = scmp.eq.s32.totalorder %s14, 1
    %p135 = por %p133, %p134
    %p136 = scmp.ne.s32.totalorder %s125, %s126
    %p137 = scmp.eq.s32.totalorder %s14, 0
    %p138 = por %p136, %p137
    %p139 = scmp.ne.s32.totalorder %s125, %s126
    %p140 = scmp.eq.s32.totalorder %s15, 1
    %p141 = por %p139, %p140
    %p143 = scmp.ne.s32.totalorder %s126, %s142
    %p144 = scmp.eq.s32.totalorder %s15, 0
    %p145 = por %p143, %p144
    %p146 = scmp.le.s32.totalorder 1, %s9
    %p147 = scmp.lt.s32.totalorder %s9, 3
    %p148 = pnand %p146, %p147
    %p149 = pneg %p148
    // Predicated region
    $region9: #{_lambda_.19} parent=5 // pred_check
      _
    $region10: #{_lambda_.19} parent=5 // pred_check_branch
      %151 = sbr.rel (%p148) target = $region12
    $region11: #{_lambda_.19} parent=5 // pred_region
      %s152 = ssub.s32 %s9, 1
      // Predicated region
      $region13: #{_lambda_.19} parent=11 // pred_check
        %p153 = pneg %p84
      $region14: #{_lambda_.19} parent=11 // pred_check_branch
        %155 = sbr.rel (%p153) target = $region16
      $region15: #{_lambda_.19} parent=11 // pred_region
        %s156 = smul.u32 4, %s21
        %p157 = scmp.lt.s32.totalorder %s156, 3
        %s158 = scalar_select %p157, %s156, 3
        %p159 = scmp.lt.s32.totalorder %s20, 0
        %s160 = scalar_select %p159, %s20, 0
        %s161 = sadd.s32 %s160, %s158
        %s162 = smul.addr %s161, 4
        %s163 = scalar_lea.vmem %s1, %s162
        %s164 = smul.u32 4, %s21
      $region16: #{_lambda_.19} parent=11 // pred_fallthru
        _
      // Predicated region
      $region17: #{_lambda_.19} parent=11 // pred_check
        %p165 = pneg %p110
      $region18: #{_lambda_.19} parent=11 // pred_check_branch
        %167 = sbr.rel (%p165) target = $region20
      $region19: #{_lambda_.19} parent=11 // pred_region
        %p168 = scmp.lt.s32.totalorder %s20, 0
        %s169 = scalar_select %p168, %s20, 0
        %s170 = scalar_lea.vmem %s2, %s169
      $region20: #{_lambda_.19} parent=11 // pred_fallthru
        _
    $region12: #{_lambda_.19} parent=5 // pred_fallthru
      _
    %p171 = scmp.lt.s32.totalorder %s9, 2
    // Predicated region
    $region21: #{_lambda_.19} parent=5 // pred_check
      %p172 = pneg %p171
    $region22: #{_lambda_.19} parent=5 // pred_check_branch
      %174 = sbr.rel (%p172) target = $region24
    $region23: #{_lambda_.19} parent=5 // pred_region
      // Predicated region
      $region25: #{_lambda_.19} parent=23 // pred_check
        %p175 = pneg %p50
      $region26: #{_lambda_.19} parent=23 // pred_check_branch
        %177 = sbr.rel (%p175) target = $region28
      $region27: #{_lambda_.19} parent=23 // pred_region
        %s178 = smul.u32 32, %s16
        %p179 = scmp.lt.s32.totalorder %s178, 63
        %s180 = scalar_select %p179, %s178, 63
        %p181 = scmp.lt.s32.totalorder %s18, 0
        %s182 = scalar_select %p181, %s18, 0
        %s183 = sadd.s32 %s182, %s180
        %s184 = smul.addr %s183, 4
        %s185 = scalar_lea.vmem %s0, %s184
        %s186 = smul.u32 32, %s16
      $region28: #{_lambda_.19} parent=23 // pred_fallthru
        _
    $region24: #{_lambda_.19} parent=5 // pred_fallthru
      _
    %p187 = scmp.le.s32.totalorder 1, %s9
    %p188 = scmp.lt.s32.totalorder %s9, 3
    %p189 = pnand %p187, %p188
    %p190 = pneg %p189
    // Predicated region
    $region29: #{_lambda_.19} parent=5 // pred_check
      _
    $region30: #{_lambda_.19} parent=5 // pred_check_branch
      %192 = sbr.rel (%p189) target = $region32
    $region31: #{_lambda_.19} parent=5 // pred_region
      %s193 = ssub.s32 %s9, 1
      %s194 = smul.u32 32, %s19
      %p195 = scmp.lt.s32.totalorder %s194, 63
      %s196 = scalar_select %p195, %s194, 63
      %p197 = scmp.lt.s32.totalorder %s21, 0
      %s198 = scalar_select %p197, %s21, 0
      %s199 = sadd.s32 %s198, %s196
      %s200 = smul.addr %s199, 4
      %s201 = scalar_lea.vmem %s0, %s200
      %p202 = pneg %p56
      %p203 = pneg %p53
      %s204 = smul.u32 4, %s21
      %p205 = scmp.lt.s32.totalorder %s204, 3
      %s206 = scalar_select %p205, %s204, 3
      %p207 = scmp.lt.s32.totalorder %s20, 0
      %s208 = scalar_select %p207, %s20, 0
      %s209 = sadd.s32 %s208, %s206
      %s210 = smul.addr %s209, 4
      %s211 = scalar_lea.vmem %s1, %s210
      %p212 = pneg %p84
      %p213 = pneg %p81
      %p214 = scmp.lt.s32.totalorder %s20, 0
      %s215 = scalar_select %p214, %s20, 0
      %s216 = scalar_lea.vmem %s2, %s215
      %p217 = pneg %p110
      %p218 = pneg %p107
      %p219 = pneg %p138
      %p220 = pneg %p135
      %s221 = smul.u32 32, %s19
      %p222 = scmp.lt.s32.totalorder %s221, 63
      %s223 = scalar_select %p222, %s221, 63
      %p224 = scmp.lt.s32.totalorder %s20, 0
      %s225 = scalar_select %p224, %s20, 0
      %s226 = sadd.s32 %s225, %s223
      %s227 = smul.addr %s226, 4
      %s228 = scalar_lea.vmem %s3, %s227
      %s229 = smul.u32 32, %s19
      %p230 = scmp.lt.s32.totalorder %s229, 63
      %s231 = scalar_select %p230, %s229, 63
      %p232 = scmp.lt.s32.totalorder %s21, 0
      %s233 = scalar_select %p232, %s21, 0
      %s234 = sadd.s32 %s233, %s231
      %s235 = smul.addr %s234, 4
      %s236 = scalar_lea.vmem %s0, %s235
      %s237 = smul.u32 32, %s19
      %s238 = smul.u32 4, %s21
      %p239 = scmp.lt.s32.totalorder %s238, 3
      %s240 = scalar_select %p239, %s238, 3
      %p241 = scmp.lt.s32.totalorder %s20, 0
      %s242 = scalar_select %p241, %s20, 0
      %s243 = sadd.s32 %s242, %s240
      %s244 = smul.addr %s243, 4
      %s245 = scalar_lea.vmem %s1, %s244
      %s246 = smul.u32 4, %s21
      %p247 = scmp.lt.s32.totalorder %s20, 0
      %s248 = scalar_select %p247, %s20, 0
      %s249 = scalar_lea.vmem %s2, %s248
      %s250 = smul.u32 32, %s19
      %p251 = scmp.lt.s32.totalorder %s250, 63
      %s252 = scalar_select %p251, %s250, 63
      %p253 = scmp.lt.s32.totalorder %s20, 0
      %s254 = scalar_select %p253, %s20, 0
      %s255 = sadd.s32 %s254, %s252
      %s256 = smul.addr %s255, 4
      %s257 = scalar_lea.vmem %s3, %s256
      %s258 = smul.u32 32, %s19
      %p260 = scmp.eq.s32.totalorder %s21, 0
      // Predicated region
      $region33: #{_lambda_.19} parent=31 // pred_check
        %p261 = pneg %p260
      $region34: #{_lambda_.19} parent=31 // pred_check_branch
        %263 = sbr.rel (%p261) target = $region36
      $region35: #{_lambda_.19} parent=31 // pred_region
        %264 = vst [vmem:[#allocation2] sm:$0xff] 0.0
        %265 = vst [vmem:[#allocation2 + $0x8] sm:$0xff] 0.0
        %266 = vst [vmem:[#allocation2 + $0x10] sm:$0xff] 0.0
        %267 = vst [vmem:[#allocation2 + $0x18] sm:$0xff] 0.0
        %268 = vst [vmem:[#allocation2 + $0x20] sm:$0xff] 0.0
        %269 = vst [vmem:[#allocation2 + $0x28] sm:$0xff] 0.0
        %270 = vst [vmem:[#allocation2 + $0x30] sm:$0xff] 0.0
        %271 = vst [vmem:[#allocation2 + $0x38] sm:$0xff] 0.0
        %272 = vst [vmem:[#allocation2 + $0x40] sm:$0xff] 0.0
        %273 = vst [vmem:[#allocation2 + $0x48] sm:$0xff] 0.0
        %274 = vst [vmem:[#allocation2 + $0x50] sm:$0xff] 0.0
        %275 = vst [vmem:[#allocation2 + $0x58] sm:$0xff] 0.0
        %276 = vst [vmem:[#allocation2 + $0x60] sm:$0xff] 0.0
        %277 = vst [vmem:[#allocation2 + $0x68] sm:$0xff] 0.0
        %278 = vst [vmem:[#allocation2 + $0x70] sm:$0xff] 0.0
        %279 = vst [vmem:[#allocation2 + $0x78] sm:$0xff] 0.0
        %280 = vst [vmem:[#allocation2 + $0x80] sm:$0xff] 0.0
        %281 = vst [vmem:[#allocation2 + $0x88] sm:$0xff] 0.0
        %282 = vst [vmem:[#allocation2 + $0x90] sm:$0xff] 0.0
        %283 = vst [vmem:[#allocation2 + $0x98] sm:$0xff] 0.0
        %284 = vst [vmem:[#allocation2 + $0xa0] sm:$0xff] 0.0
        %285 = vst [vmem:[#allocation2 + $0xa8] sm:$0xff] 0.0
        %286 = vst [vmem:[#allocation2 + $0xb0] sm:$0xff] 0.0
        %287 = vst [vmem:[#allocation2 + $0xb8] sm:$0xff] 0.0
        %288 = vst [vmem:[#allocation2 + $0xc0] sm:$0xff] 0.0
        %289 = vst [vmem:[#allocation2 + $0xc8] sm:$0xff] 0.0
        %290 = vst [vmem:[#allocation2 + $0xd0] sm:$0xff] 0.0
        %291 = vst [vmem:[#allocation2 + $0xd8] sm:$0xff] 0.0
        %292 = vst [vmem:[#allocation2 + $0xe0] sm:$0xff] 0.0
        %293 = vst [vmem:[#allocation2 + $0xe8] sm:$0xff] 0.0
        %294 = vst [vmem:[#allocation2 + $0xf0] sm:$0xff] 0.0
        %295 = vst [vmem:[#allocation2 + $0xf8] sm:$0xff] 0.0
      $region36: #{_lambda_.19} parent=31 // pred_fallthru
        _
      %v296 = vld [vmem:[#allocation2] sm:$0xff]
      %v297 = vld [vmem:[#allocation2 + $0x8] sm:$0xff]
      %v298 = vld [vmem:[#allocation2 + $0x10] sm:$0xff]
      %v299 = vld [vmem:[#allocation2 + $0x18] sm:$0xff]
      %v300 = vld [vmem:[#allocation2 + $0x20] sm:$0xff]
      %v301 = vld [vmem:[#allocation2 + $0x28] sm:$0xff]
      %v302 = vld [vmem:[#allocation2 + $0x30] sm:$0xff]
      %v303 = vld [vmem:[#allocation2 + $0x38] sm:$0xff]
      %v304 = vld [vmem:[#allocation2 + $0x40] sm:$0xff]
      %v305 = vld [vmem:[#allocation2 + $0x48] sm:$0xff]
      %v306 = vld [vmem:[#allocation2 + $0x50] sm:$0xff]
      %v307 = vld [vmem:[#allocation2 + $0x58] sm:$0xff]
      %v308 = vld [vmem:[#allocation2 + $0x60] sm:$0xff]
      %v309 = vld [vmem:[#allocation2 + $0x68] sm:$0xff]
      %v310 = vld [vmem:[#allocation2 + $0x70] sm:$0xff]
      %v311 = vld [vmem:[#allocation2 + $0x78] sm:$0xff]
      %v312 = vld [vmem:[#allocation2 + $0x80] sm:$0xff]
      %v313 = vld [vmem:[#allocation2 + $0x88] sm:$0xff]
      %v314 = vld [vmem:[#allocation2 + $0x90] sm:$0xff]
      %v315 = vld [vmem:[#allocation2 + $0x98] sm:$0xff]
      %v316 = vld [vmem:[#allocation2 + $0xa0] sm:$0xff]
      %v317 = vld [vmem:[#allocation2 + $0xa8] sm:$0xff]
      %v318 = vld [vmem:[#allocation2 + $0xb0] sm:$0xff]
      %v319 = vld [vmem:[#allocation2 + $0xb8] sm:$0xff]
      %v320 = vld [vmem:[#allocation2 + $0xc0] sm:$0xff]
      %v321 = vld [vmem:[#allocation2 + $0xc8] sm:$0xff]
      %v322 = vld [vmem:[#allocation2 + $0xd0] sm:$0xff]
      %v323 = vld [vmem:[#allocation2 + $0xd8] sm:$0xff]
      %v324 = vld [vmem:[#allocation2 + $0xe0] sm:$0xff]
      %v325 = vld [vmem:[#allocation2 + $0xe8] sm:$0xff]
      %v326 = vld [vmem:[#allocation2 + $0xf0] sm:$0xff]
      %v327 = vld [vmem:[#allocation2 + $0xf8] sm:$0xff]
      %v328 = vld [vmem:[%s236] sm:$0xf]
      %v329 = vld [vmem:[%s236 + $0x4] sm:$0xf]
      %v330 = vld [vmem:[%s236 + $0x8] sm:$0xf]
      %v331 = vld [vmem:[%s236 + $0xc] sm:$0xf]
      %v332 = vld [vmem:[%s236 + $0x10] sm:$0xf]
      %v333 = vld [vmem:[%s236 + $0x14] sm:$0xf]
      %v334 = vld [vmem:[%s236 + $0x18] sm:$0xf]
      %v335 = vld [vmem:[%s236 + $0x1c] sm:$0xf]
      %v336 = vld [vmem:[%s236 + $0x20] sm:$0xf]
      %v337 = vld [vmem:[%s236 + $0x24] sm:$0xf]
      %v338 = vld [vmem:[%s236 + $0x28] sm:$0xf]
      %v339 = vld [vmem:[%s236 + $0x2c] sm:$0xf]
      %v340 = vld [vmem:[%s236 + $0x30] sm:$0xf]
      %v341 = vld [vmem:[%s236 + $0x34] sm:$0xf]
      %v342 = vld [vmem:[%s236 + $0x38] sm:$0xf]
      %v343 = vld [vmem:[%s236 + $0x3c] sm:$0xf]
      %v344 = vld [vmem:[%s236 + $0x40] sm:$0xf]
      %v345 = vld [vmem:[%s236 + $0x44] sm:$0xf]
      %v346 = vld [vmem:[%s236 + $0x48] sm:$0xf]
      %v347 = vld [vmem:[%s236 + $0x4c] sm:$0xf]
      %v348 = vld [vmem:[%s236 + $0x50] sm:$0xf]
      %v349 = vld [vmem:[%s236 + $0x54] sm:$0xf]
      %v350 = vld [vmem:[%s236 + $0x58] sm:$0xf]
      %v351 = vld [vmem:[%s236 + $0x5c] sm:$0xf]
      %v352 = vld [vmem:[%s236 + $0x60] sm:$0xf]
      %v353 = vld [vmem:[%s236 + $0x64] sm:$0xf]
      %v354 = vld [vmem:[%s236 + $0x68] sm:$0xf]
      %v355 = vld [vmem:[%s236 + $0x6c] sm:$0xf]
      %v356 = vld [vmem:[%s236 + $0x70] sm:$0xf]
      %v357 = vld [vmem:[%s236 + $0x74] sm:$0xf]
      %v358 = vld [vmem:[%s236 + $0x78] sm:$0xf]
      %v359 = vld [vmem:[%s236 + $0x7c] sm:$0xf]
      %v360 = vld [vmem:[%s245] sm:$0xf]
      %v361 = vld [vmem:[%s245 + $0x4] sm:$0xf]
      %v362 = vld [vmem:[%s245 + $0x8] sm:$0xf]
      %v363 = vld [vmem:[%s245 + $0xc] sm:$0xf]
      %v396 = vunpack.c.l.b16 %v328
      %v397 = vunpack.c.l.b16 %v329
      %v398 = vunpack.c.l.b16 %v330
      %v399 = vunpack.c.l.b16 %v331
      %v400 = vunpack.c.l.b16 %v332
      %v401 = vunpack.c.l.b16 %v333
      %v402 = vunpack.c.l.b16 %v334
      %v403 = vunpack.c.l.b16 %v335
      %v404 = vunpack.c.l.b16 %v336
      %v405 = vunpack.c.l.b16 %v337
      %v406 = vunpack.c.l.b16 %v338
      %v407 = vunpack.c.l.b16 %v339
      %v408 = vunpack.c.l.b16 %v340
      %v409 = vunpack.c.l.b16 %v341
      %v410 = vunpack.c.l.b16 %v342
      %v411 = vunpack.c.l.b16 %v343
      %v412 = vunpack.c.l.b16 %v344
      %v413 = vunpack.c.l.b16 %v345
      %v414 = vunpack.c.l.b16 %v346
      %v415 = vunpack.c.l.b16 %v347
      %v416 = vunpack.c.l.b16 %v348
      %v417 = vunpack.c.l.b16 %v349
      %v418 = vunpack.c.l.b16 %v350
      %v419 = vunpack.c.l.b16 %v351
      %v420 = vunpack.c.l.b16 %v352
      %v421 = vunpack.c.l.b16 %v353
      %v422 = vunpack.c.l.b16 %v354
      %v423 = vunpack.c.l.b16 %v355
      %v424 = vunpack.c.l.b16 %v356
      %v425 = vunpack.c.l.b16 %v357
      %v426 = vunpack.c.l.b16 %v358
      %v427 = vunpack.c.l.b16 %v359
      %v428 = vpack.c.b16 %v397, %v396
      %v429 = vpack.c.b16 %v399, %v398
      %v430 = vpack.c.b16 %v401, %v400
      %v431 = vpack.c.b16 %v403, %v402
      %v432 = vpack.c.b16 %v405, %v404
      %v433 = vpack.c.b16 %v407, %v406
      %v434 = vpack.c.b16 %v409, %v408
      %v435 = vpack.c.b16 %v411, %v410
      %v436 = vpack.c.b16 %v413, %v412
      %v437 = vpack.c.b16 %v415, %v414
      %v438 = vpack.c.b16 %v417, %v416
      %v439 = vpack.c.b16 %v419, %v418
      %v440 = vpack.c.b16 %v421, %v420
      %v441 = vpack.c.b16 %v423, %v422
      %v442 = vpack.c.b16 %v425, %v424
      %v443 = vpack.c.b16 %v427, %v426
      %v448 = vunpack.c.l.b16 %v360
      %v449 = vunpack.c.l.b16 %v361
      %v450 = vunpack.c.l.b16 %v362
      %v451 = vunpack.c.l.b16 %v363
      %v452 = vpack.c.b16 %v449, %v448
      %v453 = vpack.c.b16 %v451, %v450
      %vm456 = vcmask 261120
      %v458 = vsel %vm456, %v428, 0
      %v461 = vsel %vm456, %v429, 0
      %v464 = vsel %vm456, %v430, 0
      %v467 = vsel %vm456, %v431, 0
      %v470 = vsel %vm456, %v432, 0
      %v473 = vsel %vm456, %v433, 0
      %v476 = vsel %vm456, %v434, 0
      %v479 = vsel %vm456, %v435, 0
      %v482 = vsel %vm456, %v436, 0
      %v485 = vsel %vm456, %v437, 0
      %v488 = vsel %vm456, %v438, 0
      %v491 = vsel %vm456, %v439, 0
      %v494 = vsel %vm456, %v440, 0
      %v497 = vsel %vm456, %v441, 0
      %v500 = vsel %vm456, %v442, 0
      %v503 = vsel %vm456, %v443, 0
      %505 = vmatprep.subr.bf16.mxu0 0
      %506 = vmatpush1.bf16.msra.mxu0 %v452
      %507 = vmatprep.subr.bf16.mxu0 0
      %508 = vmatpush1.bf16.msra.mxu0 %v453
      %509 = vmatprep.subr.bf16.mxu0 0
      %510 = vmatpush1.bf16.msra.mxu0 0
      %511 = vmatprep.subr.bf16.mxu0 0
      %512 = vmatpush1.bf16.msra.mxu0 0
      %513 = vmatprep.subr.bf16.mxu0 0
      %514 = vmatpush1.bf16.msra.mxu0 0
      %515 = vmatprep.subr.bf16.mxu0 0
      %516 = vmatpush1.bf16.msra.mxu0 0
      %517 = vmatprep.subr.bf16.mxu0 0
      %518 = vmatpush1.bf16.msra.mxu0 0
      %519 = vmatprep.subr.bf16.mxu0 0
      %520 = vmatpush1.bf16.msra.mxu0 0
      %521 = vmatprep.subr.bf16.mxu0 0
      %522 = vmatpush1.bf16.msra.mxu0 0
      %523 = vmatprep.subr.bf16.mxu0 0
      %524 = vmatpush1.bf16.msra.mxu0 0
      %525 = vmatprep.subr.bf16.mxu0 0
      %526 = vmatpush1.bf16.msra.mxu0 0
      %527 = vmatprep.subr.bf16.mxu0 0
      %528 = vmatpush1.bf16.msra.mxu0 0
      %529 = vmatprep.subr.bf16.mxu0 0
      %530 = vmatpush1.bf16.msra.mxu0 0
      %531 = vmatprep.subr.bf16.mxu0 0
      %532 = vmatpush1.bf16.msra.mxu0 0
      %533 = vmatprep.subr.bf16.mxu0 0
      %534 = vmatpush1.bf16.msra.mxu0 0
      %535 = vmatprep.subr.bf16.mxu0 0
      %536 = vmatpush1.bf16.msra.mxu0 0
      %537 = vmatprep.mubr.bf16.mxu0 0
      %538 = vmatmul.mubr.bf16.gmra.mrb[0].mxu0 %v458
      %v539 = vpop.f32.mrb[0].mxu0
      %v540 = vadd.f32 0.0, %v539
      %v541 = vpop.f32.mrb[0].mxu0
      %v542 = vpop.f32.mrb[0].mxu0
      %v543 = vadd.f32 0.0, %v542
      %v544 = vpop.f32.mrb[0].mxu0
      %545 = vmatprep.mubr.bf16.mxu0 0
      %546 = vmatmul.mubr.bf16.gmra.mrb[0].mxu0 %v461
      %v547 = vpop.f32.mrb[0].mxu0
      %v548 = vadd.f32 0.0, %v547
      %v549 = vpop.f32.mrb[0].mxu0
      %v550 = vpop.f32.mrb[0].mxu0
      %v551 = vadd.f32 0.0, %v550
      %v552 = vpop.f32.mrb[0].mxu0
      %553 = vmatprep.mubr.bf16.mxu0 0
      %554 = vmatmul.mubr.bf16.gmra.mrb[0].mxu0 %v464
      %v555 = vpop.f32.mrb[0].mxu0
      %v556 = vadd.f32 0.0, %v555
      %v557 = vpop.f32.mrb[0].mxu0
      %v558 = vpop.f32.mrb[0].mxu0
      %v559 = vadd.f32 0.0, %v558
      %v560 = vpop.f32.mrb[0].mxu0
      %561 = vmatprep.mubr.bf16.mxu0 0
      %562 = vmatmul.mubr.bf16.gmra.mrb[0].mxu0 %v467
      %v563 = vpop.f32.mrb[0].mxu0
      %v564 = vadd.f32 0.0, %v563
      %v565 = vpop.f32.mrb[0].mxu0
      %v566 = vpop.f32.mrb[0].mxu0
      %v567 = vadd.f32 0.0, %v566
      %v568 = vpop.f32.mrb[0].mxu0
      %569 = vmatprep.mubr.bf16.mxu0 0
      %570 = vmatmul.mubr.bf16.gmra.mrb[0].mxu0 %v470
      %v571 = vpop.f32.mrb[0].mxu0
      %v572 = vadd.f32 0.0, %v571
      %v573 = vpop.f32.mrb[0].mxu0
      %v574 = vpop.f32.mrb[0].mxu0
      %v575 = vadd.f32 0.0, %v574
      %v576 = vpop.f32.mrb[0].mxu0
      %577 = vmatprep.mubr.bf16.mxu0 0
      %578 = vmatmul.mubr.bf16.gmra.mrb[0].mxu0 %v473
      %v579 = vpop.f32.mrb[0].mxu0
      %v580 = vadd.f32 0.0, %v579
      %v581 = vpop.f32.mrb[0].mxu0
      %v582 = vpop.f32.mrb[0].mxu0
      %v583 = vadd.f32 0.0, %v582
      %v584 = vpop.f32.mrb[0].mxu0
      %585 = vmatprep.mubr.bf16.mxu0 0
      %586 = vmatmul.mubr.bf16.gmra.mrb[0].mxu0 %v476
      %v587 = vpop.f32.mrb[0].mxu0
      %v588 = vadd.f32 0.0, %v587
      %v589 = vpop.f32.mrb[0].mxu0
      %v590 = vpop.f32.mrb[0].mxu0
      %v591 = vadd.f32 0.0, %v590
      %v592 = vpop.f32.mrb[0].mxu0
      %593 = vmatprep.mubr.bf16.mxu0 0
      %594 = vmatmul.mubr.bf16.gmra.mrb[0].mxu0 %v479
      %v595 = vpop.f32.mrb[0].mxu0
      %v596 = vadd.f32 0.0, %v595
      %v597 = vpop.f32.mrb[0].mxu0
      %v598 = vpop.f32.mrb[0].mxu0
      %v599 = vadd.f32 0.0, %v598
      %v600 = vpop.f32.mrb[0].mxu0
      %601 = vmatprep.mubr.bf16.mxu0 0
      %602 = vmatmul.mubr.bf16.gmra.mrb[0].mxu0 %v482
      %v603 = vpop.f32.mrb[0].mxu0
      %v604 = vadd.f32 0.0, %v603
      %v605 = vpop.f32.mrb[0].mxu0
      %v606 = vpop.f32.mrb[0].mxu0
      %v607 = vadd.f32 0.0, %v606
      %v608 = vpop.f32.mrb[0].mxu0
      %609 = vmatprep.mubr.bf16.mxu0 0
      %610 = vmatmul.mubr.bf16.gmra.mrb[0].mxu0 %v485
      %v611 = vpop.f32.mrb[0].mxu0
      %v612 = vadd.f32 0.0, %v611
      %v613 = vpop.f32.mrb[0].mxu0
      %v614 = vpop.f32.mrb[0].mxu0
      %v615 = vadd.f32 0.0, %v614
      %v616 = vpop.f32.mrb[0].mxu0
      %617 = vmatprep.mubr.bf16.mxu0 0
      %618 = vmatmul.mubr.bf16.gmra.mrb[0].mxu0 %v488
      %v619 = vpop.f32.mrb[0].mxu0
      %v620 = vadd.f32 0.0, %v619
      %v621 = vpop.f32.mrb[0].mxu0
      %v622 = vpop.f32.mrb[0].mxu0
      %v623 = vadd.f32 0.0, %v622
      %v624 = vpop.f32.mrb[0].mxu0
      %625 = vmatprep.mubr.bf16.mxu0 0
      %626 = vmatmul.mubr.bf16.gmra.mrb[0].mxu0 %v491
      %v627 = vpop.f32.mrb[0].mxu0
      %v628 = vadd.f32 0.0, %v627
      %v629 = vpop.f32.mrb[0].mxu0
      %v630 = vpop.f32.mrb[0].mxu0
      %v631 = vadd.f32 0.0, %v630
      %v632 = vpop.f32.mrb[0].mxu0
      %633 = vmatprep.mubr.bf16.mxu0 0
      %634 = vmatmul.mubr.bf16.gmra.mrb[0].mxu0 %v494
      %v635 = vpop.f32.mrb[0].mxu0
      %v636 = vadd.f32 0.0, %v635
      %v637 = vpop.f32.mrb[0].mxu0
      %v638 = vpop.f32.mrb[0].mxu0
      %v639 = vadd.f32 0.0, %v638
      %v640 = vpop.f32.mrb[0].mxu0
      %641 = vmatprep.mubr.bf16.mxu0 0
      %642 = vmatmul.mubr.bf16.gmra.mrb[0].mxu0 %v497
      %v643 = vpop.f32.mrb[0].mxu0
      %v644 = vadd.f32 0.0, %v643
      %v645 = vpop.f32.mrb[0].mxu0
      %v646 = vpop.f32.mrb[0].mxu0
      %v647 = vadd.f32 0.0, %v646
      %v648 = vpop.f32.mrb[0].mxu0
      %649 = vmatprep.mubr.bf16.mxu0 0
      %650 = vmatmul.mubr.bf16.gmra.mrb[0].mxu0 %v500
      %v651 = vpop.f32.mrb[0].mxu0
      %v652 = vadd.f32 0.0, %v651
      %v653 = vpop.f32.mrb[0].mxu0
      %v654 = vpop.f32.mrb[0].mxu0
      %v655 = vadd.f32 0.0, %v654
      %v656 = vpop.f32.mrb[0].mxu0
      %657 = vmatprep.mubr.bf16.mxu0 0
      %658 = vmatmul.mubr.bf16.gmra.mrb[0].mxu0 %v503
      %v659 = vpop.f32.mrb[0].mxu0
      %v660 = vadd.f32 0.0, %v659
      %v661 = vpop.f32.mrb[0].mxu0
      %v662 = vpop.f32.mrb[0].mxu0
      %v663 = vadd.f32 0.0, %v662
      %v664 = vpop.f32.mrb[0].mxu0
      %665 = vdwg.mxu0
      %v666 = vadd.f32 %v296, %v540
      %v667 = vadd.f32 %v297, %v543
      %v668 = vadd.f32 %v298, %v548
      %v669 = vadd.f32 %v299, %v551
      %v670 = vadd.f32 %v300, %v556
      %v671 = vadd.f32 %v301, %v559
      %v672 = vadd.f32 %v302, %v564
      %v673 = vadd.f32 %v303, %v567
      %v674 = vadd.f32 %v304, %v572
      %v675 = vadd.f32 %v305, %v575
      %v676 = vadd.f32 %v306, %v580
      %v677 = vadd.f32 %v307, %v583
      %v678 = vadd.f32 %v308, %v588
      %v679 = vadd.f32 %v309, %v591
      %v680 = vadd.f32 %v310, %v596
      %v681 = vadd.f32 %v311, %v599
      %v682 = vadd.f32 %v312, %v604
      %v683 = vadd.f32 %v313, %v607
      %v684 = vadd.f32 %v314, %v612
      %v685 = vadd.f32 %v315, %v615
      %v686 = vadd.f32 %v316, %v620
      %v687 = vadd.f32 %v317, %v623
      %v688 = vadd.f32 %v318, %v628
      %v689 = vadd.f32 %v319, %v631
      %v690 = vadd.f32 %v320, %v636
      %v691 = vadd.f32 %v321, %v639
      %v692 = vadd.f32 %v322, %v644
      %v693 = vadd.f32 %v323, %v647
      %v694 = vadd.f32 %v324, %v652
      %v695 = vadd.f32 %v325, %v655
      %v696 = vadd.f32 %v326, %v660
      %v697 = vadd.f32 %v327, %v663
      %698 = vst [vmem:[#allocation2] sm:$0xff] %v666
      %699 = vst [vmem:[#allocation2 + $0x8] sm:$0xff] %v667
      %700 = vst [vmem:[#allocation2 + $0x10] sm:$0xff] %v668
      %701 = vst [vmem:[#allocation2 + $0x18] sm:$0xff] %v669
      %702 = vst [vmem:[#allocation2 + $0x20] sm:$0xff] %v670
      %703 = vst [vmem:[#allocation2 + $0x28] sm:$0xff] %v671
      %704 = vst [vmem:[#allocation2 + $0x30] sm:$0xff] %v672
      %705 = vst [vmem:[#allocation2 + $0x38] sm:$0xff] %v673
      %706 = vst [vmem:[#allocation2 + $0x40] sm:$0xff] %v674
      %707 = vst [vmem:[#allocation2 + $0x48] sm:$0xff] %v675
      %708 = vst [vmem:[#allocation2 + $0x50] sm:$0xff] %v676
      %709 = vst [vmem:[#allocation2 + $0x58] sm:$0xff] %v677
      %710 = vst [vmem:[#allocation2 + $0x60] sm:$0xff] %v678
      %711 = vst [vmem:[#allocation2 + $0x68] sm:$0xff] %v679
      %712 = vst [vmem:[#allocation2 + $0x70] sm:$0xff] %v680
      %713 = vst [vmem:[#allocation2 + $0x78] sm:$0xff] %v681
      %714 = vst [vmem:[#allocation2 + $0x80] sm:$0xff] %v682
      %715 = vst [vmem:[#allocation2 + $0x88] sm:$0xff] %v683
      %716 = vst [vmem:[#allocation2 + $0x90] sm:$0xff] %v684
      %717 = vst [vmem:[#allocation2 + $0x98] sm:$0xff] %v685
      %718 = vst [vmem:[#allocation2 + $0xa0] sm:$0xff] %v686
      %719 = vst [vmem:[#allocation2 + $0xa8] sm:$0xff] %v687
      %720 = vst [vmem:[#allocation2 + $0xb0] sm:$0xff] %v688
      %721 = vst [vmem:[#allocation2 + $0xb8] sm:$0xff] %v689
      %722 = vst [vmem:[#allocation2 + $0xc0] sm:$0xff] %v690
      %723 = vst [vmem:[#allocation2 + $0xc8] sm:$0xff] %v691
      %724 = vst [vmem:[#allocation2 + $0xd0] sm:$0xff] %v692
      %725 = vst [vmem:[#allocation2 + $0xd8] sm:$0xff] %v693
      %726 = vst [vmem:[#allocation2 + $0xe0] sm:$0xff] %v694
      %727 = vst [vmem:[#allocation2 + $0xe8] sm:$0xff] %v695
      %728 = vst [vmem:[#allocation2 + $0xf0] sm:$0xff] %v696
      %729 = vst [vmem:[#allocation2 + $0xf8] sm:$0xff] %v697
      // Predicated region
      $region37: #{_lambda_.19} parent=31 // pred_check
        %p730 = pneg %p260
      $region38: #{_lambda_.19} parent=31 // pred_check_branch
        %732 = sbr.rel (%p730) target = $region40
      $region39: #{_lambda_.19} parent=31 // pred_region
        %v733 = vld [vmem:[#allocation2] sm:$0xff]
        %v734 = vld [vmem:[#allocation2 + $0x8] sm:$0xff]
        %v735 = vld [vmem:[#allocation2 + $0x10] sm:$0xff]
        %v736 = vld [vmem:[#allocation2 + $0x18] sm:$0xff]
        %v737 = vld [vmem:[#allocation2 + $0x20] sm:$0xff]
        %v738 = vld [vmem:[#allocation2 + $0x28] sm:$0xff]
        %v739 = vld [vmem:[#allocation2 + $0x30] sm:$0xff]
        %v740 = vld [vmem:[#allocation2 + $0x38] sm:$0xff]
        %v741 = vld [vmem:[#allocation2 + $0x40] sm:$0xff]
        %v742 = vld [vmem:[#allocation2 + $0x48] sm:$0xff]
        %v743 = vld [vmem:[#allocation2 + $0x50] sm:$0xff]
        %v744 = vld [vmem:[#allocation2 + $0x58] sm:$0xff]
        %v745 = vld [vmem:[#allocation2 + $0x60] sm:$0xff]
        %v746 = vld [vmem:[#allocation2 + $0x68] sm:$0xff]
        %v747 = vld [vmem:[#allocation2 + $0x70] sm:$0xff]
        %v748 = vld [vmem:[#allocation2 + $0x78] sm:$0xff]
        %v749 = vld [vmem:[#allocation2 + $0x80] sm:$0xff]
        %v750 = vld [vmem:[#allocation2 + $0x88] sm:$0xff]
        %v751 = vld [vmem:[#allocation2 + $0x90] sm:$0xff]
        %v752 = vld [vmem:[#allocation2 + $0x98] sm:$0xff]
        %v753 = vld [vmem:[#allocation2 + $0xa0] sm:$0xff]
        %v754 = vld [vmem:[#allocation2 + $0xa8] sm:$0xff]
        %v755 = vld [vmem:[#allocation2 + $0xb0] sm:$0xff]
        %v756 = vld [vmem:[#allocation2 + $0xb8] sm:$0xff]
        %v757 = vld [vmem:[#allocation2 + $0xc0] sm:$0xff]
        %v758 = vld [vmem:[#allocation2 + $0xc8] sm:$0xff]
        %v759 = vld [vmem:[#allocation2 + $0xd0] sm:$0xff]
        %v760 = vld [vmem:[#allocation2 + $0xd8] sm:$0xff]
        %v761 = vld [vmem:[#allocation2 + $0xe0] sm:$0xff]
        %v762 = vld [vmem:[#allocation2 + $0xe8] sm:$0xff]
        %v763 = vld [vmem:[#allocation2 + $0xf0] sm:$0xff]
        %v764 = vld [vmem:[#allocation2 + $0xf8] sm:$0xff]
        %v765 = vld [vmem:[%s249] sm:$0x1]
        %v767 = vlaneseq
        %v768 = vshrl.u32 %v767, 7
        %v769 = vsub.s32 0, %v768
        %v770 = vrot.slane %v765, %v769
        %v772 = vadd.f32 %v733, %v770
        %v773 = vadd.f32 %v734, %v770
        %v774 = vadd.f32 %v735, %v770
        %v775 = vadd.f32 %v736, %v770
        %v776 = vadd.f32 %v737, %v770
        %v777 = vadd.f32 %v738, %v770
        %v778 = vadd.f32 %v739, %v770
        %v779 = vadd.f32 %v740, %v770
        %v780 = vadd.f32 %v741, %v770
        %v781 = vadd.f32 %v742, %v770
        %v782 = vadd.f32 %v743, %v770
        %v783 = vadd.f32 %v744, %v770
        %v784 = vadd.f32 %v745, %v770
        %v785 = vadd.f32 %v746, %v770
        %v786 = vadd.f32 %v747, %v770
        %v787 = vadd.f32 %v748, %v770
        %v788 = vadd.f32 %v749, %v770
        %v789 = vadd.f32 %v750, %v770
        %v790 = vadd.f32 %v751, %v770
        %v791 = vadd.f32 %v752, %v770
        %v792 = vadd.f32 %v753, %v770
        %v793 = vadd.f32 %v754, %v770
        %v794 = vadd.f32 %v755, %v770
        %v795 = vadd.f32 %v756, %v770
        %v796 = vadd.f32 %v757, %v770
        %v797 = vadd.f32 %v758, %v770
        %v798 = vadd.f32 %v759, %v770
        %v799 = vadd.f32 %v760, %v770
        %v800 = vadd.f32 %v761, %v770
        %v801 = vadd.f32 %v762, %v770
        %v802 = vadd.f32 %v763, %v770
        %v803 = vadd.f32 %v764, %v770
        %v804 = vmax.f32 %v772, 0.0
        %v805 = vmax.f32 %v773, 0.0
        %v806 = vmax.f32 %v774, 0.0
        %v807 = vmax.f32 %v775, 0.0
        %v808 = vmax.f32 %v776, 0.0
        %v809 = vmax.f32 %v777, 0.0
        %v810 = vmax.f32 %v778, 0.0
        %v811 = vmax.f32 %v779, 0.0
        %v812 = vmax.f32 %v780, 0.0
        %v813 = vmax.f32 %v781, 0.0
        %v814 = vmax.f32 %v782, 0.0
        %v815 = vmax.f32 %v783, 0.0
        %v816 = vmax.f32 %v784, 0.0
        %v817 = vmax.f32 %v785, 0.0
        %v818 = vmax.f32 %v786, 0.0
        %v819 = vmax.f32 %v787, 0.0
        %v820 = vmax.f32 %v788, 0.0
        %v821 = vmax.f32 %v789, 0.0
        %v822 = vmax.f32 %v790, 0.0
        %v823 = vmax.f32 %v791, 0.0
        %v824 = vmax.f32 %v792, 0.0
        %v825 = vmax.f32 %v793, 0.0
        %v826 = vmax.f32 %v794, 0.0
        %v827 = vmax.f32 %v795, 0.0
        %v828 = vmax.f32 %v796, 0.0
        %v829 = vmax.f32 %v797, 0.0
        %v830 = vmax.f32 %v798, 0.0
        %v831 = vmax.f32 %v799, 0.0
        %v832 = vmax.f32 %v800, 0.0
        %v833 = vmax.f32 %v801, 0.0
        %v834 = vmax.f32 %v802, 0.0
        %v835 = vmax.f32 %v803, 0.0
        %v836 = vpack.c.bf16 %v805, %v804
        %v837 = vpack.c.bf16 %v807, %v806
        %v838 = vpack.c.bf16 %v809, %v808
        %v839 = vpack.c.bf16 %v811, %v810
        %v840 = vpack.c.bf16 %v813, %v812
        %v841 = vpack.c.bf16 %v815, %v814
        %v842 = vpack.c.bf16 %v817, %v816
        %v843 = vpack.c.bf16 %v819, %v818
        %v844 = vpack.c.bf16 %v821, %v820
        %v845 = vpack.c.bf16 %v823, %v822
        %v846 = vpack.c.bf16 %v825, %v824
        %v847 = vpack.c.bf16 %v827, %v826
        %v848 = vpack.c.bf16 %v829, %v828
        %v849 = vpack.c.bf16 %v831, %v830
        %v850 = vpack.c.bf16 %v833, %v832
        %v851 = vpack.c.bf16 %v835, %v834
        %v868 = vunpack.c.l.b16 %v836
        %v869 = vunpack.c.h.b16 %v836
        %v870 = vunpack.c.l.b16 %v837
        %v871 = vunpack.c.h.b16 %v837
        %v872 = vunpack.c.l.b16 %v838
        %v873 = vunpack.c.h.b16 %v838
        %v874 = vunpack.c.l.b16 %v839
        %v875 = vunpack.c.h.b16 %v839
        %v876 = vunpack.c.l.b16 %v840
        %v877 = vunpack.c.h.b16 %v840
        %v878 = vunpack.c.l.b16 %v841
        %v879 = vunpack.c.h.b16 %v841
        %v880 = vunpack.c.l.b16 %v842
        %v881 = vunpack.c.h.b16 %v842
        %v882 = vunpack.c.l.b16 %v843
        %v883 = vunpack.c.h.b16 %v843
        %v884 = vunpack.c.l.b16 %v844
        %v885 = vunpack.c.h.b16 %v844
        %v886 = vunpack.c.l.b16 %v845
        %v887 = vunpack.c.h.b16 %v845
        %v888 = vunpack.c.l.b16 %v846
        %v889 = vunpack.c.h.b16 %v846
        %v890 = vunpack.c.l.b16 %v847
        %v891 = vunpack.c.h.b16 %v847
        %v892 = vunpack.c.l.b16 %v848
        %v893 = vunpack.c.h.b16 %v848
        %v894 = vunpack.c.l.b16 %v849
        %v895 = vunpack.c.h.b16 %v849
        %v896 = vunpack.c.l.b16 %v850
        %v897 = vunpack.c.h.b16 %v850
        %v898 = vunpack.c.l.b16 %v851
        %v899 = vunpack.c.h.b16 %v851
        %v900 = vpack.c.b16 %v868, %v868
        %v901 = vpack.c.b16 %v869, %v869
        %v902 = vpack.c.b16 %v870, %v870
        %v903 = vpack.c.b16 %v871, %v871
        %v904 = vpack.c.b16 %v872, %v872
        %v905 = vpack.c.b16 %v873, %v873
        %v906 = vpack.c.b16 %v874, %v874
        %v907 = vpack.c.b16 %v875, %v875
        %v908 = vpack.c.b16 %v876, %v876
        %v909 = vpack.c.b16 %v877, %v877
        %v910 = vpack.c.b16 %v878, %v878
        %v911 = vpack.c.b16 %v879, %v879
        %v912 = vpack.c.b16 %v880, %v880
        %v913 = vpack.c.b16 %v881, %v881
        %v914 = vpack.c.b16 %v882, %v882
        %v915 = vpack.c.b16 %v883, %v883
        %v916 = vpack.c.b16 %v884, %v884
        %v917 = vpack.c.b16 %v885, %v885
        %v918 = vpack.c.b16 %v886, %v886
        %v919 = vpack.c.b16 %v887, %v887
        %v920 = vpack.c.b16 %v888, %v888
        %v921 = vpack.c.b16 %v889, %v889
        %v922 = vpack.c.b16 %v890, %v890
        %v923 = vpack.c.b16 %v891, %v891
        %v924 = vpack.c.b16 %v892, %v892
        %v925 = vpack.c.b16 %v893, %v893
        %v926 = vpack.c.b16 %v894, %v894
        %v927 = vpack.c.b16 %v895, %v895
        %v928 = vpack.c.b16 %v896, %v896
        %v929 = vpack.c.b16 %v897, %v897
        %v930 = vpack.c.b16 %v898, %v898
        %v931 = vpack.c.b16 %v899, %v899
        %964 = vst [vmem:[%s257] sm:$0xf] %v900
        %965 = vst [vmem:[%s257 + $0x4] sm:$0xf] %v901
        %966 = vst [vmem:[%s257 + $0x8] sm:$0xf] %v902
        %967 = vst [vmem:[%s257 + $0xc] sm:$0xf] %v903
        %968 = vst [vmem:[%s257 + $0x10] sm:$0xf] %v904
        %969 = vst [vmem:[%s257 + $0x14] sm:$0xf] %v905
        %970 = vst [vmem:[%s257 + $0x18] sm:$0xf] %v906
        %971 = vst [vmem:[%s257 + $0x1c] sm:$0xf] %v907
        %972 = vst [vmem:[%s257 + $0x20] sm:$0xf] %v908
        %973 = vst [vmem:[%s257 + $0x24] sm:$0xf] %v909
        %974 = vst [vmem:[%s257 + $0x28] sm:$0xf] %v910
        %975 = vst [vmem:[%s257 + $0x2c] sm:$0xf] %v911
        %976 = vst [vmem:[%s257 + $0x30] sm:$0xf] %v912
        %977 = vst [vmem:[%s257 + $0x34] sm:$0xf] %v913
        %978 = vst [vmem:[%s257 + $0x38] sm:$0xf] %v914
        %979 = vst [vmem:[%s257 + $0x3c] sm:$0xf] %v915
        %980 = vst [vmem:[%s257 + $0x40] sm:$0xf] %v916
        %981 = vst [vmem:[%s257 + $0x44] sm:$0xf] %v917
        %982 = vst [vmem:[%s257 + $0x48] sm:$0xf] %v918
        %983 = vst [vmem:[%s257 + $0x4c] sm:$0xf] %v919
        %984 = vst [vmem:[%s257 + $0x50] sm:$0xf] %v920
        %985 = vst [vmem:[%s257 + $0x54] sm:$0xf] %v921
        %986 = vst [vmem:[%s257 + $0x58] sm:$0xf] %v922
        %987 = vst [vmem:[%s257 + $0x5c] sm:$0xf] %v923
        %988 = vst [vmem:[%s257 + $0x60] sm:$0xf] %v924
        %989 = vst [vmem:[%s257 + $0x64] sm:$0xf] %v925
        %990 = vst [vmem:[%s257 + $0x68] sm:$0xf] %v926
        %991 = vst [vmem:[%s257 + $0x6c] sm:$0xf] %v927
        %992 = vst [vmem:[%s257 + $0x70] sm:$0xf] %v928
        %993 = vst [vmem:[%s257 + $0x74] sm:$0xf] %v929
        %994 = vst [vmem:[%s257 + $0x78] sm:$0xf] %v930
        %995 = vst [vmem:[%s257 + $0x7c] sm:$0xf] %v931
      $region40: #{_lambda_.19} parent=31 // pred_fallthru
        _
      %s996 = smul.u32 32, %s19
      %p997 = scmp.lt.s32.totalorder %s996, 63
      %s998 = scalar_select %p997, %s996, 63
      %p999 = scmp.lt.s32.totalorder %s20, 0
      %s1000 = scalar_select %p999, %s20, 0
      %s1001 = sadd.s32 %s1000, %s998
      %s1002 = smul.addr %s1001, 4
      %s1003 = scalar_lea.vmem %s3, %s1002
      // Predicated region
      $region41: #{_lambda_.19} parent=31 // pred_check
        %p1004 = pneg %p135
      $region42: #{_lambda_.19} parent=31 // pred_check_branch
        %1006 = sbr.rel (%p1004) target = $region44
      $region43: #{_lambda_.19} parent=31 // pred_region
        %s1007 = smul.u32 32, %s19
      $region44: #{_lambda_.19} parent=31 // pred_fallthru
        _
    $region32: #{_lambda_.19} parent=5 // pred_fallthru
      _
    %p1008 = scmp.le.s32.totalorder 2, %s9
    // Predicated region
    $region45: #{_lambda_.19} parent=5 // pred_check
      %p1009 = pneg %p1008
    $region46: #{_lambda_.19} parent=5 // pred_check_branch
      %1011 = sbr.rel (%p1009) target = $region48
    $region47: #{_lambda_.19} parent=5 // pred_region
      %s1012 = ssub.s32 %s9, 2
      // Predicated region
      $region49: #{_lambda_.19} parent=47 // pred_check
        %p1013 = pneg %p141
      $region50: #{_lambda_.19} parent=47 // pred_check_branch
        %1015 = sbr.rel (%p1013) target = $region52
      $region51: #{_lambda_.19} parent=47 // pred_region
        %s1016 = smul.u32 32, %s22
        %p1017 = scmp.lt.s32.totalorder %s1016, 63
        %s1018 = scalar_select %p1017, %s1016, 63
        %p1019 = scmp.lt.s32.totalorder %s23, 0
        %s1020 = scalar_select %p1019, %s23, 0
        %s1021 = sadd.s32 %s1020, %s1018
        %s1022 = smul.addr %s1021, 4
        %s1023 = scalar_lea.vmem %s3, %s1022
      $region52: #{_lambda_.19} parent=47 // pred_fallthru
        _
    $region48: #{_lambda_.19} parent=5 // pred_fallthru
      _
  $region6: #{_lambda_.19} parent=0 // loop_footer
    %s13 = sadd.s32 1, %s9
  $region7: #{_lambda_.19} parent=0 // loop_footer_branch
    %8 = sbr.rel target = $region3
  $region8: #{_lambda_.19} parent=0 // loop_exit
    _

// kernel: _lambda_.20
$region0: #{_lambda_.20}
  #allocation0 [shape = 'u32[]', space=smem, size = 0x4, offset = 0x4, fixed_abs, tag = 'smem constant byte address 0x4 - core index']
  #allocation1 [shape = 'u32[144,128]{1,0:T(1,128)}', space=vmem, size = 0x12000, scoped, tag = 'internal scratch']
  #allocation2 [shape = 'f32[256,128]{1,0:T(8,128)}', space=vmem, size = 0x20000, scoped, tag = 'scratch operand']
  %s0 = inlined_call_operand.vmem [shape: bf16[512,80], index: 0, kind: input, shape index: {}]
  %s1 = inlined_call_operand.vmem [shape: bf16[80,128], index: 1, kind: input, shape index: {}]
  %s2 = inlined_call_operand.vmem [shape: f32[1,128], index: 2, kind: input, shape index: {}]
  %s3 = inlined_call_operand.vmem [shape: bf16[512,128], index: 3, kind: output, shape index: {}]
  %s4 = sld [smem:[#allocation0]]
  $region53: #{_lambda_.20} parent=0
    _
  %s6 = ssub.s32 1, %s4
  %s7 = scalar_select 0, %s6, %s4
  loop: start=0, step=1, limit=4
  $region2: #{_lambda_.20} parent=0 // loop_pre_header
    _
  $region3: #{_lambda_.20} parent=0 // loop_header
    %s9 = sphi 0, %s13
    %p10 = scmp.ge.s32.totalorder %s9, 4
    %s16 = sphi 0, %s35
    %s17 = sphi 0, %s31
    %s18 = sphi 0, %s27
    %s19 = sphi 0, %s16
    %s20 = sphi 0, %s17
    %s21 = sphi 0, %s18
    %s22 = sphi 0, %s19
    %s23 = sphi 0, %s20
    %s24 = sphi 0, %s21
    %s40 = sphi 0, %s42
    %s43 = sphi 0, %s40
    %s44 = sphi 0, %s43
    %s60 = sphi 0, %s44
    %s68 = sphi 0, %s70
    %s71 = sphi 0, %s68
    %s72 = sphi 0, %s71
    %s88 = sphi 0, %s72
    %s94 = sphi 0, %s96
    %s97 = sphi 0, %s94
    %s98 = sphi 0, %s97
    %s114 = sphi 0, %s98
    %s122 = sphi 0, %s124
    %s125 = sphi 0, %s122
    %s126 = sphi 0, %s125
    %s142 = sphi 0, %s126
  $region4: #{_lambda_.20} parent=0 // loop_header_branch
    %12 = sbr.rel (%p10) target = $region8
  $region5: #{_lambda_.20} parent=0 // loop_body
    %s14 = ssub.s32 %s9, 1
    %s15 = ssub.s32 %s9, 2
    %s25 = sadd.s32 1, %s18
    %p26 = scmp.ge.s32.totalorder %s25, 1
    %s27 = scalar_select %p26, 0, %s25
    %s28 = sadd.s32 1, %s17
    %s29 = scalar_select %p26, %s28, %s17
    %p30 = scmp.ge.s32.totalorder %s29, 1
    %s31 = scalar_select %p30, 0, %s29
    %s32 = sadd.s32 1, %s16
    %s33 = scalar_select %p30, %s32, %s16
    %p34 = scmp.ge.s32.totalorder %s33, 2
    %s35 = scalar_select %p34, 0, %s33
    %s36 = ssub.s32 %s16, %s35
    %s37 = ssub.s32 %s18, %s27
    %s38 = sor.u32 %s36, %s37
    %p39 = scmp.eq.s32.totalorder %s38, 0
    %s41 = sadd.s32 %s40, 1
    %s42 = scalar_select %p39, %s40, %s41
    %p45 = pneg %p39
    %p46 = scmp.eq.s32.totalorder %s9, 1
    %p47 = por %p45, %p46
    %p48 = scmp.ne.s32.totalorder %s40, %s43
    %p49 = scmp.eq.s32.totalorder %s9, 0
    %p50 = por %p48, %p49
    %p51 = scmp.ne.s32.totalorder %s40, %s43
    %p52 = scmp.eq.s32.totalorder %s14, 1
    %p53 = por %p51, %p52
    %p54 = scmp.ne.s32.totalorder %s43, %s44
    %p55 = scmp.eq.s32.totalorder %s14, 0
    %p56 = por %p54, %p55
    %p57 = scmp.ne.s32.totalorder %s43, %s44
    %p58 = scmp.eq.s32.totalorder %s15, 1
    %p59 = por %p57, %p58
    %p61 = scmp.ne.s32.totalorder %s44, %s60
    %p62 = scmp.eq.s32.totalorder %s15, 0
    %p63 = por %p61, %p62
    %s64 = ssub.s32 %s18, %s27
    %s65 = ssub.s32 %s17, %s31
    %s66 = sor.u32 %s64, %s65
    %p67 = scmp.eq.s32.totalorder %s66, 0
    %s69 = sadd.s32 %s68, 1
    %s70 = scalar_select %p67, %s68, %s69
    %p73 = pneg %p67
    %p74 = scmp.eq.s32.totalorder %s9, 1
    %p75 = por %p73, %p74
    %p76 = scmp.ne.s32.totalorder %s68, %s71
    %p77 = scmp.eq.s32.totalorder %s9, 0
    %p78 = por %p76, %p77
    %p79 = scmp.ne.s32.totalorder %s68, %s71
    %p80 = scmp.eq.s32.totalorder %s14, 1
    %p81 = por %p79, %p80
    %p82 = scmp.ne.s32.totalorder %s71, %s72
    %p83 = scmp.eq.s32.totalorder %s14, 0
    %p84 = por %p82, %p83
    %p85 = scmp.ne.s32.totalorder %s71, %s72
    %p86 = scmp.eq.s32.totalorder %s15, 1
    %p87 = por %p85, %p86
    %p89 = scmp.ne.s32.totalorder %s72, %s88
    %p90 = scmp.eq.s32.totalorder %s15, 0
    %p91 = por %p89, %p90
    %s92 = ssub.s32 %s17, %s31
    %p93 = scmp.eq.s32.totalorder %s92, 0
    %s95 = sadd.s32 %s94, 1
    %s96 = scalar_select %p93, %s94, %s95
    %p99 = pneg %p93
    %p100 = scmp.eq.s32.totalorder %s9, 1
    %p101 = por %p99, %p100
    %p102 = scmp.ne.s32.totalorder %s94, %s97
    %p103 = scmp.eq.s32.totalorder %s9, 0
    %p104 = por %p102, %p103
    %p105 = scmp.ne.s32.totalorder %s94, %s97
    %p106 = scmp.eq.s32.totalorder %s14, 1
    %p107 = por %p105, %p106
    %p108 = scmp.ne.s32.totalorder %s97, %s98
    %p109 = scmp.eq.s32.totalorder %s14, 0
    %p110 = por %p108, %p109
    %p111 = scmp.ne.s32.totalorder %s97, %s98
    %p112 = scmp.eq.s32.totalorder %s15, 1
    %p113 = por %p111, %p112
    %p115 = scmp.ne.s32.totalorder %s98, %s114
    %p116 = scmp.eq.s32.totalorder %s15, 0
    %p117 = por %p115, %p116
    %s118 = ssub.s32 %s16, %s35
    %s119 = ssub.s32 %s17, %s31
    %s120 = sor.u32 %s118, %s119
    %p121 = scmp.eq.s32.totalorder %s120, 0
    %s123 = sadd.s32 %s122, 1
    %s124 = scalar_select %p121, %s122, %s123
    %p127 = pneg %p121
    %p128 = scmp.eq.s32.totalorder %s9, 1
    %p129 = por %p127, %p128
    %p130 = scmp.ne.s32.totalorder %s122, %s125
    %p131 = scmp.eq.s32.totalorder %s9, 0
    %p132 = por %p130, %p131
    %p133 = scmp.ne.s32.totalorder %s122, %s125
    %p134 = scmp.eq.s32.totalorder %s14, 1
    %p135 = por %p133, %p134
    %p136 = scmp.ne.s32.totalorder %s125, %s126
    %p137 = scmp.eq.s32.totalorder %s14, 0
    %p138 = por %p136, %p137
    %p139 = scmp.ne.s32.totalorder %s125, %s126
    %p140 = scmp.eq.s32.totalorder %s15, 1
    %p141 = por %p139, %p140
    %p143 = scmp.ne.s32.totalorder %s126, %s142
    %p144 = scmp.eq.s32.totalorder %s15, 0
    %p145 = por %p143, %p144
    %p146 = scmp.le.s32.totalorder 1, %s9
    %p147 = scmp.lt.s32.totalorder %s9, 3
    %p148 = pnand %p146, %p147
    %p149 = pneg %p148
    // Predicated region
    $region9: #{_lambda_.20} parent=5 // pred_check
      _
    $region10: #{_lambda_.20} parent=5 // pred_check_branch
      %151 = sbr.rel (%p148) target = $region12
    $region11: #{_lambda_.20} parent=5 // pred_region
      %s152 = ssub.s32 %s9, 1
      // Predicated region
      $region13: #{_lambda_.20} parent=11 // pred_check
        %p153 = pneg %p84
      $region14: #{_lambda_.20} parent=11 // pred_check_branch
        %155 = sbr.rel (%p153) target = $region16
      $region15: #{_lambda_.20} parent=11 // pred_region
        %s156 = smul.u32 10, %s21
        %p157 = scmp.lt.s32.totalorder %s156, 9
        %s158 = scalar_select %p157, %s156, 9
        %p159 = scmp.lt.s32.totalorder %s20, 0
        %s160 = scalar_select %p159, %s20, 0
        %s161 = sadd.s32 %s160, %s158
        %s162 = smul.addr %s161, 4
        %s163 = scalar_lea.vmem %s1, %s162
        %s164 = smul.u32 10, %s21
      $region16: #{_lambda_.20} parent=11 // pred_fallthru
        _
      // Predicated region
      $region17: #{_lambda_.20} parent=11 // pred_check
        %p165 = pneg %p110
      $region18: #{_lambda_.20} parent=11 // pred_check_branch
        %167 = sbr.rel (%p165) target = $region20
      $region19: #{_lambda_.20} parent=11 // pred_region
        %p168 = scmp.lt.s32.totalorder %s20, 0
        %s169 = scalar_select %p168, %s20, 0
        %s170 = scalar_lea.vmem %s2, %s169
      $region20: #{_lambda_.20} parent=11 // pred_fallthru
        _
    $region12: #{_lambda_.20} parent=5 // pred_fallthru
      _
    %p171 = scmp.lt.s32.totalorder %s9, 2
    // Predicated region
    $region21: #{_lambda_.20} parent=5 // pred_check
      %p172 = pneg %p171
    $region22: #{_lambda_.20} parent=5 // pred_check_branch
      %174 = sbr.rel (%p172) target = $region24
    $region23: #{_lambda_.20} parent=5 // pred_region
      // Predicated region
      $region25: #{_lambda_.20} parent=23 // pred_check
        %p175 = pneg %p50
      $region26: #{_lambda_.20} parent=23 // pred_check_branch
        %177 = sbr.rel (%p175) target = $region28
      $region27: #{_lambda_.20} parent=23 // pred_region
        %s178 = smul.u32 32, %s16
        %p179 = scmp.lt.s32.totalorder %s178, 63
        %s180 = scalar_select %p179, %s178, 63
        %p181 = scmp.lt.s32.totalorder %s18, 0
        %s182 = scalar_select %p181, %s18, 0
        %s183 = sadd.s32 %s182, %s180
        %s184 = smul.addr %s183, 4
        %s185 = scalar_lea.vmem %s0, %s184
        %s186 = smul.u32 32, %s16
      $region28: #{_lambda_.20} parent=23 // pred_fallthru
        _
    $region24: #{_lambda_.20} parent=5 // pred_fallthru
      _
    %p187 = scmp.le.s32.totalorder 1, %s9
    %p188 = scmp.lt.s32.totalorder %s9, 3
    %p189 = pnand %p187, %p188
    %p190 = pneg %p189
    // Predicated region
    $region29: #{_lambda_.20} parent=5 // pred_check
      _
    $region30: #{_lambda_.20} parent=5 // pred_check_branch
      %192 = sbr.rel (%p189) target = $region32
    $region31: #{_lambda_.20} parent=5 // pred_region
      %s193 = ssub.s32 %s9, 1
      %s194 = smul.u32 32, %s19
      %p195 = scmp.lt.s32.totalorder %s194, 63
      %s196 = scalar_select %p195, %s194, 63
      %p197 = scmp.lt.s32.totalorder %s21, 0
      %s198 = scalar_select %p197, %s21, 0
      %s199 = sadd.s32 %s198, %s196
      %s200 = smul.addr %s199, 4
      %s201 = scalar_lea.vmem %s0, %s200
      %p202 = pneg %p56
      %p203 = pneg %p53
      %s204 = smul.u32 10, %s21
      %p205 = scmp.lt.s32.totalorder %s204, 9
      %s206 = scalar_select %p205, %s204, 9
      %p207 = scmp.lt.s32.totalorder %s20, 0
      %s208 = scalar_select %p207, %s20, 0
      %s209 = sadd.s32 %s208, %s206
      %s210 = smul.addr %s209, 4
      %s211 = scalar_lea.vmem %s1, %s210
      %p212 = pneg %p84
      %p213 = pneg %p81
      %p214 = scmp.lt.s32.totalorder %s20, 0
      %s215 = scalar_select %p214, %s20, 0
      %s216 = scalar_lea.vmem %s2, %s215
      %p217 = pneg %p110
      %p218 = pneg %p107
      %p219 = pneg %p138
      %p220 = pneg %p135
      %s221 = smul.u32 32, %s19
      %p222 = scmp.lt.s32.totalorder %s221, 63
      %s223 = scalar_select %p222, %s221, 63
      %p224 = scmp.lt.s32.totalorder %s20, 0
      %s225 = scalar_select %p224, %s20, 0
      %s226 = sadd.s32 %s225, %s223
      %s227 = smul.addr %s226, 4
      %s228 = scalar_lea.vmem %s3, %s227
      %s229 = smul.u32 32, %s19
      %p230 = scmp.lt.s32.totalorder %s229, 63
      %s231 = scalar_select %p230, %s229, 63
      %p232 = scmp.lt.s32.totalorder %s21, 0
      %s233 = scalar_select %p232, %s21, 0
      %s234 = sadd.s32 %s233, %s231
      %s235 = smul.addr %s234, 4
      %s236 = scalar_lea.vmem %s0, %s235
      %s237 = smul.u32 32, %s19
      %s238 = smul.u32 10, %s21
      %p239 = scmp.lt.s32.totalorder %s238, 9
      %s240 = scalar_select %p239, %s238, 9
      %p241 = scmp.lt.s32.totalorder %s20, 0
      %s242 = scalar_select %p241, %s20, 0
      %s243 = sadd.s32 %s242, %s240
      %s244 = smul.addr %s243, 4
      %s245 = scalar_lea.vmem %s1, %s244
      %s246 = smul.u32 10, %s21
      %p247 = scmp.lt.s32.totalorder %s20, 0
      %s248 = scalar_select %p247, %s20, 0
      %s249 = scalar_lea.vmem %s2, %s248
      %s250 = smul.u32 32, %s19
      %p251 = scmp.lt.s32.totalorder %s250, 63
      %s252 = scalar_select %p251, %s250, 63
      %p253 = scmp.lt.s32.totalorder %s20, 0
      %s254 = scalar_select %p253, %s20, 0
      %s255 = sadd.s32 %s254, %s252
      %s256 = smul.addr %s255, 4
      %s257 = scalar_lea.vmem %s3, %s256
      %s258 = smul.u32 32, %s19
      %p260 = scmp.eq.s32.totalorder %s21, 0
      // Predicated region
      $region33: #{_lambda_.20} parent=31 // pred_check
        %p261 = pneg %p260
      $region34: #{_lambda_.20} parent=31 // pred_check_branch
        %263 = sbr.rel (%p261) target = $region36
      $region35: #{_lambda_.20} parent=31 // pred_region
        %264 = vst [vmem:[#allocation2] sm:$0xff] 0.0
        %265 = vst [vmem:[#allocation2 + $0x8] sm:$0xff] 0.0
        %266 = vst [vmem:[#allocation2 + $0x10] sm:$0xff] 0.0
        %267 = vst [vmem:[#allocation2 + $0x18] sm:$0xff] 0.0
        %268 = vst [vmem:[#allocation2 + $0x20] sm:$0xff] 0.0
        %269 = vst [vmem:[#allocation2 + $0x28] sm:$0xff] 0.0
        %270 = vst [vmem:[#allocation2 + $0x30] sm:$0xff] 0.0
        %271 = vst [vmem:[#allocation2 + $0x38] sm:$0xff] 0.0
        %272 = vst [vmem:[#allocation2 + $0x40] sm:$0xff] 0.0
        %273 = vst [vmem:[#allocation2 + $0x48] sm:$0xff] 0.0
        %274 = vst [vmem:[#allocation2 + $0x50] sm:$0xff] 0.0
        %275 = vst [vmem:[#allocation2 + $0x58] sm:$0xff] 0.0
        %276 = vst [vmem:[#allocation2 + $0x60] sm:$0xff] 0.0
        %277 = vst [vmem:[#allocation2 + $0x68] sm:$0xff] 0.0
        %278 = vst [vmem:[#allocation2 + $0x70] sm:$0xff] 0.0
        %279 = vst [vmem:[#allocation2 + $0x78] sm:$0xff] 0.0
        %280 = vst [vmem:[#allocation2 + $0x80] sm:$0xff] 0.0
        %281 = vst [vmem:[#allocation2 + $0x88] sm:$0xff] 0.0
        %282 = vst [vmem:[#allocation2 + $0x90] sm:$0xff] 0.0
        %283 = vst [vmem:[#allocation2 + $0x98] sm:$0xff] 0.0
        %284 = vst [vmem:[#allocation2 + $0xa0] sm:$0xff] 0.0
        %285 = vst [vmem:[#allocation2 + $0xa8] sm:$0xff] 0.0
        %286 = vst [vmem:[#allocation2 + $0xb0] sm:$0xff] 0.0
        %287 = vst [vmem:[#allocation2 + $0xb8] sm:$0xff] 0.0
        %288 = vst [vmem:[#allocation2 + $0xc0] sm:$0xff] 0.0
        %289 = vst [vmem:[#allocation2 + $0xc8] sm:$0xff] 0.0
        %290 = vst [vmem:[#allocation2 + $0xd0] sm:$0xff] 0.0
        %291 = vst [vmem:[#allocation2 + $0xd8] sm:$0xff] 0.0
        %292 = vst [vmem:[#allocation2 + $0xe0] sm:$0xff] 0.0
        %293 = vst [vmem:[#allocation2 + $0xe8] sm:$0xff] 0.0
        %294 = vst [vmem:[#allocation2 + $0xf0] sm:$0xff] 0.0
        %295 = vst [vmem:[#allocation2 + $0xf8] sm:$0xff] 0.0
      $region36: #{_lambda_.20} parent=31 // pred_fallthru
        _
      %v296 = vld [vmem:[#allocation2] sm:$0xff]
      %v297 = vld [vmem:[#allocation2 + $0x8] sm:$0xff]
      %v298 = vld [vmem:[#allocation2 + $0x10] sm:$0xff]
      %v299 = vld [vmem:[#allocation2 + $0x18] sm:$0xff]
      %v300 = vld [vmem:[#allocation2 + $0x20] sm:$0xff]
      %v301 = vld [vmem:[#allocation2 + $0x28] sm:$0xff]
      %v302 = vld [vmem:[#allocation2 + $0x30] sm:$0xff]
      %v303 = vld [vmem:[#allocation2 + $0x38] sm:$0xff]
      %v304 = vld [vmem:[#allocation2 + $0x40] sm:$0xff]
      %v305 = vld [vmem:[#allocation2 + $0x48] sm:$0xff]
      %v306 = vld [vmem:[#allocation2 + $0x50] sm:$0xff]
      %v307 = vld [vmem:[#allocation2 + $0x58] sm:$0xff]
      %v308 = vld [vmem:[#allocation2 + $0x60] sm:$0xff]
      %v309 = vld [vmem:[#allocation2 + $0x68] sm:$0xff]
      %v310 = vld [vmem:[#allocation2 + $0x70] sm:$0xff]
      %v311 = vld [vmem:[#allocation2 + $0x78] sm:$0xff]
      %v312 = vld [vmem:[#allocation2 + $0x80] sm:$0xff]
      %v313 = vld [vmem:[#allocation2 + $0x88] sm:$0xff]
      %v314 = vld [vmem:[#allocation2 + $0x90] sm:$0xff]
      %v315 = vld [vmem:[#allocation2 + $0x98] sm:$0xff]
      %v316 = vld [vmem:[#allocation2 + $0xa0] sm:$0xff]
      %v317 = vld [vmem:[#allocation2 + $0xa8] sm:$0xff]
      %v318 = vld [vmem:[#allocation2 + $0xb0] sm:$0xff]
      %v319 = vld [vmem:[#allocation2 + $0xb8] sm:$0xff]
      %v320 = vld [vmem:[#allocation2 + $0xc0] sm:$0xff]
      %v321 = vld [vmem:[#allocation2 + $0xc8] sm:$0xff]
      %v322 = vld [vmem:[#allocation2 + $0xd0] sm:$0xff]
      %v323 = vld [vmem:[#allocation2 + $0xd8] sm:$0xff]
      %v324 = vld [vmem:[#allocation2 + $0xe0] sm:$0xff]
      %v325 = vld [vmem:[#allocation2 + $0xe8] sm:$0xff]
      %v326 = vld [vmem:[#allocation2 + $0xf0] sm:$0xff]
      %v327 = vld [vmem:[#allocation2 + $0xf8] sm:$0xff]
      %v328 = vld [vmem:[%s236] sm:$0xf]
      %v329 = vld [vmem:[%s236 + $0x4] sm:$0xf]
      %v330 = vld [vmem:[%s236 + $0x8] sm:$0xf]
      %v331 = vld [vmem:[%s236 + $0xc] sm:$0xf]
      %v332 = vld [vmem:[%s236 + $0x10] sm:$0xf]
      %v333 = vld [vmem:[%s236 + $0x14] sm:$0xf]
      %v334 = vld [vmem:[%s236 + $0x18] sm:$0xf]
      %v335 = vld [vmem:[%s236 + $0x1c] sm:$0xf]
      %v336 = vld [vmem:[%s236 + $0x20] sm:$0xf]
      %v337 = vld [vmem:[%s236 + $0x24] sm:$0xf]
      %v338 = vld [vmem:[%s236 + $0x28] sm:$0xf]
      %v339 = vld [vmem:[%s236 + $0x2c] sm:$0xf]
      %v340 = vld [vmem:[%s236 + $0x30] sm:$0xf]
      %v341 = vld [vmem:[%s236 + $0x34] sm:$0xf]
      %v342 = vld [vmem:[%s236 + $0x38] sm:$0xf]
      %v343 = vld [vmem:[%s236 + $0x3c] sm:$0xf]
      %v344 = vld [vmem:[%s236 + $0x40] sm:$0xf]
      %v345 = vld [vmem:[%s236 + $0x44] sm:$0xf]
      %v346 = vld [vmem:[%s236 + $0x48] sm:$0xf]
      %v347 = vld [vmem:[%s236 + $0x4c] sm:$0xf]
      %v348 = vld [vmem:[%s236 + $0x50] sm:$0xf]
      %v349 = vld [vmem:[%s236 + $0x54] sm:$0xf]
      %v350 = vld [vmem:[%s236 + $0x58] sm:$0xf]
      %v351 = vld [vmem:[%s236 + $0x5c] sm:$0xf]
      %v352 = vld [vmem:[%s236 + $0x60] sm:$0xf]
      %v353 = vld [vmem:[%s236 + $0x64] sm:$0xf]
      %v354 = vld [vmem:[%s236 + $0x68] sm:$0xf]
      %v355 = vld [vmem:[%s236 + $0x6c] sm:$0xf]
      %v356 = vld [vmem:[%s236 + $0x70] sm:$0xf]
      %v357 = vld [vmem:[%s236 + $0x74] sm:$0xf]
      %v358 = vld [vmem:[%s236 + $0x78] sm:$0xf]
      %v359 = vld [vmem:[%s236 + $0x7c] sm:$0xf]
      %v360 = vld [vmem:[%s245] sm:$0xf]
      %v361 = vld [vmem:[%s245 + $0x4] sm:$0xf]
      %v362 = vld [vmem:[%s245 + $0x8] sm:$0xf]
      %v363 = vld [vmem:[%s245 + $0xc] sm:$0xf]
      %v364 = vld [vmem:[%s245 + $0x10] sm:$0xf]
      %v365 = vld [vmem:[%s245 + $0x14] sm:$0xf]
      %v366 = vld [vmem:[%s245 + $0x18] sm:$0xf]
      %v367 = vld [vmem:[%s245 + $0x1c] sm:$0xf]
      %v368 = vld [vmem:[%s245 + $0x20] sm:$0xf]
      %v369 = vld [vmem:[%s245 + $0x24] sm:$0xf]
      %v402 = vunpack.c.l.b16 %v328
      %v403 = vunpack.c.l.b16 %v329
      %v404 = vunpack.c.l.b16 %v330
      %v405 = vunpack.c.l.b16 %v331
      %v406 = vunpack.c.l.b16 %v332
      %v407 = vunpack.c.l.b16 %v333
      %v408 = vunpack.c.l.b16 %v334
      %v409 = vunpack.c.l.b16 %v335
      %v410 = vunpack.c.l.b16 %v336
      %v411 = vunpack.c.l.b16 %v337
      %v412 = vunpack.c.l.b16 %v338
      %v413 = vunpack.c.l.b16 %v339
      %v414 = vunpack.c.l.b16 %v340
      %v415 = vunpack.c.l.b16 %v341
      %v416 = vunpack.c.l.b16 %v342
      %v417 = vunpack.c.l.b16 %v343
      %v418 = vunpack.c.l.b16 %v344
      %v419 = vunpack.c.l.b16 %v345
      %v420 = vunpack.c.l.b16 %v346
      %v421 = vunpack.c.l.b16 %v347
      %v422 = vunpack.c.l.b16 %v348
      %v423 = vunpack.c.l.b16 %v349
      %v424 = vunpack.c.l.b16 %v350
      %v425 = vunpack.c.l.b16 %v351
      %v426 = vunpack.c.l.b16 %v352
      %v427 = vunpack.c.l.b16 %v353
      %v428 = vunpack.c.l.b16 %v354
      %v429 = vunpack.c.l.b16 %v355
      %v430 = vunpack.c.l.b16 %v356
      %v431 = vunpack.c.l.b16 %v357
      %v432 = vunpack.c.l.b16 %v358
      %v433 = vunpack.c.l.b16 %v359
      %v434 = vpack.c.b16 %v403, %v402
      %v435 = vpack.c.b16 %v405, %v404
      %v436 = vpack.c.b16 %v407, %v406
      %v437 = vpack.c.b16 %v409, %v408
      %v438 = vpack.c.b16 %v411, %v410
      %v439 = vpack.c.b16 %v413, %v412
      %v440 = vpack.c.b16 %v415, %v414
      %v441 = vpack.c.b16 %v417, %v416
      %v442 = vpack.c.b16 %v419, %v418
      %v443 = vpack.c.b16 %v421, %v420
      %v444 = vpack.c.b16 %v423, %v422
      %v445 = vpack.c.b16 %v425, %v424
      %v446 = vpack.c.b16 %v427, %v426
      %v447 = vpack.c.b16 %v429, %v428
      %v448 = vpack.c.b16 %v431, %v430
      %v449 = vpack.c.b16 %v433, %v432
      %v460 = vunpack.c.l.b16 %v360
      %v461 = vunpack.c.l.b16 %v361
      %v462 = vunpack.c.l.b16 %v362
      %v463 = vunpack.c.l.b16 %v363
      %v464 = vunpack.c.l.b16 %v364
      %v465 = vunpack.c.l.b16 %v365
      %v466 = vunpack.c.l.b16 %v366
      %v467 = vunpack.c.l.b16 %v367
      %v468 = vunpack.c.l.b16 %v368
      %v469 = vunpack.c.l.b16 %v369
      %v470 = vpack.c.b16 %v461, %v460
      %v471 = vpack.c.b16 %v463, %v462
      %v472 = vpack.c.b16 %v465, %v464
      %v473 = vpack.c.b16 %v467, %v466
      %v474 = vpack.c.b16 %v469, %v468
      %vm480 = vcmask 654336
      %v482 = vsel %vm480, %v434, 0
      %v485 = vsel %vm480, %v435, 0
      %v488 = vsel %vm480, %v436, 0
      %v491 = vsel %vm480, %v437, 0
      %v494 = vsel %vm480, %v438, 0
      %v497 = vsel %vm480, %v439, 0
      %v500 = vsel %vm480, %v440, 0
      %v503 = vsel %vm480, %v441, 0
      %v506 = vsel %vm480, %v442, 0
      %v509 = vsel %vm480, %v443, 0
      %v512 = vsel %vm480, %v444, 0
      %v515 = vsel %vm480, %v445, 0
      %v518 = vsel %vm480, %v446, 0
      %v521 = vsel %vm480, %v447, 0
      %v524 = vsel %vm480, %v448, 0
      %v527 = vsel %vm480, %v449, 0
      %529 = vmatprep.subr.bf16.mxu0 0
      %530 = vmatpush1.bf16.msra.mxu0 %v470
      %531 = vmatprep.subr.bf16.mxu0 0
      %532 = vmatpush1.bf16.msra.mxu0 %v471
      %533 = vmatprep.subr.bf16.mxu0 0
      %534 = vmatpush1.bf16.msra.mxu0 %v472
      %535 = vmatprep.subr.bf16.mxu0 0
      %536 = vmatpush1.bf16.msra.mxu0 %v473
      %537 = vmatprep.subr.bf16.mxu0 0
      %538 = vmatpush1.bf16.msra.mxu0 %v474
      %539 = vmatprep.subr.bf16.mxu0 0
      %540 = vmatpush1.bf16.msra.mxu0 0
      %541 = vmatprep.subr.bf16.mxu0 0
      %542 = vmatpush1.bf16.msra.mxu0 0
      %543 = vmatprep.subr.bf16.mxu0 0
      %544 = vmatpush1.bf16.msra.mxu0 0
      %545 = vmatprep.subr.bf16.mxu0 0
      %546 = vmatpush1.bf16.msra.mxu0 0
      %547 = vmatprep.subr.bf16.mxu0 0
      %548 = vmatpush1.bf16.msra.mxu0 0
      %549 = vmatprep.subr.bf16.mxu0 0
      %550 = vmatpush1.bf16.msra.mxu0 0
      %551 = vmatprep.subr.bf16.mxu0 0
      %552 = vmatpush1.bf16.msra.mxu0 0
      %553 = vmatprep.subr.bf16.mxu0 0
      %554 = vmatpush1.bf16.msra.mxu0 0
      %555 = vmatprep.subr.bf16.mxu0 0
      %556 = vmatpush1.bf16.msra.mxu0 0
      %557 = vmatprep.subr.bf16.mxu0 0
      %558 = vmatpush1.bf16.msra.mxu0 0
      %559 = vmatprep.subr.bf16.mxu0 0
      %560 = vmatpush1.bf16.msra.mxu0 0
      %561 = vmatprep.mubr.bf16.mxu0 0
      %562 = vmatmul.mubr.bf16.gmra.mrb[0].mxu0 %v482
      %v563 = vpop.f32.mrb[0].mxu0
      %v564 = vadd.f32 0.0, %v563
      %v565 = vpop.f32.mrb[0].mxu0
      %v566 = vpop.f32.mrb[0].mxu0
      %v567 = vadd.f32 0.0, %v566
      %v568 = vpop.f32.mrb[0].mxu0
      %569 = vmatprep.mubr.bf16.mxu0 0
      %570 = vmatmul.mubr.bf16.gmra.mrb[0].mxu0 %v485
      %v571 = vpop.f32.mrb[0].mxu0
      %v572 = vadd.f32 0.0, %v571
      %v573 = vpop.f32.mrb[0].mxu0
      %v574 = vpop.f32.mrb[0].mxu0
      %v575 = vadd.f32 0.0, %v574
      %v576 = vpop.f32.mrb[0].mxu0
      %577 = vmatprep.mubr.bf16.mxu0 0
      %578 = vmatmul.mubr.bf16.gmra.mrb[0].mxu0 %v488
      %v579 = vpop.f32.mrb[0].mxu0
      %v580 = vadd.f32 0.0, %v579
      %v581 = vpop.f32.mrb[0].mxu0
      %v582 = vpop.f32.mrb[0].mxu0
      %v583 = vadd.f32 0.0, %v582
      %v584 = vpop.f32.mrb[0].mxu0
      %585 = vmatprep.mubr.bf16.mxu0 0
      %586 = vmatmul.mubr.bf16.gmra.mrb[0].mxu0 %v491
      %v587 = vpop.f32.mrb[0].mxu0
      %v588 = vadd.f32 0.0, %v587
      %v589 = vpop.f32.mrb[0].mxu0
      %v590 = vpop.f32.mrb[0].mxu0
      %v591 = vadd.f32 0.0, %v590
      %v592 = vpop.f32.mrb[0].mxu0
      %593 = vmatprep.mubr.bf16.mxu0 0
      %594 = vmatmul.mubr.bf16.gmra.mrb[0].mxu0 %v494
      %v595 = vpop.f32.mrb[0].mxu0
      %v596 = vadd.f32 0.0, %v595
      %v597 = vpop.f32.mrb[0].mxu0
      %v598 = vpop.f32.mrb[0].mxu0
      %v599 = vadd.f32 0.0, %v598
      %v600 = vpop.f32.mrb[0].mxu0
      %601 = vmatprep.mubr.bf16.mxu0 0
      %602 = vmatmul.mubr.bf16.gmra.mrb[0].mxu0 %v497
      %v603 = vpop.f32.mrb[0].mxu0
      %v604 = vadd.f32 0.0, %v603
      %v605 = vpop.f32.mrb[0].mxu0
      %v606 = vpop.f32.mrb[0].mxu0
      %v607 = vadd.f32 0.0, %v606
      %v608 = vpop.f32.mrb[0].mxu0
      %609 = vmatprep.mubr.bf16.mxu0 0
      %610 = vmatmul.mubr.bf16.gmra.mrb[0].mxu0 %v500
      %v611 = vpop.f32.mrb[0].mxu0
      %v612 = vadd.f32 0.0, %v611
      %v613 = vpop.f32.mrb[0].mxu0
      %v614 = vpop.f32.mrb[0].mxu0
      %v615 = vadd.f32 0.0, %v614
      %v616 = vpop.f32.mrb[0].mxu0
      %617 = vmatprep.mubr.bf16.mxu0 0
      %618 = vmatmul.mubr.bf16.gmra.mrb[0].mxu0 %v503
      %v619 = vpop.f32.mrb[0].mxu0
      %v620 = vadd.f32 0.0, %v619
      %v621 = vpop.f32.mrb[0].mxu0
      %v622 = vpop.f32.mrb[0].mxu0
      %v623 = vadd.f32 0.0, %v622
      %v624 = vpop.f32.mrb[0].mxu0
      %625 = vmatprep.mubr.bf16.mxu0 0
      %626 = vmatmul.mubr.bf16.gmra.mrb[0].mxu0 %v506
      %v627 = vpop.f32.mrb[0].mxu0
      %v628 = vadd.f32 0.0, %v627
      %v629 = vpop.f32.mrb[0].mxu0
      %v630 = vpop.f32.mrb[0].mxu0
      %v631 = vadd.f32 0.0, %v630
      %v632 = vpop.f32.mrb[0].mxu0
      %633 = vmatprep.mubr.bf16.mxu0 0
      %634 = vmatmul.mubr.bf16.gmra.mrb[0].mxu0 %v509
      %v635 = vpop.f32.mrb[0].mxu0
      %v636 = vadd.f32 0.0, %v635
      %v637 = vpop.f32.mrb[0].mxu0
      %v638 = vpop.f32.mrb[0].mxu0
      %v639 = vadd.f32 0.0, %v638
      %v640 = vpop.f32.mrb[0].mxu0
      %641 = vmatprep.mubr.bf16.mxu0 0
      %642 = vmatmul.mubr.bf16.gmra.mrb[0].mxu0 %v512
      %v643 = vpop.f32.mrb[0].mxu0
      %v644 = vadd.f32 0.0, %v643
      %v645 = vpop.f32.mrb[0].mxu0
      %v646 = vpop.f32.mrb[0].mxu0
      %v647 = vadd.f32 0.0, %v646
      %v648 = vpop.f32.mrb[0].mxu0
      %649 = vmatprep.mubr.bf16.mxu0 0
      %650 = vmatmul.mubr.bf16.gmra.mrb[0].mxu0 %v515
      %v651 = vpop.f32.mrb[0].mxu0
      %v652 = vadd.f32 0.0, %v651
      %v653 = vpop.f32.mrb[0].mxu0
      %v654 = vpop.f32.mrb[0].mxu0
      %v655 = vadd.f32 0.0, %v654
      %v656 = vpop.f32.mrb[0].mxu0
      %657 = vmatprep.mubr.bf16.mxu0 0
      %658 = vmatmul.mubr.bf16.gmra.mrb[0].mxu0 %v518
      %v659 = vpop.f32.mrb[0].mxu0
      %v660 = vadd.f32 0.0, %v659
      %v661 = vpop.f32.mrb[0].mxu0
      %v662 = vpop.f32.mrb[0].mxu0
      %v663 = vadd.f32 0.0, %v662
      %v664 = vpop.f32.mrb[0].mxu0
      %665 = vmatprep.mubr.bf16.mxu0 0
      %666 = vmatmul.mubr.bf16.gmra.mrb[0].mxu0 %v521
      %v667 = vpop.f32.mrb[0].mxu0
      %v668 = vadd.f32 0.0, %v667
      %v669 = vpop.f32.mrb[0].mxu0
      %v670 = vpop.f32.mrb[0].mxu0
      %v671 = vadd.f32 0.0, %v670
      %v672 = vpop.f32.mrb[0].mxu0
      %673 = vmatprep.mubr.bf16.mxu0 0
      %674 = vmatmul.mubr.bf16.gmra.mrb[0].mxu0 %v524
      %v675 = vpop.f32.mrb[0].mxu0
      %v676 = vadd.f32 0.0, %v675
      %v677 = vpop.f32.mrb[0].mxu0
      %v678 = vpop.f32.mrb[0].mxu0
      %v679 = vadd.f32 0.0, %v678
      %v680 = vpop.f32.mrb[0].mxu0
      %681 = vmatprep.mubr.bf16.mxu0 0
      %682 = vmatmul.mubr.bf16.gmra.mrb[0].mxu0 %v527
      %v683 = vpop.f32.mrb[0].mxu0
      %v684 = vadd.f32 0.0, %v683
      %v685 = vpop.f32.mrb[0].mxu0
      %v686 = vpop.f32.mrb[0].mxu0
      %v687 = vadd.f32 0.0, %v686
      %v688 = vpop.f32.mrb[0].mxu0
      %689 = vdwg.mxu0
      %v690 = vadd.f32 %v296, %v564
      %v691 = vadd.f32 %v297, %v567
      %v692 = vadd.f32 %v298, %v572
      %v693 = vadd.f32 %v299, %v575
      %v694 = vadd.f32 %v300, %v580
      %v695 = vadd.f32 %v301, %v583
      %v696 = vadd.f32 %v302, %v588
      %v697 = vadd.f32 %v303, %v591
      %v698 = vadd.f32 %v304, %v596
      %v699 = vadd.f32 %v305, %v599
      %v700 = vadd.f32 %v306, %v604
      %v701 = vadd.f32 %v307, %v607
      %v702 = vadd.f32 %v308, %v612
      %v703 = vadd.f32 %v309, %v615
      %v704 = vadd.f32 %v310, %v620
      %v705 = vadd.f32 %v311, %v623
      %v706 = vadd.f32 %v312, %v628
      %v707 = vadd.f32 %v313, %v631
      %v708 = vadd.f32 %v314, %v636
      %v709 = vadd.f32 %v315, %v639
      %v710 = vadd.f32 %v316, %v644
      %v711 = vadd.f32 %v317, %v647
      %v712 = vadd.f32 %v318, %v652
      %v713 = vadd.f32 %v319, %v655
      %v714 = vadd.f32 %v320, %v660
      %v715 = vadd.f32 %v321, %v663
      %v716 = vadd.f32 %v322, %v668
      %v717 = vadd.f32 %v323, %v671
      %v718 = vadd.f32 %v324, %v676
      %v719 = vadd.f32 %v325, %v679
      %v720 = vadd.f32 %v326, %v684
      %v721 = vadd.f32 %v327, %v687
      %722 = vst [vmem:[#allocation2] sm:$0xff] %v690
      %723 = vst [vmem:[#allocation2 + $0x8] sm:$0xff] %v691
      %724 = vst [vmem:[#allocation2 + $0x10] sm:$0xff] %v692
      %725 = vst [vmem:[#allocation2 + $0x18] sm:$0xff] %v693
      %726 = vst [vmem:[#allocation2 + $0x20] sm:$0xff] %v694
      %727 = vst [vmem:[#allocation2 + $0x28] sm:$0xff] %v695
      %728 = vst [vmem:[#allocation2 + $0x30] sm:$0xff] %v696
      %729 = vst [vmem:[#allocation2 + $0x38] sm:$0xff] %v697
      %730 = vst [vmem:[#allocation2 + $0x40] sm:$0xff] %v698
      %731 = vst [vmem:[#allocation2 + $0x48] sm:$0xff] %v699
      %732 = vst [vmem:[#allocation2 + $0x50] sm:$0xff] %v700
      %733 = vst [vmem:[#allocation2 + $0x58] sm:$0xff] %v701
      %734 = vst [vmem:[#allocation2 + $0x60] sm:$0xff] %v702
      %735 = vst [vmem:[#allocation2 + $0x68] sm:$0xff] %v703
      %736 = vst [vmem:[#allocation2 + $0x70] sm:$0xff] %v704
      %737 = vst [vmem:[#allocation2 + $0x78] sm:$0xff] %v705
      %738 = vst [vmem:[#allocation2 + $0x80] sm:$0xff] %v706
      %739 = vst [vmem:[#allocation2 + $0x88] sm:$0xff] %v707
      %740 = vst [vmem:[#allocation2 + $0x90] sm:$0xff] %v708
      %741 = vst [vmem:[#allocation2 + $0x98] sm:$0xff] %v709
      %742 = vst [vmem:[#allocation2 + $0xa0] sm:$0xff] %v710
      %743 = vst [vmem:[#allocation2 + $0xa8] sm:$0xff] %v711
      %744 = vst [vmem:[#allocation2 + $0xb0] sm:$0xff] %v712
      %745 = vst [vmem:[#allocation2 + $0xb8] sm:$0xff] %v713
      %746 = vst [vmem:[#allocation2 + $0xc0] sm:$0xff] %v714
      %747 = vst [vmem:[#allocation2 + $0xc8] sm:$0xff] %v715
      %748 = vst [vmem:[#allocation2 + $0xd0] sm:$0xff] %v716
      %749 = vst [vmem:[#allocation2 + $0xd8] sm:$0xff] %v717
      %750 = vst [vmem:[#allocation2 + $0xe0] sm:$0xff] %v718
      %751 = vst [vmem:[#allocation2 + $0xe8] sm:$0xff] %v719
      %752 = vst [vmem:[#allocation2 + $0xf0] sm:$0xff] %v720
      %753 = vst [vmem:[#allocation2 + $0xf8] sm:$0xff] %v721
      // Predicated region
      $region37: #{_lambda_.20} parent=31 // pred_check
        %p754 = pneg %p260
      $region38: #{_lambda_.20} parent=31 // pred_check_branch
        %756 = sbr.rel (%p754) target = $region40
      $region39: #{_lambda_.20} parent=31 // pred_region
        %v757 = vld [vmem:[#allocation2] sm:$0xff]
        %v758 = vld [vmem:[#allocation2 + $0x8] sm:$0xff]
        %v759 = vld [vmem:[#allocation2 + $0x10] sm:$0xff]
        %v760 = vld [vmem:[#allocation2 + $0x18] sm:$0xff]
        %v761 = vld [vmem:[#allocation2 + $0x20] sm:$0xff]
        %v762 = vld [vmem:[#allocation2 + $0x28] sm:$0xff]
        %v763 = vld [vmem:[#allocation2 + $0x30] sm:$0xff]
        %v764 = vld [vmem:[#allocation2 + $0x38] sm:$0xff]
        %v765 = vld [vmem:[#allocation2 + $0x40] sm:$0xff]
        %v766 = vld [vmem:[#allocation2 + $0x48] sm:$0xff]
        %v767 = vld [vmem:[#allocation2 + $0x50] sm:$0xff]
        %v768 = vld [vmem:[#allocation2 + $0x58] sm:$0xff]
        %v769 = vld [vmem:[#allocation2 + $0x60] sm:$0xff]
        %v770 = vld [vmem:[#allocation2 + $0x68] sm:$0xff]
        %v771 = vld [vmem:[#allocation2 + $0x70] sm:$0xff]
        %v772 = vld [vmem:[#allocation2 + $0x78] sm:$0xff]
        %v773 = vld [vmem:[#allocation2 + $0x80] sm:$0xff]
        %v774 = vld [vmem:[#allocation2 + $0x88] sm:$0xff]
        %v775 = vld [vmem:[#allocation2 + $0x90] sm:$0xff]
        %v776 = vld [vmem:[#allocation2 + $0x98] sm:$0xff]
        %v777 = vld [vmem:[#allocation2 + $0xa0] sm:$0xff]
        %v778 = vld [vmem:[#allocation2 + $0xa8] sm:$0xff]
        %v779 = vld [vmem:[#allocation2 + $0xb0] sm:$0xff]
        %v780 = vld [vmem:[#allocation2 + $0xb8] sm:$0xff]
        %v781 = vld [vmem:[#allocation2 + $0xc0] sm:$0xff]
        %v782 = vld [vmem:[#allocation2 + $0xc8] sm:$0xff]
        %v783 = vld [vmem:[#allocation2 + $0xd0] sm:$0xff]
        %v784 = vld [vmem:[#allocation2 + $0xd8] sm:$0xff]
        %v785 = vld [vmem:[#allocation2 + $0xe0] sm:$0xff]
        %v786 = vld [vmem:[#allocation2 + $0xe8] sm:$0xff]
        %v787 = vld [vmem:[#allocation2 + $0xf0] sm:$0xff]
        %v788 = vld [vmem:[#allocation2 + $0xf8] sm:$0xff]
        %v789 = vld [vmem:[%s249] sm:$0x1]
        %v791 = vlaneseq
        %v792 = vshrl.u32 %v791, 7
        %v793 = vsub.s32 0, %v792
        %v794 = vrot.slane %v789, %v793
        %v796 = vadd.f32 %v757, %v794
        %v797 = vadd.f32 %v758, %v794
        %v798 = vadd.f32 %v759, %v794
        %v799 = vadd.f32 %v760, %v794
        %v800 = vadd.f32 %v761, %v794
        %v801 = vadd.f32 %v762, %v794
        %v802 = vadd.f32 %v763, %v794
        %v803 = vadd.f32 %v764, %v794
        %v804 = vadd.f32 %v765, %v794
        %v805 = vadd.f32 %v766, %v794
        %v806 = vadd.f32 %v767, %v794
        %v807 = vadd.f32 %v768, %v794
        %v808 = vadd.f32 %v769, %v794
        %v809 = vadd.f32 %v770, %v794
        %v810 = vadd.f32 %v771, %v794
        %v811 = vadd.f32 %v772, %v794
        %v812 = vadd.f32 %v773, %v794
        %v813 = vadd.f32 %v774, %v794
        %v814 = vadd.f32 %v775, %v794
        %v815 = vadd.f32 %v776, %v794
        %v816 = vadd.f32 %v777, %v794
        %v817 = vadd.f32 %v778, %v794
        %v818 = vadd.f32 %v779, %v794
        %v819 = vadd.f32 %v780, %v794
        %v820 = vadd.f32 %v781, %v794
        %v821 = vadd.f32 %v782, %v794
        %v822 = vadd.f32 %v783, %v794
        %v823 = vadd.f32 %v784, %v794
        %v824 = vadd.f32 %v785, %v794
        %v825 = vadd.f32 %v786, %v794
        %v826 = vadd.f32 %v787, %v794
        %v827 = vadd.f32 %v788, %v794
        %v828 = vmax.f32 %v796, 0.0
        %v829 = vmax.f32 %v797, 0.0
        %v830 = vmax.f32 %v798, 0.0
        %v831 = vmax.f32 %v799, 0.0
        %v832 = vmax.f32 %v800, 0.0
        %v833 = vmax.f32 %v801, 0.0
        %v834 = vmax.f32 %v802, 0.0
        %v835 = vmax.f32 %v803, 0.0
        %v836 = vmax.f32 %v804, 0.0
        %v837 = vmax.f32 %v805, 0.0
        %v838 = vmax.f32 %v806, 0.0
        %v839 = vmax.f32 %v807, 0.0
        %v840 = vmax.f32 %v808, 0.0
        %v841 = vmax.f32 %v809, 0.0
        %v842 = vmax.f32 %v810, 0.0
        %v843 = vmax.f32 %v811, 0.0
        %v844 = vmax.f32 %v812, 0.0
        %v845 = vmax.f32 %v813, 0.0
        %v846 = vmax.f32 %v814, 0.0
        %v847 = vmax.f32 %v815, 0.0
        %v848 = vmax.f32 %v816, 0.0
        %v849 = vmax.f32 %v817, 0.0
        %v850 = vmax.f32 %v818, 0.0
        %v851 = vmax.f32 %v819, 0.0
        %v852 = vmax.f32 %v820, 0.0
        %v853 = vmax.f32 %v821, 0.0
        %v854 = vmax.f32 %v822, 0.0
        %v855 = vmax.f32 %v823, 0.0
        %v856 = vmax.f32 %v824, 0.0
        %v857 = vmax.f32 %v825, 0.0
        %v858 = vmax.f32 %v826, 0.0
        %v859 = vmax.f32 %v827, 0.0
        %v860 = vpack.c.bf16 %v829, %v828
        %v861 = vpack.c.bf16 %v831, %v830
        %v862 = vpack.c.bf16 %v833, %v832
        %v863 = vpack.c.bf16 %v835, %v834
        %v864 = vpack.c.bf16 %v837, %v836
        %v865 = vpack.c.bf16 %v839, %v838
        %v866 = vpack.c.bf16 %v841, %v840
        %v867 = vpack.c.bf16 %v843, %v842
        %v868 = vpack.c.bf16 %v845, %v844
        %v869 = vpack.c.bf16 %v847, %v846
        %v870 = vpack.c.bf16 %v849, %v848
        %v871 = vpack.c.bf16 %v851, %v850
        %v872 = vpack.c.bf16 %v853, %v852
        %v873 = vpack.c.bf16 %v855, %v854
        %v874 = vpack.c.bf16 %v857, %v856
        %v875 = vpack.c.bf16 %v859, %v858
        %v892 = vunpack.c.l.b16 %v860
        %v893 = vunpack.c.h.b16 %v860
        %v894 = vunpack.c.l.b16 %v861
        %v895 = vunpack.c.h.b16 %v861
        %v896 = vunpack.c.l.b16 %v862
        %v897 = vunpack.c.h.b16 %v862
        %v898 = vunpack.c.l.b16 %v863
        %v899 = vunpack.c.h.b16 %v863
        %v900 = vunpack.c.l.b16 %v864
        %v901 = vunpack.c.h.b16 %v864
        %v902 = vunpack.c.l.b16 %v865
        %v903 = vunpack.c.h.b16 %v865
        %v904 = vunpack.c.l.b16 %v866
        %v905 = vunpack.c.h.b16 %v866
        %v906 = vunpack.c.l.b16 %v867
        %v907 = vunpack.c.h.b16 %v867
        %v908 = vunpack.c.l.b16 %v868
        %v909 = vunpack.c.h.b16 %v868
        %v910 = vunpack.c.l.b16 %v869
        %v911 = vunpack.c.h.b16 %v869
        %v912 = vunpack.c.l.b16 %v870
        %v913 = vunpack.c.h.b16 %v870
        %v914 = vunpack.c.l.b16 %v871
        %v915 = vunpack.c.h.b16 %v871
        %v916 = vunpack.c.l.b16 %v872
        %v917 = vunpack.c.h.b16 %v872
        %v918 = vunpack.c.l.b16 %v873
        %v919 = vunpack.c.h.b16 %v873
        %v920 = vunpack.c.l.b16 %v874
        %v921 = vunpack.c.h.b16 %v874
        %v922 = vunpack.c.l.b16 %v875
        %v923 = vunpack.c.h.b16 %v875
        %v924 = vpack.c.b16 %v892, %v892
        %v925 = vpack.c.b16 %v893, %v893
        %v926 = vpack.c.b16 %v894, %v894
        %v927 = vpack.c.b16 %v895, %v895
        %v928 = vpack.c.b16 %v896, %v896
        %v929 = vpack.c.b16 %v897, %v897
        %v930 = vpack.c.b16 %v898, %v898
        %v931 = vpack.c.b16 %v899, %v899
        %v932 = vpack.c.b16 %v900, %v900
        %v933 = vpack.c.b16 %v901, %v901
        %v934 = vpack.c.b16 %v902, %v902
        %v935 = vpack.c.b16 %v903, %v903
        %v936 = vpack.c.b16 %v904, %v904
        %v937 = vpack.c.b16 %v905, %v905
        %v938 = vpack.c.b16 %v906, %v906
        %v939 = vpack.c.b16 %v907, %v907
        %v940 = vpack.c.b16 %v908, %v908
        %v941 = vpack.c.b16 %v909, %v909
        %v942 = vpack.c.b16 %v910, %v910
        %v943 = vpack.c.b16 %v911, %v911
        %v944 = vpack.c.b16 %v912, %v912
        %v945 = vpack.c.b16 %v913, %v913
        %v946 = vpack.c.b16 %v914, %v914
        %v947 = vpack.c.b16 %v915, %v915
        %v948 = vpack.c.b16 %v916, %v916
        %v949 = vpack.c.b16 %v917, %v917
        %v950 = vpack.c.b16 %v918, %v918
        %v951 = vpack.c.b16 %v919, %v919
        %v952 = vpack.c.b16 %v920, %v920
        %v953 = vpack.c.b16 %v921, %v921
        %v954 = vpack.c.b16 %v922, %v922
        %v955 = vpack.c.b16 %v923, %v923
        %988 = vst [vmem:[%s257] sm:$0xf] %v924
        %989 = vst [vmem:[%s257 + $0x4] sm:$0xf] %v925
        %990 = vst [vmem:[%s257 + $0x8] sm:$0xf] %v926
        %991 = vst [vmem:[%s257 + $0xc] sm:$0xf] %v927
        %992 = vst [vmem:[%s257 + $0x10] sm:$0xf] %v928
        %993 = vst [vmem:[%s257 + $0x14] sm:$0xf] %v929
        %994 = vst [vmem:[%s257 + $0x18] sm:$0xf] %v930
        %995 = vst [vmem:[%s257 + $0x1c] sm:$0xf] %v931
        %996 = vst [vmem:[%s257 + $0x20] sm:$0xf] %v932
        %997 = vst [vmem:[%s257 + $0x24] sm:$0xf] %v933
        %998 = vst [vmem:[%s257 + $0x28] sm:$0xf] %v934
        %999 = vst [vmem:[%s257 + $0x2c] sm:$0xf] %v935
        %1000 = vst [vmem:[%s257 + $0x30] sm:$0xf] %v936
        %1001 = vst [vmem:[%s257 + $0x34] sm:$0xf] %v937
        %1002 = vst [vmem:[%s257 + $0x38] sm:$0xf] %v938
        %1003 = vst [vmem:[%s257 + $0x3c] sm:$0xf] %v939
        %1004 = vst [vmem:[%s257 + $0x40] sm:$0xf] %v940
        %1005 = vst [vmem:[%s257 + $0x44] sm:$0xf] %v941
        %1006 = vst [vmem:[%s257 + $0x48] sm:$0xf] %v942
        %1007 = vst [vmem:[%s257 + $0x4c] sm:$0xf] %v943
        %1008 = vst [vmem:[%s257 + $0x50] sm:$0xf] %v944
        %1009 = vst [vmem:[%s257 + $0x54] sm:$0xf] %v945
        %1010 = vst [vmem:[%s257 + $0x58] sm:$0xf] %v946
        %1011 = vst [vmem:[%s257 + $0x5c] sm:$0xf] %v947
        %1012 = vst [vmem:[%s257 + $0x60] sm:$0xf] %v948
        %1013 = vst [vmem:[%s257 + $0x64] sm:$0xf] %v949
        %1014 = vst [vmem:[%s257 + $0x68] sm:$0xf] %v950
        %1015 = vst [vmem:[%s257 + $0x6c] sm:$0xf] %v951
        %1016 = vst [vmem:[%s257 + $0x70] sm:$0xf] %v952
        %1017 = vst [vmem:[%s257 + $0x74] sm:$0xf] %v953
        %1018 = vst [vmem:[%s257 + $0x78] sm:$0xf] %v954
        %1019 = vst [vmem:[%s257 + $0x7c] sm:$0xf] %v955
      $region40: #{_lambda_.20} parent=31 // pred_fallthru
        _
      %s1020 = smul.u32 32, %s19
      %p1021 = scmp.lt.s32.totalorder %s1020, 63
      %s1022 = scalar_select %p1021, %s1020, 63
      %p1023 = scmp.lt.s32.totalorder %s20, 0
      %s1024 = scalar_select %p1023, %s20, 0
      %s1025 = sadd.s32 %s1024, %s1022
      %s1026 = smul.addr %s1025, 4
      %s1027 = scalar_lea.vmem %s3, %s1026
      // Predicated region
      $region41: #{_lambda_.20} parent=31 // pred_check
        %p1028 = pneg %p135
      $region42: #{_lambda_.20} parent=31 // pred_check_branch
        %1030 = sbr.rel (%p1028) target = $region44
      $region43: #{_lambda_.20} parent=31 // pred_region
        %s1031 = smul.u32 32, %s19
      $region44: #{_lambda_.20} parent=31 // pred_fallthru
        _
    $region32: #{_lambda_.20} parent=5 // pred_fallthru
      _
    %p1032 = scmp.le.s32.totalorder 2, %s9
    // Predicated region
    $region45: #{_lambda_.20} parent=5 // pred_check
      %p1033 = pneg %p1032
    $region46: #{_lambda_.20} parent=5 // pred_check_branch
      %1035 = sbr.rel (%p1033) target = $region48
    $region47: #{_lambda_.20} parent=5 // pred_region
      %s1036 = ssub.s32 %s9, 2
      // Predicated region
      $region49: #{_lambda_.20} parent=47 // pred_check
        %p1037 = pneg %p141
      $region50: #{_lambda_.20} parent=47 // pred_check_branch
        %1039 = sbr.rel (%p1037) target = $region52
      $region51: #{_lambda_.20} parent=47 // pred_region
        %s1040 = smul.u32 32, %s22
        %p1041 = scmp.lt.s32.totalorder %s1040, 63
        %s1042 = scalar_select %p1041, %s1040, 63
        %p1043 = scmp.lt.s32.totalorder %s23, 0
        %s1044 = scalar_select %p1043, %s23, 0
        %s1045 = sadd.s32 %s1044, %s1042
        %s1046 = smul.addr %s1045, 4
        %s1047 = scalar_lea.vmem %s3, %s1046
      $region52: #{_lambda_.20} parent=47 // pred_fallthru
        _
    $region48: #{_lambda_.20} parent=5 // pred_fallthru
      _
  $region6: #{_lambda_.20} parent=0 // loop_footer
    %s13 = sadd.s32 1, %s9
  $region7: #{_lambda_.20} parent=0 // loop_footer_branch
    %8 = sbr.rel target = $region3
  $region8: #{_lambda_.20} parent=0 // loop_exit
    _

// kernel: _lambda_.24
$region0: #{_lambda_.24}
  #allocation0 [shape = 'u32[]', space=smem, size = 0x4, offset = 0x4, fixed_abs, tag = 'smem constant byte address 0x4 - core index']
  #allocation1 [shape = 'u32[144,128]{1,0:T(1,128)}', space=vmem, size = 0x12000, scoped, tag = 'internal scratch']
  #allocation2 [shape = 'f32[128,128]{1,0:T(8,128)}', space=vmem, size = 0x10000, scoped, tag = 'scratch operand']
  %s0 = inlined_call_operand.vmem [shape: bf16[128,16], index: 0, kind: input, shape index: {}]
  %s1 = inlined_call_operand.vmem [shape: bf16[16,128], index: 1, kind: input, shape index: {}]
  %s2 = inlined_call_operand.vmem [shape: f32[1,128], index: 2, kind: input, shape index: {}]
  %s3 = inlined_call_operand.vmem [shape: bf16[128,128], index: 3, kind: output, shape index: {}]
  %s4 = sld [smem:[#allocation0]]
  $region30: #{_lambda_.24} parent=0
    _
  %s6 = ssub.s32 1, %s4
  %s7 = scalar_select 0, %s6, %s4
  // Predicated region
  $region2: #{_lambda_.24} parent=0 // pred_check
    _
  $region3: #{_lambda_.24} parent=0 // pred_check_branch
    %9 = sbr.rel (0) target = $region5
  $region4: #{_lambda_.24} parent=0 // pred_region
    _
  $region5: #{_lambda_.24} parent=0 // pred_fallthru
    _
  // Predicated region
  $region6: #{_lambda_.24} parent=0 // pred_check
    _
  $region7: #{_lambda_.24} parent=0 // pred_check_branch
    %11 = sbr.rel (0) target = $region9
  $region8: #{_lambda_.24} parent=0 // pred_region
    _
  $region9: #{_lambda_.24} parent=0 // pred_fallthru
    _
  // Predicated region
  $region10: #{_lambda_.24} parent=0 // pred_check
    _
  $region11: #{_lambda_.24} parent=0 // pred_check_branch
    %13 = sbr.rel (0) target = $region13
  $region12: #{_lambda_.24} parent=0 // pred_region
    _
  $region13: #{_lambda_.24} parent=0 // pred_fallthru
    _
  %p15 = scmp.eq.s32.totalorder 0, 0
  // Predicated region
  $region14: #{_lambda_.24} parent=0 // pred_check
    %p16 = pneg %p15
  $region15: #{_lambda_.24} parent=0 // pred_check_branch
    %18 = sbr.rel (%p16) target = $region17
  $region16: #{_lambda_.24} parent=0 // pred_region
    %19 = vst [vmem:[#allocation2] sm:$0xff] 0.0
    %20 = vst [vmem:[#allocation2 + $0x8] sm:$0xff] 0.0
    %21 = vst [vmem:[#allocation2 + $0x10] sm:$0xff] 0.0
    %22 = vst [vmem:[#allocation2 + $0x18] sm:$0xff] 0.0
    %23 = vst [vmem:[#allocation2 + $0x20] sm:$0xff] 0.0
    %24 = vst [vmem:[#allocation2 + $0x28] sm:$0xff] 0.0
    %25 = vst [vmem:[#allocation2 + $0x30] sm:$0xff] 0.0
    %26 = vst [vmem:[#allocation2 + $0x38] sm:$0xff] 0.0
    %27 = vst [vmem:[#allocation2 + $0x40] sm:$0xff] 0.0
    %28 = vst [vmem:[#allocation2 + $0x48] sm:$0xff] 0.0
    %29 = vst [vmem:[#allocation2 + $0x50] sm:$0xff] 0.0
    %30 = vst [vmem:[#allocation2 + $0x58] sm:$0xff] 0.0
    %31 = vst [vmem:[#allocation2 + $0x60] sm:$0xff] 0.0
    %32 = vst [vmem:[#allocation2 + $0x68] sm:$0xff] 0.0
    %33 = vst [vmem:[#allocation2 + $0x70] sm:$0xff] 0.0
    %34 = vst [vmem:[#allocation2 + $0x78] sm:$0xff] 0.0
  $region17: #{_lambda_.24} parent=0 // pred_fallthru
    _
  %v35 = vld [vmem:[#allocation2] sm:$0xff]
  %v36 = vld [vmem:[#allocation2 + $0x8] sm:$0xff]
  %v37 = vld [vmem:[#allocation2 + $0x10] sm:$0xff]
  %v38 = vld [vmem:[#allocation2 + $0x18] sm:$0xff]
  %v39 = vld [vmem:[#allocation2 + $0x20] sm:$0xff]
  %v40 = vld [vmem:[#allocation2 + $0x28] sm:$0xff]
  %v41 = vld [vmem:[#allocation2 + $0x30] sm:$0xff]
  %v42 = vld [vmem:[#allocation2 + $0x38] sm:$0xff]
  %v43 = vld [vmem:[#allocation2 + $0x40] sm:$0xff]
  %v44 = vld [vmem:[#allocation2 + $0x48] sm:$0xff]
  %v45 = vld [vmem:[#allocation2 + $0x50] sm:$0xff]
  %v46 = vld [vmem:[#allocation2 + $0x58] sm:$0xff]
  %v47 = vld [vmem:[#allocation2 + $0x60] sm:$0xff]
  %v48 = vld [vmem:[#allocation2 + $0x68] sm:$0xff]
  %v49 = vld [vmem:[#allocation2 + $0x70] sm:$0xff]
  %v50 = vld [vmem:[#allocation2 + $0x78] sm:$0xff]
  %v51 = vld [vmem:[%s0] sm:$0xf]
  %v52 = vld [vmem:[%s0 + $0x4] sm:$0xf]
  %v53 = vld [vmem:[%s0 + $0x8] sm:$0xf]
  %v54 = vld [vmem:[%s0 + $0xc] sm:$0xf]
  %v55 = vld [vmem:[%s0 + $0x10] sm:$0xf]
  %v56 = vld [vmem:[%s0 + $0x14] sm:$0xf]
  %v57 = vld [vmem:[%s0 + $0x18] sm:$0xf]
  %v58 = vld [vmem:[%s0 + $0x1c] sm:$0xf]
  %v59 = vld [vmem:[%s0 + $0x20] sm:$0xf]
  %v60 = vld [vmem:[%s0 + $0x24] sm:$0xf]
  %v61 = vld [vmem:[%s0 + $0x28] sm:$0xf]
  %v62 = vld [vmem:[%s0 + $0x2c] sm:$0xf]
  %v63 = vld [vmem:[%s0 + $0x30] sm:$0xf]
  %v64 = vld [vmem:[%s0 + $0x34] sm:$0xf]
  %v65 = vld [vmem:[%s0 + $0x38] sm:$0xf]
  %v66 = vld [vmem:[%s0 + $0x3c] sm:$0xf]
  %v67 = vld [vmem:[%s1] sm:$0xf]
  %v68 = vld [vmem:[%s1 + $0x4] sm:$0xf]
  %v85 = vunpack.c.l.b16 %v51
  %v86 = vunpack.c.l.b16 %v52
  %v87 = vunpack.c.l.b16 %v53
  %v88 = vunpack.c.l.b16 %v54
  %v89 = vunpack.c.l.b16 %v55
  %v90 = vunpack.c.l.b16 %v56
  %v91 = vunpack.c.l.b16 %v57
  %v92 = vunpack.c.l.b16 %v58
  %v93 = vunpack.c.l.b16 %v59
  %v94 = vunpack.c.l.b16 %v60
  %v95 = vunpack.c.l.b16 %v61
  %v96 = vunpack.c.l.b16 %v62
  %v97 = vunpack.c.l.b16 %v63
  %v98 = vunpack.c.l.b16 %v64
  %v99 = vunpack.c.l.b16 %v65
  %v100 = vunpack.c.l.b16 %v66
  %v101 = vpack.c.b16 %v86, %v85
  %v102 = vpack.c.b16 %v88, %v87
  %v103 = vpack.c.b16 %v90, %v89
  %v104 = vpack.c.b16 %v92, %v91
  %v105 = vpack.c.b16 %v94, %v93
  %v106 = vpack.c.b16 %v96, %v95
  %v107 = vpack.c.b16 %v98, %v97
  %v108 = vpack.c.b16 %v100, %v99
  %v111 = vunpack.c.l.b16 %v67
  %v112 = vunpack.c.l.b16 %v68
  %v113 = vpack.c.b16 %v112, %v111
  %vm115 = vcmask 130048
  %v117 = vsel %vm115, %v101, 0
  %v120 = vsel %vm115, %v102, 0
  %v123 = vsel %vm115, %v103, 0
  %v126 = vsel %vm115, %v104, 0
  %v129 = vsel %vm115, %v105, 0
  %v132 = vsel %vm115, %v106, 0
  %v135 = vsel %vm115, %v107, 0
  %v138 = vsel %vm115, %v108, 0
  %140 = vmatprep.subr.bf16.mxu0 0
  %141 = vmatpush1.bf16.msra.mxu0 %v113
  %142 = vmatprep.subr.bf16.mxu0 0
  %143 = vmatpush1.bf16.msra.mxu0 0
  %144 = vmatprep.subr.bf16.mxu0 0
  %145 = vmatpush1.bf16.msra.mxu0 0
  %146 = vmatprep.subr.bf16.mxu0 0
  %147 = vmatpush1.bf16.msra.mxu0 0
  %148 = vmatprep.subr.bf16.mxu0 0
  %149 = vmatpush1.bf16.msra.mxu0 0
  %150 = vmatprep.subr.bf16.mxu0 0
  %151 = vmatpush1.bf16.msra.mxu0 0
  %152 = vmatprep.subr.bf16.mxu0 0
  %153 = vmatpush1.bf16.msra.mxu0 0
  %154 = vmatprep.subr.bf16.mxu0 0
  %155 = vmatpush1.bf16.msra.mxu0 0
  %156 = vmatprep.subr.bf16.mxu0 0
  %157 = vmatpush1.bf16.msra.mxu0 0
  %158 = vmatprep.subr.bf16.mxu0 0
  %159 = vmatpush1.bf16.msra.mxu0 0
  %160 = vmatprep.subr.bf16.mxu0 0
  %161 = vmatpush1.bf16.msra.mxu0 0
  %162 = vmatprep.subr.bf16.mxu0 0
  %163 = vmatpush1.bf16.msra.mxu0 0
  %164 = vmatprep.subr.bf16.mxu0 0
  %165 = vmatpush1.bf16.msra.mxu0 0
  %166 = vmatprep.subr.bf16.mxu0 0
  %167 = vmatpush1.bf16.msra.mxu0 0
  %168 = vmatprep.subr.bf16.mxu0 0
  %169 = vmatpush1.bf16.msra.mxu0 0
  %170 = vmatprep.subr.bf16.mxu0 0
  %171 = vmatpush1.bf16.msra.mxu0 0
  %172 = vmatprep.mubr.bf16.mxu0 0
  %173 = vmatmul.mubr.bf16.gmra.mrb[0].mxu0 %v117
  %v174 = vpop.f32.mrb[0].mxu0
  %v175 = vadd.f32 0.0, %v174
  %v176 = vpop.f32.mrb[0].mxu0
  %v177 = vpop.f32.mrb[0].mxu0
  %v178 = vadd.f32 0.0, %v177
  %v179 = vpop.f32.mrb[0].mxu0
  %180 = vmatprep.mubr.bf16.mxu0 0
  %181 = vmatmul.mubr.bf16.gmra.mrb[0].mxu0 %v120
  %v182 = vpop.f32.mrb[0].mxu0
  %v183 = vadd.f32 0.0, %v182
  %v184 = vpop.f32.mrb[0].mxu0
  %v185 = vpop.f32.mrb[0].mxu0
  %v186 = vadd.f32 0.0, %v185
  %v187 = vpop.f32.mrb[0].mxu0
  %188 = vmatprep.mubr.bf16.mxu0 0
  %189 = vmatmul.mubr.bf16.gmra.mrb[0].mxu0 %v123
  %v190 = vpop.f32.mrb[0].mxu0
  %v191 = vadd.f32 0.0, %v190
  %v192 = vpop.f32.mrb[0].mxu0
  %v193 = vpop.f32.mrb[0].mxu0
  %v194 = vadd.f32 0.0, %v193
  %v195 = vpop.f32.mrb[0].mxu0
  %196 = vmatprep.mubr.bf16.mxu0 0
  %197 = vmatmul.mubr.bf16.gmra.mrb[0].mxu0 %v126
  %v198 = vpop.f32.mrb[0].mxu0
  %v199 = vadd.f32 0.0, %v198
  %v200 = vpop.f32.mrb[0].mxu0
  %v201 = vpop.f32.mrb[0].mxu0
  %v202 = vadd.f32 0.0, %v201
  %v203 = vpop.f32.mrb[0].mxu0
  %204 = vmatprep.mubr.bf16.mxu0 0
  %205 = vmatmul.mubr.bf16.gmra.mrb[0].mxu0 %v129
  %v206 = vpop.f32.mrb[0].mxu0
  %v207 = vadd.f32 0.0, %v206
  %v208 = vpop.f32.mrb[0].mxu0
  %v209 = vpop.f32.mrb[0].mxu0
  %v210 = vadd.f32 0.0, %v209
  %v211 = vpop.f32.mrb[0].mxu0
  %212 = vmatprep.mubr.bf16.mxu0 0
  %213 = vmatmul.mubr.bf16.gmra.mrb[0].mxu0 %v132
  %v214 = vpop.f32.mrb[0].mxu0
  %v215 = vadd.f32 0.0, %v214
  %v216 = vpop.f32.mrb[0].mxu0
  %v217 = vpop.f32.mrb[0].mxu0
  %v218 = vadd.f32 0.0, %v217
  %v219 = vpop.f32.mrb[0].mxu0
  %220 = vmatprep.mubr.bf16.mxu0 0
  %221 = vmatmul.mubr.bf16.gmra.mrb[0].mxu0 %v135
  %v222 = vpop.f32.mrb[0].mxu0
  %v223 = vadd.f32 0.0, %v222
  %v224 = vpop.f32.mrb[0].mxu0
  %v225 = vpop.f32.mrb[0].mxu0
  %v226 = vadd.f32 0.0, %v225
  %v227 = vpop.f32.mrb[0].mxu0
  %228 = vmatprep.mubr.bf16.mxu0 0
  %229 = vmatmul.mubr.bf16.gmra.mrb[0].mxu0 %v138
  %v230 = vpop.f32.mrb[0].mxu0
  %v231 = vadd.f32 0.0, %v230
  %v232 = vpop.f32.mrb[0].mxu0
  %v233 = vpop.f32.mrb[0].mxu0
  %v234 = vadd.f32 0.0, %v233
  %v235 = vpop.f32.mrb[0].mxu0
  %236 = vdwg.mxu0
  %v237 = vadd.f32 %v35, %v175
  %v238 = vadd.f32 %v36, %v178
  %v239 = vadd.f32 %v37, %v183
  %v240 = vadd.f32 %v38, %v186
  %v241 = vadd.f32 %v39, %v191
  %v242 = vadd.f32 %v40, %v194
  %v243 = vadd.f32 %v41, %v199
  %v244 = vadd.f32 %v42, %v202
  %v245 = vadd.f32 %v43, %v207
  %v246 = vadd.f32 %v44, %v210
  %v247 = vadd.f32 %v45, %v215
  %v248 = vadd.f32 %v46, %v218
  %v249 = vadd.f32 %v47, %v223
  %v250 = vadd.f32 %v48, %v226
  %v251 = vadd.f32 %v49, %v231
  %v252 = vadd.f32 %v50, %v234
  %253 = vst [vmem:[#allocation2] sm:$0xff] %v237
  %254 = vst [vmem:[#allocation2 + $0x8] sm:$0xff] %v238
  %255 = vst [vmem:[#allocation2 + $0x10] sm:$0xff] %v239
  %256 = vst [vmem:[#allocation2 + $0x18] sm:$0xff] %v240
  %257 = vst [vmem:[#allocation2 + $0x20] sm:$0xff] %v241
  %258 = vst [vmem:[#allocation2 + $0x28] sm:$0xff] %v242
  %259 = vst [vmem:[#allocation2 + $0x30] sm:$0xff] %v243
  %260 = vst [vmem:[#allocation2 + $0x38] sm:$0xff] %v244
  %261 = vst [vmem:[#allocation2 + $0x40] sm:$0xff] %v245
  %262 = vst [vmem:[#allocation2 + $0x48] sm:$0xff] %v246
  %263 = vst [vmem:[#allocation2 + $0x50] sm:$0xff] %v247
  %264 = vst [vmem:[#allocation2 + $0x58] sm:$0xff] %v248
  %265 = vst [vmem:[#allocation2 + $0x60] sm:$0xff] %v249
  %266 = vst [vmem:[#allocation2 + $0x68] sm:$0xff] %v250
  %267 = vst [vmem:[#allocation2 + $0x70] sm:$0xff] %v251
  %268 = vst [vmem:[#allocation2 + $0x78] sm:$0xff] %v252
  // Predicated region
  $region18: #{_lambda_.24} parent=0 // pred_check
    %p269 = pneg %p15
  $region19: #{_lambda_.24} parent=0 // pred_check_branch
    %271 = sbr.rel (%p269) target = $region21
  $region20: #{_lambda_.24} parent=0 // pred_region
    %v272 = vld [vmem:[#allocation2] sm:$0xff]
    %v273 = vld [vmem:[#allocation2 + $0x8] sm:$0xff]
    %v274 = vld [vmem:[#allocation2 + $0x10] sm:$0xff]
    %v275 = vld [vmem:[#allocation2 + $0x18] sm:$0xff]
    %v276 = vld [vmem:[#allocation2 + $0x20] sm:$0xff]
    %v277 = vld [vmem:[#allocation2 + $0x28] sm:$0xff]
    %v278 = vld [vmem:[#allocation2 + $0x30] sm:$0xff]
    %v279 = vld [vmem:[#allocation2 + $0x38] sm:$0xff]
    %v280 = vld [vmem:[#allocation2 + $0x40] sm:$0xff]
    %v281 = vld [vmem:[#allocation2 + $0x48] sm:$0xff]
    %v282 = vld [vmem:[#allocation2 + $0x50] sm:$0xff]
    %v283 = vld [vmem:[#allocation2 + $0x58] sm:$0xff]
    %v284 = vld [vmem:[#allocation2 + $0x60] sm:$0xff]
    %v285 = vld [vmem:[#allocation2 + $0x68] sm:$0xff]
    %v286 = vld [vmem:[#allocation2 + $0x70] sm:$0xff]
    %v287 = vld [vmem:[#allocation2 + $0x78] sm:$0xff]
    %v288 = vld [vmem:[%s2] sm:$0x1]
    %v290 = vlaneseq
    %v291 = vshrl.u32 %v290, 7
    %v292 = vsub.s32 0, %v291
    %v293 = vrot.slane %v288, %v292
    %v295 = vadd.f32 %v272, %v293
    %v296 = vadd.f32 %v273, %v293
    %v297 = vadd.f32 %v274, %v293
    %v298 = vadd.f32 %v275, %v293
    %v299 = vadd.f32 %v276, %v293
    %v300 = vadd.f32 %v277, %v293
    %v301 = vadd.f32 %v278, %v293
    %v302 = vadd.f32 %v279, %v293
    %v303 = vadd.f32 %v280, %v293
    %v304 = vadd.f32 %v281, %v293
    %v305 = vadd.f32 %v282, %v293
    %v306 = vadd.f32 %v283, %v293
    %v307 = vadd.f32 %v284, %v293
    %v308 = vadd.f32 %v285, %v293
    %v309 = vadd.f32 %v286, %v293
    %v310 = vadd.f32 %v287, %v293
    %v311 = vpack.c.bf16 %v296, %v295
    %v312 = vpack.c.bf16 %v298, %v297
    %v313 = vpack.c.bf16 %v300, %v299
    %v314 = vpack.c.bf16 %v302, %v301
    %v315 = vpack.c.bf16 %v304, %v303
    %v316 = vpack.c.bf16 %v306, %v305
    %v317 = vpack.c.bf16 %v308, %v307
    %v318 = vpack.c.bf16 %v310, %v309
    %v327 = vunpack.c.l.b16 %v311
    %v328 = vunpack.c.h.b16 %v311
    %v329 = vunpack.c.l.b16 %v312
    %v330 = vunpack.c.h.b16 %v312
    %v331 = vunpack.c.l.b16 %v313
    %v332 = vunpack.c.h.b16 %v313
    %v333 = vunpack.c.l.b16 %v314
    %v334 = vunpack.c.h.b16 %v314
    %v335 = vunpack.c.l.b16 %v315
    %v336 = vunpack.c.h.b16 %v315
    %v337 = vunpack.c.l.b16 %v316
    %v338 = vunpack.c.h.b16 %v316
    %v339 = vunpack.c.l.b16 %v317
    %v340 = vunpack.c.h.b16 %v317
    %v341 = vunpack.c.l.b16 %v318
    %v342 = vunpack.c.h.b16 %v318
    %v343 = vpack.c.b16 %v327, %v327
    %v344 = vpack.c.b16 %v328, %v328
    %v345 = vpack.c.b16 %v329, %v329
    %v346 = vpack.c.b16 %v330, %v330
    %v347 = vpack.c.b16 %v331, %v331
    %v348 = vpack.c.b16 %v332, %v332
    %v349 = vpack.c.b16 %v333, %v333
    %v350 = vpack.c.b16 %v334, %v334
    %v351 = vpack.c.b16 %v335, %v335
    %v352 = vpack.c.b16 %v336, %v336
    %v353 = vpack.c.b16 %v337, %v337
    %v354 = vpack.c.b16 %v338, %v338
    %v355 = vpack.c.b16 %v339, %v339
    %v356 = vpack.c.b16 %v340, %v340
    %v357 = vpack.c.b16 %v341, %v341
    %v358 = vpack.c.b16 %v342, %v342
    %375 = vst [vmem:[%s3] sm:$0xf] %v343
    %376 = vst [vmem:[%s3 + $0x4] sm:$0xf] %v344
    %377 = vst [vmem:[%s3 + $0x8] sm:$0xf] %v345
    %378 = vst [vmem:[%s3 + $0xc] sm:$0xf] %v346
    %379 = vst [vmem:[%s3 + $0x10] sm:$0xf] %v347
    %380 = vst [vmem:[%s3 + $0x14] sm:$0xf] %v348
    %381 = vst [vmem:[%s3 + $0x18] sm:$0xf] %v349
    %382 = vst [vmem:[%s3 + $0x1c] sm:$0xf] %v350
    %383 = vst [vmem:[%s3 + $0x20] sm:$0xf] %v351
    %384 = vst [vmem:[%s3 + $0x24] sm:$0xf] %v352
    %385 = vst [vmem:[%s3 + $0x28] sm:$0xf] %v353
    %386 = vst [vmem:[%s3 + $0x2c] sm:$0xf] %v354
    %387 = vst [vmem:[%s3 + $0x30] sm:$0xf] %v355
    %388 = vst [vmem:[%s3 + $0x34] sm:$0xf] %v356
    %389 = vst [vmem:[%s3 + $0x38] sm:$0xf] %v357
    %390 = vst [vmem:[%s3 + $0x3c] sm:$0xf] %v358
  $region21: #{_lambda_.24} parent=0 // pred_fallthru
    _
  // Predicated region
  $region22: #{_lambda_.24} parent=0 // pred_check
    _
  $region23: #{_lambda_.24} parent=0 // pred_check_branch
    %392 = sbr.rel (0) target = $region25
  $region24: #{_lambda_.24} parent=0 // pred_region
    _
  $region25: #{_lambda_.24} parent=0 // pred_fallthru
    _
  // Predicated region
  $region26: #{_lambda_.24} parent=0 // pred_check
    _
  $region27: #{_lambda_.24} parent=0 // pred_check_branch
    %394 = sbr.rel (0) target = $region29
  $region28: #{_lambda_.24} parent=0 // pred_region
    _
  $region29: #{_lambda_.24} parent=0 // pred_fallthru
    _

// kernel: _lambda_.22
$region0: #{_lambda_.22}
  #allocation0 [shape = 'u32[]', space=smem, size = 0x4, offset = 0x4, fixed_abs, tag = 'smem constant byte address 0x4 - core index']
  #allocation1 [shape = 'u32[144,128]{1,0:T(1,128)}', space=vmem, size = 0x12000, scoped, tag = 'internal scratch']
  #allocation2 [shape = 'f32[128,128]{1,0:T(8,128)}', space=vmem, size = 0x10000, scoped, tag = 'scratch operand']
  %s0 = inlined_call_operand.vmem [shape: bf16[128,16], index: 0, kind: input, shape index: {}]
  %s1 = inlined_call_operand.vmem [shape: bf16[16,128], index: 1, kind: input, shape index: {}]
  %s2 = inlined_call_operand.vmem [shape: f32[1,128], index: 2, kind: input, shape index: {}]
  %s3 = inlined_call_operand.vmem [shape: bf16[128,128], index: 3, kind: output, shape index: {}]
  %s4 = sld [smem:[#allocation0]]
  $region30: #{_lambda_.22} parent=0
    _
  %s6 = ssub.s32 1, %s4
  %s7 = scalar_select 0, %s6, %s4
  // Predicated region
  $region2: #{_lambda_.22} parent=0 // pred_check
    _
  $region3: #{_lambda_.22} parent=0 // pred_check_branch
    %9 = sbr.rel (0) target = $region5
  $region4: #{_lambda_.22} parent=0 // pred_region
    _
  $region5: #{_lambda_.22} parent=0 // pred_fallthru
    _
  // Predicated region
  $region6: #{_lambda_.22} parent=0 // pred_check
    _
  $region7: #{_lambda_.22} parent=0 // pred_check_branch
    %11 = sbr.rel (0) target = $region9
  $region8: #{_lambda_.22} parent=0 // pred_region
    _
  $region9: #{_lambda_.22} parent=0 // pred_fallthru
    _
  // Predicated region
  $region10: #{_lambda_.22} parent=0 // pred_check
    _
  $region11: #{_lambda_.22} parent=0 // pred_check_branch
    %13 = sbr.rel (0) target = $region13
  $region12: #{_lambda_.22} parent=0 // pred_region
    _
  $region13: #{_lambda_.22} parent=0 // pred_fallthru
    _
  %p15 = scmp.eq.s32.totalorder 0, 0
  // Predicated region
  $region14: #{_lambda_.22} parent=0 // pred_check
    %p16 = pneg %p15
  $region15: #{_lambda_.22} parent=0 // pred_check_branch
    %18 = sbr.rel (%p16) target = $region17
  $region16: #{_lambda_.22} parent=0 // pred_region
    %19 = vst [vmem:[#allocation2] sm:$0xff] 0.0
    %20 = vst [vmem:[#allocation2 + $0x8] sm:$0xff] 0.0
    %21 = vst [vmem:[#allocation2 + $0x10] sm:$0xff] 0.0
    %22 = vst [vmem:[#allocation2 + $0x18] sm:$0xff] 0.0
    %23 = vst [vmem:[#allocation2 + $0x20] sm:$0xff] 0.0
    %24 = vst [vmem:[#allocation2 + $0x28] sm:$0xff] 0.0
    %25 = vst [vmem:[#allocation2 + $0x30] sm:$0xff] 0.0
    %26 = vst [vmem:[#allocation2 + $0x38] sm:$0xff] 0.0
    %27 = vst [vmem:[#allocation2 + $0x40] sm:$0xff] 0.0
    %28 = vst [vmem:[#allocation2 + $0x48] sm:$0xff] 0.0
    %29 = vst [vmem:[#allocation2 + $0x50] sm:$0xff] 0.0
    %30 = vst [vmem:[#allocation2 + $0x58] sm:$0xff] 0.0
    %31 = vst [vmem:[#allocation2 + $0x60] sm:$0xff] 0.0
    %32 = vst [vmem:[#allocation2 + $0x68] sm:$0xff] 0.0
    %33 = vst [vmem:[#allocation2 + $0x70] sm:$0xff] 0.0
    %34 = vst [vmem:[#allocation2 + $0x78] sm:$0xff] 0.0
  $region17: #{_lambda_.22} parent=0 // pred_fallthru
    _
  %v35 = vld [vmem:[#allocation2] sm:$0xff]
  %v36 = vld [vmem:[#allocation2 + $0x8] sm:$0xff]
  %v37 = vld [vmem:[#allocation2 + $0x10] sm:$0xff]
  %v38 = vld [vmem:[#allocation2 + $0x18] sm:$0xff]
  %v39 = vld [vmem:[#allocation2 + $0x20] sm:$0xff]
  %v40 = vld [vmem:[#allocation2 + $0x28] sm:$0xff]
  %v41 = vld [vmem:[#allocation2 + $0x30] sm:$0xff]
  %v42 = vld [vmem:[#allocation2 + $0x38] sm:$0xff]
  %v43 = vld [vmem:[#allocation2 + $0x40] sm:$0xff]
  %v44 = vld [vmem:[#allocation2 + $0x48] sm:$0xff]
  %v45 = vld [vmem:[#allocation2 + $0x50] sm:$0xff]
  %v46 = vld [vmem:[#allocation2 + $0x58] sm:$0xff]
  %v47 = vld [vmem:[#allocation2 + $0x60] sm:$0xff]
  %v48 = vld [vmem:[#allocation2 + $0x68] sm:$0xff]
  %v49 = vld [vmem:[#allocation2 + $0x70] sm:$0xff]
  %v50 = vld [vmem:[#allocation2 + $0x78] sm:$0xff]
  %v51 = vld [vmem:[%s0] sm:$0xf]
  %v52 = vld [vmem:[%s0 + $0x4] sm:$0xf]
  %v53 = vld [vmem:[%s0 + $0x8] sm:$0xf]
  %v54 = vld [vmem:[%s0 + $0xc] sm:$0xf]
  %v55 = vld [vmem:[%s0 + $0x10] sm:$0xf]
  %v56 = vld [vmem:[%s0 + $0x14] sm:$0xf]
  %v57 = vld [vmem:[%s0 + $0x18] sm:$0xf]
  %v58 = vld [vmem:[%s0 + $0x1c] sm:$0xf]
  %v59 = vld [vmem:[%s0 + $0x20] sm:$0xf]
  %v60 = vld [vmem:[%s0 + $0x24] sm:$0xf]
  %v61 = vld [vmem:[%s0 + $0x28] sm:$0xf]
  %v62 = vld [vmem:[%s0 + $0x2c] sm:$0xf]
  %v63 = vld [vmem:[%s0 + $0x30] sm:$0xf]
  %v64 = vld [vmem:[%s0 + $0x34] sm:$0xf]
  %v65 = vld [vmem:[%s0 + $0x38] sm:$0xf]
  %v66 = vld [vmem:[%s0 + $0x3c] sm:$0xf]
  %v67 = vld [vmem:[%s1] sm:$0xf]
  %v68 = vld [vmem:[%s1 + $0x4] sm:$0xf]
  %v85 = vunpack.c.l.b16 %v51
  %v86 = vunpack.c.l.b16 %v52
  %v87 = vunpack.c.l.b16 %v53
  %v88 = vunpack.c.l.b16 %v54
  %v89 = vunpack.c.l.b16 %v55
  %v90 = vunpack.c.l.b16 %v56
  %v91 = vunpack.c.l.b16 %v57
  %v92 = vunpack.c.l.b16 %v58
  %v93 = vunpack.c.l.b16 %v59
  %v94 = vunpack.c.l.b16 %v60
  %v95 = vunpack.c.l.b16 %v61
  %v96 = vunpack.c.l.b16 %v62
  %v97 = vunpack.c.l.b16 %v63
  %v98 = vunpack.c.l.b16 %v64
  %v99 = vunpack.c.l.b16 %v65
  %v100 = vunpack.c.l.b16 %v66
  %v101 = vpack.c.b16 %v86, %v85
  %v102 = vpack.c.b16 %v88, %v87
  %v103 = vpack.c.b16 %v90, %v89
  %v104 = vpack.c.b16 %v92, %v91
  %v105 = vpack.c.b16 %v94, %v93
  %v106 = vpack.c.b16 %v96, %v95
  %v107 = vpack.c.b16 %v98, %v97
  %v108 = vpack.c.b16 %v100, %v99
  %v111 = vunpack.c.l.b16 %v67
  %v112 = vunpack.c.l.b16 %v68
  %v113 = vpack.c.b16 %v112, %v111
  %vm115 = vcmask 130048
  %v117 = vsel %vm115, %v101, 0
  %v120 = vsel %vm115, %v102, 0
  %v123 = vsel %vm115, %v103, 0
  %v126 = vsel %vm115, %v104, 0
  %v129 = vsel %vm115, %v105, 0
  %v132 = vsel %vm115, %v106, 0
  %v135 = vsel %vm115, %v107, 0
  %v138 = vsel %vm115, %v108, 0
  %140 = vmatprep.subr.bf16.mxu0 0
  %141 = vmatpush1.bf16.msra.mxu0 %v113
  %142 = vmatprep.subr.bf16.mxu0 0
  %143 = vmatpush1.bf16.msra.mxu0 0
  %144 = vmatprep.subr.bf16.mxu0 0
  %145 = vmatpush1.bf16.msra.mxu0 0
  %146 = vmatprep.subr.bf16.mxu0 0
  %147 = vmatpush1.bf16.msra.mxu0 0
  %148 = vmatprep.subr.bf16.mxu0 0
  %149 = vmatpush1.bf16.msra.mxu0 0
  %150 = vmatprep.subr.bf16.mxu0 0
  %151 = vmatpush1.bf16.msra.mxu0 0
  %152 = vmatprep.subr.bf16.mxu0 0
  %153 = vmatpush1.bf16.msra.mxu0 0
  %154 = vmatprep.subr.bf16.mxu0 0
  %155 = vmatpush1.bf16.msra.mxu0 0
  %156 = vmatprep.subr.bf16.mxu0 0
  %157 = vmatpush1.bf16.msra.mxu0 0
  %158 = vmatprep.subr.bf16.mxu0 0
  %159 = vmatpush1.bf16.msra.mxu0 0
  %160 = vmatprep.subr.bf16.mxu0 0
  %161 = vmatpush1.bf16.msra.mxu0 0
  %162 = vmatprep.subr.bf16.mxu0 0
  %163 = vmatpush1.bf16.msra.mxu0 0
  %164 = vmatprep.subr.bf16.mxu0 0
  %165 = vmatpush1.bf16.msra.mxu0 0
  %166 = vmatprep.subr.bf16.mxu0 0
  %167 = vmatpush1.bf16.msra.mxu0 0
  %168 = vmatprep.subr.bf16.mxu0 0
  %169 = vmatpush1.bf16.msra.mxu0 0
  %170 = vmatprep.subr.bf16.mxu0 0
  %171 = vmatpush1.bf16.msra.mxu0 0
  %172 = vmatprep.mubr.bf16.mxu0 0
  %173 = vmatmul.mubr.bf16.gmra.mrb[0].mxu0 %v117
  %v174 = vpop.f32.mrb[0].mxu0
  %v175 = vadd.f32 0.0, %v174
  %v176 = vpop.f32.mrb[0].mxu0
  %v177 = vpop.f32.mrb[0].mxu0
  %v178 = vadd.f32 0.0, %v177
  %v179 = vpop.f32.mrb[0].mxu0
  %180 = vmatprep.mubr.bf16.mxu0 0
  %181 = vmatmul.mubr.bf16.gmra.mrb[0].mxu0 %v120
  %v182 = vpop.f32.mrb[0].mxu0
  %v183 = vadd.f32 0.0, %v182
  %v184 = vpop.f32.mrb[0].mxu0
  %v185 = vpop.f32.mrb[0].mxu0
  %v186 = vadd.f32 0.0, %v185
  %v187 = vpop.f32.mrb[0].mxu0
  %188 = vmatprep.mubr.bf16.mxu0 0
  %189 = vmatmul.mubr.bf16.gmra.mrb[0].mxu0 %v123
  %v190 = vpop.f32.mrb[0].mxu0
  %v191 = vadd.f32 0.0, %v190
  %v192 = vpop.f32.mrb[0].mxu0
  %v193 = vpop.f32.mrb[0].mxu0
  %v194 = vadd.f32 0.0, %v193
  %v195 = vpop.f32.mrb[0].mxu0
  %196 = vmatprep.mubr.bf16.mxu0 0
  %197 = vmatmul.mubr.bf16.gmra.mrb[0].mxu0 %v126
  %v198 = vpop.f32.mrb[0].mxu0
  %v199 = vadd.f32 0.0, %v198
  %v200 = vpop.f32.mrb[0].mxu0
  %v201 = vpop.f32.mrb[0].mxu0
  %v202 = vadd.f32 0.0, %v201
  %v203 = vpop.f32.mrb[0].mxu0
  %204 = vmatprep.mubr.bf16.mxu0 0
  %205 = vmatmul.mubr.bf16.gmra.mrb[0].mxu0 %v129
  %v206 = vpop.f32.mrb[0].mxu0
  %v207 = vadd.f32 0.0, %v206
  %v208 = vpop.f32.mrb[0].mxu0
  %v209 = vpop.f32.mrb[0].mxu0
  %v210 = vadd.f32 0.0, %v209
  %v211 = vpop.f32.mrb[0].mxu0
  %212 = vmatprep.mubr.bf16.mxu0 0
  %213 = vmatmul.mubr.bf16.gmra.mrb[0].mxu0 %v132
  %v214 = vpop.f32.mrb[0].mxu0
  %v215 = vadd.f32 0.0, %v214
  %v216 = vpop.f32.mrb[0].mxu0
  %v217 = vpop.f32.mrb[0].mxu0
  %v218 = vadd.f32 0.0, %v217
  %v219 = vpop.f32.mrb[0].mxu0
  %220 = vmatprep.mubr.bf16.mxu0 0
  %221 = vmatmul.mubr.bf16.gmra.mrb[0].mxu0 %v135
  %v222 = vpop.f32.mrb[0].mxu0
  %v223 = vadd.f32 0.0, %v222
  %v224 = vpop.f32.mrb[0].mxu0
  %v225 = vpop.f32.mrb[0].mxu0
  %v226 = vadd.f32 0.0, %v225
  %v227 = vpop.f32.mrb[0].mxu0
  %228 = vmatprep.mubr.bf16.mxu0 0
  %229 = vmatmul.mubr.bf16.gmra.mrb[0].mxu0 %v138
  %v230 = vpop.f32.mrb[0].mxu0
  %v231 = vadd.f32 0.0, %v230
  %v232 = vpop.f32.mrb[0].mxu0
  %v233 = vpop.f32.mrb[0].mxu0
  %v234 = vadd.f32 0.0, %v233
  %v235 = vpop.f32.mrb[0].mxu0
  %236 = vdwg.mxu0
  %v237 = vadd.f32 %v35, %v175
  %v238 = vadd.f32 %v36, %v178
  %v239 = vadd.f32 %v37, %v183
  %v240 = vadd.f32 %v38, %v186
  %v241 = vadd.f32 %v39, %v191
  %v242 = vadd.f32 %v40, %v194
  %v243 = vadd.f32 %v41, %v199
  %v244 = vadd.f32 %v42, %v202
  %v245 = vadd.f32 %v43, %v207
  %v246 = vadd.f32 %v44, %v210
  %v247 = vadd.f32 %v45, %v215
  %v248 = vadd.f32 %v46, %v218
  %v249 = vadd.f32 %v47, %v223
  %v250 = vadd.f32 %v48, %v226
  %v251 = vadd.f32 %v49, %v231
  %v252 = vadd.f32 %v50, %v234
  %253 = vst [vmem:[#allocation2] sm:$0xff] %v237
  %254 = vst [vmem:[#allocation2 + $0x8] sm:$0xff] %v238
  %255 = vst [vmem:[#allocation2 + $0x10] sm:$0xff] %v239
  %256 = vst [vmem:[#allocation2 + $0x18] sm:$0xff] %v240
  %257 = vst [vmem:[#allocation2 + $0x20] sm:$0xff] %v241
  %258 = vst [vmem:[#allocation2 + $0x28] sm:$0xff] %v242
  %259 = vst [vmem:[#allocation2 + $0x30] sm:$0xff] %v243
  %260 = vst [vmem:[#allocation2 + $0x38] sm:$0xff] %v244
  %261 = vst [vmem:[#allocation2 + $0x40] sm:$0xff] %v245
  %262 = vst [vmem:[#allocation2 + $0x48] sm:$0xff] %v246
  %263 = vst [vmem:[#allocation2 + $0x50] sm:$0xff] %v247
  %264 = vst [vmem:[#allocation2 + $0x58] sm:$0xff] %v248
  %265 = vst [vmem:[#allocation2 + $0x60] sm:$0xff] %v249
  %266 = vst [vmem:[#allocation2 + $0x68] sm:$0xff] %v250
  %267 = vst [vmem:[#allocation2 + $0x70] sm:$0xff] %v251
  %268 = vst [vmem:[#allocation2 + $0x78] sm:$0xff] %v252
  // Predicated region
  $region18: #{_lambda_.22} parent=0 // pred_check
    %p269 = pneg %p15
  $region19: #{_lambda_.22} parent=0 // pred_check_branch
    %271 = sbr.rel (%p269) target = $region21
  $region20: #{_lambda_.22} parent=0 // pred_region
    %v272 = vld [vmem:[#allocation2] sm:$0xff]
    %v273 = vld [vmem:[#allocation2 + $0x8] sm:$0xff]
    %v274 = vld [vmem:[#allocation2 + $0x10] sm:$0xff]
    %v275 = vld [vmem:[#allocation2 + $0x18] sm:$0xff]
    %v276 = vld [vmem:[#allocation2 + $0x20] sm:$0xff]
    %v277 = vld [vmem:[#allocation2 + $0x28] sm:$0xff]
    %v278 = vld [vmem:[#allocation2 + $0x30] sm:$0xff]
    %v279 = vld [vmem:[#allocation2 + $0x38] sm:$0xff]
    %v280 = vld [vmem:[#allocation2 + $0x40] sm:$0xff]
    %v281 = vld [vmem:[#allocation2 + $0x48] sm:$0xff]
    %v282 = vld [vmem:[#allocation2 + $0x50] sm:$0xff]
    %v283 = vld [vmem:[#allocation2 + $0x58] sm:$0xff]
    %v284 = vld [vmem:[#allocation2 + $0x60] sm:$0xff]
    %v285 = vld [vmem:[#allocation2 + $0x68] sm:$0xff]
    %v286 = vld [vmem:[#allocation2 + $0x70] sm:$0xff]
    %v287 = vld [vmem:[#allocation2 + $0x78] sm:$0xff]
    %v288 = vld [vmem:[%s2] sm:$0x1]
    %v290 = vlaneseq
    %v291 = vshrl.u32 %v290, 7
    %v292 = vsub.s32 0, %v291
    %v293 = vrot.slane %v288, %v292
    %v295 = vadd.f32 %v272, %v293
    %v296 = vadd.f32 %v273, %v293
    %v297 = vadd.f32 %v274, %v293
    %v298 = vadd.f32 %v275, %v293
    %v299 = vadd.f32 %v276, %v293
    %v300 = vadd.f32 %v277, %v293
    %v301 = vadd.f32 %v278, %v293
    %v302 = vadd.f32 %v279, %v293
    %v303 = vadd.f32 %v280, %v293
    %v304 = vadd.f32 %v281, %v293
    %v305 = vadd.f32 %v282, %v293
    %v306 = vadd.f32 %v283, %v293
    %v307 = vadd.f32 %v284, %v293
    %v308 = vadd.f32 %v285, %v293
    %v309 = vadd.f32 %v286, %v293
    %v310 = vadd.f32 %v287, %v293
    %v311 = vmax.f32 %v295, 0.0
    %v312 = vmax.f32 %v296, 0.0
    %v313 = vmax.f32 %v297, 0.0
    %v314 = vmax.f32 %v298, 0.0
    %v315 = vmax.f32 %v299, 0.0
    %v316 = vmax.f32 %v300, 0.0
    %v317 = vmax.f32 %v301, 0.0
    %v318 = vmax.f32 %v302, 0.0
    %v319 = vmax.f32 %v303, 0.0
    %v320 = vmax.f32 %v304, 0.0
    %v321 = vmax.f32 %v305, 0.0
    %v322 = vmax.f32 %v306, 0.0
    %v323 = vmax.f32 %v307, 0.0
    %v324 = vmax.f32 %v308, 0.0
    %v325 = vmax.f32 %v309, 0.0
    %v326 = vmax.f32 %v310, 0.0
    %v327 = vpack.c.bf16 %v312, %v311
    %v328 = vpack.c.bf16 %v314, %v313
    %v329 = vpack.c.bf16 %v316, %v315
    %v330 = vpack.c.bf16 %v318, %v317
    %v331 = vpack.c.bf16 %v320, %v319
    %v332 = vpack.c.bf16 %v322, %v321
    %v333 = vpack.c.bf16 %v324, %v323
    %v334 = vpack.c.bf16 %v326, %v325
    %v343 = vunpack.c.l.b16 %v327
    %v344 = vunpack.c.h.b16 %v327
    %v345 = vunpack.c.l.b16 %v328
    %v346 = vunpack.c.h.b16 %v328
    %v347 = vunpack.c.l.b16 %v329
    %v348 = vunpack.c.h.b16 %v329
    %v349 = vunpack.c.l.b16 %v330
    %v350 = vunpack.c.h.b16 %v330
    %v351 = vunpack.c.l.b16 %v331
    %v352 = vunpack.c.h.b16 %v331
    %v353 = vunpack.c.l.b16 %v332
    %v354 = vunpack.c.h.b16 %v332
    %v355 = vunpack.c.l.b16 %v333
    %v356 = vunpack.c.h.b16 %v333
    %v357 = vunpack.c.l.b16 %v334
    %v358 = vunpack.c.h.b16 %v334
    %v359 = vpack.c.b16 %v343, %v343
    %v360 = vpack.c.b16 %v344, %v344
    %v361 = vpack.c.b16 %v345, %v345
    %v362 = vpack.c.b16 %v346, %v346
    %v363 = vpack.c.b16 %v347, %v347
    %v364 = vpack.c.b16 %v348, %v348
    %v365 = vpack.c.b16 %v349, %v349
    %v366 = vpack.c.b16 %v350, %v350
    %v367 = vpack.c.b16 %v351, %v351
    %v368 = vpack.c.b16 %v352, %v352
    %v369 = vpack.c.b16 %v353, %v353
    %v370 = vpack.c.b16 %v354, %v354
    %v371 = vpack.c.b16 %v355, %v355
    %v372 = vpack.c.b16 %v356, %v356
    %v373 = vpack.c.b16 %v357, %v357
    %v374 = vpack.c.b16 %v358, %v358
    %391 = vst [vmem:[%s3] sm:$0xf] %v359
    %392 = vst [vmem:[%s3 + $0x4] sm:$0xf] %v360
    %393 = vst [vmem:[%s3 + $0x8] sm:$0xf] %v361
    %394 = vst [vmem:[%s3 + $0xc] sm:$0xf] %v362
    %395 = vst [vmem:[%s3 + $0x10] sm:$0xf] %v363
    %396 = vst [vmem:[%s3 + $0x14] sm:$0xf] %v364
    %397 = vst [vmem:[%s3 + $0x18] sm:$0xf] %v365
    %398 = vst [vmem:[%s3 + $0x1c] sm:$0xf] %v366
    %399 = vst [vmem:[%s3 + $0x20] sm:$0xf] %v367
    %400 = vst [vmem:[%s3 + $0x24] sm:$0xf] %v368
    %401 = vst [vmem:[%s3 + $0x28] sm:$0xf] %v369
    %402 = vst [vmem:[%s3 + $0x2c] sm:$0xf] %v370
    %403 = vst [vmem:[%s3 + $0x30] sm:$0xf] %v371
    %404 = vst [vmem:[%s3 + $0x34] sm:$0xf] %v372
    %405 = vst [vmem:[%s3 + $0x38] sm:$0xf] %v373
    %406 = vst [vmem:[%s3 + $0x3c] sm:$0xf] %v374
  $region21: #{_lambda_.22} parent=0 // pred_fallthru
    _
  // Predicated region
  $region22: #{_lambda_.22} parent=0 // pred_check
    _
  $region23: #{_lambda_.22} parent=0 // pred_check_branch
    %408 = sbr.rel (0) target = $region25
  $region24: #{_lambda_.22} parent=0 // pred_region
    _
  $region25: #{_lambda_.22} parent=0 // pred_fallthru
    _
  // Predicated region
  $region26: #{_lambda_.22} parent=0 // pred_check
    _
  $region27: #{_lambda_.22} parent=0 // pred_check_branch
    %410 = sbr.rel (0) target = $region29
  $region28: #{_lambda_.22} parent=0 // pred_region
    _
  $region29: #{_lambda_.22} parent=0 // pred_fallthru
    _

// kernel: _lambda_.23
$region0: #{_lambda_.23}
  #allocation0 [shape = 'u32[]', space=smem, size = 0x4, offset = 0x4, fixed_abs, tag = 'smem constant byte address 0x4 - core index']
  #allocation1 [shape = 'u32[144,128]{1,0:T(1,128)}', space=vmem, size = 0x12000, scoped, tag = 'internal scratch']
  #allocation2 [shape = 'f32[128,128]{1,0:T(8,128)}', space=vmem, size = 0x10000, scoped, tag = 'scratch operand']
  %s0 = inlined_call_operand.vmem [shape: bf16[128,80], index: 0, kind: input, shape index: {}]
  %s1 = inlined_call_operand.vmem [shape: bf16[80,128], index: 1, kind: input, shape index: {}]
  %s2 = inlined_call_operand.vmem [shape: f32[1,128], index: 2, kind: input, shape index: {}]
  %s3 = inlined_call_operand.vmem [shape: bf16[128,128], index: 3, kind: output, shape index: {}]
  %s4 = sld [smem:[#allocation0]]
  $region30: #{_lambda_.23} parent=0
    _
  %s6 = ssub.s32 1, %s4
  %s7 = scalar_select 0, %s6, %s4
  // Predicated region
  $region2: #{_lambda_.23} parent=0 // pred_check
    _
  $region3: #{_lambda_.23} parent=0 // pred_check_branch
    %9 = sbr.rel (0) target = $region5
  $region4: #{_lambda_.23} parent=0 // pred_region
    _
  $region5: #{_lambda_.23} parent=0 // pred_fallthru
    _
  // Predicated region
  $region6: #{_lambda_.23} parent=0 // pred_check
    _
  $region7: #{_lambda_.23} parent=0 // pred_check_branch
    %11 = sbr.rel (0) target = $region9
  $region8: #{_lambda_.23} parent=0 // pred_region
    _
  $region9: #{_lambda_.23} parent=0 // pred_fallthru
    _
  // Predicated region
  $region10: #{_lambda_.23} parent=0 // pred_check
    _
  $region11: #{_lambda_.23} parent=0 // pred_check_branch
    %13 = sbr.rel (0) target = $region13
  $region12: #{_lambda_.23} parent=0 // pred_region
    _
  $region13: #{_lambda_.23} parent=0 // pred_fallthru
    _
  %p15 = scmp.eq.s32.totalorder 0, 0
  // Predicated region
  $region14: #{_lambda_.23} parent=0 // pred_check
    %p16 = pneg %p15
  $region15: #{_lambda_.23} parent=0 // pred_check_branch
    %18 = sbr.rel (%p16) target = $region17
  $region16: #{_lambda_.23} parent=0 // pred_region
    %19 = vst [vmem:[#allocation2] sm:$0xff] 0.0
    %20 = vst [vmem:[#allocation2 + $0x8] sm:$0xff] 0.0
    %21 = vst [vmem:[#allocation2 + $0x10] sm:$0xff] 0.0
    %22 = vst [vmem:[#allocation2 + $0x18] sm:$0xff] 0.0
    %23 = vst [vmem:[#allocation2 + $0x20] sm:$0xff] 0.0
    %24 = vst [vmem:[#allocation2 + $0x28] sm:$0xff] 0.0
    %25 = vst [vmem:[#allocation2 + $0x30] sm:$0xff] 0.0
    %26 = vst [vmem:[#allocation2 + $0x38] sm:$0xff] 0.0
    %27 = vst [vmem:[#allocation2 + $0x40] sm:$0xff] 0.0
    %28 = vst [vmem:[#allocation2 + $0x48] sm:$0xff] 0.0
    %29 = vst [vmem:[#allocation2 + $0x50] sm:$0xff] 0.0
    %30 = vst [vmem:[#allocation2 + $0x58] sm:$0xff] 0.0
    %31 = vst [vmem:[#allocation2 + $0x60] sm:$0xff] 0.0
    %32 = vst [vmem:[#allocation2 + $0x68] sm:$0xff] 0.0
    %33 = vst [vmem:[#allocation2 + $0x70] sm:$0xff] 0.0
    %34 = vst [vmem:[#allocation2 + $0x78] sm:$0xff] 0.0
  $region17: #{_lambda_.23} parent=0 // pred_fallthru
    _
  %v35 = vld [vmem:[#allocation2] sm:$0xff]
  %v36 = vld [vmem:[#allocation2 + $0x8] sm:$0xff]
  %v37 = vld [vmem:[#allocation2 + $0x10] sm:$0xff]
  %v38 = vld [vmem:[#allocation2 + $0x18] sm:$0xff]
  %v39 = vld [vmem:[#allocation2 + $0x20] sm:$0xff]
  %v40 = vld [vmem:[#allocation2 + $0x28] sm:$0xff]
  %v41 = vld [vmem:[#allocation2 + $0x30] sm:$0xff]
  %v42 = vld [vmem:[#allocation2 + $0x38] sm:$0xff]
  %v43 = vld [vmem:[#allocation2 + $0x40] sm:$0xff]
  %v44 = vld [vmem:[#allocation2 + $0x48] sm:$0xff]
  %v45 = vld [vmem:[#allocation2 + $0x50] sm:$0xff]
  %v46 = vld [vmem:[#allocation2 + $0x58] sm:$0xff]
  %v47 = vld [vmem:[#allocation2 + $0x60] sm:$0xff]
  %v48 = vld [vmem:[#allocation2 + $0x68] sm:$0xff]
  %v49 = vld [vmem:[#allocation2 + $0x70] sm:$0xff]
  %v50 = vld [vmem:[#allocation2 + $0x78] sm:$0xff]
  %v51 = vld [vmem:[%s0] sm:$0xf]
  %v52 = vld [vmem:[%s0 + $0x4] sm:$0xf]
  %v53 = vld [vmem:[%s0 + $0x8] sm:$0xf]
  %v54 = vld [vmem:[%s0 + $0xc] sm:$0xf]
  %v55 = vld [vmem:[%s0 + $0x10] sm:$0xf]
  %v56 = vld [vmem:[%s0 + $0x14] sm:$0xf]
  %v57 = vld [vmem:[%s0 + $0x18] sm:$0xf]
  %v58 = vld [vmem:[%s0 + $0x1c] sm:$0xf]
  %v59 = vld [vmem:[%s0 + $0x20] sm:$0xf]
  %v60 = vld [vmem:[%s0 + $0x24] sm:$0xf]
  %v61 = vld [vmem:[%s0 + $0x28] sm:$0xf]
  %v62 = vld [vmem:[%s0 + $0x2c] sm:$0xf]
  %v63 = vld [vmem:[%s0 + $0x30] sm:$0xf]
  %v64 = vld [vmem:[%s0 + $0x34] sm:$0xf]
  %v65 = vld [vmem:[%s0 + $0x38] sm:$0xf]
  %v66 = vld [vmem:[%s0 + $0x3c] sm:$0xf]
  %v67 = vld [vmem:[%s1] sm:$0xf]
  %v68 = vld [vmem:[%s1 + $0x4] sm:$0xf]
  %v69 = vld [vmem:[%s1 + $0x8] sm:$0xf]
  %v70 = vld [vmem:[%s1 + $0xc] sm:$0xf]
  %v71 = vld [vmem:[%s1 + $0x10] sm:$0xf]
  %v72 = vld [vmem:[%s1 + $0x14] sm:$0xf]
  %v73 = vld [vmem:[%s1 + $0x18] sm:$0xf]
  %v74 = vld [vmem:[%s1 + $0x1c] sm:$0xf]
  %v75 = vld [vmem:[%s1 + $0x20] sm:$0xf]
  %v76 = vld [vmem:[%s1 + $0x24] sm:$0xf]
  %v93 = vunpack.c.l.b16 %v51
  %v94 = vunpack.c.l.b16 %v52
  %v95 = vunpack.c.l.b16 %v53
  %v96 = vunpack.c.l.b16 %v54
  %v97 = vunpack.c.l.b16 %v55
  %v98 = vunpack.c.l.b16 %v56
  %v99 = vunpack.c.l.b16 %v57
  %v100 = vunpack.c.l.b16 %v58
  %v101 = vunpack.c.l.b16 %v59
  %v102 = vunpack.c.l.b16 %v60
  %v103 = vunpack.c.l.b16 %v61
  %v104 = vunpack.c.l.b16 %v62
  %v105 = vunpack.c.l.b16 %v63
  %v106 = vunpack.c.l.b16 %v64
  %v107 = vunpack.c.l.b16 %v65
  %v108 = vunpack.c.l.b16 %v66
  %v109 = vpack.c.b16 %v94, %v93
  %v110 = vpack.c.b16 %v96, %v95
  %v111 = vpack.c.b16 %v98, %v97
  %v112 = vpack.c.b16 %v100, %v99
  %v113 = vpack.c.b16 %v102, %v101
  %v114 = vpack.c.b16 %v104, %v103
  %v115 = vpack.c.b16 %v106, %v105
  %v116 = vpack.c.b16 %v108, %v107
  %v127 = vunpack.c.l.b16 %v67
  %v128 = vunpack.c.l.b16 %v68
  %v129 = vunpack.c.l.b16 %v69
  %v130 = vunpack.c.l.b16 %v70
  %v131 = vunpack.c.l.b16 %v71
  %v132 = vunpack.c.l.b16 %v72
  %v133 = vunpack.c.l.b16 %v73
  %v134 = vunpack.c.l.b16 %v74
  %v135 = vunpack.c.l.b16 %v75
  %v136 = vunpack.c.l.b16 %v76
  %v137 = vpack.c.b16 %v128, %v127
  %v138 = vpack.c.b16 %v130, %v129
  %v139 = vpack.c.b16 %v132, %v131
  %v140 = vpack.c.b16 %v134, %v133
  %v141 = vpack.c.b16 %v136, %v135
  %vm147 = vcmask 654336
  %v149 = vsel %vm147, %v109, 0
  %v152 = vsel %vm147, %v110, 0
  %v155 = vsel %vm147, %v111, 0
  %v158 = vsel %vm147, %v112, 0
  %v161 = vsel %vm147, %v113, 0
  %v164 = vsel %vm147, %v114, 0
  %v167 = vsel %vm147, %v115, 0
  %v170 = vsel %vm147, %v116, 0
  %172 = vmatprep.subr.bf16.mxu0 0
  %173 = vmatpush1.bf16.msra.mxu0 %v137
  %174 = vmatprep.subr.bf16.mxu0 0
  %175 = vmatpush1.bf16.msra.mxu0 %v138
  %176 = vmatprep.subr.bf16.mxu0 0
  %177 = vmatpush1.bf16.msra.mxu0 %v139
  %178 = vmatprep.subr.bf16.mxu0 0
  %179 = vmatpush1.bf16.msra.mxu0 %v140
  %180 = vmatprep.subr.bf16.mxu0 0
  %181 = vmatpush1.bf16.msra.mxu0 %v141
  %182 = vmatprep.subr.bf16.mxu0 0
  %183 = vmatpush1.bf16.msra.mxu0 0
  %184 = vmatprep.subr.bf16.mxu0 0
  %185 = vmatpush1.bf16.msra.mxu0 0
  %186 = vmatprep.subr.bf16.mxu0 0
  %187 = vmatpush1.bf16.msra.mxu0 0
  %188 = vmatprep.subr.bf16.mxu0 0
  %189 = vmatpush1.bf16.msra.mxu0 0
  %190 = vmatprep.subr.bf16.mxu0 0
  %191 = vmatpush1.bf16.msra.mxu0 0
  %192 = vmatprep.subr.bf16.mxu0 0
  %193 = vmatpush1.bf16.msra.mxu0 0
  %194 = vmatprep.subr.bf16.mxu0 0
  %195 = vmatpush1.bf16.msra.mxu0 0
  %196 = vmatprep.subr.bf16.mxu0 0
  %197 = vmatpush1.bf16.msra.mxu0 0
  %198 = vmatprep.subr.bf16.mxu0 0
  %199 = vmatpush1.bf16.msra.mxu0 0
  %200 = vmatprep.subr.bf16.mxu0 0
  %201 = vmatpush1.bf16.msra.mxu0 0
  %202 = vmatprep.subr.bf16.mxu0 0
  %203 = vmatpush1.bf16.msra.mxu0 0
  %204 = vmatprep.mubr.bf16.mxu0 0
  %205 = vmatmul.mubr.bf16.gmra.mrb[0].mxu0 %v149
  %v206 = vpop.f32.mrb[0].mxu0
  %v207 = vadd.f32 0.0, %v206
  %v208 = vpop.f32.mrb[0].mxu0
  %v209 = vpop.f32.mrb[0].mxu0
  %v210 = vadd.f32 0.0, %v209
  %v211 = vpop.f32.mrb[0].mxu0
  %212 = vmatprep.mubr.bf16.mxu0 0
  %213 = vmatmul.mubr.bf16.gmra.mrb[0].mxu0 %v152
  %v214 = vpop.f32.mrb[0].mxu0
  %v215 = vadd.f32 0.0, %v214
  %v216 = vpop.f32.mrb[0].mxu0
  %v217 = vpop.f32.mrb[0].mxu0
  %v218 = vadd.f32 0.0, %v217
  %v219 = vpop.f32.mrb[0].mxu0
  %220 = vmatprep.mubr.bf16.mxu0 0
  %221 = vmatmul.mubr.bf16.gmra.mrb[0].mxu0 %v155
  %v222 = vpop.f32.mrb[0].mxu0
  %v223 = vadd.f32 0.0, %v222
  %v224 = vpop.f32.mrb[0].mxu0
  %v225 = vpop.f32.mrb[0].mxu0
  %v226 = vadd.f32 0.0, %v225
  %v227 = vpop.f32.mrb[0].mxu0
  %228 = vmatprep.mubr.bf16.mxu0 0
  %229 = vmatmul.mubr.bf16.gmra.mrb[0].mxu0 %v158
  %v230 = vpop.f32.mrb[0].mxu0
  %v231 = vadd.f32 0.0, %v230
  %v232 = vpop.f32.mrb[0].mxu0
  %v233 = vpop.f32.mrb[0].mxu0
  %v234 = vadd.f32 0.0, %v233
  %v235 = vpop.f32.mrb[0].mxu0
  %236 = vmatprep.mubr.bf16.mxu0 0
  %237 = vmatmul.mubr.bf16.gmra.mrb[0].mxu0 %v161
  %v238 = vpop.f32.mrb[0].mxu0
  %v239 = vadd.f32 0.0, %v238
  %v240 = vpop.f32.mrb[0].mxu0
  %v241 = vpop.f32.mrb[0].mxu0
  %v242 = vadd.f32 0.0, %v241
  %v243 = vpop.f32.mrb[0].mxu0
  %244 = vmatprep.mubr.bf16.mxu0 0
  %245 = vmatmul.mubr.bf16.gmra.mrb[0].mxu0 %v164
  %v246 = vpop.f32.mrb[0].mxu0
  %v247 = vadd.f32 0.0, %v246
  %v248 = vpop.f32.mrb[0].mxu0
  %v249 = vpop.f32.mrb[0].mxu0
  %v250 = vadd.f32 0.0, %v249
  %v251 = vpop.f32.mrb[0].mxu0
  %252 = vmatprep.mubr.bf16.mxu0 0
  %253 = vmatmul.mubr.bf16.gmra.mrb[0].mxu0 %v167
  %v254 = vpop.f32.mrb[0].mxu0
  %v255 = vadd.f32 0.0, %v254
  %v256 = vpop.f32.mrb[0].mxu0
  %v257 = vpop.f32.mrb[0].mxu0
  %v258 = vadd.f32 0.0, %v257
  %v259 = vpop.f32.mrb[0].mxu0
  %260 = vmatprep.mubr.bf16.mxu0 0
  %261 = vmatmul.mubr.bf16.gmra.mrb[0].mxu0 %v170
  %v262 = vpop.f32.mrb[0].mxu0
  %v263 = vadd.f32 0.0, %v262
  %v264 = vpop.f32.mrb[0].mxu0
  %v265 = vpop.f32.mrb[0].mxu0
  %v266 = vadd.f32 0.0, %v265
  %v267 = vpop.f32.mrb[0].mxu0
  %268 = vdwg.mxu0
  %v269 = vadd.f32 %v35, %v207
  %v270 = vadd.f32 %v36, %v210
  %v271 = vadd.f32 %v37, %v215
  %v272 = vadd.f32 %v38, %v218
  %v273 = vadd.f32 %v39, %v223
  %v274 = vadd.f32 %v40, %v226
  %v275 = vadd.f32 %v41, %v231
  %v276 = vadd.f32 %v42, %v234
  %v277 = vadd.f32 %v43, %v239
  %v278 = vadd.f32 %v44, %v242
  %v279 = vadd.f32 %v45, %v247
  %v280 = vadd.f32 %v46, %v250
  %v281 = vadd.f32 %v47, %v255
  %v282 = vadd.f32 %v48, %v258
  %v283 = vadd.f32 %v49, %v263
  %v284 = vadd.f32 %v50, %v266
  %285 = vst [vmem:[#allocation2] sm:$0xff] %v269
  %286 = vst [vmem:[#allocation2 + $0x8] sm:$0xff] %v270
  %287 = vst [vmem:[#allocation2 + $0x10] sm:$0xff] %v271
  %288 = vst [vmem:[#allocation2 + $0x18] sm:$0xff] %v272
  %289 = vst [vmem:[#allocation2 + $0x20] sm:$0xff] %v273
  %290 = vst [vmem:[#allocation2 + $0x28] sm:$0xff] %v274
  %291 = vst [vmem:[#allocation2 + $0x30] sm:$0xff] %v275
  %292 = vst [vmem:[#allocation2 + $0x38] sm:$0xff] %v276
  %293 = vst [vmem:[#allocation2 + $0x40] sm:$0xff] %v277
  %294 = vst [vmem:[#allocation2 + $0x48] sm:$0xff] %v278
  %295 = vst [vmem:[#allocation2 + $0x50] sm:$0xff] %v279
  %296 = vst [vmem:[#allocation2 + $0x58] sm:$0xff] %v280
  %297 = vst [vmem:[#allocation2 + $0x60] sm:$0xff] %v281
  %298 = vst [vmem:[#allocation2 + $0x68] sm:$0xff] %v282
  %299 = vst [vmem:[#allocation2 + $0x70] sm:$0xff] %v283
  %300 = vst [vmem:[#allocation2 + $0x78] sm:$0xff] %v284
  // Predicated region
  $region18: #{_lambda_.23} parent=0 // pred_check
    %p301 = pneg %p15
  $region19: #{_lambda_.23} parent=0 // pred_check_branch
    %303 = sbr.rel (%p301) target = $region21
  $region20: #{_lambda_.23} parent=0 // pred_region
    %v304 = vld [vmem:[#allocation2] sm:$0xff]
    %v305 = vld [vmem:[#allocation2 + $0x8] sm:$0xff]
    %v306 = vld [vmem:[#allocation2 + $0x10] sm:$0xff]
    %v307 = vld [vmem:[#allocation2 + $0x18] sm:$0xff]
    %v308 = vld [vmem:[#allocation2 + $0x20] sm:$0xff]
    %v309 = vld [vmem:[#allocation2 + $0x28] sm:$0xff]
    %v310 = vld [vmem:[#allocation2 + $0x30] sm:$0xff]
    %v311 = vld [vmem:[#allocation2 + $0x38] sm:$0xff]
    %v312 = vld [vmem:[#allocation2 + $0x40] sm:$0xff]
    %v313 = vld [vmem:[#allocation2 + $0x48] sm:$0xff]
    %v314 = vld [vmem:[#allocation2 + $0x50] sm:$0xff]
    %v315 = vld [vmem:[#allocation2 + $0x58] sm:$0xff]
    %v316 = vld [vmem:[#allocation2 + $0x60] sm:$0xff]
    %v317 = vld [vmem:[#allocation2 + $0x68] sm:$0xff]
    %v318 = vld [vmem:[#allocation2 + $0x70] sm:$0xff]
    %v319 = vld [vmem:[#allocation2 + $0x78] sm:$0xff]
    %v320 = vld [vmem:[%s2] sm:$0x1]
    %v322 = vlaneseq
    %v323 = vshrl.u32 %v322, 7
    %v324 = vsub.s32 0, %v323
    %v325 = vrot.slane %v320, %v324
    %v327 = vadd.f32 %v304, %v325
    %v328 = vadd.f32 %v305, %v325
    %v329 = vadd.f32 %v306, %v325
    %v330 = vadd.f32 %v307, %v325
    %v331 = vadd.f32 %v308, %v325
    %v332 = vadd.f32 %v309, %v325
    %v333 = vadd.f32 %v310, %v325
    %v334 = vadd.f32 %v311, %v325
    %v335 = vadd.f32 %v312, %v325
    %v336 = vadd.f32 %v313, %v325
    %v337 = vadd.f32 %v314, %v325
    %v338 = vadd.f32 %v315, %v325
    %v339 = vadd.f32 %v316, %v325
    %v340 = vadd.f32 %v317, %v325
    %v341 = vadd.f32 %v318, %v325
    %v342 = vadd.f32 %v319, %v325
    %v343 = vmax.f32 %v327, 0.0
    %v344 = vmax.f32 %v328, 0.0
    %v345 = vmax.f32 %v329, 0.0
    %v346 = vmax.f32 %v330, 0.0
    %v347 = vmax.f32 %v331, 0.0
    %v348 = vmax.f32 %v332, 0.0
    %v349 = vmax.f32 %v333, 0.0
    %v350 = vmax.f32 %v334, 0.0
    %v351 = vmax.f32 %v335, 0.0
    %v352 = vmax.f32 %v336, 0.0
    %v353 = vmax.f32 %v337, 0.0
    %v354 = vmax.f32 %v338, 0.0
    %v355 = vmax.f32 %v339, 0.0
    %v356 = vmax.f32 %v340, 0.0
    %v357 = vmax.f32 %v341, 0.0
    %v358 = vmax.f32 %v342, 0.0
    %v359 = vpack.c.bf16 %v344, %v343
    %v360 = vpack.c.bf16 %v346, %v345
    %v361 = vpack.c.bf16 %v348, %v347
    %v362 = vpack.c.bf16 %v350, %v349
    %v363 = vpack.c.bf16 %v352, %v351
    %v364 = vpack.c.bf16 %v354, %v353
    %v365 = vpack.c.bf16 %v356, %v355
    %v366 = vpack.c.bf16 %v358, %v357
    %v375 = vunpack.c.l.b16 %v359
    %v376 = vunpack.c.h.b16 %v359
    %v377 = vunpack.c.l.b16 %v360
    %v378 = vunpack.c.h.b16 %v360
    %v379 = vunpack.c.l.b16 %v361
    %v380 = vunpack.c.h.b16 %v361
    %v381 = vunpack.c.l.b16 %v362
    %v382 = vunpack.c.h.b16 %v362
    %v383 = vunpack.c.l.b16 %v363
    %v384 = vunpack.c.h.b16 %v363
    %v385 = vunpack.c.l.b16 %v364
    %v386 = vunpack.c.h.b16 %v364
    %v387 = vunpack.c.l.b16 %v365
    %v388 = vunpack.c.h.b16 %v365
    %v389 = vunpack.c.l.b16 %v366
    %v390 = vunpack.c.h.b16 %v366
    %v391 = vpack.c.b16 %v375, %v375
    %v392 = vpack.c.b16 %v376, %v376
    %v393 = vpack.c.b16 %v377, %v377
    %v394 = vpack.c.b16 %v378, %v378
    %v395 = vpack.c.b16 %v379, %v379
    %v396 = vpack.c.b16 %v380, %v380
    %v397 = vpack.c.b16 %v381, %v381
    %v398 = vpack.c.b16 %v382, %v382
    %v399 = vpack.c.b16 %v383, %v383
    %v400 = vpack.c.b16 %v384, %v384
    %v401 = vpack.c.b16 %v385, %v385
    %v402 = vpack.c.b16 %v386, %v386
    %v403 = vpack.c.b16 %v387, %v387
    %v404 = vpack.c.b16 %v388, %v388
    %v405 = vpack.c.b16 %v389, %v389
    %v406 = vpack.c.b16 %v390, %v390
    %423 = vst [vmem:[%s3] sm:$0xf] %v391
    %424 = vst [vmem:[%s3 + $0x4] sm:$0xf] %v392
    %425 = vst [vmem:[%s3 + $0x8] sm:$0xf] %v393
    %426 = vst [vmem:[%s3 + $0xc] sm:$0xf] %v394
    %427 = vst [vmem:[%s3 + $0x10] sm:$0xf] %v395
    %428 = vst [vmem:[%s3 + $0x14] sm:$0xf] %v396
    %429 = vst [vmem:[%s3 + $0x18] sm:$0xf] %v397
    %430 = vst [vmem:[%s3 + $0x1c] sm:$0xf] %v398
    %431 = vst [vmem:[%s3 + $0x20] sm:$0xf] %v399
    %432 = vst [vmem:[%s3 + $0x24] sm:$0xf] %v400
    %433 = vst [vmem:[%s3 + $0x28] sm:$0xf] %v401
    %434 = vst [vmem:[%s3 + $0x2c] sm:$0xf] %v402
    %435 = vst [vmem:[%s3 + $0x30] sm:$0xf] %v403
    %436 = vst [vmem:[%s3 + $0x34] sm:$0xf] %v404
    %437 = vst [vmem:[%s3 + $0x38] sm:$0xf] %v405
    %438 = vst [vmem:[%s3 + $0x3c] sm:$0xf] %v406
  $region21: #{_lambda_.23} parent=0 // pred_fallthru
    _
  // Predicated region
  $region22: #{_lambda_.23} parent=0 // pred_check
    _
  $region23: #{_lambda_.23} parent=0 // pred_check_branch
    %440 = sbr.rel (0) target = $region25
  $region24: #{_lambda_.23} parent=0 // pred_region
    _
  $region25: #{_lambda_.23} parent=0 // pred_fallthru
    _
  // Predicated region
  $region26: #{_lambda_.23} parent=0 // pred_check
    _
  $region27: #{_lambda_.23} parent=0 // pred_check_branch
    %442 = sbr.rel (0) target = $region29
  $region28: #{_lambda_.23} parent=0 // pred_region
    _
  $region29: #{_lambda_.23} parent=0 // pred_fallthru
    _

// kernel: _lambda_.25
$region0: #{_lambda_.25}
  #allocation0 [shape = 'u32[]', space=smem, size = 0x4, offset = 0x4, fixed_abs, tag = 'smem constant byte address 0x4 - core index']
  #allocation1 [shape = 'u32[144,128]{1,0:T(1,128)}', space=vmem, size = 0x12000, scoped, tag = 'internal scratch']
  #allocation2 [shape = 'f32[128,128]{1,0:T(8,128)}', space=vmem, size = 0x10000, scoped, tag = 'scratch operand']
  %s0 = inlined_call_operand.vmem [shape: bf16[128,16], index: 0, kind: input, shape index: {}]
  %s1 = inlined_call_operand.vmem [shape: bf16[16,128], index: 1, kind: input, shape index: {}]
  %s2 = inlined_call_operand.vmem [shape: f32[1,128], index: 2, kind: input, shape index: {}]
  %s3 = inlined_call_operand.vmem [shape: bf16[128,128], index: 3, kind: input, shape index: {}]
  %s4 = inlined_call_operand.vmem [shape: bf16[128,128], index: 4, kind: output, shape index: {}]
  %s5 = sld [smem:[#allocation0]]
  $region34: #{_lambda_.25} parent=0
    _
  %s7 = ssub.s32 1, %s5
  %s8 = scalar_select 0, %s7, %s5
  // Predicated region
  $region2: #{_lambda_.25} parent=0 // pred_check
    _
  $region3: #{_lambda_.25} parent=0 // pred_check_branch
    %10 = sbr.rel (0) target = $region5
  $region4: #{_lambda_.25} parent=0 // pred_region
    _
  $region5: #{_lambda_.25} parent=0 // pred_fallthru
    _
  // Predicated region
  $region6: #{_lambda_.25} parent=0 // pred_check
    _
  $region7: #{_lambda_.25} parent=0 // pred_check_branch
    %12 = sbr.rel (0) target = $region9
  $region8: #{_lambda_.25} parent=0 // pred_region
    _
  $region9: #{_lambda_.25} parent=0 // pred_fallthru
    _
  // Predicated region
  $region10: #{_lambda_.25} parent=0 // pred_check
    _
  $region11: #{_lambda_.25} parent=0 // pred_check_branch
    %14 = sbr.rel (0) target = $region13
  $region12: #{_lambda_.25} parent=0 // pred_region
    _
  $region13: #{_lambda_.25} parent=0 // pred_fallthru
    _
  // Predicated region
  $region14: #{_lambda_.25} parent=0 // pred_check
    _
  $region15: #{_lambda_.25} parent=0 // pred_check_branch
    %16 = sbr.rel (0) target = $region17
  $region16: #{_lambda_.25} parent=0 // pred_region
    _
  $region17: #{_lambda_.25} parent=0 // pred_fallthru
    _
  %p18 = scmp.eq.s32.totalorder 0, 0
  // Predicated region
  $region18: #{_lambda_.25} parent=0 // pred_check
    %p19 = pneg %p18
  $region19: #{_lambda_.25} parent=0 // pred_check_branch
    %21 = sbr.rel (%p19) target = $region21
  $region20: #{_lambda_.25} parent=0 // pred_region
    %22 = vst [vmem:[#allocation2] sm:$0xff] 0.0
    %23 = vst [vmem:[#allocation2 + $0x8] sm:$0xff] 0.0
    %24 = vst [vmem:[#allocation2 + $0x10] sm:$0xff] 0.0
    %25 = vst [vmem:[#allocation2 + $0x18] sm:$0xff] 0.0
    %26 = vst [vmem:[#allocation2 + $0x20] sm:$0xff] 0.0
    %27 = vst [vmem:[#allocation2 + $0x28] sm:$0xff] 0.0
    %28 = vst [vmem:[#allocation2 + $0x30] sm:$0xff] 0.0
    %29 = vst [vmem:[#allocation2 + $0x38] sm:$0xff] 0.0
    %30 = vst [vmem:[#allocation2 + $0x40] sm:$0xff] 0.0
    %31 = vst [vmem:[#allocation2 + $0x48] sm:$0xff] 0.0
    %32 = vst [vmem:[#allocation2 + $0x50] sm:$0xff] 0.0
    %33 = vst [vmem:[#allocation2 + $0x58] sm:$0xff] 0.0
    %34 = vst [vmem:[#allocation2 + $0x60] sm:$0xff] 0.0
    %35 = vst [vmem:[#allocation2 + $0x68] sm:$0xff] 0.0
    %36 = vst [vmem:[#allocation2 + $0x70] sm:$0xff] 0.0
    %37 = vst [vmem:[#allocation2 + $0x78] sm:$0xff] 0.0
  $region21: #{_lambda_.25} parent=0 // pred_fallthru
    _
  %v38 = vld [vmem:[#allocation2] sm:$0xff]
  %v39 = vld [vmem:[#allocation2 + $0x8] sm:$0xff]
  %v40 = vld [vmem:[#allocation2 + $0x10] sm:$0xff]
  %v41 = vld [vmem:[#allocation2 + $0x18] sm:$0xff]
  %v42 = vld [vmem:[#allocation2 + $0x20] sm:$0xff]
  %v43 = vld [vmem:[#allocation2 + $0x28] sm:$0xff]
  %v44 = vld [vmem:[#allocation2 + $0x30] sm:$0xff]
  %v45 = vld [vmem:[#allocation2 + $0x38] sm:$0xff]
  %v46 = vld [vmem:[#allocation2 + $0x40] sm:$0xff]
  %v47 = vld [vmem:[#allocation2 + $0x48] sm:$0xff]
  %v48 = vld [vmem:[#allocation2 + $0x50] sm:$0xff]
  %v49 = vld [vmem:[#allocation2 + $0x58] sm:$0xff]
  %v50 = vld [vmem:[#allocation2 + $0x60] sm:$0xff]
  %v51 = vld [vmem:[#allocation2 + $0x68] sm:$0xff]
  %v52 = vld [vmem:[#allocation2 + $0x70] sm:$0xff]
  %v53 = vld [vmem:[#allocation2 + $0x78] sm:$0xff]
  %v54 = vld [vmem:[%s0] sm:$0xf]
  %v55 = vld [vmem:[%s0 + $0x4] sm:$0xf]
  %v56 = vld [vmem:[%s0 + $0x8] sm:$0xf]
  %v57 = vld [vmem:[%s0 + $0xc] sm:$0xf]
  %v58 = vld [vmem:[%s0 + $0x10] sm:$0xf]
  %v59 = vld [vmem:[%s0 + $0x14] sm:$0xf]
  %v60 = vld [vmem:[%s0 + $0x18] sm:$0xf]
  %v61 = vld [vmem:[%s0 + $0x1c] sm:$0xf]
  %v62 = vld [vmem:[%s0 + $0x20] sm:$0xf]
  %v63 = vld [vmem:[%s0 + $0x24] sm:$0xf]
  %v64 = vld [vmem:[%s0 + $0x28] sm:$0xf]
  %v65 = vld [vmem:[%s0 + $0x2c] sm:$0xf]
  %v66 = vld [vmem:[%s0 + $0x30] sm:$0xf]
  %v67 = vld [vmem:[%s0 + $0x34] sm:$0xf]
  %v68 = vld [vmem:[%s0 + $0x38] sm:$0xf]
  %v69 = vld [vmem:[%s0 + $0x3c] sm:$0xf]
  %v70 = vld [vmem:[%s1] sm:$0xf]
  %v71 = vld [vmem:[%s1 + $0x4] sm:$0xf]
  %v88 = vunpack.c.l.b16 %v54
  %v89 = vunpack.c.l.b16 %v55
  %v90 = vunpack.c.l.b16 %v56
  %v91 = vunpack.c.l.b16 %v57
  %v92 = vunpack.c.l.b16 %v58
  %v93 = vunpack.c.l.b16 %v59
  %v94 = vunpack.c.l.b16 %v60
  %v95 = vunpack.c.l.b16 %v61
  %v96 = vunpack.c.l.b16 %v62
  %v97 = vunpack.c.l.b16 %v63
  %v98 = vunpack.c.l.b16 %v64
  %v99 = vunpack.c.l.b16 %v65
  %v100 = vunpack.c.l.b16 %v66
  %v101 = vunpack.c.l.b16 %v67
  %v102 = vunpack.c.l.b16 %v68
  %v103 = vunpack.c.l.b16 %v69
  %v104 = vpack.c.b16 %v89, %v88
  %v105 = vpack.c.b16 %v91, %v90
  %v106 = vpack.c.b16 %v93, %v92
  %v107 = vpack.c.b16 %v95, %v94
  %v108 = vpack.c.b16 %v97, %v96
  %v109 = vpack.c.b16 %v99, %v98
  %v110 = vpack.c.b16 %v101, %v100
  %v111 = vpack.c.b16 %v103, %v102
  %v114 = vunpack.c.l.b16 %v70
  %v115 = vunpack.c.l.b16 %v71
  %v116 = vpack.c.b16 %v115, %v114
  %vm118 = vcmask 130048
  %v120 = vsel %vm118, %v104, 0
  %v123 = vsel %vm118, %v105, 0
  %v126 = vsel %vm118, %v106, 0
  %v129 = vsel %vm118, %v107, 0
  %v132 = vsel %vm118, %v108, 0
  %v135 = vsel %vm118, %v109, 0
  %v138 = vsel %vm118, %v110, 0
  %v141 = vsel %vm118, %v111, 0
  %143 = vmatprep.subr.bf16.mxu0 0
  %144 = vmatpush1.bf16.msra.mxu0 %v116
  %145 = vmatprep.subr.bf16.mxu0 0
  %146 = vmatpush1.bf16.msra.mxu0 0
  %147 = vmatprep.subr.bf16.mxu0 0
  %148 = vmatpush1.bf16.msra.mxu0 0
  %149 = vmatprep.subr.bf16.mxu0 0
  %150 = vmatpush1.bf16.msra.mxu0 0
  %151 = vmatprep.subr.bf16.mxu0 0
  %152 = vmatpush1.bf16.msra.mxu0 0
  %153 = vmatprep.subr.bf16.mxu0 0
  %154 = vmatpush1.bf16.msra.mxu0 0
  %155 = vmatprep.subr.bf16.mxu0 0
  %156 = vmatpush1.bf16.msra.mxu0 0
  %157 = vmatprep.subr.bf16.mxu0 0
  %158 = vmatpush1.bf16.msra.mxu0 0
  %159 = vmatprep.subr.bf16.mxu0 0
  %160 = vmatpush1.bf16.msra.mxu0 0
  %161 = vmatprep.subr.bf16.mxu0 0
  %162 = vmatpush1.bf16.msra.mxu0 0
  %163 = vmatprep.subr.bf16.mxu0 0
  %164 = vmatpush1.bf16.msra.mxu0 0
  %165 = vmatprep.subr.bf16.mxu0 0
  %166 = vmatpush1.bf16.msra.mxu0 0
  %167 = vmatprep.subr.bf16.mxu0 0
  %168 = vmatpush1.bf16.msra.mxu0 0
  %169 = vmatprep.subr.bf16.mxu0 0
  %170 = vmatpush1.bf16.msra.mxu0 0
  %171 = vmatprep.subr.bf16.mxu0 0
  %172 = vmatpush1.bf16.msra.mxu0 0
  %173 = vmatprep.subr.bf16.mxu0 0
  %174 = vmatpush1.bf16.msra.mxu0 0
  %175 = vmatprep.mubr.bf16.mxu0 0
  %176 = vmatmul.mubr.bf16.gmra.mrb[0].mxu0 %v120
  %v177 = vpop.f32.mrb[0].mxu0
  %v178 = vadd.f32 0.0, %v177
  %v179 = vpop.f32.mrb[0].mxu0
  %v180 = vpop.f32.mrb[0].mxu0
  %v181 = vadd.f32 0.0, %v180
  %v182 = vpop.f32.mrb[0].mxu0
  %183 = vmatprep.mubr.bf16.mxu0 0
  %184 = vmatmul.mubr.bf16.gmra.mrb[0].mxu0 %v123
  %v185 = vpop.f32.mrb[0].mxu0
  %v186 = vadd.f32 0.0, %v185
  %v187 = vpop.f32.mrb[0].mxu0
  %v188 = vpop.f32.mrb[0].mxu0
  %v189 = vadd.f32 0.0, %v188
  %v190 = vpop.f32.mrb[0].mxu0
  %191 = vmatprep.mubr.bf16.mxu0 0
  %192 = vmatmul.mubr.bf16.gmra.mrb[0].mxu0 %v126
  %v193 = vpop.f32.mrb[0].mxu0
  %v194 = vadd.f32 0.0, %v193
  %v195 = vpop.f32.mrb[0].mxu0
  %v196 = vpop.f32.mrb[0].mxu0
  %v197 = vadd.f32 0.0, %v196
  %v198 = vpop.f32.mrb[0].mxu0
  %199 = vmatprep.mubr.bf16.mxu0 0
  %200 = vmatmul.mubr.bf16.gmra.mrb[0].mxu0 %v129
  %v201 = vpop.f32.mrb[0].mxu0
  %v202 = vadd.f32 0.0, %v201
  %v203 = vpop.f32.mrb[0].mxu0
  %v204 = vpop.f32.mrb[0].mxu0
  %v205 = vadd.f32 0.0, %v204
  %v206 = vpop.f32.mrb[0].mxu0
  %207 = vmatprep.mubr.bf16.mxu0 0
  %208 = vmatmul.mubr.bf16.gmra.mrb[0].mxu0 %v132
  %v209 = vpop.f32.mrb[0].mxu0
  %v210 = vadd.f32 0.0, %v209
  %v211 = vpop.f32.mrb[0].mxu0
  %v212 = vpop.f32.mrb[0].mxu0
  %v213 = vadd.f32 0.0, %v212
  %v214 = vpop.f32.mrb[0].mxu0
  %215 = vmatprep.mubr.bf16.mxu0 0
  %216 = vmatmul.mubr.bf16.gmra.mrb[0].mxu0 %v135
  %v217 = vpop.f32.mrb[0].mxu0
  %v218 = vadd.f32 0.0, %v217
  %v219 = vpop.f32.mrb[0].mxu0
  %v220 = vpop.f32.mrb[0].mxu0
  %v221 = vadd.f32 0.0, %v220
  %v222 = vpop.f32.mrb[0].mxu0
  %223 = vmatprep.mubr.bf16.mxu0 0
  %224 = vmatmul.mubr.bf16.gmra.mrb[0].mxu0 %v138
  %v225 = vpop.f32.mrb[0].mxu0
  %v226 = vadd.f32 0.0, %v225
  %v227 = vpop.f32.mrb[0].mxu0
  %v228 = vpop.f32.mrb[0].mxu0
  %v229 = vadd.f32 0.0, %v228
  %v230 = vpop.f32.mrb[0].mxu0
  %231 = vmatprep.mubr.bf16.mxu0 0
  %232 = vmatmul.mubr.bf16.gmra.mrb[0].mxu0 %v141
  %v233 = vpop.f32.mrb[0].mxu0
  %v234 = vadd.f32 0.0, %v233
  %v235 = vpop.f32.mrb[0].mxu0
  %v236 = vpop.f32.mrb[0].mxu0
  %v237 = vadd.f32 0.0, %v236
  %v238 = vpop.f32.mrb[0].mxu0
  %239 = vdwg.mxu0
  %v240 = vadd.f32 %v38, %v178
  %v241 = vadd.f32 %v39, %v181
  %v242 = vadd.f32 %v40, %v186
  %v243 = vadd.f32 %v41, %v189
  %v244 = vadd.f32 %v42, %v194
  %v245 = vadd.f32 %v43, %v197
  %v246 = vadd.f32 %v44, %v202
  %v247 = vadd.f32 %v45, %v205
  %v248 = vadd.f32 %v46, %v210
  %v249 = vadd.f32 %v47, %v213
  %v250 = vadd.f32 %v48, %v218
  %v251 = vadd.f32 %v49, %v221
  %v252 = vadd.f32 %v50, %v226
  %v253 = vadd.f32 %v51, %v229
  %v254 = vadd.f32 %v52, %v234
  %v255 = vadd.f32 %v53, %v237
  %256 = vst [vmem:[#allocation2] sm:$0xff] %v240
  %257 = vst [vmem:[#allocation2 + $0x8] sm:$0xff] %v241
  %258 = vst [vmem:[#allocation2 + $0x10] sm:$0xff] %v242
  %259 = vst [vmem:[#allocation2 + $0x18] sm:$0xff] %v243
  %260 = vst [vmem:[#allocation2 + $0x20] sm:$0xff] %v244
  %261 = vst [vmem:[#allocation2 + $0x28] sm:$0xff] %v245
  %262 = vst [vmem:[#allocation2 + $0x30] sm:$0xff] %v246
  %263 = vst [vmem:[#allocation2 + $0x38] sm:$0xff] %v247
  %264 = vst [vmem:[#allocation2 + $0x40] sm:$0xff] %v248
  %265 = vst [vmem:[#allocation2 + $0x48] sm:$0xff] %v249
  %266 = vst [vmem:[#allocation2 + $0x50] sm:$0xff] %v250
  %267 = vst [vmem:[#allocation2 + $0x58] sm:$0xff] %v251
  %268 = vst [vmem:[#allocation2 + $0x60] sm:$0xff] %v252
  %269 = vst [vmem:[#allocation2 + $0x68] sm:$0xff] %v253
  %270 = vst [vmem:[#allocation2 + $0x70] sm:$0xff] %v254
  %271 = vst [vmem:[#allocation2 + $0x78] sm:$0xff] %v255
  // Predicated region
  $region22: #{_lambda_.25} parent=0 // pred_check
    %p272 = pneg %p18
  $region23: #{_lambda_.25} parent=0 // pred_check_branch
    %274 = sbr.rel (%p272) target = $region25
  $region24: #{_lambda_.25} parent=0 // pred_region
    %v275 = vld [vmem:[#allocation2] sm:$0xff]
    %v276 = vld [vmem:[#allocation2 + $0x8] sm:$0xff]
    %v277 = vld [vmem:[#allocation2 + $0x10] sm:$0xff]
    %v278 = vld [vmem:[#allocation2 + $0x18] sm:$0xff]
    %v279 = vld [vmem:[#allocation2 + $0x20] sm:$0xff]
    %v280 = vld [vmem:[#allocation2 + $0x28] sm:$0xff]
    %v281 = vld [vmem:[#allocation2 + $0x30] sm:$0xff]
    %v282 = vld [vmem:[#allocation2 + $0x38] sm:$0xff]
    %v283 = vld [vmem:[#allocation2 + $0x40] sm:$0xff]
    %v284 = vld [vmem:[#allocation2 + $0x48] sm:$0xff]
    %v285 = vld [vmem:[#allocation2 + $0x50] sm:$0xff]
    %v286 = vld [vmem:[#allocation2 + $0x58] sm:$0xff]
    %v287 = vld [vmem:[#allocation2 + $0x60] sm:$0xff]
    %v288 = vld [vmem:[#allocation2 + $0x68] sm:$0xff]
    %v289 = vld [vmem:[#allocation2 + $0x70] sm:$0xff]
    %v290 = vld [vmem:[#allocation2 + $0x78] sm:$0xff]
    %v291 = vld [vmem:[%s2] sm:$0x1]
    %v293 = vlaneseq
    %v294 = vshrl.u32 %v293, 7
    %v295 = vsub.s32 0, %v294
    %v296 = vrot.slane %v291, %v295
    %v298 = vadd.f32 %v275, %v296
    %v299 = vadd.f32 %v276, %v296
    %v300 = vadd.f32 %v277, %v296
    %v301 = vadd.f32 %v278, %v296
    %v302 = vadd.f32 %v279, %v296
    %v303 = vadd.f32 %v280, %v296
    %v304 = vadd.f32 %v281, %v296
    %v305 = vadd.f32 %v282, %v296
    %v306 = vadd.f32 %v283, %v296
    %v307 = vadd.f32 %v284, %v296
    %v308 = vadd.f32 %v285, %v296
    %v309 = vadd.f32 %v286, %v296
    %v310 = vadd.f32 %v287, %v296
    %v311 = vadd.f32 %v288, %v296
    %v312 = vadd.f32 %v289, %v296
    %v313 = vadd.f32 %v290, %v296
    %v314 = vld [vmem:[%s3] sm:$0xf]
    %v315 = vld [vmem:[%s3 + $0x4] sm:$0xf]
    %v316 = vld [vmem:[%s3 + $0x8] sm:$0xf]
    %v317 = vld [vmem:[%s3 + $0xc] sm:$0xf]
    %v318 = vld [vmem:[%s3 + $0x10] sm:$0xf]
    %v319 = vld [vmem:[%s3 + $0x14] sm:$0xf]
    %v320 = vld [vmem:[%s3 + $0x18] sm:$0xf]
    %v321 = vld [vmem:[%s3 + $0x1c] sm:$0xf]
    %v322 = vld [vmem:[%s3 + $0x20] sm:$0xf]
    %v323 = vld [vmem:[%s3 + $0x24] sm:$0xf]
    %v324 = vld [vmem:[%s3 + $0x28] sm:$0xf]
    %v325 = vld [vmem:[%s3 + $0x2c] sm:$0xf]
    %v326 = vld [vmem:[%s3 + $0x30] sm:$0xf]
    %v327 = vld [vmem:[%s3 + $0x34] sm:$0xf]
    %v328 = vld [vmem:[%s3 + $0x38] sm:$0xf]
    %v329 = vld [vmem:[%s3 + $0x3c] sm:$0xf]
    %v330 = vunpack.c.l.bf16 %v314
    %v331 = vunpack.c.l.bf16 %v315
    %v332 = vunpack.c.l.bf16 %v316
    %v333 = vunpack.c.l.bf16 %v317
    %v334 = vunpack.c.l.bf16 %v318
    %v335 = vunpack.c.l.bf16 %v319
    %v336 = vunpack.c.l.bf16 %v320
    %v337 = vunpack.c.l.bf16 %v321
    %v338 = vunpack.c.l.bf16 %v322
    %v339 = vunpack.c.l.bf16 %v323
    %v340 = vunpack.c.l.bf16 %v324
    %v341 = vunpack.c.l.bf16 %v325
    %v342 = vunpack.c.l.bf16 %v326
    %v343 = vunpack.c.l.bf16 %v327
    %v344 = vunpack.c.l.bf16 %v328
    %v345 = vunpack.c.l.bf16 %v329
    %v346 = vadd.f32 %v298, %v330
    %v347 = vadd.f32 %v299, %v331
    %v348 = vadd.f32 %v300, %v332
    %v349 = vadd.f32 %v301, %v333
    %v350 = vadd.f32 %v302, %v334
    %v351 = vadd.f32 %v303, %v335
    %v352 = vadd.f32 %v304, %v336
    %v353 = vadd.f32 %v305, %v337
    %v354 = vadd.f32 %v306, %v338
    %v355 = vadd.f32 %v307, %v339
    %v356 = vadd.f32 %v308, %v340
    %v357 = vadd.f32 %v309, %v341
    %v358 = vadd.f32 %v310, %v342
    %v359 = vadd.f32 %v311, %v343
    %v360 = vadd.f32 %v312, %v344
    %v361 = vadd.f32 %v313, %v345
    %v362 = vmax.f32 %v346, 0.0
    %v363 = vmax.f32 %v347, 0.0
    %v364 = vmax.f32 %v348, 0.0
    %v365 = vmax.f32 %v349, 0.0
    %v366 = vmax.f32 %v350, 0.0
    %v367 = vmax.f32 %v351, 0.0
    %v368 = vmax.f32 %v352, 0.0
    %v369 = vmax.f32 %v353, 0.0
    %v370 = vmax.f32 %v354, 0.0
    %v371 = vmax.f32 %v355, 0.0
    %v372 = vmax.f32 %v356, 0.0
    %v373 = vmax.f32 %v357, 0.0
    %v374 = vmax.f32 %v358, 0.0
    %v375 = vmax.f32 %v359, 0.0
    %v376 = vmax.f32 %v360, 0.0
    %v377 = vmax.f32 %v361, 0.0
    %v378 = vpack.c.bf16 %v363, %v362
    %v379 = vpack.c.bf16 %v365, %v364
    %v380 = vpack.c.bf16 %v367, %v366
    %v381 = vpack.c.bf16 %v369, %v368
    %v382 = vpack.c.bf16 %v371, %v370
    %v383 = vpack.c.bf16 %v373, %v372
    %v384 = vpack.c.bf16 %v375, %v374
    %v385 = vpack.c.bf16 %v377, %v376
    %v394 = vunpack.c.l.b16 %v378
    %v395 = vunpack.c.h.b16 %v378
    %v396 = vunpack.c.l.b16 %v379
    %v397 = vunpack.c.h.b16 %v379
    %v398 = vunpack.c.l.b16 %v380
    %v399 = vunpack.c.h.b16 %v380
    %v400 = vunpack.c.l.b16 %v381
    %v401 = vunpack.c.h.b16 %v381
    %v402 = vunpack.c.l.b16 %v382
    %v403 = vunpack.c.h.b16 %v382
    %v404 = vunpack.c.l.b16 %v383
    %v405 = vunpack.c.h.b16 %v383
    %v406 = vunpack.c.l.b16 %v384
    %v407 = vunpack.c.h.b16 %v384
    %v408 = vunpack.c.l.b16 %v385
    %v409 = vunpack.c.h.b16 %v385
    %v410 = vpack.c.b16 %v394, %v394
    %v411 = vpack.c.b16 %v395, %v395
    %v412 = vpack.c.b16 %v396, %v396
    %v413 = vpack.c.b16 %v397, %v397
    %v414 = vpack.c.b16 %v398, %v398
    %v415 = vpack.c.b16 %v399, %v399
    %v416 = vpack.c.b16 %v400, %v400
    %v417 = vpack.c.b16 %v401, %v401
    %v418 = vpack.c.b16 %v402, %v402
    %v419 = vpack.c.b16 %v403, %v403
    %v420 = vpack.c.b16 %v404, %v404
    %v421 = vpack.c.b16 %v405, %v405
    %v422 = vpack.c.b16 %v406, %v406
    %v423 = vpack.c.b16 %v407, %v407
    %v424 = vpack.c.b16 %v408, %v408
    %v425 = vpack.c.b16 %v409, %v409
    %442 = vst [vmem:[%s4] sm:$0xf] %v410
    %443 = vst [vmem:[%s4 + $0x4] sm:$0xf] %v411
    %444 = vst [vmem:[%s4 + $0x8] sm:$0xf] %v412
    %445 = vst [vmem:[%s4 + $0xc] sm:$0xf] %v413
    %446 = vst [vmem:[%s4 + $0x10] sm:$0xf] %v414
    %447 = vst [vmem:[%s4 + $0x14] sm:$0xf] %v415
    %448 = vst [vmem:[%s4 + $0x18] sm:$0xf] %v416
    %449 = vst [vmem:[%s4 + $0x1c] sm:$0xf] %v417
    %450 = vst [vmem:[%s4 + $0x20] sm:$0xf] %v418
    %451 = vst [vmem:[%s4 + $0x24] sm:$0xf] %v419
    %452 = vst [vmem:[%s4 + $0x28] sm:$0xf] %v420
    %453 = vst [vmem:[%s4 + $0x2c] sm:$0xf] %v421
    %454 = vst [vmem:[%s4 + $0x30] sm:$0xf] %v422
    %455 = vst [vmem:[%s4 + $0x34] sm:$0xf] %v423
    %456 = vst [vmem:[%s4 + $0x38] sm:$0xf] %v424
    %457 = vst [vmem:[%s4 + $0x3c] sm:$0xf] %v425
  $region25: #{_lambda_.25} parent=0 // pred_fallthru
    _
  // Predicated region
  $region26: #{_lambda_.25} parent=0 // pred_check
    _
  $region27: #{_lambda_.25} parent=0 // pred_check_branch
    %459 = sbr.rel (0) target = $region29
  $region28: #{_lambda_.25} parent=0 // pred_region
    _
  $region29: #{_lambda_.25} parent=0 // pred_fallthru
    _
  // Predicated region
  $region30: #{_lambda_.25} parent=0 // pred_check
    _
  $region31: #{_lambda_.25} parent=0 // pred_check_branch
    %461 = sbr.rel (0) target = $region33
  $region32: #{_lambda_.25} parent=0 // pred_region
    _
  $region33: #{_lambda_.25} parent=0 // pred_fallthru
    _

// kernel: _lambda_.28
$region0: #{_lambda_.28}
  #allocation0 [shape = 'u32[]', space=smem, size = 0x4, offset = 0x4, fixed_abs, tag = 'smem constant byte address 0x4 - core index']
  #allocation1 [shape = 'u32[144,128]{1,0:T(1,128)}', space=vmem, size = 0x12000, scoped, tag = 'internal scratch']
  #allocation2 [shape = 'f32[32,128]{1,0:T(8,128)}', space=vmem, size = 0x4000, scoped, tag = 'scratch operand']
  %s0 = inlined_call_operand.vmem [shape: bf16[32,32], index: 0, kind: input, shape index: {}]
  %s1 = inlined_call_operand.vmem [shape: bf16[32,128], index: 1, kind: input, shape index: {}]
  %s2 = inlined_call_operand.vmem [shape: f32[1,128], index: 2, kind: input, shape index: {}]
  %s3 = inlined_call_operand.vmem [shape: bf16[32,128], index: 3, kind: output, shape index: {}]
  %s4 = sld [smem:[#allocation0]]
  $region30: #{_lambda_.28} parent=0
    _
  %s6 = ssub.s32 1, %s4
  %s7 = scalar_select 0, %s6, %s4
  // Predicated region
  $region2: #{_lambda_.28} parent=0 // pred_check
    _
  $region3: #{_lambda_.28} parent=0 // pred_check_branch
    %9 = sbr.rel (0) target = $region5
  $region4: #{_lambda_.28} parent=0 // pred_region
    _
  $region5: #{_lambda_.28} parent=0 // pred_fallthru
    _
  // Predicated region
  $region6: #{_lambda_.28} parent=0 // pred_check
    _
  $region7: #{_lambda_.28} parent=0 // pred_check_branch
    %11 = sbr.rel (0) target = $region9
  $region8: #{_lambda_.28} parent=0 // pred_region
    _
  $region9: #{_lambda_.28} parent=0 // pred_fallthru
    _
  // Predicated region
  $region10: #{_lambda_.28} parent=0 // pred_check
    _
  $region11: #{_lambda_.28} parent=0 // pred_check_branch
    %13 = sbr.rel (0) target = $region13
  $region12: #{_lambda_.28} parent=0 // pred_region
    _
  $region13: #{_lambda_.28} parent=0 // pred_fallthru
    _
  %p15 = scmp.eq.s32.totalorder 0, 0
  // Predicated region
  $region14: #{_lambda_.28} parent=0 // pred_check
    %p16 = pneg %p15
  $region15: #{_lambda_.28} parent=0 // pred_check_branch
    %18 = sbr.rel (%p16) target = $region17
  $region16: #{_lambda_.28} parent=0 // pred_region
    %19 = vst [vmem:[#allocation2] sm:$0xff] 0.0
    %20 = vst [vmem:[#allocation2 + $0x8] sm:$0xff] 0.0
    %21 = vst [vmem:[#allocation2 + $0x10] sm:$0xff] 0.0
    %22 = vst [vmem:[#allocation2 + $0x18] sm:$0xff] 0.0
  $region17: #{_lambda_.28} parent=0 // pred_fallthru
    _
  %v23 = vld [vmem:[#allocation2] sm:$0xff]
  %v24 = vld [vmem:[#allocation2 + $0x8] sm:$0xff]
  %v25 = vld [vmem:[#allocation2 + $0x10] sm:$0xff]
  %v26 = vld [vmem:[#allocation2 + $0x18] sm:$0xff]
  %v27 = vld [vmem:[%s0] sm:$0xf]
  %v28 = vld [vmem:[%s0 + $0x4] sm:$0xf]
  %v29 = vld [vmem:[%s0 + $0x8] sm:$0xf]
  %v30 = vld [vmem:[%s0 + $0xc] sm:$0xf]
  %v31 = vld [vmem:[%s1] sm:$0xf]
  %v32 = vld [vmem:[%s1 + $0x4] sm:$0xf]
  %v33 = vld [vmem:[%s1 + $0x8] sm:$0xf]
  %v34 = vld [vmem:[%s1 + $0xc] sm:$0xf]
  %v39 = vunpack.c.l.b16 %v27
  %v40 = vunpack.c.l.b16 %v28
  %v41 = vunpack.c.l.b16 %v29
  %v42 = vunpack.c.l.b16 %v30
  %v43 = vpack.c.b16 %v40, %v39
  %v44 = vpack.c.b16 %v42, %v41
  %v49 = vunpack.c.l.b16 %v31
  %v50 = vunpack.c.l.b16 %v32
  %v51 = vunpack.c.l.b16 %v33
  %v52 = vunpack.c.l.b16 %v34
  %v53 = vpack.c.b16 %v50, %v49
  %v54 = vpack.c.b16 %v52, %v51
  %vm57 = vcmask 261120
  %v59 = vsel %vm57, %v43, 0
  %v62 = vsel %vm57, %v44, 0
  %64 = vmatprep.subr.bf16.mxu0 0
  %65 = vmatpush1.bf16.msra.mxu0 %v53
  %66 = vmatprep.subr.bf16.mxu0 0
  %67 = vmatpush1.bf16.msra.mxu0 %v54
  %68 = vmatprep.subr.bf16.mxu0 0
  %69 = vmatpush1.bf16.msra.mxu0 0
  %70 = vmatprep.subr.bf16.mxu0 0
  %71 = vmatpush1.bf16.msra.mxu0 0
  %72 = vmatprep.subr.bf16.mxu0 0
  %73 = vmatpush1.bf16.msra.mxu0 0
  %74 = vmatprep.subr.bf16.mxu0 0
  %75 = vmatpush1.bf16.msra.mxu0 0
  %76 = vmatprep.subr.bf16.mxu0 0
  %77 = vmatpush1.bf16.msra.mxu0 0
  %78 = vmatprep.subr.bf16.mxu0 0
  %79 = vmatpush1.bf16.msra.mxu0 0
  %80 = vmatprep.subr.bf16.mxu0 0
  %81 = vmatpush1.bf16.msra.mxu0 0
  %82 = vmatprep.subr.bf16.mxu0 0
  %83 = vmatpush1.bf16.msra.mxu0 0
  %84 = vmatprep.subr.bf16.mxu0 0
  %85 = vmatpush1.bf16.msra.mxu0 0
  %86 = vmatprep.subr.bf16.mxu0 0
  %87 = vmatpush1.bf16.msra.mxu0 0
  %88 = vmatprep.subr.bf16.mxu0 0
  %89 = vmatpush1.bf16.msra.mxu0 0
  %90 = vmatprep.subr.bf16.mxu0 0
  %91 = vmatpush1.bf16.msra.mxu0 0
  %92 = vmatprep.subr.bf16.mxu0 0
  %93 = vmatpush1.bf16.msra.mxu0 0
  %94 = vmatprep.subr.bf16.mxu0 0
  %95 = vmatpush1.bf16.msra.mxu0 0
  %96 = vmatprep.mubr.bf16.mxu0 0
  %97 = vmatmul.mubr.bf16.gmra.mrb[0].mxu0 %v59
  %v98 = vpop.f32.mrb[0].mxu0
  %v99 = vadd.f32 0.0, %v98
  %v100 = vpop.f32.mrb[0].mxu0
  %v101 = vpop.f32.mrb[0].mxu0
  %v102 = vadd.f32 0.0, %v101
  %v103 = vpop.f32.mrb[0].mxu0
  %104 = vmatprep.mubr.bf16.mxu0 0
  %105 = vmatmul.mubr.bf16.gmra.mrb[0].mxu0 %v62
  %v106 = vpop.f32.mrb[0].mxu0
  %v107 = vadd.f32 0.0, %v106
  %v108 = vpop.f32.mrb[0].mxu0
  %v109 = vpop.f32.mrb[0].mxu0
  %v110 = vadd.f32 0.0, %v109
  %v111 = vpop.f32.mrb[0].mxu0
  %112 = vdwg.mxu0
  %v113 = vadd.f32 %v23, %v99
  %v114 = vadd.f32 %v24, %v102
  %v115 = vadd.f32 %v25, %v107
  %v116 = vadd.f32 %v26, %v110
  %117 = vst [vmem:[#allocation2] sm:$0xff] %v113
  %118 = vst [vmem:[#allocation2 + $0x8] sm:$0xff] %v114
  %119 = vst [vmem:[#allocation2 + $0x10] sm:$0xff] %v115
  %120 = vst [vmem:[#allocation2 + $0x18] sm:$0xff] %v116
  // Predicated region
  $region18: #{_lambda_.28} parent=0 // pred_check
    %p121 = pneg %p15
  $region19: #{_lambda_.28} parent=0 // pred_check_branch
    %123 = sbr.rel (%p121) target = $region21
  $region20: #{_lambda_.28} parent=0 // pred_region
    %v124 = vld [vmem:[#allocation2] sm:$0xff]
    %v125 = vld [vmem:[#allocation2 + $0x8] sm:$0xff]
    %v126 = vld [vmem:[#allocation2 + $0x10] sm:$0xff]
    %v127 = vld [vmem:[#allocation2 + $0x18] sm:$0xff]
    %v128 = vld [vmem:[%s2] sm:$0x1]
    %v130 = vlaneseq
    %v131 = vshrl.u32 %v130, 7
    %v132 = vsub.s32 0, %v131
    %v133 = vrot.slane %v128, %v132
    %v135 = vadd.f32 %v124, %v133
    %v136 = vadd.f32 %v125, %v133
    %v137 = vadd.f32 %v126, %v133
    %v138 = vadd.f32 %v127, %v133
    %v139 = vpack.c.bf16 %v136, %v135
    %v140 = vpack.c.bf16 %v138, %v137
    %v143 = vunpack.c.l.b16 %v139
    %v144 = vunpack.c.h.b16 %v139
    %v145 = vunpack.c.l.b16 %v140
    %v146 = vunpack.c.h.b16 %v140
    %v147 = vpack.c.b16 %v143, %v143
    %v148 = vpack.c.b16 %v144, %v144
    %v149 = vpack.c.b16 %v145, %v145
    %v150 = vpack.c.b16 %v146, %v146
    %155 = vst [vmem:[%s3] sm:$0xf] %v147
    %156 = vst [vmem:[%s3 + $0x4] sm:$0xf] %v148
    %157 = vst [vmem:[%s3 + $0x8] sm:$0xf] %v149
    %158 = vst [vmem:[%s3 + $0xc] sm:$0xf] %v150
  $region21: #{_lambda_.28} parent=0 // pred_fallthru
    _
  // Predicated region
  $region22: #{_lambda_.28} parent=0 // pred_check
    _
  $region23: #{_lambda_.28} parent=0 // pred_check_branch
    %160 = sbr.rel (0) target = $region25
  $region24: #{_lambda_.28} parent=0 // pred_region
    _
  $region25: #{_lambda_.28} parent=0 // pred_fallthru
    _
  // Predicated region
  $region26: #{_lambda_.28} parent=0 // pred_check
    _
  $region27: #{_lambda_.28} parent=0 // pred_check_branch
    %162 = sbr.rel (0) target = $region29
  $region28: #{_lambda_.28} parent=0 // pred_region
    _
  $region29: #{_lambda_.28} parent=0 // pred_fallthru
    _

// kernel: _lambda_.26
$region0: #{_lambda_.26}
  #allocation0 [shape = 'u32[]', space=smem, size = 0x4, offset = 0x4, fixed_abs, tag = 'smem constant byte address 0x4 - core index']
  #allocation1 [shape = 'u32[144,128]{1,0:T(1,128)}', space=vmem, size = 0x12000, scoped, tag = 'internal scratch']
  #allocation2 [shape = 'f32[128,128]{1,0:T(8,128)}', space=vmem, size = 0x10000, scoped, tag = 'scratch operand']
  %s0 = inlined_call_operand.vmem [shape: bf16[128,32], index: 0, kind: input, shape index: {}]
  %s1 = inlined_call_operand.vmem [shape: bf16[32,128], index: 1, kind: input, shape index: {}]
  %s2 = inlined_call_operand.vmem [shape: f32[1,128], index: 2, kind: input, shape index: {}]
  %s3 = inlined_call_operand.vmem [shape: bf16[128,128], index: 3, kind: output, shape index: {}]
  %s4 = sld [smem:[#allocation0]]
  $region30: #{_lambda_.26} parent=0
    _
  %s6 = ssub.s32 1, %s4
  %s7 = scalar_select 0, %s6, %s4
  // Predicated region
  $region2: #{_lambda_.26} parent=0 // pred_check
    _
  $region3: #{_lambda_.26} parent=0 // pred_check_branch
    %9 = sbr.rel (0) target = $region5
  $region4: #{_lambda_.26} parent=0 // pred_region
    _
  $region5: #{_lambda_.26} parent=0 // pred_fallthru
    _
  // Predicated region
  $region6: #{_lambda_.26} parent=0 // pred_check
    _
  $region7: #{_lambda_.26} parent=0 // pred_check_branch
    %11 = sbr.rel (0) target = $region9
  $region8: #{_lambda_.26} parent=0 // pred_region
    _
  $region9: #{_lambda_.26} parent=0 // pred_fallthru
    _
  // Predicated region
  $region10: #{_lambda_.26} parent=0 // pred_check
    _
  $region11: #{_lambda_.26} parent=0 // pred_check_branch
    %13 = sbr.rel (0) target = $region13
  $region12: #{_lambda_.26} parent=0 // pred_region
    _
  $region13: #{_lambda_.26} parent=0 // pred_fallthru
    _
  %p15 = scmp.eq.s32.totalorder 0, 0
  // Predicated region
  $region14: #{_lambda_.26} parent=0 // pred_check
    %p16 = pneg %p15
  $region15: #{_lambda_.26} parent=0 // pred_check_branch
    %18 = sbr.rel (%p16) target = $region17
  $region16: #{_lambda_.26} parent=0 // pred_region
    %19 = vst [vmem:[#allocation2] sm:$0xff] 0.0
    %20 = vst [vmem:[#allocation2 + $0x8] sm:$0xff] 0.0
    %21 = vst [vmem:[#allocation2 + $0x10] sm:$0xff] 0.0
    %22 = vst [vmem:[#allocation2 + $0x18] sm:$0xff] 0.0
    %23 = vst [vmem:[#allocation2 + $0x20] sm:$0xff] 0.0
    %24 = vst [vmem:[#allocation2 + $0x28] sm:$0xff] 0.0
    %25 = vst [vmem:[#allocation2 + $0x30] sm:$0xff] 0.0
    %26 = vst [vmem:[#allocation2 + $0x38] sm:$0xff] 0.0
    %27 = vst [vmem:[#allocation2 + $0x40] sm:$0xff] 0.0
    %28 = vst [vmem:[#allocation2 + $0x48] sm:$0xff] 0.0
    %29 = vst [vmem:[#allocation2 + $0x50] sm:$0xff] 0.0
    %30 = vst [vmem:[#allocation2 + $0x58] sm:$0xff] 0.0
    %31 = vst [vmem:[#allocation2 + $0x60] sm:$0xff] 0.0
    %32 = vst [vmem:[#allocation2 + $0x68] sm:$0xff] 0.0
    %33 = vst [vmem:[#allocation2 + $0x70] sm:$0xff] 0.0
    %34 = vst [vmem:[#allocation2 + $0x78] sm:$0xff] 0.0
  $region17: #{_lambda_.26} parent=0 // pred_fallthru
    _
  %v35 = vld [vmem:[#allocation2] sm:$0xff]
  %v36 = vld [vmem:[#allocation2 + $0x8] sm:$0xff]
  %v37 = vld [vmem:[#allocation2 + $0x10] sm:$0xff]
  %v38 = vld [vmem:[#allocation2 + $0x18] sm:$0xff]
  %v39 = vld [vmem:[#allocation2 + $0x20] sm:$0xff]
  %v40 = vld [vmem:[#allocation2 + $0x28] sm:$0xff]
  %v41 = vld [vmem:[#allocation2 + $0x30] sm:$0xff]
  %v42 = vld [vmem:[#allocation2 + $0x38] sm:$0xff]
  %v43 = vld [vmem:[#allocation2 + $0x40] sm:$0xff]
  %v44 = vld [vmem:[#allocation2 + $0x48] sm:$0xff]
  %v45 = vld [vmem:[#allocation2 + $0x50] sm:$0xff]
  %v46 = vld [vmem:[#allocation2 + $0x58] sm:$0xff]
  %v47 = vld [vmem:[#allocation2 + $0x60] sm:$0xff]
  %v48 = vld [vmem:[#allocation2 + $0x68] sm:$0xff]
  %v49 = vld [vmem:[#allocation2 + $0x70] sm:$0xff]
  %v50 = vld [vmem:[#allocation2 + $0x78] sm:$0xff]
  %v51 = vld [vmem:[%s0] sm:$0xf]
  %v52 = vld [vmem:[%s0 + $0x4] sm:$0xf]
  %v53 = vld [vmem:[%s0 + $0x8] sm:$0xf]
  %v54 = vld [vmem:[%s0 + $0xc] sm:$0xf]
  %v55 = vld [vmem:[%s0 + $0x10] sm:$0xf]
  %v56 = vld [vmem:[%s0 + $0x14] sm:$0xf]
  %v57 = vld [vmem:[%s0 + $0x18] sm:$0xf]
  %v58 = vld [vmem:[%s0 + $0x1c] sm:$0xf]
  %v59 = vld [vmem:[%s0 + $0x20] sm:$0xf]
  %v60 = vld [vmem:[%s0 + $0x24] sm:$0xf]
  %v61 = vld [vmem:[%s0 + $0x28] sm:$0xf]
  %v62 = vld [vmem:[%s0 + $0x2c] sm:$0xf]
  %v63 = vld [vmem:[%s0 + $0x30] sm:$0xf]
  %v64 = vld [vmem:[%s0 + $0x34] sm:$0xf]
  %v65 = vld [vmem:[%s0 + $0x38] sm:$0xf]
  %v66 = vld [vmem:[%s0 + $0x3c] sm:$0xf]
  %v67 = vld [vmem:[%s1] sm:$0xf]
  %v68 = vld [vmem:[%s1 + $0x4] sm:$0xf]
  %v69 = vld [vmem:[%s1 + $0x8] sm:$0xf]
  %v70 = vld [vmem:[%s1 + $0xc] sm:$0xf]
  %v87 = vunpack.c.l.b16 %v51
  %v88 = vunpack.c.l.b16 %v52
  %v89 = vunpack.c.l.b16 %v53
  %v90 = vunpack.c.l.b16 %v54
  %v91 = vunpack.c.l.b16 %v55
  %v92 = vunpack.c.l.b16 %v56
  %v93 = vunpack.c.l.b16 %v57
  %v94 = vunpack.c.l.b16 %v58
  %v95 = vunpack.c.l.b16 %v59
  %v96 = vunpack.c.l.b16 %v60
  %v97 = vunpack.c.l.b16 %v61
  %v98 = vunpack.c.l.b16 %v62
  %v99 = vunpack.c.l.b16 %v63
  %v100 = vunpack.c.l.b16 %v64
  %v101 = vunpack.c.l.b16 %v65
  %v102 = vunpack.c.l.b16 %v66
  %v103 = vpack.c.b16 %v88, %v87
  %v104 = vpack.c.b16 %v90, %v89
  %v105 = vpack.c.b16 %v92, %v91
  %v106 = vpack.c.b16 %v94, %v93
  %v107 = vpack.c.b16 %v96, %v95
  %v108 = vpack.c.b16 %v98, %v97
  %v109 = vpack.c.b16 %v100, %v99
  %v110 = vpack.c.b16 %v102, %v101
  %v115 = vunpack.c.l.b16 %v67
  %v116 = vunpack.c.l.b16 %v68
  %v117 = vunpack.c.l.b16 %v69
  %v118 = vunpack.c.l.b16 %v70
  %v119 = vpack.c.b16 %v116, %v115
  %v120 = vpack.c.b16 %v118, %v117
  %vm123 = vcmask 261120
  %v125 = vsel %vm123, %v103, 0
  %v128 = vsel %vm123, %v104, 0
  %v131 = vsel %vm123, %v105, 0
  %v134 = vsel %vm123, %v106, 0
  %v137 = vsel %vm123, %v107, 0
  %v140 = vsel %vm123, %v108, 0
  %v143 = vsel %vm123, %v109, 0
  %v146 = vsel %vm123, %v110, 0
  %148 = vmatprep.subr.bf16.mxu0 0
  %149 = vmatpush1.bf16.msra.mxu0 %v119
  %150 = vmatprep.subr.bf16.mxu0 0
  %151 = vmatpush1.bf16.msra.mxu0 %v120
  %152 = vmatprep.subr.bf16.mxu0 0
  %153 = vmatpush1.bf16.msra.mxu0 0
  %154 = vmatprep.subr.bf16.mxu0 0
  %155 = vmatpush1.bf16.msra.mxu0 0
  %156 = vmatprep.subr.bf16.mxu0 0
  %157 = vmatpush1.bf16.msra.mxu0 0
  %158 = vmatprep.subr.bf16.mxu0 0
  %159 = vmatpush1.bf16.msra.mxu0 0
  %160 = vmatprep.subr.bf16.mxu0 0
  %161 = vmatpush1.bf16.msra.mxu0 0
  %162 = vmatprep.subr.bf16.mxu0 0
  %163 = vmatpush1.bf16.msra.mxu0 0
  %164 = vmatprep.subr.bf16.mxu0 0
  %165 = vmatpush1.bf16.msra.mxu0 0
  %166 = vmatprep.subr.bf16.mxu0 0
  %167 = vmatpush1.bf16.msra.mxu0 0
  %168 = vmatprep.subr.bf16.mxu0 0
  %169 = vmatpush1.bf16.msra.mxu0 0
  %170 = vmatprep.subr.bf16.mxu0 0
  %171 = vmatpush1.bf16.msra.mxu0 0
  %172 = vmatprep.subr.bf16.mxu0 0
  %173 = vmatpush1.bf16.msra.mxu0 0
  %174 = vmatprep.subr.bf16.mxu0 0
  %175 = vmatpush1.bf16.msra.mxu0 0
  %176 = vmatprep.subr.bf16.mxu0 0
  %177 = vmatpush1.bf16.msra.mxu0 0
  %178 = vmatprep.subr.bf16.mxu0 0
  %179 = vmatpush1.bf16.msra.mxu0 0
  %180 = vmatprep.mubr.bf16.mxu0 0
  %181 = vmatmul.mubr.bf16.gmra.mrb[0].mxu0 %v125
  %v182 = vpop.f32.mrb[0].mxu0
  %v183 = vadd.f32 0.0, %v182
  %v184 = vpop.f32.mrb[0].mxu0
  %v185 = vpop.f32.mrb[0].mxu0
  %v186 = vadd.f32 0.0, %v185
  %v187 = vpop.f32.mrb[0].mxu0
  %188 = vmatprep.mubr.bf16.mxu0 0
  %189 = vmatmul.mubr.bf16.gmra.mrb[0].mxu0 %v128
  %v190 = vpop.f32.mrb[0].mxu0
  %v191 = vadd.f32 0.0, %v190
  %v192 = vpop.f32.mrb[0].mxu0
  %v193 = vpop.f32.mrb[0].mxu0
  %v194 = vadd.f32 0.0, %v193
  %v195 = vpop.f32.mrb[0].mxu0
  %196 = vmatprep.mubr.bf16.mxu0 0
  %197 = vmatmul.mubr.bf16.gmra.mrb[0].mxu0 %v131
  %v198 = vpop.f32.mrb[0].mxu0
  %v199 = vadd.f32 0.0, %v198
  %v200 = vpop.f32.mrb[0].mxu0
  %v201 = vpop.f32.mrb[0].mxu0
  %v202 = vadd.f32 0.0, %v201
  %v203 = vpop.f32.mrb[0].mxu0
  %204 = vmatprep.mubr.bf16.mxu0 0
  %205 = vmatmul.mubr.bf16.gmra.mrb[0].mxu0 %v134
  %v206 = vpop.f32.mrb[0].mxu0
  %v207 = vadd.f32 0.0, %v206
  %v208 = vpop.f32.mrb[0].mxu0
  %v209 = vpop.f32.mrb[0].mxu0
  %v210 = vadd.f32 0.0, %v209
  %v211 = vpop.f32.mrb[0].mxu0
  %212 = vmatprep.mubr.bf16.mxu0 0
  %213 = vmatmul.mubr.bf16.gmra.mrb[0].mxu0 %v137
  %v214 = vpop.f32.mrb[0].mxu0
  %v215 = vadd.f32 0.0, %v214
  %v216 = vpop.f32.mrb[0].mxu0
  %v217 = vpop.f32.mrb[0].mxu0
  %v218 = vadd.f32 0.0, %v217
  %v219 = vpop.f32.mrb[0].mxu0
  %220 = vmatprep.mubr.bf16.mxu0 0
  %221 = vmatmul.mubr.bf16.gmra.mrb[0].mxu0 %v140
  %v222 = vpop.f32.mrb[0].mxu0
  %v223 = vadd.f32 0.0, %v222
  %v224 = vpop.f32.mrb[0].mxu0
  %v225 = vpop.f32.mrb[0].mxu0
  %v226 = vadd.f32 0.0, %v225
  %v227 = vpop.f32.mrb[0].mxu0
  %228 = vmatprep.mubr.bf16.mxu0 0
  %229 = vmatmul.mubr.bf16.gmra.mrb[0].mxu0 %v143
  %v230 = vpop.f32.mrb[0].mxu0
  %v231 = vadd.f32 0.0, %v230
  %v232 = vpop.f32.mrb[0].mxu0
  %v233 = vpop.f32.mrb[0].mxu0
  %v234 = vadd.f32 0.0, %v233
  %v235 = vpop.f32.mrb[0].mxu0
  %236 = vmatprep.mubr.bf16.mxu0 0
  %237 = vmatmul.mubr.bf16.gmra.mrb[0].mxu0 %v146
  %v238 = vpop.f32.mrb[0].mxu0
  %v239 = vadd.f32 0.0, %v238
  %v240 = vpop.f32.mrb[0].mxu0
  %v241 = vpop.f32.mrb[0].mxu0
  %v242 = vadd.f32 0.0, %v241
  %v243 = vpop.f32.mrb[0].mxu0
  %244 = vdwg.mxu0
  %v245 = vadd.f32 %v35, %v183
  %v246 = vadd.f32 %v36, %v186
  %v247 = vadd.f32 %v37, %v191
  %v248 = vadd.f32 %v38, %v194
  %v249 = vadd.f32 %v39, %v199
  %v250 = vadd.f32 %v40, %v202
  %v251 = vadd.f32 %v41, %v207
  %v252 = vadd.f32 %v42, %v210
  %v253 = vadd.f32 %v43, %v215
  %v254 = vadd.f32 %v44, %v218
  %v255 = vadd.f32 %v45, %v223
  %v256 = vadd.f32 %v46, %v226
  %v257 = vadd.f32 %v47, %v231
  %v258 = vadd.f32 %v48, %v234
  %v259 = vadd.f32 %v49, %v239
  %v260 = vadd.f32 %v50, %v242
  %261 = vst [vmem:[#allocation2] sm:$0xff] %v245
  %262 = vst [vmem:[#allocation2 + $0x8] sm:$0xff] %v246
  %263 = vst [vmem:[#allocation2 + $0x10] sm:$0xff] %v247
  %264 = vst [vmem:[#allocation2 + $0x18] sm:$0xff] %v248
  %265 = vst [vmem:[#allocation2 + $0x20] sm:$0xff] %v249
  %266 = vst [vmem:[#allocation2 + $0x28] sm:$0xff] %v250
  %267 = vst [vmem:[#allocation2 + $0x30] sm:$0xff] %v251
  %268 = vst [vmem:[#allocation2 + $0x38] sm:$0xff] %v252
  %269 = vst [vmem:[#allocation2 + $0x40] sm:$0xff] %v253
  %270 = vst [vmem:[#allocation2 + $0x48] sm:$0xff] %v254
  %271 = vst [vmem:[#allocation2 + $0x50] sm:$0xff] %v255
  %272 = vst [vmem:[#allocation2 + $0x58] sm:$0xff] %v256
  %273 = vst [vmem:[#allocation2 + $0x60] sm:$0xff] %v257
  %274 = vst [vmem:[#allocation2 + $0x68] sm:$0xff] %v258
  %275 = vst [vmem:[#allocation2 + $0x70] sm:$0xff] %v259
  %276 = vst [vmem:[#allocation2 + $0x78] sm:$0xff] %v260
  // Predicated region
  $region18: #{_lambda_.26} parent=0 // pred_check
    %p277 = pneg %p15
  $region19: #{_lambda_.26} parent=0 // pred_check_branch
    %279 = sbr.rel (%p277) target = $region21
  $region20: #{_lambda_.26} parent=0 // pred_region
    %v280 = vld [vmem:[#allocation2] sm:$0xff]
    %v281 = vld [vmem:[#allocation2 + $0x8] sm:$0xff]
    %v282 = vld [vmem:[#allocation2 + $0x10] sm:$0xff]
    %v283 = vld [vmem:[#allocation2 + $0x18] sm:$0xff]
    %v284 = vld [vmem:[#allocation2 + $0x20] sm:$0xff]
    %v285 = vld [vmem:[#allocation2 + $0x28] sm:$0xff]
    %v286 = vld [vmem:[#allocation2 + $0x30] sm:$0xff]
    %v287 = vld [vmem:[#allocation2 + $0x38] sm:$0xff]
    %v288 = vld [vmem:[#allocation2 + $0x40] sm:$0xff]
    %v289 = vld [vmem:[#allocation2 + $0x48] sm:$0xff]
    %v290 = vld [vmem:[#allocation2 + $0x50] sm:$0xff]
    %v291 = vld [vmem:[#allocation2 + $0x58] sm:$0xff]
    %v292 = vld [vmem:[#allocation2 + $0x60] sm:$0xff]
    %v293 = vld [vmem:[#allocation2 + $0x68] sm:$0xff]
    %v294 = vld [vmem:[#allocation2 + $0x70] sm:$0xff]
    %v295 = vld [vmem:[#allocation2 + $0x78] sm:$0xff]
    %v296 = vld [vmem:[%s2] sm:$0x1]
    %v298 = vlaneseq
    %v299 = vshrl.u32 %v298, 7
    %v300 = vsub.s32 0, %v299
    %v301 = vrot.slane %v296, %v300
    %v303 = vadd.f32 %v280, %v301
    %v304 = vadd.f32 %v281, %v301
    %v305 = vadd.f32 %v282, %v301
    %v306 = vadd.f32 %v283, %v301
    %v307 = vadd.f32 %v284, %v301
    %v308 = vadd.f32 %v285, %v301
    %v309 = vadd.f32 %v286, %v301
    %v310 = vadd.f32 %v287, %v301
    %v311 = vadd.f32 %v288, %v301
    %v312 = vadd.f32 %v289, %v301
    %v313 = vadd.f32 %v290, %v301
    %v314 = vadd.f32 %v291, %v301
    %v315 = vadd.f32 %v292, %v301
    %v316 = vadd.f32 %v293, %v301
    %v317 = vadd.f32 %v294, %v301
    %v318 = vadd.f32 %v295, %v301
    %v319 = vmax.f32 %v303, 0.0
    %v320 = vmax.f32 %v304, 0.0
    %v321 = vmax.f32 %v305, 0.0
    %v322 = vmax.f32 %v306, 0.0
    %v323 = vmax.f32 %v307, 0.0
    %v324 = vmax.f32 %v308, 0.0
    %v325 = vmax.f32 %v309, 0.0
    %v326 = vmax.f32 %v310, 0.0
    %v327 = vmax.f32 %v311, 0.0
    %v328 = vmax.f32 %v312, 0.0
    %v329 = vmax.f32 %v313, 0.0
    %v330 = vmax.f32 %v314, 0.0
    %v331 = vmax.f32 %v315, 0.0
    %v332 = vmax.f32 %v316, 0.0
    %v333 = vmax.f32 %v317, 0.0
    %v334 = vmax.f32 %v318, 0.0
    %v335 = vpack.c.bf16 %v320, %v319
    %v336 = vpack.c.bf16 %v322, %v321
    %v337 = vpack.c.bf16 %v324, %v323
    %v338 = vpack.c.bf16 %v326, %v325
    %v339 = vpack.c.bf16 %v328, %v327
    %v340 = vpack.c.bf16 %v330, %v329
    %v341 = vpack.c.bf16 %v332, %v331
    %v342 = vpack.c.bf16 %v334, %v333
    %v351 = vunpack.c.l.b16 %v335
    %v352 = vunpack.c.h.b16 %v335
    %v353 = vunpack.c.l.b16 %v336
    %v354 = vunpack.c.h.b16 %v336
    %v355 = vunpack.c.l.b16 %v337
    %v356 = vunpack.c.h.b16 %v337
    %v357 = vunpack.c.l.b16 %v338
    %v358 = vunpack.c.h.b16 %v338
    %v359 = vunpack.c.l.b16 %v339
    %v360 = vunpack.c.h.b16 %v339
    %v361 = vunpack.c.l.b16 %v340
    %v362 = vunpack.c.h.b16 %v340
    %v363 = vunpack.c.l.b16 %v341
    %v364 = vunpack.c.h.b16 %v341
    %v365 = vunpack.c.l.b16 %v342
    %v366 = vunpack.c.h.b16 %v342
    %v367 = vpack.c.b16 %v351, %v351
    %v368 = vpack.c.b16 %v352, %v352
    %v369 = vpack.c.b16 %v353, %v353
    %v370 = vpack.c.b16 %v354, %v354
    %v371 = vpack.c.b16 %v355, %v355
    %v372 = vpack.c.b16 %v356, %v356
    %v373 = vpack.c.b16 %v357, %v357
    %v374 = vpack.c.b16 %v358, %v358
    %v375 = vpack.c.b16 %v359, %v359
    %v376 = vpack.c.b16 %v360, %v360
    %v377 = vpack.c.b16 %v361, %v361
    %v378 = vpack.c.b16 %v362, %v362
    %v379 = vpack.c.b16 %v363, %v363
    %v380 = vpack.c.b16 %v364, %v364
    %v381 = vpack.c.b16 %v365, %v365
    %v382 = vpack.c.b16 %v366, %v366
    %399 = vst [vmem:[%s3] sm:$0xf] %v367
    %400 = vst [vmem:[%s3 + $0x4] sm:$0xf] %v368
    %401 = vst [vmem:[%s3 + $0x8] sm:$0xf] %v369
    %402 = vst [vmem:[%s3 + $0xc] sm:$0xf] %v370
    %403 = vst [vmem:[%s3 + $0x10] sm:$0xf] %v371
    %404 = vst [vmem:[%s3 + $0x14] sm:$0xf] %v372
    %405 = vst [vmem:[%s3 + $0x18] sm:$0xf] %v373
    %406 = vst [vmem:[%s3 + $0x1c] sm:$0xf] %v374
    %407 = vst [vmem:[%s3 + $0x20] sm:$0xf] %v375
    %408 = vst [vmem:[%s3 + $0x24] sm:$0xf] %v376
    %409 = vst [vmem:[%s3 + $0x28] sm:$0xf] %v377
    %410 = vst [vmem:[%s3 + $0x2c] sm:$0xf] %v378
    %411 = vst [vmem:[%s3 + $0x30] sm:$0xf] %v379
    %412 = vst [vmem:[%s3 + $0x34] sm:$0xf] %v380
    %413 = vst [vmem:[%s3 + $0x38] sm:$0xf] %v381
    %414 = vst [vmem:[%s3 + $0x3c] sm:$0xf] %v382
  $region21: #{_lambda_.26} parent=0 // pred_fallthru
    _
  // Predicated region
  $region22: #{_lambda_.26} parent=0 // pred_check
    _
  $region23: #{_lambda_.26} parent=0 // pred_check_branch
    %416 = sbr.rel (0) target = $region25
  $region24: #{_lambda_.26} parent=0 // pred_region
    _
  $region25: #{_lambda_.26} parent=0 // pred_fallthru
    _
  // Predicated region
  $region26: #{_lambda_.26} parent=0 // pred_check
    _
  $region27: #{_lambda_.26} parent=0 // pred_check_branch
    %418 = sbr.rel (0) target = $region29
  $region28: #{_lambda_.26} parent=0 // pred_region
    _
  $region29: #{_lambda_.26} parent=0 // pred_fallthru
    _

// kernel: _lambda_.27
$region0: #{_lambda_.27}
  #allocation0 [shape = 'u32[]', space=smem, size = 0x4, offset = 0x4, fixed_abs, tag = 'smem constant byte address 0x4 - core index']
  #allocation1 [shape = 'u32[144,128]{1,0:T(1,128)}', space=vmem, size = 0x12000, scoped, tag = 'internal scratch']
  #allocation2 [shape = 'f32[32,128]{1,0:T(8,128)}', space=vmem, size = 0x4000, scoped, tag = 'scratch operand']
  %s0 = inlined_call_operand.vmem [shape: bf16[32,144], index: 0, kind: input, shape index: {}]
  %s1 = inlined_call_operand.vmem [shape: bf16[144,128], index: 1, kind: input, shape index: {}]
  %s2 = inlined_call_operand.vmem [shape: f32[1,128], index: 2, kind: input, shape index: {}]
  %s3 = inlined_call_operand.vmem [shape: bf16[32,128], index: 3, kind: output, shape index: {}]
  %s4 = sld [smem:[#allocation0]]
  $region30: #{_lambda_.27} parent=0
    _
  %s6 = ssub.s32 1, %s4
  %s7 = scalar_select 0, %s6, %s4
  // Predicated region
  $region2: #{_lambda_.27} parent=0 // pred_check
    _
  $region3: #{_lambda_.27} parent=0 // pred_check_branch
    %9 = sbr.rel (0) target = $region5
  $region4: #{_lambda_.27} parent=0 // pred_region
    _
  $region5: #{_lambda_.27} parent=0 // pred_fallthru
    _
  // Predicated region
  $region6: #{_lambda_.27} parent=0 // pred_check
    _
  $region7: #{_lambda_.27} parent=0 // pred_check_branch
    %11 = sbr.rel (0) target = $region9
  $region8: #{_lambda_.27} parent=0 // pred_region
    _
  $region9: #{_lambda_.27} parent=0 // pred_fallthru
    _
  // Predicated region
  $region10: #{_lambda_.27} parent=0 // pred_check
    _
  $region11: #{_lambda_.27} parent=0 // pred_check_branch
    %13 = sbr.rel (0) target = $region13
  $region12: #{_lambda_.27} parent=0 // pred_region
    _
  $region13: #{_lambda_.27} parent=0 // pred_fallthru
    _
  %p15 = scmp.eq.s32.totalorder 0, 0
  // Predicated region
  $region14: #{_lambda_.27} parent=0 // pred_check
    %p16 = pneg %p15
  $region15: #{_lambda_.27} parent=0 // pred_check_branch
    %18 = sbr.rel (%p16) target = $region17
  $region16: #{_lambda_.27} parent=0 // pred_region
    %19 = vst [vmem:[#allocation2] sm:$0xff] 0.0
    %20 = vst [vmem:[#allocation2 + $0x8] sm:$0xff] 0.0
    %21 = vst [vmem:[#allocation2 + $0x10] sm:$0xff] 0.0
    %22 = vst [vmem:[#allocation2 + $0x18] sm:$0xff] 0.0
  $region17: #{_lambda_.27} parent=0 // pred_fallthru
    _
  %v23 = vld [vmem:[#allocation2] sm:$0xff]
  %v24 = vld [vmem:[#allocation2 + $0x8] sm:$0xff]
  %v25 = vld [vmem:[#allocation2 + $0x10] sm:$0xff]
  %v26 = vld [vmem:[#allocation2 + $0x18] sm:$0xff]
  %v27 = vld [vmem:[%s0] sm:$0xff]
  %v28 = vld [vmem:[%s0 + $0x8] sm:$0xff]
  %v29 = vld [vmem:[%s0 + $0x10] sm:$0xff]
  %v30 = vld [vmem:[%s0 + $0x18] sm:$0xff]
  %v31 = vld [vmem:[%s1] sm:$0xf]
  %v32 = vld [vmem:[%s1 + $0x4] sm:$0xf]
  %v33 = vld [vmem:[%s1 + $0x8] sm:$0xf]
  %v34 = vld [vmem:[%s1 + $0xc] sm:$0xf]
  %v35 = vld [vmem:[%s1 + $0x10] sm:$0xf]
  %v36 = vld [vmem:[%s1 + $0x14] sm:$0xf]
  %v37 = vld [vmem:[%s1 + $0x18] sm:$0xf]
  %v38 = vld [vmem:[%s1 + $0x1c] sm:$0xf]
  %v39 = vld [vmem:[%s1 + $0x20] sm:$0xf]
  %v40 = vld [vmem:[%s1 + $0x24] sm:$0xf]
  %v41 = vld [vmem:[%s1 + $0x28] sm:$0xf]
  %v42 = vld [vmem:[%s1 + $0x2c] sm:$0xf]
  %v43 = vld [vmem:[%s1 + $0x30] sm:$0xf]
  %v44 = vld [vmem:[%s1 + $0x34] sm:$0xf]
  %v45 = vld [vmem:[%s1 + $0x38] sm:$0xf]
  %v46 = vld [vmem:[%s1 + $0x3c] sm:$0xf]
  %v47 = vld [vmem:[%s1 + $0x40] sm:$0xf]
  %v48 = vld [vmem:[%s1 + $0x44] sm:$0xf]
  %v53 = vunpack.c.l.b16 %v27
  %v54 = vunpack.c.h.b16 %v27
  %v55 = vunpack.c.l.b16 %v28
  %v56 = vunpack.c.h.b16 %v28
  %v57 = vunpack.c.l.b16 %v29
  %v58 = vunpack.c.h.b16 %v29
  %v59 = vunpack.c.l.b16 %v30
  %v60 = vunpack.c.h.b16 %v30
  %v61 = vpack.c.b16 %v55, %v53
  %v62 = vpack.c.b16 %v56, %v54
  %v63 = vpack.c.b16 %v59, %v57
  %v64 = vpack.c.b16 %v60, %v58
  %v85 = vunpack.c.l.b16 %v31
  %v86 = vunpack.c.l.b16 %v32
  %v87 = vunpack.c.l.b16 %v33
  %v88 = vunpack.c.l.b16 %v34
  %v89 = vunpack.c.l.b16 %v35
  %v90 = vunpack.c.l.b16 %v36
  %v91 = vunpack.c.l.b16 %v37
  %v92 = vunpack.c.l.b16 %v38
  %v93 = vunpack.c.l.b16 %v39
  %v94 = vunpack.c.l.b16 %v40
  %v95 = vunpack.c.l.b16 %v41
  %v96 = vunpack.c.l.b16 %v42
  %v97 = vunpack.c.l.b16 %v43
  %v98 = vunpack.c.l.b16 %v44
  %v99 = vunpack.c.l.b16 %v45
  %v100 = vunpack.c.l.b16 %v46
  %v101 = vunpack.c.l.b16 %v47
  %v102 = vunpack.c.l.b16 %v48
  %v103 = vpack.c.b16 %v86, %v85
  %v104 = vpack.c.b16 %v88, %v87
  %v105 = vpack.c.b16 %v90, %v89
  %v106 = vpack.c.b16 %v92, %v91
  %v107 = vpack.c.b16 %v94, %v93
  %v108 = vpack.c.b16 %v96, %v95
  %v109 = vpack.c.b16 %v98, %v97
  %v110 = vpack.c.b16 %v100, %v99
  %v111 = vpack.c.b16 %v102, %v101
  %vm121 = vcmask 130048
  %v123 = vsel %vm121, %v62, 0
  %v126 = vsel %vm121, %v64, 0
  %128 = vmatprep.subr.bf16.mxu0 0
  %129 = vmatpush1.bf16.msra.mxu0 %v103
  %130 = vmatprep.subr.bf16.mxu0 0
  %131 = vmatpush1.bf16.msra.mxu0 %v104
  %132 = vmatprep.subr.bf16.mxu0 0
  %133 = vmatpush1.bf16.msra.mxu0 %v105
  %134 = vmatprep.subr.bf16.mxu0 0
  %135 = vmatpush1.bf16.msra.mxu0 %v106
  %136 = vmatprep.subr.bf16.mxu0 0
  %137 = vmatpush1.bf16.msra.mxu0 %v107
  %138 = vmatprep.subr.bf16.mxu0 0
  %139 = vmatpush1.bf16.msra.mxu0 %v108
  %140 = vmatprep.subr.bf16.mxu0 0
  %141 = vmatpush1.bf16.msra.mxu0 %v109
  %142 = vmatprep.subr.bf16.mxu0 0
  %143 = vmatpush1.bf16.msra.mxu0 %v110
  %144 = vmatprep.subr.bf16.mxu0 0
  %145 = vmatpush1.bf16.msra.mxu0 %v111
  %146 = vmatprep.subr.bf16.mxu0 0
  %147 = vmatpush1.bf16.msra.mxu0 0
  %148 = vmatprep.subr.bf16.mxu0 0
  %149 = vmatpush1.bf16.msra.mxu0 0
  %150 = vmatprep.subr.bf16.mxu0 0
  %151 = vmatpush1.bf16.msra.mxu0 0
  %152 = vmatprep.subr.bf16.mxu0 0
  %153 = vmatpush1.bf16.msra.mxu0 0
  %154 = vmatprep.subr.bf16.mxu0 0
  %155 = vmatpush1.bf16.msra.mxu0 0
  %156 = vmatprep.subr.bf16.mxu0 0
  %157 = vmatpush1.bf16.msra.mxu0 0
  %158 = vmatprep.subr.bf16.mxu0 0
  %159 = vmatpush1.bf16.msra.mxu0 0
  %160 = vmatprep.mubr.bf16.mxu0 %v123
  %161 = vmatmul.mubr.bf16.gmra.mrb[0].mxu0 %v61
  %v162 = vpop.f32.mrb[0].mxu0
  %v163 = vadd.f32 0.0, %v162
  %v164 = vpop.f32.mrb[0].mxu0
  %v165 = vpop.f32.mrb[0].mxu0
  %v166 = vadd.f32 0.0, %v165
  %v167 = vpop.f32.mrb[0].mxu0
  %168 = vmatprep.mubr.bf16.mxu0 %v126
  %169 = vmatmul.mubr.bf16.gmra.mrb[0].mxu0 %v63
  %v170 = vpop.f32.mrb[0].mxu0
  %v171 = vadd.f32 0.0, %v170
  %v172 = vpop.f32.mrb[0].mxu0
  %v173 = vpop.f32.mrb[0].mxu0
  %v174 = vadd.f32 0.0, %v173
  %v175 = vpop.f32.mrb[0].mxu0
  %176 = vdwg.mxu0
  %v177 = vadd.f32 %v23, %v163
  %v178 = vadd.f32 %v24, %v166
  %v179 = vadd.f32 %v25, %v171
  %v180 = vadd.f32 %v26, %v174
  %181 = vst [vmem:[#allocation2] sm:$0xff] %v177
  %182 = vst [vmem:[#allocation2 + $0x8] sm:$0xff] %v178
  %183 = vst [vmem:[#allocation2 + $0x10] sm:$0xff] %v179
  %184 = vst [vmem:[#allocation2 + $0x18] sm:$0xff] %v180
  // Predicated region
  $region18: #{_lambda_.27} parent=0 // pred_check
    %p185 = pneg %p15
  $region19: #{_lambda_.27} parent=0 // pred_check_branch
    %187 = sbr.rel (%p185) target = $region21
  $region20: #{_lambda_.27} parent=0 // pred_region
    %v188 = vld [vmem:[#allocation2] sm:$0xff]
    %v189 = vld [vmem:[#allocation2 + $0x8] sm:$0xff]
    %v190 = vld [vmem:[#allocation2 + $0x10] sm:$0xff]
    %v191 = vld [vmem:[#allocation2 + $0x18] sm:$0xff]
    %v192 = vld [vmem:[%s2] sm:$0x1]
    %v194 = vlaneseq
    %v195 = vshrl.u32 %v194, 7
    %v196 = vsub.s32 0, %v195
    %v197 = vrot.slane %v192, %v196
    %v199 = vadd.f32 %v188, %v197
    %v200 = vadd.f32 %v189, %v197
    %v201 = vadd.f32 %v190, %v197
    %v202 = vadd.f32 %v191, %v197
    %v203 = vmax.f32 %v199, 0.0
    %v204 = vmax.f32 %v200, 0.0
    %v205 = vmax.f32 %v201, 0.0
    %v206 = vmax.f32 %v202, 0.0
    %v207 = vpack.c.bf16 %v204, %v203
    %v208 = vpack.c.bf16 %v206, %v205
    %v211 = vunpack.c.l.b16 %v207
    %v212 = vunpack.c.h.b16 %v207
    %v213 = vunpack.c.l.b16 %v208
    %v214 = vunpack.c.h.b16 %v208
    %v215 = vpack.c.b16 %v211, %v211
    %v216 = vpack.c.b16 %v212, %v212
    %v217 = vpack.c.b16 %v213, %v213
    %v218 = vpack.c.b16 %v214, %v214
    %223 = vst [vmem:[%s3] sm:$0xf] %v215
    %224 = vst [vmem:[%s3 + $0x4] sm:$0xf] %v216
    %225 = vst [vmem:[%s3 + $0x8] sm:$0xf] %v217
    %226 = vst [vmem:[%s3 + $0xc] sm:$0xf] %v218
  $region21: #{_lambda_.27} parent=0 // pred_fallthru
    _
  // Predicated region
  $region22: #{_lambda_.27} parent=0 // pred_check
    _
  $region23: #{_lambda_.27} parent=0 // pred_check_branch
    %228 = sbr.rel (0) target = $region25
  $region24: #{_lambda_.27} parent=0 // pred_region
    _
  $region25: #{_lambda_.27} parent=0 // pred_fallthru
    _
  // Predicated region
  $region26: #{_lambda_.27} parent=0 // pred_check
    _
  $region27: #{_lambda_.27} parent=0 // pred_check_branch
    %230 = sbr.rel (0) target = $region29
  $region28: #{_lambda_.27} parent=0 // pred_region
    _
  $region29: #{_lambda_.27} parent=0 // pred_fallthru
    _

// kernel: _lambda_.29
$region0: #{_lambda_.29}
  #allocation0 [shape = 'u32[]', space=smem, size = 0x4, offset = 0x4, fixed_abs, tag = 'smem constant byte address 0x4 - core index']
  #allocation1 [shape = 'u32[144,128]{1,0:T(1,128)}', space=vmem, size = 0x12000, scoped, tag = 'internal scratch']
  #allocation2 [shape = 'f32[32,128]{1,0:T(8,128)}', space=vmem, size = 0x4000, scoped, tag = 'scratch operand']
  %s0 = inlined_call_operand.vmem [shape: bf16[32,16], index: 0, kind: input, shape index: {}]
  %s1 = inlined_call_operand.vmem [shape: bf16[16,128], index: 1, kind: input, shape index: {}]
  %s2 = inlined_call_operand.vmem [shape: f32[1,128], index: 2, kind: input, shape index: {}]
  %s3 = inlined_call_operand.vmem [shape: bf16[32,128], index: 3, kind: input, shape index: {}]
  %s4 = inlined_call_operand.vmem [shape: bf16[32,128], index: 4, kind: output, shape index: {}]
  %s5 = sld [smem:[#allocation0]]
  $region34: #{_lambda_.29} parent=0
    _
  %s7 = ssub.s32 1, %s5
  %s8 = scalar_select 0, %s7, %s5
  // Predicated region
  $region2: #{_lambda_.29} parent=0 // pred_check
    _
  $region3: #{_lambda_.29} parent=0 // pred_check_branch
    %10 = sbr.rel (0) target = $region5
  $region4: #{_lambda_.29} parent=0 // pred_region
    _
  $region5: #{_lambda_.29} parent=0 // pred_fallthru
    _
  // Predicated region
  $region6: #{_lambda_.29} parent=0 // pred_check
    _
  $region7: #{_lambda_.29} parent=0 // pred_check_branch
    %12 = sbr.rel (0) target = $region9
  $region8: #{_lambda_.29} parent=0 // pred_region
    _
  $region9: #{_lambda_.29} parent=0 // pred_fallthru
    _
  // Predicated region
  $region10: #{_lambda_.29} parent=0 // pred_check
    _
  $region11: #{_lambda_.29} parent=0 // pred_check_branch
    %14 = sbr.rel (0) target = $region13
  $region12: #{_lambda_.29} parent=0 // pred_region
    _
  $region13: #{_lambda_.29} parent=0 // pred_fallthru
    _
  // Predicated region
  $region14: #{_lambda_.29} parent=0 // pred_check
    _
  $region15: #{_lambda_.29} parent=0 // pred_check_branch
    %16 = sbr.rel (0) target = $region17
  $region16: #{_lambda_.29} parent=0 // pred_region
    _
  $region17: #{_lambda_.29} parent=0 // pred_fallthru
    _
  %p18 = scmp.eq.s32.totalorder 0, 0
  // Predicated region
  $region18: #{_lambda_.29} parent=0 // pred_check
    %p19 = pneg %p18
  $region19: #{_lambda_.29} parent=0 // pred_check_branch
    %21 = sbr.rel (%p19) target = $region21
  $region20: #{_lambda_.29} parent=0 // pred_region
    %22 = vst [vmem:[#allocation2] sm:$0xff] 0.0
    %23 = vst [vmem:[#allocation2 + $0x8] sm:$0xff] 0.0
    %24 = vst [vmem:[#allocation2 + $0x10] sm:$0xff] 0.0
    %25 = vst [vmem:[#allocation2 + $0x18] sm:$0xff] 0.0
  $region21: #{_lambda_.29} parent=0 // pred_fallthru
    _
  %v26 = vld [vmem:[#allocation2] sm:$0xff]
  %v27 = vld [vmem:[#allocation2 + $0x8] sm:$0xff]
  %v28 = vld [vmem:[#allocation2 + $0x10] sm:$0xff]
  %v29 = vld [vmem:[#allocation2 + $0x18] sm:$0xff]
  %v30 = vld [vmem:[%s0] sm:$0xf]
  %v31 = vld [vmem:[%s0 + $0x4] sm:$0xf]
  %v32 = vld [vmem:[%s0 + $0x8] sm:$0xf]
  %v33 = vld [vmem:[%s0 + $0xc] sm:$0xf]
  %v34 = vld [vmem:[%s1] sm:$0xf]
  %v35 = vld [vmem:[%s1 + $0x4] sm:$0xf]
  %v40 = vunpack.c.l.b16 %v30
  %v41 = vunpack.c.l.b16 %v31
  %v42 = vunpack.c.l.b16 %v32
  %v43 = vunpack.c.l.b16 %v33
  %v44 = vpack.c.b16 %v41, %v40
  %v45 = vpack.c.b16 %v43, %v42
  %v48 = vunpack.c.l.b16 %v34
  %v49 = vunpack.c.l.b16 %v35
  %v50 = vpack.c.b16 %v49, %v48
  %vm52 = vcmask 130048
  %v54 = vsel %vm52, %v44, 0
  %v57 = vsel %vm52, %v45, 0
  %59 = vmatprep.subr.bf16.mxu0 0
  %60 = vmatpush1.bf16.msra.mxu0 %v50
  %61 = vmatprep.subr.bf16.mxu0 0
  %62 = vmatpush1.bf16.msra.mxu0 0
  %63 = vmatprep.subr.bf16.mxu0 0
  %64 = vmatpush1.bf16.msra.mxu0 0
  %65 = vmatprep.subr.bf16.mxu0 0
  %66 = vmatpush1.bf16.msra.mxu0 0
  %67 = vmatprep.subr.bf16.mxu0 0
  %68 = vmatpush1.bf16.msra.mxu0 0
  %69 = vmatprep.subr.bf16.mxu0 0
  %70 = vmatpush1.bf16.msra.mxu0 0
  %71 = vmatprep.subr.bf16.mxu0 0
  %72 = vmatpush1.bf16.msra.mxu0 0
  %73 = vmatprep.subr.bf16.mxu0 0
  %74 = vmatpush1.bf16.msra.mxu0 0
  %75 = vmatprep.subr.bf16.mxu0 0
  %76 = vmatpush1.bf16.msra.mxu0 0
  %77 = vmatprep.subr.bf16.mxu0 0
  %78 = vmatpush1.bf16.msra.mxu0 0
  %79 = vmatprep.subr.bf16.mxu0 0
  %80 = vmatpush1.bf16.msra.mxu0 0
  %81 = vmatprep.subr.bf16.mxu0 0
  %82 = vmatpush1.bf16.msra.mxu0 0
  %83 = vmatprep.subr.bf16.mxu0 0
  %84 = vmatpush1.bf16.msra.mxu0 0
  %85 = vmatprep.subr.bf16.mxu0 0
  %86 = vmatpush1.bf16.msra.mxu0 0
  %87 = vmatprep.subr.bf16.mxu0 0
  %88 = vmatpush1.bf16.msra.mxu0 0
  %89 = vmatprep.subr.bf16.mxu0 0
  %90 = vmatpush1.bf16.msra.mxu0 0
  %91 = vmatprep.mubr.bf16.mxu0 0
  %92 = vmatmul.mubr.bf16.gmra.mrb[0].mxu0 %v54
  %v93 = vpop.f32.mrb[0].mxu0
  %v94 = vadd.f32 0.0, %v93
  %v95 = vpop.f32.mrb[0].mxu0
  %v96 = vpop.f32.mrb[0].mxu0
  %v97 = vadd.f32 0.0, %v96
  %v98 = vpop.f32.mrb[0].mxu0
  %99 = vmatprep.mubr.bf16.mxu0 0
  %100 = vmatmul.mubr.bf16.gmra.mrb[0].mxu0 %v57
  %v101 = vpop.f32.mrb[0].mxu0
  %v102 = vadd.f32 0.0, %v101
  %v103 = vpop.f32.mrb[0].mxu0
  %v104 = vpop.f32.mrb[0].mxu0
  %v105 = vadd.f32 0.0, %v104
  %v106 = vpop.f32.mrb[0].mxu0
  %107 = vdwg.mxu0
  %v108 = vadd.f32 %v26, %v94
  %v109 = vadd.f32 %v27, %v97
  %v110 = vadd.f32 %v28, %v102
  %v111 = vadd.f32 %v29, %v105
  %112 = vst [vmem:[#allocation2] sm:$0xff] %v108
  %113 = vst [vmem:[#allocation2 + $0x8] sm:$0xff] %v109
  %114 = vst [vmem:[#allocation2 + $0x10] sm:$0xff] %v110
  %115 = vst [vmem:[#allocation2 + $0x18] sm:$0xff] %v111
  // Predicated region
  $region22: #{_lambda_.29} parent=0 // pred_check
    %p116 = pneg %p18
  $region23: #{_lambda_.29} parent=0 // pred_check_branch
    %118 = sbr.rel (%p116) target = $region25
  $region24: #{_lambda_.29} parent=0 // pred_region
    %v119 = vld [vmem:[#allocation2] sm:$0xff]
    %v120 = vld [vmem:[#allocation2 + $0x8] sm:$0xff]
    %v121 = vld [vmem:[#allocation2 + $0x10] sm:$0xff]
    %v122 = vld [vmem:[#allocation2 + $0x18] sm:$0xff]
    %v123 = vld [vmem:[%s2] sm:$0x1]
    %v125 = vlaneseq
    %v126 = vshrl.u32 %v125, 7
    %v127 = vsub.s32 0, %v126
    %v128 = vrot.slane %v123, %v127
    %v130 = vadd.f32 %v119, %v128
    %v131 = vadd.f32 %v120, %v128
    %v132 = vadd.f32 %v121, %v128
    %v133 = vadd.f32 %v122, %v128
    %v134 = vld [vmem:[%s3] sm:$0xf]
    %v135 = vld [vmem:[%s3 + $0x4] sm:$0xf]
    %v136 = vld [vmem:[%s3 + $0x8] sm:$0xf]
    %v137 = vld [vmem:[%s3 + $0xc] sm:$0xf]
    %v138 = vunpack.c.l.bf16 %v134
    %v139 = vunpack.c.l.bf16 %v135
    %v140 = vunpack.c.l.bf16 %v136
    %v141 = vunpack.c.l.bf16 %v137
    %v142 = vadd.f32 %v130, %v138
    %v143 = vadd.f32 %v131, %v139
    %v144 = vadd.f32 %v132, %v140
    %v145 = vadd.f32 %v133, %v141
    %v146 = vmax.f32 %v142, 0.0
    %v147 = vmax.f32 %v143, 0.0
    %v148 = vmax.f32 %v144, 0.0
    %v149 = vmax.f32 %v145, 0.0
    %v150 = vpack.c.bf16 %v147, %v146
    %v151 = vpack.c.bf16 %v149, %v148
    %v154 = vunpack.c.l.b16 %v150
    %v155 = vunpack.c.h.b16 %v150
    %v156 = vunpack.c.l.b16 %v151
    %v157 = vunpack.c.h.b16 %v151
    %v158 = vpack.c.b16 %v154, %v154
    %v159 = vpack.c.b16 %v155, %v155
    %v160 = vpack.c.b16 %v156, %v156
    %v161 = vpack.c.b16 %v157, %v157
    %166 = vst [vmem:[%s4] sm:$0xf] %v158
    %167 = vst [vmem:[%s4 + $0x4] sm:$0xf] %v159
    %168 = vst [vmem:[%s4 + $0x8] sm:$0xf] %v160
    %169 = vst [vmem:[%s4 + $0xc] sm:$0xf] %v161
  $region25: #{_lambda_.29} parent=0 // pred_fallthru
    _
  // Predicated region
  $region26: #{_lambda_.29} parent=0 // pred_check
    _
  $region27: #{_lambda_.29} parent=0 // pred_check_branch
    %171 = sbr.rel (0) target = $region29
  $region28: #{_lambda_.29} parent=0 // pred_region
    _
  $region29: #{_lambda_.29} parent=0 // pred_fallthru
    _
  // Predicated region
  $region30: #{_lambda_.29} parent=0 // pred_check
    _
  $region31: #{_lambda_.29} parent=0 // pred_check_branch
    %173 = sbr.rel (0) target = $region33
  $region32: #{_lambda_.29} parent=0 // pred_region
    _
  $region33: #{_lambda_.29} parent=0 // pred_fallthru
    _

// kernel: _lambda_.32
$region0: #{_lambda_.32}
  #allocation0 [shape = 'u32[]', space=smem, size = 0x4, offset = 0x4, fixed_abs, tag = 'smem constant byte address 0x4 - core index']
  #allocation1 [shape = 'u32[144,128]{1,0:T(1,128)}', space=vmem, size = 0x12000, scoped, tag = 'internal scratch']
  #allocation2 [shape = 'f32[16,128]{1,0:T(8,128)}', space=vmem, size = 0x2000, scoped, tag = 'scratch operand']
  %s0 = inlined_call_operand.vmem [shape: bf16[16,64], index: 0, kind: input, shape index: {}]
  %s1 = inlined_call_operand.vmem [shape: bf16[64,128], index: 1, kind: input, shape index: {}]
  %s2 = inlined_call_operand.vmem [shape: f32[1,128], index: 2, kind: input, shape index: {}]
  %s3 = inlined_call_operand.vmem [shape: bf16[16,128], index: 3, kind: output, shape index: {}]
  %s4 = sld [smem:[#allocation0]]
  $region30: #{_lambda_.32} parent=0
    _
  %s6 = ssub.s32 1, %s4
  %s7 = scalar_select 0, %s6, %s4
  // Predicated region
  $region2: #{_lambda_.32} parent=0 // pred_check
    _
  $region3: #{_lambda_.32} parent=0 // pred_check_branch
    %9 = sbr.rel (0) target = $region5
  $region4: #{_lambda_.32} parent=0 // pred_region
    _
  $region5: #{_lambda_.32} parent=0 // pred_fallthru
    _
  // Predicated region
  $region6: #{_lambda_.32} parent=0 // pred_check
    _
  $region7: #{_lambda_.32} parent=0 // pred_check_branch
    %11 = sbr.rel (0) target = $region9
  $region8: #{_lambda_.32} parent=0 // pred_region
    _
  $region9: #{_lambda_.32} parent=0 // pred_fallthru
    _
  // Predicated region
  $region10: #{_lambda_.32} parent=0 // pred_check
    _
  $region11: #{_lambda_.32} parent=0 // pred_check_branch
    %13 = sbr.rel (0) target = $region13
  $region12: #{_lambda_.32} parent=0 // pred_region
    _
  $region13: #{_lambda_.32} parent=0 // pred_fallthru
    _
  %p15 = scmp.eq.s32.totalorder 0, 0
  // Predicated region
  $region14: #{_lambda_.32} parent=0 // pred_check
    %p16 = pneg %p15
  $region15: #{_lambda_.32} parent=0 // pred_check_branch
    %18 = sbr.rel (%p16) target = $region17
  $region16: #{_lambda_.32} parent=0 // pred_region
    %19 = vst [vmem:[#allocation2] sm:$0xff] 0.0
    %20 = vst [vmem:[#allocation2 + $0x8] sm:$0xff] 0.0
  $region17: #{_lambda_.32} parent=0 // pred_fallthru
    _
  %v21 = vld [vmem:[#allocation2] sm:$0xff]
  %v22 = vld [vmem:[#allocation2 + $0x8] sm:$0xff]
  %v23 = vld [vmem:[%s0] sm:$0xf]
  %v24 = vld [vmem:[%s0 + $0x4] sm:$0xf]
  %v25 = vld [vmem:[%s1] sm:$0xf]
  %v26 = vld [vmem:[%s1 + $0x4] sm:$0xf]
  %v27 = vld [vmem:[%s1 + $0x8] sm:$0xf]
  %v28 = vld [vmem:[%s1 + $0xc] sm:$0xf]
  %v29 = vld [vmem:[%s1 + $0x10] sm:$0xf]
  %v30 = vld [vmem:[%s1 + $0x14] sm:$0xf]
  %v31 = vld [vmem:[%s1 + $0x18] sm:$0xf]
  %v32 = vld [vmem:[%s1 + $0x1c] sm:$0xf]
  %v35 = vunpack.c.l.b16 %v23
  %v36 = vunpack.c.l.b16 %v24
  %v37 = vpack.c.b16 %v36, %v35
  %v46 = vunpack.c.l.b16 %v25
  %v47 = vunpack.c.l.b16 %v26
  %v48 = vunpack.c.l.b16 %v27
  %v49 = vunpack.c.l.b16 %v28
  %v50 = vunpack.c.l.b16 %v29
  %v51 = vunpack.c.l.b16 %v30
  %v52 = vunpack.c.l.b16 %v31
  %v53 = vunpack.c.l.b16 %v32
  %v54 = vpack.c.b16 %v47, %v46
  %v55 = vpack.c.b16 %v49, %v48
  %v56 = vpack.c.b16 %v51, %v50
  %v57 = vpack.c.b16 %v53, %v52
  %vm62 = vcmask 523264
  %v64 = vsel %vm62, %v37, 0
  %66 = vmatprep.subr.bf16.mxu0 0
  %67 = vmatpush1.bf16.msra.mxu0 %v54
  %68 = vmatprep.subr.bf16.mxu0 0
  %69 = vmatpush1.bf16.msra.mxu0 %v55
  %70 = vmatprep.subr.bf16.mxu0 0
  %71 = vmatpush1.bf16.msra.mxu0 %v56
  %72 = vmatprep.subr.bf16.mxu0 0
  %73 = vmatpush1.bf16.msra.mxu0 %v57
  %74 = vmatprep.subr.bf16.mxu0 0
  %75 = vmatpush1.bf16.msra.mxu0 0
  %76 = vmatprep.subr.bf16.mxu0 0
  %77 = vmatpush1.bf16.msra.mxu0 0
  %78 = vmatprep.subr.bf16.mxu0 0
  %79 = vmatpush1.bf16.msra.mxu0 0
  %80 = vmatprep.subr.bf16.mxu0 0
  %81 = vmatpush1.bf16.msra.mxu0 0
  %82 = vmatprep.subr.bf16.mxu0 0
  %83 = vmatpush1.bf16.msra.mxu0 0
  %84 = vmatprep.subr.bf16.mxu0 0
  %85 = vmatpush1.bf16.msra.mxu0 0
  %86 = vmatprep.subr.bf16.mxu0 0
  %87 = vmatpush1.bf16.msra.mxu0 0
  %88 = vmatprep.subr.bf16.mxu0 0
  %89 = vmatpush1.bf16.msra.mxu0 0
  %90 = vmatprep.subr.bf16.mxu0 0
  %91 = vmatpush1.bf16.msra.mxu0 0
  %92 = vmatprep.subr.bf16.mxu0 0
  %93 = vmatpush1.bf16.msra.mxu0 0
  %94 = vmatprep.subr.bf16.mxu0 0
  %95 = vmatpush1.bf16.msra.mxu0 0
  %96 = vmatprep.subr.bf16.mxu0 0
  %97 = vmatpush1.bf16.msra.mxu0 0
  %98 = vmatprep.mubr.bf16.mxu0 0
  %99 = vmatmul.mubr.bf16.gmra.mrb[0].mxu0 %v64
  %v100 = vpop.f32.mrb[0].mxu0
  %v101 = vadd.f32 0.0, %v100
  %v102 = vpop.f32.mrb[0].mxu0
  %v103 = vpop.f32.mrb[0].mxu0
  %v104 = vadd.f32 0.0, %v103
  %v105 = vpop.f32.mrb[0].mxu0
  %106 = vdwg.mxu0
  %v107 = vadd.f32 %v21, %v101
  %v108 = vadd.f32 %v22, %v104
  %109 = vst [vmem:[#allocation2] sm:$0xff] %v107
  %110 = vst [vmem:[#allocation2 + $0x8] sm:$0xff] %v108
  // Predicated region
  $region18: #{_lambda_.32} parent=0 // pred_check
    %p111 = pneg %p15
  $region19: #{_lambda_.32} parent=0 // pred_check_branch
    %113 = sbr.rel (%p111) target = $region21
  $region20: #{_lambda_.32} parent=0 // pred_region
    %v114 = vld [vmem:[#allocation2] sm:$0xff]
    %v115 = vld [vmem:[#allocation2 + $0x8] sm:$0xff]
    %v116 = vld [vmem:[%s2] sm:$0x1]
    %v118 = vlaneseq
    %v119 = vshrl.u32 %v118, 7
    %v120 = vsub.s32 0, %v119
    %v121 = vrot.slane %v116, %v120
    %v123 = vadd.f32 %v114, %v121
    %v124 = vadd.f32 %v115, %v121
    %v125 = vpack.c.bf16 %v124, %v123
    %v127 = vunpack.c.l.b16 %v125
    %v128 = vunpack.c.h.b16 %v125
    %v129 = vpack.c.b16 %v127, %v127
    %v130 = vpack.c.b16 %v128, %v128
    %133 = vst [vmem:[%s3] sm:$0xf] %v129
    %134 = vst [vmem:[%s3 + $0x4] sm:$0xf] %v130
  $region21: #{_lambda_.32} parent=0 // pred_fallthru
    _
  // Predicated region
  $region22: #{_lambda_.32} parent=0 // pred_check
    _
  $region23: #{_lambda_.32} parent=0 // pred_check_branch
    %136 = sbr.rel (0) target = $region25
  $region24: #{_lambda_.32} parent=0 // pred_region
    _
  $region25: #{_lambda_.32} parent=0 // pred_fallthru
    _
  // Predicated region
  $region26: #{_lambda_.32} parent=0 // pred_check
    _
  $region27: #{_lambda_.32} parent=0 // pred_check_branch
    %138 = sbr.rel (0) target = $region29
  $region28: #{_lambda_.32} parent=0 // pred_region
    _
  $region29: #{_lambda_.32} parent=0 // pred_fallthru
    _

// kernel: _lambda_.30
$region0: #{_lambda_.30}
  #allocation0 [shape = 'u32[]', space=smem, size = 0x4, offset = 0x4, fixed_abs, tag = 'smem constant byte address 0x4 - core index']
  #allocation1 [shape = 'u32[144,128]{1,0:T(1,128)}', space=vmem, size = 0x12000, scoped, tag = 'internal scratch']
  #allocation2 [shape = 'f32[32,128]{1,0:T(8,128)}', space=vmem, size = 0x4000, scoped, tag = 'scratch operand']
  %s0 = inlined_call_operand.vmem [shape: bf16[32,64], index: 0, kind: input, shape index: {}]
  %s1 = inlined_call_operand.vmem [shape: bf16[64,128], index: 1, kind: input, shape index: {}]
  %s2 = inlined_call_operand.vmem [shape: f32[1,128], index: 2, kind: input, shape index: {}]
  %s3 = inlined_call_operand.vmem [shape: bf16[32,128], index: 3, kind: output, shape index: {}]
  %s4 = sld [smem:[#allocation0]]
  $region30: #{_lambda_.30} parent=0
    _
  %s6 = ssub.s32 1, %s4
  %s7 = scalar_select 0, %s6, %s4
  // Predicated region
  $region2: #{_lambda_.30} parent=0 // pred_check
    _
  $region3: #{_lambda_.30} parent=0 // pred_check_branch
    %9 = sbr.rel (0) target = $region5
  $region4: #{_lambda_.30} parent=0 // pred_region
    _
  $region5: #{_lambda_.30} parent=0 // pred_fallthru
    _
  // Predicated region
  $region6: #{_lambda_.30} parent=0 // pred_check
    _
  $region7: #{_lambda_.30} parent=0 // pred_check_branch
    %11 = sbr.rel (0) target = $region9
  $region8: #{_lambda_.30} parent=0 // pred_region
    _
  $region9: #{_lambda_.30} parent=0 // pred_fallthru
    _
  // Predicated region
  $region10: #{_lambda_.30} parent=0 // pred_check
    _
  $region11: #{_lambda_.30} parent=0 // pred_check_branch
    %13 = sbr.rel (0) target = $region13
  $region12: #{_lambda_.30} parent=0 // pred_region
    _
  $region13: #{_lambda_.30} parent=0 // pred_fallthru
    _
  %p15 = scmp.eq.s32.totalorder 0, 0
  // Predicated region
  $region14: #{_lambda_.30} parent=0 // pred_check
    %p16 = pneg %p15
  $region15: #{_lambda_.30} parent=0 // pred_check_branch
    %18 = sbr.rel (%p16) target = $region17
  $region16: #{_lambda_.30} parent=0 // pred_region
    %19 = vst [vmem:[#allocation2] sm:$0xff] 0.0
    %20 = vst [vmem:[#allocation2 + $0x8] sm:$0xff] 0.0
    %21 = vst [vmem:[#allocation2 + $0x10] sm:$0xff] 0.0
    %22 = vst [vmem:[#allocation2 + $0x18] sm:$0xff] 0.0
  $region17: #{_lambda_.30} parent=0 // pred_fallthru
    _
  %v23 = vld [vmem:[#allocation2] sm:$0xff]
  %v24 = vld [vmem:[#allocation2 + $0x8] sm:$0xff]
  %v25 = vld [vmem:[#allocation2 + $0x10] sm:$0xff]
  %v26 = vld [vmem:[#allocation2 + $0x18] sm:$0xff]
  %v27 = vld [vmem:[%s0] sm:$0xf]
  %v28 = vld [vmem:[%s0 + $0x4] sm:$0xf]
  %v29 = vld [vmem:[%s0 + $0x8] sm:$0xf]
  %v30 = vld [vmem:[%s0 + $0xc] sm:$0xf]
  %v31 = vld [vmem:[%s1] sm:$0xf]
  %v32 = vld [vmem:[%s1 + $0x4] sm:$0xf]
  %v33 = vld [vmem:[%s1 + $0x8] sm:$0xf]
  %v34 = vld [vmem:[%s1 + $0xc] sm:$0xf]
  %v35 = vld [vmem:[%s1 + $0x10] sm:$0xf]
  %v36 = vld [vmem:[%s1 + $0x14] sm:$0xf]
  %v37 = vld [vmem:[%s1 + $0x18] sm:$0xf]
  %v38 = vld [vmem:[%s1 + $0x1c] sm:$0xf]
  %v43 = vunpack.c.l.b16 %v27
  %v44 = vunpack.c.l.b16 %v28
  %v45 = vunpack.c.l.b16 %v29
  %v46 = vunpack.c.l.b16 %v30
  %v47 = vpack.c.b16 %v44, %v43
  %v48 = vpack.c.b16 %v46, %v45
  %v57 = vunpack.c.l.b16 %v31
  %v58 = vunpack.c.l.b16 %v32
  %v59 = vunpack.c.l.b16 %v33
  %v60 = vunpack.c.l.b16 %v34
  %v61 = vunpack.c.l.b16 %v35
  %v62 = vunpack.c.l.b16 %v36
  %v63 = vunpack.c.l.b16 %v37
  %v64 = vunpack.c.l.b16 %v38
  %v65 = vpack.c.b16 %v58, %v57
  %v66 = vpack.c.b16 %v60, %v59
  %v67 = vpack.c.b16 %v62, %v61
  %v68 = vpack.c.b16 %v64, %v63
  %vm73 = vcmask 523264
  %v75 = vsel %vm73, %v47, 0
  %v78 = vsel %vm73, %v48, 0
  %80 = vmatprep.subr.bf16.mxu0 0
  %81 = vmatpush1.bf16.msra.mxu0 %v65
  %82 = vmatprep.subr.bf16.mxu0 0
  %83 = vmatpush1.bf16.msra.mxu0 %v66
  %84 = vmatprep.subr.bf16.mxu0 0
  %85 = vmatpush1.bf16.msra.mxu0 %v67
  %86 = vmatprep.subr.bf16.mxu0 0
  %87 = vmatpush1.bf16.msra.mxu0 %v68
  %88 = vmatprep.subr.bf16.mxu0 0
  %89 = vmatpush1.bf16.msra.mxu0 0
  %90 = vmatprep.subr.bf16.mxu0 0
  %91 = vmatpush1.bf16.msra.mxu0 0
  %92 = vmatprep.subr.bf16.mxu0 0
  %93 = vmatpush1.bf16.msra.mxu0 0
  %94 = vmatprep.subr.bf16.mxu0 0
  %95 = vmatpush1.bf16.msra.mxu0 0
  %96 = vmatprep.subr.bf16.mxu0 0
  %97 = vmatpush1.bf16.msra.mxu0 0
  %98 = vmatprep.subr.bf16.mxu0 0
  %99 = vmatpush1.bf16.msra.mxu0 0
  %100 = vmatprep.subr.bf16.mxu0 0
  %101 = vmatpush1.bf16.msra.mxu0 0
  %102 = vmatprep.subr.bf16.mxu0 0
  %103 = vmatpush1.bf16.msra.mxu0 0
  %104 = vmatprep.subr.bf16.mxu0 0
  %105 = vmatpush1.bf16.msra.mxu0 0
  %106 = vmatprep.subr.bf16.mxu0 0
  %107 = vmatpush1.bf16.msra.mxu0 0
  %108 = vmatprep.subr.bf16.mxu0 0
  %109 = vmatpush1.bf16.msra.mxu0 0
  %110 = vmatprep.subr.bf16.mxu0 0
  %111 = vmatpush1.bf16.msra.mxu0 0
  %112 = vmatprep.mubr.bf16.mxu0 0
  %113 = vmatmul.mubr.bf16.gmra.mrb[0].mxu0 %v75
  %v114 = vpop.f32.mrb[0].mxu0
  %v115 = vadd.f32 0.0, %v114
  %v116 = vpop.f32.mrb[0].mxu0
  %v117 = vpop.f32.mrb[0].mxu0
  %v118 = vadd.f32 0.0, %v117
  %v119 = vpop.f32.mrb[0].mxu0
  %120 = vmatprep.mubr.bf16.mxu0 0
  %121 = vmatmul.mubr.bf16.gmra.mrb[0].mxu0 %v78
  %v122 = vpop.f32.mrb[0].mxu0
  %v123 = vadd.f32 0.0, %v122
  %v124 = vpop.f32.mrb[0].mxu0
  %v125 = vpop.f32.mrb[0].mxu0
  %v126 = vadd.f32 0.0, %v125
  %v127 = vpop.f32.mrb[0].mxu0
  %128 = vdwg.mxu0
  %v129 = vadd.f32 %v23, %v115
  %v130 = vadd.f32 %v24, %v118
  %v131 = vadd.f32 %v25, %v123
  %v132 = vadd.f32 %v26, %v126
  %133 = vst [vmem:[#allocation2] sm:$0xff] %v129
  %134 = vst [vmem:[#allocation2 + $0x8] sm:$0xff] %v130
  %135 = vst [vmem:[#allocation2 + $0x10] sm:$0xff] %v131
  %136 = vst [vmem:[#allocation2 + $0x18] sm:$0xff] %v132
  // Predicated region
  $region18: #{_lambda_.30} parent=0 // pred_check
    %p137 = pneg %p15
  $region19: #{_lambda_.30} parent=0 // pred_check_branch
    %139 = sbr.rel (%p137) target = $region21
  $region20: #{_lambda_.30} parent=0 // pred_region
    %v140 = vld [vmem:[#allocation2] sm:$0xff]
    %v141 = vld [vmem:[#allocation2 + $0x8] sm:$0xff]
    %v142 = vld [vmem:[#allocation2 + $0x10] sm:$0xff]
    %v143 = vld [vmem:[#allocation2 + $0x18] sm:$0xff]
    %v144 = vld [vmem:[%s2] sm:$0x1]
    %v146 = vlaneseq
    %v147 = vshrl.u32 %v146, 7
    %v148 = vsub.s32 0, %v147
    %v149 = vrot.slane %v144, %v148
    %v151 = vadd.f32 %v140, %v149
    %v152 = vadd.f32 %v141, %v149
    %v153 = vadd.f32 %v142, %v149
    %v154 = vadd.f32 %v143, %v149
    %v155 = vmax.f32 %v151, 0.0
    %v156 = vmax.f32 %v152, 0.0
    %v157 = vmax.f32 %v153, 0.0
    %v158 = vmax.f32 %v154, 0.0
    %v159 = vpack.c.bf16 %v156, %v155
    %v160 = vpack.c.bf16 %v158, %v157
    %v163 = vunpack.c.l.b16 %v159
    %v164 = vunpack.c.h.b16 %v159
    %v165 = vunpack.c.l.b16 %v160
    %v166 = vunpack.c.h.b16 %v160
    %v167 = vpack.c.b16 %v163, %v163
    %v168 = vpack.c.b16 %v164, %v164
    %v169 = vpack.c.b16 %v165, %v165
    %v170 = vpack.c.b16 %v166, %v166
    %175 = vst [vmem:[%s3] sm:$0xf] %v167
    %176 = vst [vmem:[%s3 + $0x4] sm:$0xf] %v168
    %177 = vst [vmem:[%s3 + $0x8] sm:$0xf] %v169
    %178 = vst [vmem:[%s3 + $0xc] sm:$0xf] %v170
  $region21: #{_lambda_.30} parent=0 // pred_fallthru
    _
  // Predicated region
  $region22: #{_lambda_.30} parent=0 // pred_check
    _
  $region23: #{_lambda_.30} parent=0 // pred_check_branch
    %180 = sbr.rel (0) target = $region25
  $region24: #{_lambda_.30} parent=0 // pred_region
    _
  $region25: #{_lambda_.30} parent=0 // pred_fallthru
    _
  // Predicated region
  $region26: #{_lambda_.30} parent=0 // pred_check
    _
  $region27: #{_lambda_.30} parent=0 // pred_check_branch
    %182 = sbr.rel (0) target = $region29
  $region28: #{_lambda_.30} parent=0 // pred_region
    _
  $region29: #{_lambda_.30} parent=0 // pred_fallthru
    _

// kernel: _lambda_.31
$region0: #{_lambda_.31}
  #allocation0 [shape = 'u32[]', space=smem, size = 0x4, offset = 0x4, fixed_abs, tag = 'smem constant byte address 0x4 - core index']
  #allocation1 [shape = 'u32[144,128]{1,0:T(1,128)}', space=vmem, size = 0x12000, scoped, tag = 'internal scratch']
  #allocation2 [shape = 'f32[16,128]{1,0:T(8,128)}', space=vmem, size = 0x2000, scoped, tag = 'scratch operand']
  %s0 = inlined_call_operand.vmem [shape: bf16[16,288], index: 0, kind: input, shape index: {}]
  %s1 = inlined_call_operand.vmem [shape: bf16[288,128], index: 1, kind: input, shape index: {}]
  %s2 = inlined_call_operand.vmem [shape: f32[1,128], index: 2, kind: input, shape index: {}]
  %s3 = inlined_call_operand.vmem [shape: bf16[16,128], index: 3, kind: output, shape index: {}]
  %s4 = sld [smem:[#allocation0]]
  $region30: #{_lambda_.31} parent=0
    _
  %s6 = ssub.s32 1, %s4
  %s7 = scalar_select 0, %s6, %s4
  // Predicated region
  $region2: #{_lambda_.31} parent=0 // pred_check
    _
  $region3: #{_lambda_.31} parent=0 // pred_check_branch
    %9 = sbr.rel (0) target = $region5
  $region4: #{_lambda_.31} parent=0 // pred_region
    _
  $region5: #{_lambda_.31} parent=0 // pred_fallthru
    _
  // Predicated region
  $region6: #{_lambda_.31} parent=0 // pred_check
    _
  $region7: #{_lambda_.31} parent=0 // pred_check_branch
    %11 = sbr.rel (0) target = $region9
  $region8: #{_lambda_.31} parent=0 // pred_region
    _
  $region9: #{_lambda_.31} parent=0 // pred_fallthru
    _
  // Predicated region
  $region10: #{_lambda_.31} parent=0 // pred_check
    _
  $region11: #{_lambda_.31} parent=0 // pred_check_branch
    %13 = sbr.rel (0) target = $region13
  $region12: #{_lambda_.31} parent=0 // pred_region
    _
  $region13: #{_lambda_.31} parent=0 // pred_fallthru
    _
  %p15 = scmp.eq.s32.totalorder 0, 0
  // Predicated region
  $region14: #{_lambda_.31} parent=0 // pred_check
    %p16 = pneg %p15
  $region15: #{_lambda_.31} parent=0 // pred_check_branch
    %18 = sbr.rel (%p16) target = $region17
  $region16: #{_lambda_.31} parent=0 // pred_region
    %19 = vst [vmem:[#allocation2] sm:$0xff] 0.0
    %20 = vst [vmem:[#allocation2 + $0x8] sm:$0xff] 0.0
  $region17: #{_lambda_.31} parent=0 // pred_fallthru
    _
  %v21 = vld [vmem:[#allocation2] sm:$0xff]
  %v22 = vld [vmem:[#allocation2 + $0x8] sm:$0xff]
  %v23 = vld [vmem:[%s0] sm:$0xff]
  %v24 = vld [vmem:[%s0 + $0x8] sm:$0xf]
  %v25 = vld [vmem:[%s0 + $0xc] sm:$0xff]
  %v26 = vld [vmem:[%s0 + $0x14] sm:$0xf]
  %v27 = vld [vmem:[%s1] sm:$0xf]
  %v28 = vld [vmem:[%s1 + $0x4] sm:$0xf]
  %v29 = vld [vmem:[%s1 + $0x8] sm:$0xf]
  %v30 = vld [vmem:[%s1 + $0xc] sm:$0xf]
  %v31 = vld [vmem:[%s1 + $0x10] sm:$0xf]
  %v32 = vld [vmem:[%s1 + $0x14] sm:$0xf]
  %v33 = vld [vmem:[%s1 + $0x18] sm:$0xf]
  %v34 = vld [vmem:[%s1 + $0x1c] sm:$0xf]
  %v35 = vld [vmem:[%s1 + $0x20] sm:$0xf]
  %v36 = vld [vmem:[%s1 + $0x24] sm:$0xf]
  %v37 = vld [vmem:[%s1 + $0x28] sm:$0xf]
  %v38 = vld [vmem:[%s1 + $0x2c] sm:$0xf]
  %v39 = vld [vmem:[%s1 + $0x30] sm:$0xf]
  %v40 = vld [vmem:[%s1 + $0x34] sm:$0xf]
  %v41 = vld [vmem:[%s1 + $0x38] sm:$0xf]
  %v42 = vld [vmem:[%s1 + $0x3c] sm:$0xf]
  %v43 = vld [vmem:[%s1 + $0x40] sm:$0xf]
  %v44 = vld [vmem:[%s1 + $0x44] sm:$0xf]
  %v45 = vld [vmem:[%s1 + $0x48] sm:$0xf]
  %v46 = vld [vmem:[%s1 + $0x4c] sm:$0xf]
  %v47 = vld [vmem:[%s1 + $0x50] sm:$0xf]
  %v48 = vld [vmem:[%s1 + $0x54] sm:$0xf]
  %v49 = vld [vmem:[%s1 + $0x58] sm:$0xf]
  %v50 = vld [vmem:[%s1 + $0x5c] sm:$0xf]
  %v51 = vld [vmem:[%s1 + $0x60] sm:$0xf]
  %v52 = vld [vmem:[%s1 + $0x64] sm:$0xf]
  %v53 = vld [vmem:[%s1 + $0x68] sm:$0xf]
  %v54 = vld [vmem:[%s1 + $0x6c] sm:$0xf]
  %v55 = vld [vmem:[%s1 + $0x70] sm:$0xf]
  %v56 = vld [vmem:[%s1 + $0x74] sm:$0xf]
  %v57 = vld [vmem:[%s1 + $0x78] sm:$0xf]
  %v58 = vld [vmem:[%s1 + $0x7c] sm:$0xf]
  %v59 = vld [vmem:[%s1 + $0x80] sm:$0xf]
  %v60 = vld [vmem:[%s1 + $0x84] sm:$0xf]
  %v61 = vld [vmem:[%s1 + $0x88] sm:$0xf]
  %v62 = vld [vmem:[%s1 + $0x8c] sm:$0xf]
  %v67 = vunpack.c.l.b16 %v23
  %v68 = vunpack.c.h.b16 %v23
  %v69 = vunpack.c.l.b16 %v24
  %v70 = vunpack.c.l.b16 %v25
  %v71 = vunpack.c.h.b16 %v25
  %v72 = vunpack.c.l.b16 %v26
  %v73 = vpack.c.b16 %v70, %v67
  %v74 = vpack.c.b16 %v71, %v68
  %v75 = vpack.c.b16 %v72, %v69
  %v114 = vunpack.c.l.b16 %v27
  %v115 = vunpack.c.l.b16 %v28
  %v116 = vunpack.c.l.b16 %v29
  %v117 = vunpack.c.l.b16 %v30
  %v118 = vunpack.c.l.b16 %v31
  %v119 = vunpack.c.l.b16 %v32
  %v120 = vunpack.c.l.b16 %v33
  %v121 = vunpack.c.l.b16 %v34
  %v122 = vunpack.c.l.b16 %v35
  %v123 = vunpack.c.l.b16 %v36
  %v124 = vunpack.c.l.b16 %v37
  %v125 = vunpack.c.l.b16 %v38
  %v126 = vunpack.c.l.b16 %v39
  %v127 = vunpack.c.l.b16 %v40
  %v128 = vunpack.c.l.b16 %v41
  %v129 = vunpack.c.l.b16 %v42
  %v130 = vunpack.c.l.b16 %v43
  %v131 = vunpack.c.l.b16 %v44
  %v132 = vunpack.c.l.b16 %v45
  %v133 = vunpack.c.l.b16 %v46
  %v134 = vunpack.c.l.b16 %v47
  %v135 = vunpack.c.l.b16 %v48
  %v136 = vunpack.c.l.b16 %v49
  %v137 = vunpack.c.l.b16 %v50
  %v138 = vunpack.c.l.b16 %v51
  %v139 = vunpack.c.l.b16 %v52
  %v140 = vunpack.c.l.b16 %v53
  %v141 = vunpack.c.l.b16 %v54
  %v142 = vunpack.c.l.b16 %v55
  %v143 = vunpack.c.l.b16 %v56
  %v144 = vunpack.c.l.b16 %v57
  %v145 = vunpack.c.l.b16 %v58
  %v146 = vunpack.c.l.b16 %v59
  %v147 = vunpack.c.l.b16 %v60
  %v148 = vunpack.c.l.b16 %v61
  %v149 = vunpack.c.l.b16 %v62
  %v150 = vpack.c.b16 %v115, %v114
  %v151 = vpack.c.b16 %v117, %v116
  %v152 = vpack.c.b16 %v119, %v118
  %v153 = vpack.c.b16 %v121, %v120
  %v154 = vpack.c.b16 %v123, %v122
  %v155 = vpack.c.b16 %v125, %v124
  %v156 = vpack.c.b16 %v127, %v126
  %v157 = vpack.c.b16 %v129, %v128
  %v158 = vpack.c.b16 %v131, %v130
  %v159 = vpack.c.b16 %v133, %v132
  %v160 = vpack.c.b16 %v135, %v134
  %v161 = vpack.c.b16 %v137, %v136
  %v162 = vpack.c.b16 %v139, %v138
  %v163 = vpack.c.b16 %v141, %v140
  %v164 = vpack.c.b16 %v143, %v142
  %v165 = vpack.c.b16 %v145, %v144
  %v166 = vpack.c.b16 %v147, %v146
  %v167 = vpack.c.b16 %v149, %v148
  %vm186 = vcmask 261120
  %v188 = vsel %vm186, %v75, 0
  %190 = vmatprep.subr.bf16.mxu0 0
  %191 = vmatpush1.bf16.msra.mxu0 %v150
  %192 = vmatprep.subr.bf16.mxu0 0
  %193 = vmatpush1.bf16.msra.mxu0 %v151
  %194 = vmatprep.subr.bf16.mxu0 0
  %195 = vmatpush1.bf16.msra.mxu0 %v152
  %196 = vmatprep.subr.bf16.mxu0 0
  %197 = vmatpush1.bf16.msra.mxu0 %v153
  %198 = vmatprep.subr.bf16.mxu0 0
  %199 = vmatpush1.bf16.msra.mxu0 %v154
  %200 = vmatprep.subr.bf16.mxu0 0
  %201 = vmatpush1.bf16.msra.mxu0 %v155
  %202 = vmatprep.subr.bf16.mxu0 0
  %203 = vmatpush1.bf16.msra.mxu0 %v156
  %204 = vmatprep.subr.bf16.mxu0 0
  %205 = vmatpush1.bf16.msra.mxu0 %v157
  %206 = vmatprep.subr.bf16.mxu0 0
  %207 = vmatpush1.bf16.msra.mxu0 %v158
  %208 = vmatprep.subr.bf16.mxu0 0
  %209 = vmatpush1.bf16.msra.mxu0 %v159
  %210 = vmatprep.subr.bf16.mxu0 0
  %211 = vmatpush1.bf16.msra.mxu0 %v160
  %212 = vmatprep.subr.bf16.mxu0 0
  %213 = vmatpush1.bf16.msra.mxu0 %v161
  %214 = vmatprep.subr.bf16.mxu0 0
  %215 = vmatpush1.bf16.msra.mxu0 %v162
  %216 = vmatprep.subr.bf16.mxu0 0
  %217 = vmatpush1.bf16.msra.mxu0 %v163
  %218 = vmatprep.subr.bf16.mxu0 0
  %219 = vmatpush1.bf16.msra.mxu0 %v164
  %220 = vmatprep.subr.bf16.mxu0 0
  %221 = vmatpush1.bf16.msra.mxu0 %v165
  %222 = vmatprep.mubr.bf16.mxu0 %v74
  %223 = vmatmul.mubr.bf16.gmra.mrb[0].mxu0 %v73
  %v224 = vpop.f32.mrb[0].mxu0
  %v225 = vadd.f32 0.0, %v224
  %v226 = vpop.f32.mrb[0].mxu0
  %v227 = vpop.f32.mrb[0].mxu0
  %v228 = vadd.f32 0.0, %v227
  %v229 = vpop.f32.mrb[0].mxu0
  %230 = vdwg.mxu0
  %231 = vmatprep.subr.bf16.mxu0 0
  %232 = vmatpush1.bf16.msra.mxu0 %v166
  %233 = vmatprep.subr.bf16.mxu0 0
  %234 = vmatpush1.bf16.msra.mxu0 %v167
  %235 = vmatprep.subr.bf16.mxu0 0
  %236 = vmatpush1.bf16.msra.mxu0 0
  %237 = vmatprep.subr.bf16.mxu0 0
  %238 = vmatpush1.bf16.msra.mxu0 0
  %239 = vmatprep.subr.bf16.mxu0 0
  %240 = vmatpush1.bf16.msra.mxu0 0
  %241 = vmatprep.subr.bf16.mxu0 0
  %242 = vmatpush1.bf16.msra.mxu0 0
  %243 = vmatprep.subr.bf16.mxu0 0
  %244 = vmatpush1.bf16.msra.mxu0 0
  %245 = vmatprep.subr.bf16.mxu0 0
  %246 = vmatpush1.bf16.msra.mxu0 0
  %247 = vmatprep.subr.bf16.mxu0 0
  %248 = vmatpush1.bf16.msra.mxu0 0
  %249 = vmatprep.subr.bf16.mxu0 0
  %250 = vmatpush1.bf16.msra.mxu0 0
  %251 = vmatprep.subr.bf16.mxu0 0
  %252 = vmatpush1.bf16.msra.mxu0 0
  %253 = vmatprep.subr.bf16.mxu0 0
  %254 = vmatpush1.bf16.msra.mxu0 0
  %255 = vmatprep.subr.bf16.mxu0 0
  %256 = vmatpush1.bf16.msra.mxu0 0
  %257 = vmatprep.subr.bf16.mxu0 0
  %258 = vmatpush1.bf16.msra.mxu0 0
  %259 = vmatprep.subr.bf16.mxu0 0
  %260 = vmatpush1.bf16.msra.mxu0 0
  %261 = vmatprep.subr.bf16.mxu0 0
  %262 = vmatpush1.bf16.msra.mxu0 0
  %263 = vmatprep.mubr.bf16.mxu0 0
  %264 = vmatmul.mubr.bf16.gmra.mrb[0].mxu0 %v188
  %v265 = vpop.f32.mrb[0].mxu0
  %v266 = vadd.f32 %v225, %v265
  %v267 = vpop.f32.mrb[0].mxu0
  %v268 = vpop.f32.mrb[0].mxu0
  %v269 = vadd.f32 %v228, %v268
  %v270 = vpop.f32.mrb[0].mxu0
  %271 = vdwg.mxu0
  %v272 = vadd.f32 %v21, %v266
  %v273 = vadd.f32 %v22, %v269
  %274 = vst [vmem:[#allocation2] sm:$0xff] %v272
  %275 = vst [vmem:[#allocation2 + $0x8] sm:$0xff] %v273
  // Predicated region
  $region18: #{_lambda_.31} parent=0 // pred_check
    %p276 = pneg %p15
  $region19: #{_lambda_.31} parent=0 // pred_check_branch
    %278 = sbr.rel (%p276) target = $region21
  $region20: #{_lambda_.31} parent=0 // pred_region
    %v279 = vld [vmem:[#allocation2] sm:$0xff]
    %v280 = vld [vmem:[#allocation2 + $0x8] sm:$0xff]
    %v281 = vld [vmem:[%s2] sm:$0x1]
    %v283 = vlaneseq
    %v284 = vshrl.u32 %v283, 7
    %v285 = vsub.s32 0, %v284
    %v286 = vrot.slane %v281, %v285
    %v288 = vadd.f32 %v279, %v286
    %v289 = vadd.f32 %v280, %v286
    %v290 = vmax.f32 %v288, 0.0
    %v291 = vmax.f32 %v289, 0.0
    %v292 = vpack.c.bf16 %v291, %v290
    %v294 = vunpack.c.l.b16 %v292
    %v295 = vunpack.c.h.b16 %v292
    %v296 = vpack.c.b16 %v294, %v294
    %v297 = vpack.c.b16 %v295, %v295
    %300 = vst [vmem:[%s3] sm:$0xf] %v296
    %301 = vst [vmem:[%s3 + $0x4] sm:$0xf] %v297
  $region21: #{_lambda_.31} parent=0 // pred_fallthru
    _
  // Predicated region
  $region22: #{_lambda_.31} parent=0 // pred_check
    _
  $region23: #{_lambda_.31} parent=0 // pred_check_branch
    %303 = sbr.rel (0) target = $region25
  $region24: #{_lambda_.31} parent=0 // pred_region
    _
  $region25: #{_lambda_.31} parent=0 // pred_fallthru
    _
  // Predicated region
  $region26: #{_lambda_.31} parent=0 // pred_check
    _
  $region27: #{_lambda_.31} parent=0 // pred_check_branch
    %305 = sbr.rel (0) target = $region29
  $region28: #{_lambda_.31} parent=0 // pred_region
    _
  $region29: #{_lambda_.31} parent=0 // pred_fallthru
    _

// kernel: _lambda_.33
$region0: #{_lambda_.33}
  #allocation0 [shape = 'u32[]', space=smem, size = 0x4, offset = 0x4, fixed_abs, tag = 'smem constant byte address 0x4 - core index']
  #allocation1 [shape = 'u32[144,128]{1,0:T(1,128)}', space=vmem, size = 0x12000, scoped, tag = 'internal scratch']
  #allocation2 [shape = 'f32[16,128]{1,0:T(8,128)}', space=vmem, size = 0x2000, scoped, tag = 'scratch operand']
  %s0 = inlined_call_operand.vmem [shape: bf16[16,32], index: 0, kind: input, shape index: {}]
  %s1 = inlined_call_operand.vmem [shape: bf16[32,128], index: 1, kind: input, shape index: {}]
  %s2 = inlined_call_operand.vmem [shape: f32[1,128], index: 2, kind: input, shape index: {}]
  %s3 = inlined_call_operand.vmem [shape: bf16[16,128], index: 3, kind: input, shape index: {}]
  %s4 = inlined_call_operand.vmem [shape: bf16[16,128], index: 4, kind: output, shape index: {}]
  %s5 = sld [smem:[#allocation0]]
  $region34: #{_lambda_.33} parent=0
    _
  %s7 = ssub.s32 1, %s5
  %s8 = scalar_select 0, %s7, %s5
  // Predicated region
  $region2: #{_lambda_.33} parent=0 // pred_check
    _
  $region3: #{_lambda_.33} parent=0 // pred_check_branch
    %10 = sbr.rel (0) target = $region5
  $region4: #{_lambda_.33} parent=0 // pred_region
    _
  $region5: #{_lambda_.33} parent=0 // pred_fallthru
    _
  // Predicated region
  $region6: #{_lambda_.33} parent=0 // pred_check
    _
  $region7: #{_lambda_.33} parent=0 // pred_check_branch
    %12 = sbr.rel (0) target = $region9
  $region8: #{_lambda_.33} parent=0 // pred_region
    _
  $region9: #{_lambda_.33} parent=0 // pred_fallthru
    _
  // Predicated region
  $region10: #{_lambda_.33} parent=0 // pred_check
    _
  $region11: #{_lambda_.33} parent=0 // pred_check_branch
    %14 = sbr.rel (0) target = $region13
  $region12: #{_lambda_.33} parent=0 // pred_region
    _
  $region13: #{_lambda_.33} parent=0 // pred_fallthru
    _
  // Predicated region
  $region14: #{_lambda_.33} parent=0 // pred_check
    _
  $region15: #{_lambda_.33} parent=0 // pred_check_branch
    %16 = sbr.rel (0) target = $region17
  $region16: #{_lambda_.33} parent=0 // pred_region
    _
  $region17: #{_lambda_.33} parent=0 // pred_fallthru
    _
  %p18 = scmp.eq.s32.totalorder 0, 0
  // Predicated region
  $region18: #{_lambda_.33} parent=0 // pred_check
    %p19 = pneg %p18
  $region19: #{_lambda_.33} parent=0 // pred_check_branch
    %21 = sbr.rel (%p19) target = $region21
  $region20: #{_lambda_.33} parent=0 // pred_region
    %22 = vst [vmem:[#allocation2] sm:$0xff] 0.0
    %23 = vst [vmem:[#allocation2 + $0x8] sm:$0xff] 0.0
  $region21: #{_lambda_.33} parent=0 // pred_fallthru
    _
  %v24 = vld [vmem:[#allocation2] sm:$0xff]
  %v25 = vld [vmem:[#allocation2 + $0x8] sm:$0xff]
  %v26 = vld [vmem:[%s0] sm:$0xf]
  %v27 = vld [vmem:[%s0 + $0x4] sm:$0xf]
  %v28 = vld [vmem:[%s1] sm:$0xf]
  %v29 = vld [vmem:[%s1 + $0x4] sm:$0xf]
  %v30 = vld [vmem:[%s1 + $0x8] sm:$0xf]
  %v31 = vld [vmem:[%s1 + $0xc] sm:$0xf]
  %v34 = vunpack.c.l.b16 %v26
  %v35 = vunpack.c.l.b16 %v27
  %v36 = vpack.c.b16 %v35, %v34
  %v41 = vunpack.c.l.b16 %v28
  %v42 = vunpack.c.l.b16 %v29
  %v43 = vunpack.c.l.b16 %v30
  %v44 = vunpack.c.l.b16 %v31
  %v45 = vpack.c.b16 %v42, %v41
  %v46 = vpack.c.b16 %v44, %v43
  %vm49 = vcmask 261120
  %v51 = vsel %vm49, %v36, 0
  %53 = vmatprep.subr.bf16.mxu0 0
  %54 = vmatpush1.bf16.msra.mxu0 %v45
  %55 = vmatprep.subr.bf16.mxu0 0
  %56 = vmatpush1.bf16.msra.mxu0 %v46
  %57 = vmatprep.subr.bf16.mxu0 0
  %58 = vmatpush1.bf16.msra.mxu0 0
  %59 = vmatprep.subr.bf16.mxu0 0
  %60 = vmatpush1.bf16.msra.mxu0 0
  %61 = vmatprep.subr.bf16.mxu0 0
  %62 = vmatpush1.bf16.msra.mxu0 0
  %63 = vmatprep.subr.bf16.mxu0 0
  %64 = vmatpush1.bf16.msra.mxu0 0
  %65 = vmatprep.subr.bf16.mxu0 0
  %66 = vmatpush1.bf16.msra.mxu0 0
  %67 = vmatprep.subr.bf16.mxu0 0
  %68 = vmatpush1.bf16.msra.mxu0 0
  %69 = vmatprep.subr.bf16.mxu0 0
  %70 = vmatpush1.bf16.msra.mxu0 0
  %71 = vmatprep.subr.bf16.mxu0 0
  %72 = vmatpush1.bf16.msra.mxu0 0
  %73 = vmatprep.subr.bf16.mxu0 0
  %74 = vmatpush1.bf16.msra.mxu0 0
  %75 = vmatprep.subr.bf16.mxu0 0
  %76 = vmatpush1.bf16.msra.mxu0 0
  %77 = vmatprep.subr.bf16.mxu0 0
  %78 = vmatpush1.bf16.msra.mxu0 0
  %79 = vmatprep.subr.bf16.mxu0 0
  %80 = vmatpush1.bf16.msra.mxu0 0
  %81 = vmatprep.subr.bf16.mxu0 0
  %82 = vmatpush1.bf16.msra.mxu0 0
  %83 = vmatprep.subr.bf16.mxu0 0
  %84 = vmatpush1.bf16.msra.mxu0 0
  %85 = vmatprep.mubr.bf16.mxu0 0
  %86 = vmatmul.mubr.bf16.gmra.mrb[0].mxu0 %v51
  %v87 = vpop.f32.mrb[0].mxu0
  %v88 = vadd.f32 0.0, %v87
  %v89 = vpop.f32.mrb[0].mxu0
  %v90 = vpop.f32.mrb[0].mxu0
  %v91 = vadd.f32 0.0, %v90
  %v92 = vpop.f32.mrb[0].mxu0
  %93 = vdwg.mxu0
  %v94 = vadd.f32 %v24, %v88
  %v95 = vadd.f32 %v25, %v91
  %96 = vst [vmem:[#allocation2] sm:$0xff] %v94
  %97 = vst [vmem:[#allocation2 + $0x8] sm:$0xff] %v95
  // Predicated region
  $region22: #{_lambda_.33} parent=0 // pred_check
    %p98 = pneg %p18
  $region23: #{_lambda_.33} parent=0 // pred_check_branch
    %100 = sbr.rel (%p98) target = $region25
  $region24: #{_lambda_.33} parent=0 // pred_region
    %v101 = vld [vmem:[#allocation2] sm:$0xff]
    %v102 = vld [vmem:[#allocation2 + $0x8] sm:$0xff]
    %v103 = vld [vmem:[%s2] sm:$0x1]
    %v105 = vlaneseq
    %v106 = vshrl.u32 %v105, 7
    %v107 = vsub.s32 0, %v106
    %v108 = vrot.slane %v103, %v107
    %v110 = vadd.f32 %v101, %v108
    %v111 = vadd.f32 %v102, %v108
    %v112 = vld [vmem:[%s3] sm:$0xf]
    %v113 = vld [vmem:[%s3 + $0x4] sm:$0xf]
    %v114 = vunpack.c.l.bf16 %v112
    %v115 = vunpack.c.l.bf16 %v113
    %v116 = vadd.f32 %v110, %v114
    %v117 = vadd.f32 %v111, %v115
    %v118 = vmax.f32 %v116, 0.0
    %v119 = vmax.f32 %v117, 0.0
    %v120 = vpack.c.bf16 %v119, %v118
    %v122 = vunpack.c.l.b16 %v120
    %v123 = vunpack.c.h.b16 %v120
    %v124 = vpack.c.b16 %v122, %v122
    %v125 = vpack.c.b16 %v123, %v123
    %128 = vst [vmem:[%s4] sm:$0xf] %v124
    %129 = vst [vmem:[%s4 + $0x4] sm:$0xf] %v125
  $region25: #{_lambda_.33} parent=0 // pred_fallthru
    _
  // Predicated region
  $region26: #{_lambda_.33} parent=0 // pred_check
    _
  $region27: #{_lambda_.33} parent=0 // pred_check_branch
    %131 = sbr.rel (0) target = $region29
  $region28: #{_lambda_.33} parent=0 // pred_region
    _
  $region29: #{_lambda_.33} parent=0 // pred_fallthru
    _
  // Predicated region
  $region30: #{_lambda_.33} parent=0 // pred_check
    _
  $region31: #{_lambda_.33} parent=0 // pred_check_branch
    %133 = sbr.rel (0) target = $region33
  $region32: #{_lambda_.33} parent=0 // pred_region
    _
  $region33: #{_lambda_.33} parent=0 // pred_fallthru
    _

// kernel: _lambda_.34
$region0: #{_lambda_.34}
  #allocation0 [shape = 'u32[]', space=smem, size = 0x4, offset = 0x4, fixed_abs, tag = 'smem constant byte address 0x4 - core index']
  #allocation1 [shape = 'u32[144,128]{1,0:T(1,128)}', space=vmem, size = 0x12000, scoped, tag = 'internal scratch']
  #allocation2 [shape = 'f32[16,128]{1,0:T(8,128)}', space=vmem, size = 0x2000, scoped, tag = 'scratch operand']
  %s0 = inlined_call_operand.vmem [shape: bf16[16,128], index: 0, kind: input, shape index: {}]
  %s1 = inlined_call_operand.vmem [shape: bf16[128,128], index: 1, kind: input, shape index: {}]
  %s2 = inlined_call_operand.vmem [shape: f32[1,128], index: 2, kind: input, shape index: {}]
  %s3 = inlined_call_operand.vmem [shape: bf16[16,128], index: 3, kind: output, shape index: {}]
  %s4 = sld [smem:[#allocation0]]
  $region30: #{_lambda_.34} parent=0
    _
  %s6 = ssub.s32 1, %s4
  %s7 = scalar_select 0, %s6, %s4
  // Predicated region
  $region2: #{_lambda_.34} parent=0 // pred_check
    _
  $region3: #{_lambda_.34} parent=0 // pred_check_branch
    %9 = sbr.rel (0) target = $region5
  $region4: #{_lambda_.34} parent=0 // pred_region
    _
  $region5: #{_lambda_.34} parent=0 // pred_fallthru
    _
  // Predicated region
  $region6: #{_lambda_.34} parent=0 // pred_check
    _
  $region7: #{_lambda_.34} parent=0 // pred_check_branch
    %11 = sbr.rel (0) target = $region9
  $region8: #{_lambda_.34} parent=0 // pred_region
    _
  $region9: #{_lambda_.34} parent=0 // pred_fallthru
    _
  // Predicated region
  $region10: #{_lambda_.34} parent=0 // pred_check
    _
  $region11: #{_lambda_.34} parent=0 // pred_check_branch
    %13 = sbr.rel (0) target = $region13
  $region12: #{_lambda_.34} parent=0 // pred_region
    _
  $region13: #{_lambda_.34} parent=0 // pred_fallthru
    _
  %p15 = scmp.eq.s32.totalorder 0, 0
  // Predicated region
  $region14: #{_lambda_.34} parent=0 // pred_check
    %p16 = pneg %p15
  $region15: #{_lambda_.34} parent=0 // pred_check_branch
    %18 = sbr.rel (%p16) target = $region17
  $region16: #{_lambda_.34} parent=0 // pred_region
    %19 = vst [vmem:[#allocation2] sm:$0xff] 0.0
    %20 = vst [vmem:[#allocation2 + $0x8] sm:$0xff] 0.0
  $region17: #{_lambda_.34} parent=0 // pred_fallthru
    _
  %v21 = vld [vmem:[#allocation2] sm:$0xff]
  %v22 = vld [vmem:[#allocation2 + $0x8] sm:$0xff]
  %v23 = vld [vmem:[%s0] sm:$0xf]
  %v24 = vld [vmem:[%s0 + $0x4] sm:$0xf]
  %v25 = vld [vmem:[%s1] sm:$0xf]
  %v26 = vld [vmem:[%s1 + $0x4] sm:$0xf]
  %v27 = vld [vmem:[%s1 + $0x8] sm:$0xf]
  %v28 = vld [vmem:[%s1 + $0xc] sm:$0xf]
  %v29 = vld [vmem:[%s1 + $0x10] sm:$0xf]
  %v30 = vld [vmem:[%s1 + $0x14] sm:$0xf]
  %v31 = vld [vmem:[%s1 + $0x18] sm:$0xf]
  %v32 = vld [vmem:[%s1 + $0x1c] sm:$0xf]
  %v33 = vld [vmem:[%s1 + $0x20] sm:$0xf]
  %v34 = vld [vmem:[%s1 + $0x24] sm:$0xf]
  %v35 = vld [vmem:[%s1 + $0x28] sm:$0xf]
  %v36 = vld [vmem:[%s1 + $0x2c] sm:$0xf]
  %v37 = vld [vmem:[%s1 + $0x30] sm:$0xf]
  %v38 = vld [vmem:[%s1 + $0x34] sm:$0xf]
  %v39 = vld [vmem:[%s1 + $0x38] sm:$0xf]
  %v40 = vld [vmem:[%s1 + $0x3c] sm:$0xf]
  %v43 = vunpack.c.l.b16 %v23
  %v44 = vunpack.c.l.b16 %v24
  %v45 = vpack.c.b16 %v44, %v43
  %v63 = vunpack.c.l.b16 %v25
  %v64 = vunpack.c.l.b16 %v26
  %v65 = vunpack.c.l.b16 %v27
  %v66 = vunpack.c.l.b16 %v28
  %v67 = vunpack.c.l.b16 %v29
  %v68 = vunpack.c.l.b16 %v30
  %v69 = vunpack.c.l.b16 %v31
  %v70 = vunpack.c.l.b16 %v32
  %v71 = vunpack.c.l.b16 %v33
  %v72 = vunpack.c.l.b16 %v34
  %v73 = vunpack.c.l.b16 %v35
  %v74 = vunpack.c.l.b16 %v36
  %v75 = vunpack.c.l.b16 %v37
  %v76 = vunpack.c.l.b16 %v38
  %v77 = vunpack.c.l.b16 %v39
  %v78 = vunpack.c.l.b16 %v40
  %v79 = vpack.c.b16 %v64, %v63
  %v80 = vpack.c.b16 %v66, %v65
  %v81 = vpack.c.b16 %v68, %v67
  %v82 = vpack.c.b16 %v70, %v69
  %v83 = vpack.c.b16 %v72, %v71
  %v84 = vpack.c.b16 %v74, %v73
  %v85 = vpack.c.b16 %v76, %v75
  %v86 = vpack.c.b16 %v78, %v77
  %95 = vmatprep.subr.bf16.mxu0 0
  %96 = vmatpush1.bf16.msra.mxu0 %v79
  %97 = vmatprep.subr.bf16.mxu0 0
  %98 = vmatpush1.bf16.msra.mxu0 %v80
  %99 = vmatprep.subr.bf16.mxu0 0
  %100 = vmatpush1.bf16.msra.mxu0 %v81
  %101 = vmatprep.subr.bf16.mxu0 0
  %102 = vmatpush1.bf16.msra.mxu0 %v82
  %103 = vmatprep.subr.bf16.mxu0 0
  %104 = vmatpush1.bf16.msra.mxu0 %v83
  %105 = vmatprep.subr.bf16.mxu0 0
  %106 = vmatpush1.bf16.msra.mxu0 %v84
  %107 = vmatprep.subr.bf16.mxu0 0
  %108 = vmatpush1.bf16.msra.mxu0 %v85
  %109 = vmatprep.subr.bf16.mxu0 0
  %110 = vmatpush1.bf16.msra.mxu0 %v86
  %111 = vmatprep.subr.bf16.mxu0 0
  %112 = vmatpush1.bf16.msra.mxu0 0
  %113 = vmatprep.subr.bf16.mxu0 0
  %114 = vmatpush1.bf16.msra.mxu0 0
  %115 = vmatprep.subr.bf16.mxu0 0
  %116 = vmatpush1.bf16.msra.mxu0 0
  %117 = vmatprep.subr.bf16.mxu0 0
  %118 = vmatpush1.bf16.msra.mxu0 0
  %119 = vmatprep.subr.bf16.mxu0 0
  %120 = vmatpush1.bf16.msra.mxu0 0
  %121 = vmatprep.subr.bf16.mxu0 0
  %122 = vmatpush1.bf16.msra.mxu0 0
  %123 = vmatprep.subr.bf16.mxu0 0
  %124 = vmatpush1.bf16.msra.mxu0 0
  %125 = vmatprep.subr.bf16.mxu0 0
  %126 = vmatpush1.bf16.msra.mxu0 0
  %127 = vmatprep.mubr.bf16.mxu0 0
  %128 = vmatmul.mubr.bf16.gmra.mrb[0].mxu0 %v45
  %v129 = vpop.f32.mrb[0].mxu0
  %v130 = vadd.f32 0.0, %v129
  %v131 = vpop.f32.mrb[0].mxu0
  %v132 = vpop.f32.mrb[0].mxu0
  %v133 = vadd.f32 0.0, %v132
  %v134 = vpop.f32.mrb[0].mxu0
  %135 = vdwg.mxu0
  %v136 = vadd.f32 %v21, %v130
  %v137 = vadd.f32 %v22, %v133
  %138 = vst [vmem:[#allocation2] sm:$0xff] %v136
  %139 = vst [vmem:[#allocation2 + $0x8] sm:$0xff] %v137
  // Predicated region
  $region18: #{_lambda_.34} parent=0 // pred_check
    %p140 = pneg %p15
  $region19: #{_lambda_.34} parent=0 // pred_check_branch
    %142 = sbr.rel (%p140) target = $region21
  $region20: #{_lambda_.34} parent=0 // pred_region
    %v143 = vld [vmem:[#allocation2] sm:$0xff]
    %v144 = vld [vmem:[#allocation2 + $0x8] sm:$0xff]
    %v145 = vld [vmem:[%s2] sm:$0x1]
    %v147 = vlaneseq
    %v148 = vshrl.u32 %v147, 7
    %v149 = vsub.s32 0, %v148
    %v150 = vrot.slane %v145, %v149
    %v152 = vadd.f32 %v143, %v150
    %v153 = vadd.f32 %v144, %v150
    %v154 = vmax.f32 %v152, 0.0
    %v155 = vmax.f32 %v153, 0.0
    %v156 = vpack.c.bf16 %v155, %v154
    %v158 = vunpack.c.l.b16 %v156
    %v159 = vunpack.c.h.b16 %v156
    %v160 = vpack.c.b16 %v158, %v158
    %v161 = vpack.c.b16 %v159, %v159
    %164 = vst [vmem:[%s3] sm:$0xf] %v160
    %165 = vst [vmem:[%s3 + $0x4] sm:$0xf] %v161
  $region21: #{_lambda_.34} parent=0 // pred_fallthru
    _
  // Predicated region
  $region22: #{_lambda_.34} parent=0 // pred_check
    _
  $region23: #{_lambda_.34} parent=0 // pred_check_branch
    %167 = sbr.rel (0) target = $region25
  $region24: #{_lambda_.34} parent=0 // pred_region
    _
  $region25: #{_lambda_.34} parent=0 // pred_fallthru
    _
  // Predicated region
  $region26: #{_lambda_.34} parent=0 // pred_check
    _
  $region27: #{_lambda_.34} parent=0 // pred_check_branch
    %169 = sbr.rel (0) target = $region29
  $region28: #{_lambda_.34} parent=0 // pred_region
    _
  $region29: #{_lambda_.34} parent=0 // pred_fallthru
    _

// kernel: _lambda_.36
$region0: #{_lambda_.36}
  #allocation0 [shape = 'u32[]', space=smem, size = 0x4, offset = 0x4, fixed_abs, tag = 'smem constant byte address 0x4 - core index']
  #allocation1 [shape = 'u32[144,128]{1,0:T(1,128)}', space=vmem, size = 0x12000, scoped, tag = 'internal scratch']
  #allocation2 [shape = 'f32[16,128]{1,0:T(8,128)}', space=vmem, size = 0x2000, scoped, tag = 'scratch operand']
  %s0 = inlined_call_operand.vmem [shape: bf16[16,128], index: 0, kind: input, shape index: {}]
  %s1 = inlined_call_operand.vmem [shape: bf16[128,256], index: 1, kind: input, shape index: {}]
  %s2 = inlined_call_operand.vmem [shape: f32[1,256], index: 2, kind: input, shape index: {}]
  %s3 = inlined_call_operand.vmem [shape: bf16[16,256], index: 3, kind: output, shape index: {}]
  %s4 = sld [smem:[#allocation0]]
  $region131: #{_lambda_.36} parent=0
    _
  %s6 = ssub.s32 1, %s4
  %s7 = scalar_select 0, %s6, %s4
  $region1: #{_lambda_.36} parent=0
    #allocation3 [shape = 'u8[65536]{0}', space=vmem, size = 0x10000, scoped, tag = 'input window, operand 1']
    #allocation4 [shape = 'u8[8192]{0}', space=vmem, size = 0x2000, scoped, tag = 'output window, operand 0']
    loop: start=0, step=1, limit=4
    $region2: #{_lambda_.36} parent=1 // loop_pre_header
      _
    $region3: #{_lambda_.36} parent=1 // loop_header
      %s9 = sphi 0, %s13
      %p10 = scmp.ge.s32.totalorder %s9, 4
      %s16 = sphi 0, %s35
      %s17 = sphi 0, %s31
      %s18 = sphi 0, %s27
      %s19 = sphi 0, %s16
      %s20 = sphi 0, %s17
      %s21 = sphi 0, %s18
      %s22 = sphi 0, %s19
      %s23 = sphi 0, %s20
      %s24 = sphi 0, %s21
      %s40 = sphi 0, %s42
      %s43 = sphi 0, %s40
      %s44 = sphi 0, %s43
      %s60 = sphi 0, %s44
      %s68 = sphi 0, %s70
      %s71 = sphi 0, %s68
      %s72 = sphi 0, %s71
      %s88 = sphi 0, %s72
      %s94 = sphi 0, %s96
      %s97 = sphi 0, %s94
      %s98 = sphi 0, %s97
      %s114 = sphi 0, %s98
      %s122 = sphi 0, %s124
      %s125 = sphi 0, %s122
      %s126 = sphi 0, %s125
      %s142 = sphi 0, %s126
    $region4: #{_lambda_.36} parent=1 // loop_header_branch
      %12 = sbr.rel (%p10) target = $region8
    $region5: #{_lambda_.36} parent=1 // loop_body
      %s14 = ssub.s32 %s9, 1
      %s15 = ssub.s32 %s9, 2
      %s25 = sadd.s32 1, %s18
      %p26 = scmp.ge.s32.totalorder %s25, 1
      %s27 = scalar_select %p26, 0, %s25
      %s28 = sadd.s32 1, %s17
      %s29 = scalar_select %p26, %s28, %s17
      %p30 = scmp.ge.s32.totalorder %s29, 2
      %s31 = scalar_select %p30, 0, %s29
      %s32 = sadd.s32 1, %s16
      %s33 = scalar_select %p30, %s32, %s16
      %p34 = scmp.ge.s32.totalorder %s33, 1
      %s35 = scalar_select %p34, 0, %s33
      %s36 = ssub.s32 %s16, %s35
      %s37 = ssub.s32 %s18, %s27
      %s38 = sor.u32 %s36, %s37
      %p39 = scmp.eq.s32.totalorder %s38, 0
      %s41 = sadd.s32 %s40, 1
      %s42 = scalar_select %p39, %s40, %s41
      %p45 = pneg %p39
      %p46 = scmp.eq.s32.totalorder %s9, 1
      %p47 = por %p45, %p46
      %p48 = scmp.ne.s32.totalorder %s40, %s43
      %p49 = scmp.eq.s32.totalorder %s9, 0
      %p50 = por %p48, %p49
      %p51 = scmp.ne.s32.totalorder %s40, %s43
      %p52 = scmp.eq.s32.totalorder %s14, 1
      %p53 = por %p51, %p52
      %p54 = scmp.ne.s32.totalorder %s43, %s44
      %p55 = scmp.eq.s32.totalorder %s14, 0
      %p56 = por %p54, %p55
      %p57 = scmp.ne.s32.totalorder %s43, %s44
      %p58 = scmp.eq.s32.totalorder %s15, 1
      %p59 = por %p57, %p58
      %p61 = scmp.ne.s32.totalorder %s44, %s60
      %p62 = scmp.eq.s32.totalorder %s15, 0
      %p63 = por %p61, %p62
      %s64 = ssub.s32 %s18, %s27
      %s65 = ssub.s32 %s17, %s31
      %s66 = sor.u32 %s64, %s65
      %p67 = scmp.eq.s32.totalorder %s66, 0
      %s69 = sadd.s32 %s68, 1
      %s70 = scalar_select %p67, %s68, %s69
      %p73 = pneg %p67
      %p74 = scmp.eq.s32.totalorder %s9, 1
      %p75 = por %p73, %p74
      %p76 = scmp.ne.s32.totalorder %s68, %s71
      %p77 = scmp.eq.s32.totalorder %s9, 0
      %p78 = por %p76, %p77
      %p79 = scmp.ne.s32.totalorder %s68, %s71
      %p80 = scmp.eq.s32.totalorder %s14, 1
      %p81 = por %p79, %p80
      %p82 = scmp.ne.s32.totalorder %s71, %s72
      %p83 = scmp.eq.s32.totalorder %s14, 0
      %p84 = por %p82, %p83
      %p85 = scmp.ne.s32.totalorder %s71, %s72
      %p86 = scmp.eq.s32.totalorder %s15, 1
      %p87 = por %p85, %p86
      %p89 = scmp.ne.s32.totalorder %s72, %s88
      %p90 = scmp.eq.s32.totalorder %s15, 0
      %p91 = por %p89, %p90
      %s92 = ssub.s32 %s17, %s31
      %p93 = scmp.eq.s32.totalorder %s92, 0
      %s95 = sadd.s32 %s94, 1
      %s96 = scalar_select %p93, %s94, %s95
      %p99 = pneg %p93
      %p100 = scmp.eq.s32.totalorder %s9, 1
      %p101 = por %p99, %p100
      %p102 = scmp.ne.s32.totalorder %s94, %s97
      %p103 = scmp.eq.s32.totalorder %s9, 0
      %p104 = por %p102, %p103
      %p105 = scmp.ne.s32.totalorder %s94, %s97
      %p106 = scmp.eq.s32.totalorder %s14, 1
      %p107 = por %p105, %p106
      %p108 = scmp.ne.s32.totalorder %s97, %s98
      %p109 = scmp.eq.s32.totalorder %s14, 0
      %p110 = por %p108, %p109
      %p111 = scmp.ne.s32.totalorder %s97, %s98
      %p112 = scmp.eq.s32.totalorder %s15, 1
      %p113 = por %p111, %p112
      %p115 = scmp.ne.s32.totalorder %s98, %s114
      %p116 = scmp.eq.s32.totalorder %s15, 0
      %p117 = por %p115, %p116
      %s118 = ssub.s32 %s16, %s35
      %s119 = ssub.s32 %s17, %s31
      %s120 = sor.u32 %s118, %s119
      %p121 = scmp.eq.s32.totalorder %s120, 0
      %s123 = sadd.s32 %s122, 1
      %s124 = scalar_select %p121, %s122, %s123
      %p127 = pneg %p121
      %p128 = scmp.eq.s32.totalorder %s9, 1
      %p129 = por %p127, %p128
      %p130 = scmp.ne.s32.totalorder %s122, %s125
      %p131 = scmp.eq.s32.totalorder %s9, 0
      %p132 = por %p130, %p131
      %p133 = scmp.ne.s32.totalorder %s122, %s125
      %p134 = scmp.eq.s32.totalorder %s14, 1
      %p135 = por %p133, %p134
      %p136 = scmp.ne.s32.totalorder %s125, %s126
      %p137 = scmp.eq.s32.totalorder %s14, 0
      %p138 = por %p136, %p137
      %p139 = scmp.ne.s32.totalorder %s125, %s126
      %p140 = scmp.eq.s32.totalorder %s15, 1
      %p141 = por %p139, %p140
      %p143 = scmp.ne.s32.totalorder %s126, %s142
      %p144 = scmp.eq.s32.totalorder %s15, 0
      %p145 = por %p143, %p144
      %p146 = scmp.le.s32.totalorder 1, %s9
      %p147 = scmp.lt.s32.totalorder %s9, 3
      %p148 = pnand %p146, %p147
      %p149 = pneg %p148
      // Predicated region
      $region9: #{_lambda_.36} parent=5 // pred_check
        _
      $region10: #{_lambda_.36} parent=5 // pred_check_branch
        %151 = sbr.rel (%p148) target = $region12
      $region11: #{_lambda_.36} parent=5 // pred_region
        %s152 = ssub.s32 %s9, 1
        // Predicated region
        $region13: #{_lambda_.36} parent=11 // pred_check
          %p153 = pneg %p56
        $region14: #{_lambda_.36} parent=11 // pred_check_branch
          %155 = sbr.rel (%p153) target = $region16
        $region15: #{_lambda_.36} parent=11 // pred_region
          %s156 = smul.u32 2, %s19
          %p157 = scmp.lt.s32.totalorder %s156, 1
          %s158 = scalar_select %p157, %s156, 1
          %p159 = scmp.lt.s32.totalorder %s21, 0
          %s160 = scalar_select %p159, %s21, 0
          %s161 = sadd.s32 %s160, %s158
          %s162 = smul.addr %s161, 4
          %s163 = scalar_lea.vmem %s0, %s162
          %s164 = smul.u32 2, %s19
        $region16: #{_lambda_.36} parent=11 // pred_fallthru
          _
      $region12: #{_lambda_.36} parent=5 // pred_fallthru
        _
      %p165 = scmp.lt.s32.totalorder %s9, 2
      // Predicated region
      $region17: #{_lambda_.36} parent=5 // pred_check
        %p166 = pneg %p165
      $region18: #{_lambda_.36} parent=5 // pred_check_branch
        %168 = sbr.rel (%p166) target = $region20
      $region19: #{_lambda_.36} parent=5 // pred_region
        // Predicated region
        $region21: #{_lambda_.36} parent=19 // pred_check
          %p169 = pneg %p78
        $region22: #{_lambda_.36} parent=19 // pred_check_branch
          %171 = sbr.rel (%p169) target = $region24
        $region23: #{_lambda_.36} parent=19 // pred_region
          %s172 = sand.u32 %s68, 1
          %s173 = sand.u32 %s68, 1
          %s174 = smul.addr %s173, 64
          %s175 = scalar_lea.vmem [#allocation3], %s174
          %s176 = smul.u32 16, %s18
          %s177 = smul.addr %s176, 2
          %s178 = sadd.s32 %s17, %s177
          %s179 = smul.addr %s178, 4
          %s180 = scalar_lea.vmem %s1, %s179
          // Predicated region
          $region25: #{_lambda_.36} parent=23 // pred_check
            _
          $region26: #{_lambda_.36} parent=23 // pred_check_branch
            %182 = sbr.rel (0) target = $region28
          $region27: #{_lambda_.36} parent=23 // pred_region
            // Predicated region
            $region29: #{_lambda_.36} parent=27 // pred_check
              _
            $region30: #{_lambda_.36} parent=27 // pred_check_branch
              %184 = sbr.rel target = $region32
            $region31: #{_lambda_.36} parent=27 // pred_region
              // Predicated region
              $region44: #{_lambda_.36} parent=31 // pred_check
                _
              $region45: #{_lambda_.36} parent=31 // pred_check_branch
                %229 = sbr.rel (0) target = $region47
              $region46: #{_lambda_.36} parent=31 // pred_region
                loop: start=0, step=1, limit=1
                $region48: #{_lambda_.36} parent=46 // loop_pre_header
                  _
                $region49: #{_lambda_.36} parent=46 // loop_header
                  %s231 = sphi 0, %s235
                  %p232 = scmp.ge.s32.totalorder %s231, 1
                  %s236 = sphi %s180, %s180
                  %s237 = sphi %s175, %s175
                $region50: #{_lambda_.36} parent=46 // loop_header_branch
                  %234 = sbr.rel (%p232) target = $region54
                $region51: #{_lambda_.36} parent=46 // loop_body
                  _
                $region52: #{_lambda_.36} parent=46 // loop_footer
                  %s235 = sadd.s32 1, %s231
                $region53: #{_lambda_.36} parent=46 // loop_footer_branch
                  %230 = sbr.rel target = $region49
                $region54: #{_lambda_.36} parent=46 // loop_exit
                  _
                loop: start=0, step=1, limit=1
                $region55: #{_lambda_.36} parent=46 // loop_pre_header
                  _
                $region56: #{_lambda_.36} parent=46 // loop_header
                  %s240 = sphi 0, %s244
                  %p241 = scmp.ge.s32.totalorder %s240, 1
                  %s245 = sphi %s180, %s180
                  %s246 = sphi %s175, %s175
                $region57: #{_lambda_.36} parent=46 // loop_header_branch
                  %243 = sbr.rel (%p241) target = $region61
                $region58: #{_lambda_.36} parent=46 // loop_body
                  %v247 = vld [vmem:[%s245] sm:$0xf]
                  %248 = vst [vmem:[%s246] sm:$0xf] %v247
                  %v249 = vld [vmem:[%s245 + $0x8] sm:$0xf]
                  %250 = vst [vmem:[%s246 + $0x4] sm:$0xf] %v249
                  %v251 = vld [vmem:[%s245 + $0x10] sm:$0xf]
                  %252 = vst [vmem:[%s246 + $0x8] sm:$0xf] %v251
                  %v253 = vld [vmem:[%s245 + $0x18] sm:$0xf]
                  %254 = vst [vmem:[%s246 + $0xc] sm:$0xf] %v253
                  %v255 = vld [vmem:[%s245 + $0x20] sm:$0xf]
                  %256 = vst [vmem:[%s246 + $0x10] sm:$0xf] %v255
                  %v257 = vld [vmem:[%s245 + $0x28] sm:$0xf]
                  %258 = vst [vmem:[%s246 + $0x14] sm:$0xf] %v257
                  %v259 = vld [vmem:[%s245 + $0x30] sm:$0xf]
                  %260 = vst [vmem:[%s246 + $0x18] sm:$0xf] %v259
                  %v261 = vld [vmem:[%s245 + $0x38] sm:$0xf]
                  %262 = vst [vmem:[%s246 + $0x1c] sm:$0xf] %v261
                  %v263 = vld [vmem:[%s245 + $0x40] sm:$0xf]
                  %264 = vst [vmem:[%s246 + $0x20] sm:$0xf] %v263
                  %v265 = vld [vmem:[%s245 + $0x48] sm:$0xf]
                  %266 = vst [vmem:[%s246 + $0x24] sm:$0xf] %v265
                  %v267 = vld [vmem:[%s245 + $0x50] sm:$0xf]
                  %268 = vst [vmem:[%s246 + $0x28] sm:$0xf] %v267
                  %v269 = vld [vmem:[%s245 + $0x58] sm:$0xf]
                  %270 = vst [vmem:[%s246 + $0x2c] sm:$0xf] %v269
                  %v271 = vld [vmem:[%s245 + $0x60] sm:$0xf]
                  %272 = vst [vmem:[%s246 + $0x30] sm:$0xf] %v271
                  %v273 = vld [vmem:[%s245 + $0x68] sm:$0xf]
                  %274 = vst [vmem:[%s246 + $0x34] sm:$0xf] %v273
                  %v275 = vld [vmem:[%s245 + $0x70] sm:$0xf]
                  %276 = vst [vmem:[%s246 + $0x38] sm:$0xf] %v275
                  %v277 = vld [vmem:[%s245 + $0x78] sm:$0xf]
                  %278 = vst [vmem:[%s246 + $0x3c] sm:$0xf] %v277
                $region59: #{_lambda_.36} parent=46 // loop_footer
                  %s244 = sadd.s32 1, %s240
                $region60: #{_lambda_.36} parent=46 // loop_footer_branch
                  %239 = sbr.rel target = $region56
                $region61: #{_lambda_.36} parent=46 // loop_exit
                  _
              $region47: #{_lambda_.36} parent=31 // pred_fallthru
                _
            $region32: #{_lambda_.36} parent=27 // pred_fallthru
              _
            // Predicated region
            $region33: #{_lambda_.36} parent=27 // pred_check
              _
            $region34: #{_lambda_.36} parent=27 // pred_check_branch
              %186 = sbr.rel (0) target = $region36
            $region35: #{_lambda_.36} parent=27 // pred_region
              loop: start=0, step=1, limit=1
              $region37: #{_lambda_.36} parent=35 // loop_pre_header
                _
              $region38: #{_lambda_.36} parent=35 // loop_header
                %s189 = sphi 0, %s193
                %p190 = scmp.ge.s32.totalorder %s189, 1
                %s194 = sphi %s180, %s180
                %s195 = sphi %s175, %s175
              $region39: #{_lambda_.36} parent=35 // loop_header_branch
                %192 = sbr.rel (%p190) target = $region43
              $region40: #{_lambda_.36} parent=35 // loop_body
                %v196 = vld [vmem:[%s194] sm:$0xf]
                %197 = vst [vmem:[%s195] sm:$0xf] %v196
                %v198 = vld [vmem:[%s194 + $0x8] sm:$0xf]
                %199 = vst [vmem:[%s195 + $0x4] sm:$0xf] %v198
                %v200 = vld [vmem:[%s194 + $0x10] sm:$0xf]
                %201 = vst [vmem:[%s195 + $0x8] sm:$0xf] %v200
                %v202 = vld [vmem:[%s194 + $0x18] sm:$0xf]
                %203 = vst [vmem:[%s195 + $0xc] sm:$0xf] %v202
                %v204 = vld [vmem:[%s194 + $0x20] sm:$0xf]
                %205 = vst [vmem:[%s195 + $0x10] sm:$0xf] %v204
                %v206 = vld [vmem:[%s194 + $0x28] sm:$0xf]
                %207 = vst [vmem:[%s195 + $0x14] sm:$0xf] %v206
                %v208 = vld [vmem:[%s194 + $0x30] sm:$0xf]
                %209 = vst [vmem:[%s195 + $0x18] sm:$0xf] %v208
                %v210 = vld [vmem:[%s194 + $0x38] sm:$0xf]
                %211 = vst [vmem:[%s195 + $0x1c] sm:$0xf] %v210
                %v212 = vld [vmem:[%s194 + $0x40] sm:$0xf]
                %213 = vst [vmem:[%s195 + $0x20] sm:$0xf] %v212
                %v214 = vld [vmem:[%s194 + $0x48] sm:$0xf]
                %215 = vst [vmem:[%s195 + $0x24] sm:$0xf] %v214
                %v216 = vld [vmem:[%s194 + $0x50] sm:$0xf]
                %217 = vst [vmem:[%s195 + $0x28] sm:$0xf] %v216
                %v218 = vld [vmem:[%s194 + $0x58] sm:$0xf]
                %219 = vst [vmem:[%s195 + $0x2c] sm:$0xf] %v218
                %v220 = vld [vmem:[%s194 + $0x60] sm:$0xf]
                %221 = vst [vmem:[%s195 + $0x30] sm:$0xf] %v220
                %v222 = vld [vmem:[%s194 + $0x68] sm:$0xf]
                %223 = vst [vmem:[%s195 + $0x34] sm:$0xf] %v222
                %v224 = vld [vmem:[%s194 + $0x70] sm:$0xf]
                %225 = vst [vmem:[%s195 + $0x38] sm:$0xf] %v224
                %v226 = vld [vmem:[%s194 + $0x78] sm:$0xf]
                %227 = vst [vmem:[%s195 + $0x3c] sm:$0xf] %v226
              $region41: #{_lambda_.36} parent=35 // loop_footer
                %s193 = sadd.s32 1, %s189
              $region42: #{_lambda_.36} parent=35 // loop_footer_branch
                %188 = sbr.rel target = $region38
              $region43: #{_lambda_.36} parent=35 // loop_exit
                _
            $region36: #{_lambda_.36} parent=27 // pred_fallthru
              _
          $region28: #{_lambda_.36} parent=23 // pred_fallthru
            _
          %279 = vnop
        $region24: #{_lambda_.36} parent=19 // pred_fallthru
          _
        // Predicated region
        $region62: #{_lambda_.36} parent=19 // pred_check
          %p280 = pneg %p104
        $region63: #{_lambda_.36} parent=19 // pred_check_branch
          %282 = sbr.rel (%p280) target = $region65
        $region64: #{_lambda_.36} parent=19 // pred_region
          %p283 = scmp.lt.s32.totalorder %s17, 1
          %s284 = scalar_select %p283, %s17, 1
          %s285 = scalar_lea.vmem %s2, %s284
        $region65: #{_lambda_.36} parent=19 // pred_fallthru
          _
      $region20: #{_lambda_.36} parent=5 // pred_fallthru
        _
      %p286 = scmp.le.s32.totalorder 1, %s9
      %p287 = scmp.lt.s32.totalorder %s9, 3
      %p288 = pnand %p286, %p287
      %p289 = pneg %p288
      // Predicated region
      $region66: #{_lambda_.36} parent=5 // pred_check
        _
      $region67: #{_lambda_.36} parent=5 // pred_check_branch
        %291 = sbr.rel (%p288) target = $region69
      $region68: #{_lambda_.36} parent=5 // pred_region
        %s292 = ssub.s32 %s9, 1
        %s293 = sand.u32 %s71, 1
        %s294 = sand.u32 %s71, 1
        %s295 = smul.addr %s294, 64
        %s296 = scalar_lea.vmem [#allocation3], %s295
        // Predicated region
        $region70: #{_lambda_.36} parent=68 // pred_check
          %p297 = pneg %p84
        $region71: #{_lambda_.36} parent=68 // pred_check_branch
          %299 = sbr.rel (%p297) target = $region73
        $region72: #{_lambda_.36} parent=68 // pred_region
          _
        $region73: #{_lambda_.36} parent=68 // pred_fallthru
          _
        %s300 = smul.u32 2, %s19
        %p301 = scmp.lt.s32.totalorder %s300, 1
        %s302 = scalar_select %p301, %s300, 1
        %p303 = scmp.lt.s32.totalorder %s21, 0
        %s304 = scalar_select %p303, %s21, 0
        %s305 = sadd.s32 %s304, %s302
        %s306 = smul.addr %s305, 4
        %s307 = scalar_lea.vmem %s0, %s306
        %p308 = pneg %p56
        %p309 = pneg %p53
        %s310 = sand.u32 %s71, 1
        %s311 = sand.u32 %s71, 1
        %s312 = smul.addr %s311, 64
        %s313 = scalar_lea.vmem [#allocation3], %s312
        %p314 = pneg %p84
        %p315 = pneg %p81
        %p316 = scmp.lt.s32.totalorder %s20, 1
        %s317 = scalar_select %p316, %s20, 1
        %s318 = scalar_lea.vmem %s2, %s317
        %p319 = pneg %p110
        %p320 = pneg %p107
        %p321 = pneg %p138
        %p322 = pneg %p135
        %s323 = sand.u32 %s125, 1
        %s324 = sand.u32 %s125, 1
        %s325 = smul.addr %s324, 8
        %s326 = scalar_lea.vmem [#allocation4], %s325
        %s327 = smul.u32 2, %s19
        %p328 = scmp.lt.s32.totalorder %s327, 1
        %s329 = scalar_select %p328, %s327, 1
        %p330 = scmp.lt.s32.totalorder %s21, 0
        %s331 = scalar_select %p330, %s21, 0
        %s332 = sadd.s32 %s331, %s329
        %s333 = smul.addr %s332, 4
        %s334 = scalar_lea.vmem %s0, %s333
        %s335 = smul.u32 2, %s19
        %s336 = smul.u32 16, %s21
        %p337 = scmp.lt.s32.totalorder %s20, 1
        %s338 = scalar_select %p337, %s20, 1
        %s339 = scalar_lea.vmem %s2, %s338
        %s340 = smul.u32 2, %s19
        %p342 = scmp.eq.s32.totalorder %s21, 0
        // Predicated region
        $region74: #{_lambda_.36} parent=68 // pred_check
          %p343 = pneg %p342
        $region75: #{_lambda_.36} parent=68 // pred_check_branch
          %345 = sbr.rel (%p343) target = $region77
        $region76: #{_lambda_.36} parent=68 // pred_region
          %346 = vst [vmem:[#allocation2] sm:$0xff] 0.0
          %347 = vst [vmem:[#allocation2 + $0x8] sm:$0xff] 0.0
        $region77: #{_lambda_.36} parent=68 // pred_fallthru
          _
        %v348 = vld [vmem:[#allocation2] sm:$0xff]
        %v349 = vld [vmem:[#allocation2 + $0x8] sm:$0xff]
        %v350 = vld [vmem:[%s334] sm:$0xf]
        %v351 = vld [vmem:[%s334 + $0x4] sm:$0xf]
        %v352 = vld [vmem:[%s296] sm:$0xf]
        %v353 = vld [vmem:[%s296 + $0x4] sm:$0xf]
        %v354 = vld [vmem:[%s296 + $0x8] sm:$0xf]
        %v355 = vld [vmem:[%s296 + $0xc] sm:$0xf]
        %v356 = vld [vmem:[%s296 + $0x10] sm:$0xf]
        %v357 = vld [vmem:[%s296 + $0x14] sm:$0xf]
        %v358 = vld [vmem:[%s296 + $0x18] sm:$0xf]
        %v359 = vld [vmem:[%s296 + $0x1c] sm:$0xf]
        %v360 = vld [vmem:[%s296 + $0x20] sm:$0xf]
        %v361 = vld [vmem:[%s296 + $0x24] sm:$0xf]
        %v362 = vld [vmem:[%s296 + $0x28] sm:$0xf]
        %v363 = vld [vmem:[%s296 + $0x2c] sm:$0xf]
        %v364 = vld [vmem:[%s296 + $0x30] sm:$0xf]
        %v365 = vld [vmem:[%s296 + $0x34] sm:$0xf]
        %v366 = vld [vmem:[%s296 + $0x38] sm:$0xf]
        %v367 = vld [vmem:[%s296 + $0x3c] sm:$0xf]
        %v370 = vunpack.c.l.b16 %v350
        %v371 = vunpack.c.l.b16 %v351
        %v372 = vpack.c.b16 %v371, %v370
        %v390 = vunpack.c.l.b16 %v352
        %v391 = vunpack.c.l.b16 %v353
        %v392 = vunpack.c.l.b16 %v354
        %v393 = vunpack.c.l.b16 %v355
        %v394 = vunpack.c.l.b16 %v356
        %v395 = vunpack.c.l.b16 %v357
        %v396 = vunpack.c.l.b16 %v358
        %v397 = vunpack.c.l.b16 %v359
        %v398 = vunpack.c.l.b16 %v360
        %v399 = vunpack.c.l.b16 %v361
        %v400 = vunpack.c.l.b16 %v362
        %v401 = vunpack.c.l.b16 %v363
        %v402 = vunpack.c.l.b16 %v364
        %v403 = vunpack.c.l.b16 %v365
        %v404 = vunpack.c.l.b16 %v366
        %v405 = vunpack.c.l.b16 %v367
        %v406 = vpack.c.b16 %v391, %v390
        %v407 = vpack.c.b16 %v393, %v392
        %v408 = vpack.c.b16 %v395, %v394
        %v409 = vpack.c.b16 %v397, %v396
        %v410 = vpack.c.b16 %v399, %v398
        %v411 = vpack.c.b16 %v401, %v400
        %v412 = vpack.c.b16 %v403, %v402
        %v413 = vpack.c.b16 %v405, %v404
        %422 = vmatprep.subr.bf16.mxu0 0
        %423 = vmatpush1.bf16.msra.mxu0 %v406
        %424 = vmatprep.subr.bf16.mxu0 0
        %425 = vmatpush1.bf16.msra.mxu0 %v407
        %426 = vmatprep.subr.bf16.mxu0 0
        %427 = vmatpush1.bf16.msra.mxu0 %v408
        %428 = vmatprep.subr.bf16.mxu0 0
        %429 = vmatpush1.bf16.msra.mxu0 %v409
        %430 = vmatprep.subr.bf16.mxu0 0
        %431 = vmatpush1.bf16.msra.mxu0 %v410
        %432 = vmatprep.subr.bf16.mxu0 0
        %433 = vmatpush1.bf16.msra.mxu0 %v411
        %434 = vmatprep.subr.bf16.mxu0 0
        %435 = vmatpush1.bf16.msra.mxu0 %v412
        %436 = vmatprep.subr.bf16.mxu0 0
        %437 = vmatpush1.bf16.msra.mxu0 %v413
        %438 = vmatprep.subr.bf16.mxu0 0
        %439 = vmatpush1.bf16.msra.mxu0 0
        %440 = vmatprep.subr.bf16.mxu0 0
        %441 = vmatpush1.bf16.msra.mxu0 0
        %442 = vmatprep.subr.bf16.mxu0 0
        %443 = vmatpush1.bf16.msra.mxu0 0
        %444 = vmatprep.subr.bf16.mxu0 0
        %445 = vmatpush1.bf16.msra.mxu0 0
        %446 = vmatprep.subr.bf16.mxu0 0
        %447 = vmatpush1.bf16.msra.mxu0 0
        %448 = vmatprep.subr.bf16.mxu0 0
        %449 = vmatpush1.bf16.msra.mxu0 0
        %450 = vmatprep.subr.bf16.mxu0 0
        %451 = vmatpush1.bf16.msra.mxu0 0
        %452 = vmatprep.subr.bf16.mxu0 0
        %453 = vmatpush1.bf16.msra.mxu0 0
        %454 = vmatprep.mubr.bf16.mxu0 0
        %455 = vmatmul.mubr.bf16.gmra.mrb[0].mxu0 %v372
        %v456 = vpop.f32.mrb[0].mxu0
        %v457 = vadd.f32 0.0, %v456
        %v458 = vpop.f32.mrb[0].mxu0
        %v459 = vpop.f32.mrb[0].mxu0
        %v460 = vadd.f32 0.0, %v459
        %v461 = vpop.f32.mrb[0].mxu0
        %462 = vdwg.mxu0
        %v463 = vadd.f32 %v348, %v457
        %v464 = vadd.f32 %v349, %v460
        %465 = vst [vmem:[#allocation2] sm:$0xff] %v463
        %466 = vst [vmem:[#allocation2 + $0x8] sm:$0xff] %v464
        // Predicated region
        $region78: #{_lambda_.36} parent=68 // pred_check
          %p467 = pneg %p342
        $region79: #{_lambda_.36} parent=68 // pred_check_branch
          %469 = sbr.rel (%p467) target = $region81
        $region80: #{_lambda_.36} parent=68 // pred_region
          %v470 = vld [vmem:[#allocation2] sm:$0xff]
          %v471 = vld [vmem:[#allocation2 + $0x8] sm:$0xff]
          %v472 = vld [vmem:[%s339] sm:$0x1]
          %v474 = vlaneseq
          %v475 = vshrl.u32 %v474, 7
          %v476 = vsub.s32 0, %v475
          %v477 = vrot.slane %v472, %v476
          %v479 = vadd.f32 %v470, %v477
          %v480 = vadd.f32 %v471, %v477
          %v481 = vpack.c.bf16 %v480, %v479
          %v483 = vunpack.c.l.b16 %v481
          %v484 = vunpack.c.h.b16 %v481
          %v485 = vpack.c.b16 %v483, %v483
          %v486 = vpack.c.b16 %v484, %v484
          %489 = vst [vmem:[%s326] sm:$0xf] %v485
          %490 = vst [vmem:[%s326 + $0x4] sm:$0xf] %v486
        $region81: #{_lambda_.36} parent=68 // pred_fallthru
          _
        %s491 = sand.u32 %s125, 1
        %s492 = sand.u32 %s125, 1
        %s493 = smul.addr %s492, 8
        %s494 = scalar_lea.vmem [#allocation4], %s493
        // Predicated region
        $region82: #{_lambda_.36} parent=68 // pred_check
          %p495 = pneg %p135
        $region83: #{_lambda_.36} parent=68 // pred_check_branch
          %497 = sbr.rel (%p495) target = $region85
        $region84: #{_lambda_.36} parent=68 // pred_region
          %s498 = smul.u32 2, %s19
          %s499 = smul.addr %s498, 2
          %s500 = sadd.s32 %s20, %s499
          %s501 = smul.addr %s500, 4
          %s502 = scalar_lea.vmem %s3, %s501
          // Predicated region
          $region86: #{_lambda_.36} parent=84 // pred_check
            _
          $region87: #{_lambda_.36} parent=84 // pred_check_branch
            %504 = sbr.rel (0) target = $region89
          $region88: #{_lambda_.36} parent=84 // pred_region
            // Predicated region
            $region90: #{_lambda_.36} parent=88 // pred_check
              _
            $region91: #{_lambda_.36} parent=88 // pred_check_branch
              %506 = sbr.rel target = $region93
            $region92: #{_lambda_.36} parent=88 // pred_region
              // Predicated region
              $region105: #{_lambda_.36} parent=92 // pred_check
                _
              $region106: #{_lambda_.36} parent=92 // pred_check_branch
                %523 = sbr.rel (0) target = $region108
              $region107: #{_lambda_.36} parent=92 // pred_region
                loop: start=0, step=1, limit=1
                $region109: #{_lambda_.36} parent=107 // loop_pre_header
                  _
                $region110: #{_lambda_.36} parent=107 // loop_header
                  %s525 = sphi 0, %s529
                  %p526 = scmp.ge.s32.totalorder %s525, 1
                  %s530 = sphi %s494, %s494
                  %s531 = sphi %s502, %s502
                $region111: #{_lambda_.36} parent=107 // loop_header_branch
                  %528 = sbr.rel (%p526) target = $region115
                $region112: #{_lambda_.36} parent=107 // loop_body
                  _
                $region113: #{_lambda_.36} parent=107 // loop_footer
                  %s529 = sadd.s32 1, %s525
                $region114: #{_lambda_.36} parent=107 // loop_footer_branch
                  %524 = sbr.rel target = $region110
                $region115: #{_lambda_.36} parent=107 // loop_exit
                  _
                loop: start=0, step=1, limit=1
                $region116: #{_lambda_.36} parent=107 // loop_pre_header
                  _
                $region117: #{_lambda_.36} parent=107 // loop_header
                  %s534 = sphi 0, %s538
                  %p535 = scmp.ge.s32.totalorder %s534, 1
                  %s539 = sphi %s494, %s494
                  %s540 = sphi %s502, %s502
                $region118: #{_lambda_.36} parent=107 // loop_header_branch
                  %537 = sbr.rel (%p535) target = $region122
                $region119: #{_lambda_.36} parent=107 // loop_body
                  %v541 = vld [vmem:[%s539] sm:$0xf]
                  %542 = vst [vmem:[%s540] sm:$0xf] %v541
                  %v543 = vld [vmem:[%s539 + $0x4] sm:$0xf]
                  %544 = vst [vmem:[%s540 + $0x8] sm:$0xf] %v543
                $region120: #{_lambda_.36} parent=107 // loop_footer
                  %s538 = sadd.s32 1, %s534
                $region121: #{_lambda_.36} parent=107 // loop_footer_branch
                  %533 = sbr.rel target = $region117
                $region122: #{_lambda_.36} parent=107 // loop_exit
                  _
              $region108: #{_lambda_.36} parent=92 // pred_fallthru
                _
            $region93: #{_lambda_.36} parent=88 // pred_fallthru
              _
            // Predicated region
            $region94: #{_lambda_.36} parent=88 // pred_check
              _
            $region95: #{_lambda_.36} parent=88 // pred_check_branch
              %508 = sbr.rel (0) target = $region97
            $region96: #{_lambda_.36} parent=88 // pred_region
              loop: start=0, step=1, limit=1
              $region98: #{_lambda_.36} parent=96 // loop_pre_header
                _
              $region99: #{_lambda_.36} parent=96 // loop_header
                %s511 = sphi 0, %s515
                %p512 = scmp.ge.s32.totalorder %s511, 1
                %s516 = sphi %s494, %s494
                %s517 = sphi %s502, %s502
              $region100: #{_lambda_.36} parent=96 // loop_header_branch
                %514 = sbr.rel (%p512) target = $region104
              $region101: #{_lambda_.36} parent=96 // loop_body
                %v518 = vld [vmem:[%s516] sm:$0xf]
                %519 = vst [vmem:[%s517] sm:$0xf] %v518
                %v520 = vld [vmem:[%s516 + $0x4] sm:$0xf]
                %521 = vst [vmem:[%s517 + $0x8] sm:$0xf] %v520
              $region102: #{_lambda_.36} parent=96 // loop_footer
                %s515 = sadd.s32 1, %s511
              $region103: #{_lambda_.36} parent=96 // loop_footer_branch
                %510 = sbr.rel target = $region99
              $region104: #{_lambda_.36} parent=96 // loop_exit
                _
            $region97: #{_lambda_.36} parent=88 // pred_fallthru
              _
          $region89: #{_lambda_.36} parent=84 // pred_fallthru
            _
          %545 = vnop
        $region85: #{_lambda_.36} parent=68 // pred_fallthru
          _
      $region69: #{_lambda_.36} parent=5 // pred_fallthru
        _
      %p546 = scmp.le.s32.totalorder 2, %s9
      // Predicated region
      $region123: #{_lambda_.36} parent=5 // pred_check
        %p547 = pneg %p546
      $region124: #{_lambda_.36} parent=5 // pred_check_branch
        %549 = sbr.rel (%p547) target = $region126
      $region125: #{_lambda_.36} parent=5 // pred_region
        %s550 = ssub.s32 %s9, 2
        // Predicated region
        $region127: #{_lambda_.36} parent=125 // pred_check
          %p551 = pneg %p141
        $region128: #{_lambda_.36} parent=125 // pred_check_branch
          %553 = sbr.rel (%p551) target = $region130
        $region129: #{_lambda_.36} parent=125 // pred_region
          %s554 = sand.u32 %s126, 1
          %s555 = sand.u32 %s126, 1
          %s556 = smul.addr %s555, 8
          %s557 = scalar_lea.vmem [#allocation4], %s556
        $region130: #{_lambda_.36} parent=125 // pred_fallthru
          _
      $region126: #{_lambda_.36} parent=5 // pred_fallthru
        _
    $region6: #{_lambda_.36} parent=1 // loop_footer
      %s13 = sadd.s32 1, %s9
    $region7: #{_lambda_.36} parent=1 // loop_footer_branch
      %8 = sbr.rel target = $region3
    $region8: #{_lambda_.36} parent=1 // loop_exit
      _

// kernel: _lambda_.37
$region0: #{_lambda_.37}
  #allocation0 [shape = 'u32[]', space=smem, size = 0x4, offset = 0x4, fixed_abs, tag = 'smem constant byte address 0x4 - core index']
  #allocation1 [shape = 'u32[144,128]{1,0:T(1,128)}', space=vmem, size = 0x12000, scoped, tag = 'internal scratch']
  #allocation2 [shape = 'f32[16,128]{1,0:T(8,128)}', space=vmem, size = 0x2000, scoped, tag = 'scratch operand']
  %s0 = inlined_call_operand.vmem [shape: bf16[16,64], index: 0, kind: input, shape index: {}]
  %s1 = inlined_call_operand.vmem [shape: bf16[64,256], index: 1, kind: input, shape index: {}]
  %s2 = inlined_call_operand.vmem [shape: f32[1,256], index: 2, kind: input, shape index: {}]
  %s3 = inlined_call_operand.vmem [shape: bf16[16,256], index: 3, kind: input, shape index: {}]
  %s4 = inlined_call_operand.vmem [shape: bf16[16,256], index: 4, kind: output, shape index: {}]
  %s5 = sld [smem:[#allocation0]]
  $region176: #{_lambda_.37} parent=0
    _
  %s7 = ssub.s32 1, %s5
  %s8 = scalar_select 0, %s7, %s5
  $region1: #{_lambda_.37} parent=0
    #allocation3 [shape = 'u8[32768]{0}', space=vmem, size = 0x8000, scoped, tag = 'input window, operand 1']
    #allocation4 [shape = 'u8[8192]{0}', space=vmem, size = 0x2000, scoped, tag = 'input window, operand 3']
    #allocation5 [shape = 'u8[8192]{0}', space=vmem, size = 0x2000, scoped, tag = 'output window, operand 0']
    loop: start=0, step=1, limit=4
    $region2: #{_lambda_.37} parent=1 // loop_pre_header
      _
    $region3: #{_lambda_.37} parent=1 // loop_header
      %s10 = sphi 0, %s14
      %p11 = scmp.ge.s32.totalorder %s10, 4
      %s17 = sphi 0, %s36
      %s18 = sphi 0, %s32
      %s19 = sphi 0, %s28
      %s20 = sphi 0, %s17
      %s21 = sphi 0, %s18
      %s22 = sphi 0, %s19
      %s23 = sphi 0, %s20
      %s24 = sphi 0, %s21
      %s25 = sphi 0, %s22
      %s41 = sphi 0, %s43
      %s44 = sphi 0, %s41
      %s45 = sphi 0, %s44
      %s61 = sphi 0, %s45
      %s69 = sphi 0, %s71
      %s72 = sphi 0, %s69
      %s73 = sphi 0, %s72
      %s89 = sphi 0, %s73
      %s95 = sphi 0, %s97
      %s98 = sphi 0, %s95
      %s99 = sphi 0, %s98
      %s115 = sphi 0, %s99
      %s123 = sphi 0, %s125
      %s126 = sphi 0, %s123
      %s127 = sphi 0, %s126
      %s143 = sphi 0, %s127
      %s151 = sphi 0, %s153
      %s154 = sphi 0, %s151
      %s155 = sphi 0, %s154
      %s171 = sphi 0, %s155
    $region4: #{_lambda_.37} parent=1 // loop_header_branch
      %13 = sbr.rel (%p11) target = $region8
    $region5: #{_lambda_.37} parent=1 // loop_body
      %s15 = ssub.s32 %s10, 1
      %s16 = ssub.s32 %s10, 2
      %s26 = sadd.s32 1, %s19
      %p27 = scmp.ge.s32.totalorder %s26, 1
      %s28 = scalar_select %p27, 0, %s26
      %s29 = sadd.s32 1, %s18
      %s30 = scalar_select %p27, %s29, %s18
      %p31 = scmp.ge.s32.totalorder %s30, 2
      %s32 = scalar_select %p31, 0, %s30
      %s33 = sadd.s32 1, %s17
      %s34 = scalar_select %p31, %s33, %s17
      %p35 = scmp.ge.s32.totalorder %s34, 1
      %s36 = scalar_select %p35, 0, %s34
      %s37 = ssub.s32 %s17, %s36
      %s38 = ssub.s32 %s19, %s28
      %s39 = sor.u32 %s37, %s38
      %p40 = scmp.eq.s32.totalorder %s39, 0
      %s42 = sadd.s32 %s41, 1
      %s43 = scalar_select %p40, %s41, %s42
      %p46 = pneg %p40
      %p47 = scmp.eq.s32.totalorder %s10, 1
      %p48 = por %p46, %p47
      %p49 = scmp.ne.s32.totalorder %s41, %s44
      %p50 = scmp.eq.s32.totalorder %s10, 0
      %p51 = por %p49, %p50
      %p52 = scmp.ne.s32.totalorder %s41, %s44
      %p53 = scmp.eq.s32.totalorder %s15, 1
      %p54 = por %p52, %p53
      %p55 = scmp.ne.s32.totalorder %s44, %s45
      %p56 = scmp.eq.s32.totalorder %s15, 0
      %p57 = por %p55, %p56
      %p58 = scmp.ne.s32.totalorder %s44, %s45
      %p59 = scmp.eq.s32.totalorder %s16, 1
      %p60 = por %p58, %p59
      %p62 = scmp.ne.s32.totalorder %s45, %s61
      %p63 = scmp.eq.s32.totalorder %s16, 0
      %p64 = por %p62, %p63
      %s65 = ssub.s32 %s19, %s28
      %s66 = ssub.s32 %s18, %s32
      %s67 = sor.u32 %s65, %s66
      %p68 = scmp.eq.s32.totalorder %s67, 0
      %s70 = sadd.s32 %s69, 1
      %s71 = scalar_select %p68, %s69, %s70
      %p74 = pneg %p68
      %p75 = scmp.eq.s32.totalorder %s10, 1
      %p76 = por %p74, %p75
      %p77 = scmp.ne.s32.totalorder %s69, %s72
      %p78 = scmp.eq.s32.totalorder %s10, 0
      %p79 = por %p77, %p78
      %p80 = scmp.ne.s32.totalorder %s69, %s72
      %p81 = scmp.eq.s32.totalorder %s15, 1
      %p82 = por %p80, %p81
      %p83 = scmp.ne.s32.totalorder %s72, %s73
      %p84 = scmp.eq.s32.totalorder %s15, 0
      %p85 = por %p83, %p84
      %p86 = scmp.ne.s32.totalorder %s72, %s73
      %p87 = scmp.eq.s32.totalorder %s16, 1
      %p88 = por %p86, %p87
      %p90 = scmp.ne.s32.totalorder %s73, %s89
      %p91 = scmp.eq.s32.totalorder %s16, 0
      %p92 = por %p90, %p91
      %s93 = ssub.s32 %s18, %s32
      %p94 = scmp.eq.s32.totalorder %s93, 0
      %s96 = sadd.s32 %s95, 1
      %s97 = scalar_select %p94, %s95, %s96
      %p100 = pneg %p94
      %p101 = scmp.eq.s32.totalorder %s10, 1
      %p102 = por %p100, %p101
      %p103 = scmp.ne.s32.totalorder %s95, %s98
      %p104 = scmp.eq.s32.totalorder %s10, 0
      %p105 = por %p103, %p104
      %p106 = scmp.ne.s32.totalorder %s95, %s98
      %p107 = scmp.eq.s32.totalorder %s15, 1
      %p108 = por %p106, %p107
      %p109 = scmp.ne.s32.totalorder %s98, %s99
      %p110 = scmp.eq.s32.totalorder %s15, 0
      %p111 = por %p109, %p110
      %p112 = scmp.ne.s32.totalorder %s98, %s99
      %p113 = scmp.eq.s32.totalorder %s16, 1
      %p114 = por %p112, %p113
      %p116 = scmp.ne.s32.totalorder %s99, %s115
      %p117 = scmp.eq.s32.totalorder %s16, 0
      %p118 = por %p116, %p117
      %s119 = ssub.s32 %s17, %s36
      %s120 = ssub.s32 %s18, %s32
      %s121 = sor.u32 %s119, %s120
      %p122 = scmp.eq.s32.totalorder %s121, 0
      %s124 = sadd.s32 %s123, 1
      %s125 = scalar_select %p122, %s123, %s124
      %p128 = pneg %p122
      %p129 = scmp.eq.s32.totalorder %s10, 1
      %p130 = por %p128, %p129
      %p131 = scmp.ne.s32.totalorder %s123, %s126
      %p132 = scmp.eq.s32.totalorder %s10, 0
      %p133 = por %p131, %p132
      %p134 = scmp.ne.s32.totalorder %s123, %s126
      %p135 = scmp.eq.s32.totalorder %s15, 1
      %p136 = por %p134, %p135
      %p137 = scmp.ne.s32.totalorder %s126, %s127
      %p138 = scmp.eq.s32.totalorder %s15, 0
      %p139 = por %p137, %p138
      %p140 = scmp.ne.s32.totalorder %s126, %s127
      %p141 = scmp.eq.s32.totalorder %s16, 1
      %p142 = por %p140, %p141
      %p144 = scmp.ne.s32.totalorder %s127, %s143
      %p145 = scmp.eq.s32.totalorder %s16, 0
      %p146 = por %p144, %p145
      %s147 = ssub.s32 %s17, %s36
      %s148 = ssub.s32 %s18, %s32
      %s149 = sor.u32 %s147, %s148
      %p150 = scmp.eq.s32.totalorder %s149, 0
      %s152 = sadd.s32 %s151, 1
      %s153 = scalar_select %p150, %s151, %s152
      %p156 = pneg %p150
      %p157 = scmp.eq.s32.totalorder %s10, 1
      %p158 = por %p156, %p157
      %p159 = scmp.ne.s32.totalorder %s151, %s154
      %p160 = scmp.eq.s32.totalorder %s10, 0
      %p161 = por %p159, %p160
      %p162 = scmp.ne.s32.totalorder %s151, %s154
      %p163 = scmp.eq.s32.totalorder %s15, 1
      %p164 = por %p162, %p163
      %p165 = scmp.ne.s32.totalorder %s154, %s155
      %p166 = scmp.eq.s32.totalorder %s15, 0
      %p167 = por %p165, %p166
      %p168 = scmp.ne.s32.totalorder %s154, %s155
      %p169 = scmp.eq.s32.totalorder %s16, 1
      %p170 = por %p168, %p169
      %p172 = scmp.ne.s32.totalorder %s155, %s171
      %p173 = scmp.eq.s32.totalorder %s16, 0
      %p174 = por %p172, %p173
      %p175 = scmp.le.s32.totalorder 1, %s10
      %p176 = scmp.lt.s32.totalorder %s10, 3
      %p177 = pnand %p175, %p176
      %p178 = pneg %p177
      // Predicated region
      $region9: #{_lambda_.37} parent=5 // pred_check
        _
      $region10: #{_lambda_.37} parent=5 // pred_check_branch
        %180 = sbr.rel (%p177) target = $region12
      $region11: #{_lambda_.37} parent=5 // pred_region
        %s181 = ssub.s32 %s10, 1
        // Predicated region
        $region13: #{_lambda_.37} parent=11 // pred_check
          %p182 = pneg %p57
        $region14: #{_lambda_.37} parent=11 // pred_check_branch
          %184 = sbr.rel (%p182) target = $region16
        $region15: #{_lambda_.37} parent=11 // pred_region
          %s185 = smul.u32 2, %s20
          %p186 = scmp.lt.s32.totalorder %s185, 1
          %s187 = scalar_select %p186, %s185, 1
          %p188 = scmp.lt.s32.totalorder %s22, 0
          %s189 = scalar_select %p188, %s22, 0
          %s190 = sadd.s32 %s189, %s187
          %s191 = smul.addr %s190, 4
          %s192 = scalar_lea.vmem %s0, %s191
          %s193 = smul.u32 2, %s20
        $region16: #{_lambda_.37} parent=11 // pred_fallthru
          _
      $region12: #{_lambda_.37} parent=5 // pred_fallthru
        _
      %p194 = scmp.lt.s32.totalorder %s10, 2
      // Predicated region
      $region17: #{_lambda_.37} parent=5 // pred_check
        %p195 = pneg %p194
      $region18: #{_lambda_.37} parent=5 // pred_check_branch
        %197 = sbr.rel (%p195) target = $region20
      $region19: #{_lambda_.37} parent=5 // pred_region
        // Predicated region
        $region21: #{_lambda_.37} parent=19 // pred_check
          %p198 = pneg %p79
        $region22: #{_lambda_.37} parent=19 // pred_check_branch
          %200 = sbr.rel (%p198) target = $region24
        $region23: #{_lambda_.37} parent=19 // pred_region
          %s201 = sand.u32 %s69, 1
          %s202 = sand.u32 %s69, 1
          %s203 = smul.addr %s202, 32
          %s204 = scalar_lea.vmem [#allocation3], %s203
          %s205 = smul.u32 8, %s19
          %s206 = smul.addr %s205, 2
          %s207 = sadd.s32 %s18, %s206
          %s208 = smul.addr %s207, 4
          %s209 = scalar_lea.vmem %s1, %s208
          // Predicated region
          $region25: #{_lambda_.37} parent=23 // pred_check
            _
          $region26: #{_lambda_.37} parent=23 // pred_check_branch
            %211 = sbr.rel (0) target = $region28
          $region27: #{_lambda_.37} parent=23 // pred_region
            // Predicated region
            $region29: #{_lambda_.37} parent=27 // pred_check
              _
            $region30: #{_lambda_.37} parent=27 // pred_check_branch
              %213 = sbr.rel target = $region32
            $region31: #{_lambda_.37} parent=27 // pred_region
              // Predicated region
              $region44: #{_lambda_.37} parent=31 // pred_check
                _
              $region45: #{_lambda_.37} parent=31 // pred_check_branch
                %242 = sbr.rel (0) target = $region47
              $region46: #{_lambda_.37} parent=31 // pred_region
                loop: start=0, step=1, limit=1
                $region48: #{_lambda_.37} parent=46 // loop_pre_header
                  _
                $region49: #{_lambda_.37} parent=46 // loop_header
                  %s244 = sphi 0, %s248
                  %p245 = scmp.ge.s32.totalorder %s244, 1
                  %s249 = sphi %s209, %s209
                  %s250 = sphi %s204, %s204
                $region50: #{_lambda_.37} parent=46 // loop_header_branch
                  %247 = sbr.rel (%p245) target = $region54
                $region51: #{_lambda_.37} parent=46 // loop_body
                  _
                $region52: #{_lambda_.37} parent=46 // loop_footer
                  %s248 = sadd.s32 1, %s244
                $region53: #{_lambda_.37} parent=46 // loop_footer_branch
                  %243 = sbr.rel target = $region49
                $region54: #{_lambda_.37} parent=46 // loop_exit
                  _
                loop: start=0, step=1, limit=1
                $region55: #{_lambda_.37} parent=46 // loop_pre_header
                  _
                $region56: #{_lambda_.37} parent=46 // loop_header
                  %s253 = sphi 0, %s257
                  %p254 = scmp.ge.s32.totalorder %s253, 1
                  %s258 = sphi %s209, %s209
                  %s259 = sphi %s204, %s204
                $region57: #{_lambda_.37} parent=46 // loop_header_branch
                  %256 = sbr.rel (%p254) target = $region61
                $region58: #{_lambda_.37} parent=46 // loop_body
                  %v260 = vld [vmem:[%s258] sm:$0xf]
                  %261 = vst [vmem:[%s259] sm:$0xf] %v260
                  %v262 = vld [vmem:[%s258 + $0x8] sm:$0xf]
                  %263 = vst [vmem:[%s259 + $0x4] sm:$0xf] %v262
                  %v264 = vld [vmem:[%s258 + $0x10] sm:$0xf]
                  %265 = vst [vmem:[%s259 + $0x8] sm:$0xf] %v264
                  %v266 = vld [vmem:[%s258 + $0x18] sm:$0xf]
                  %267 = vst [vmem:[%s259 + $0xc] sm:$0xf] %v266
                  %v268 = vld [vmem:[%s258 + $0x20] sm:$0xf]
                  %269 = vst [vmem:[%s259 + $0x10] sm:$0xf] %v268
                  %v270 = vld [vmem:[%s258 + $0x28] sm:$0xf]
                  %271 = vst [vmem:[%s259 + $0x14] sm:$0xf] %v270
                  %v272 = vld [vmem:[%s258 + $0x30] sm:$0xf]
                  %273 = vst [vmem:[%s259 + $0x18] sm:$0xf] %v272
                  %v274 = vld [vmem:[%s258 + $0x38] sm:$0xf]
                  %275 = vst [vmem:[%s259 + $0x1c] sm:$0xf] %v274
                $region59: #{_lambda_.37} parent=46 // loop_footer
                  %s257 = sadd.s32 1, %s253
                $region60: #{_lambda_.37} parent=46 // loop_footer_branch
                  %252 = sbr.rel target = $region56
                $region61: #{_lambda_.37} parent=46 // loop_exit
                  _
              $region47: #{_lambda_.37} parent=31 // pred_fallthru
                _
            $region32: #{_lambda_.37} parent=27 // pred_fallthru
              _
            // Predicated region
            $region33: #{_lambda_.37} parent=27 // pred_check
              _
            $region34: #{_lambda_.37} parent=27 // pred_check_branch
              %215 = sbr.rel (0) target = $region36
            $region35: #{_lambda_.37} parent=27 // pred_region
              loop: start=0, step=1, limit=1
              $region37: #{_lambda_.37} parent=35 // loop_pre_header
                _
              $region38: #{_lambda_.37} parent=35 // loop_header
                %s218 = sphi 0, %s222
                %p219 = scmp.ge.s32.totalorder %s218, 1
                %s223 = sphi %s209, %s209
                %s224 = sphi %s204, %s204
              $region39: #{_lambda_.37} parent=35 // loop_header_branch
                %221 = sbr.rel (%p219) target = $region43
              $region40: #{_lambda_.37} parent=35 // loop_body
                %v225 = vld [vmem:[%s223] sm:$0xf]
                %226 = vst [vmem:[%s224] sm:$0xf] %v225
                %v227 = vld [vmem:[%s223 + $0x8] sm:$0xf]
                %228 = vst [vmem:[%s224 + $0x4] sm:$0xf] %v227
                %v229 = vld [vmem:[%s223 + $0x10] sm:$0xf]
                %230 = vst [vmem:[%s224 + $0x8] sm:$0xf] %v229
                %v231 = vld [vmem:[%s223 + $0x18] sm:$0xf]
                %232 = vst [vmem:[%s224 + $0xc] sm:$0xf] %v231
                %v233 = vld [vmem:[%s223 + $0x20] sm:$0xf]
                %234 = vst [vmem:[%s224 + $0x10] sm:$0xf] %v233
                %v235 = vld [vmem:[%s223 + $0x28] sm:$0xf]
                %236 = vst [vmem:[%s224 + $0x14] sm:$0xf] %v235
                %v237 = vld [vmem:[%s223 + $0x30] sm:$0xf]
                %238 = vst [vmem:[%s224 + $0x18] sm:$0xf] %v237
                %v239 = vld [vmem:[%s223 + $0x38] sm:$0xf]
                %240 = vst [vmem:[%s224 + $0x1c] sm:$0xf] %v239
              $region41: #{_lambda_.37} parent=35 // loop_footer
                %s222 = sadd.s32 1, %s218
              $region42: #{_lambda_.37} parent=35 // loop_footer_branch
                %217 = sbr.rel target = $region38
              $region43: #{_lambda_.37} parent=35 // loop_exit
                _
            $region36: #{_lambda_.37} parent=27 // pred_fallthru
              _
          $region28: #{_lambda_.37} parent=23 // pred_fallthru
            _
          %276 = vnop
        $region24: #{_lambda_.37} parent=19 // pred_fallthru
          _
        // Predicated region
        $region62: #{_lambda_.37} parent=19 // pred_check
          %p277 = pneg %p105
        $region63: #{_lambda_.37} parent=19 // pred_check_branch
          %279 = sbr.rel (%p277) target = $region65
        $region64: #{_lambda_.37} parent=19 // pred_region
          %p280 = scmp.lt.s32.totalorder %s18, 1
          %s281 = scalar_select %p280, %s18, 1
          %s282 = scalar_lea.vmem %s2, %s281
        $region65: #{_lambda_.37} parent=19 // pred_fallthru
          _
        // Predicated region
        $region66: #{_lambda_.37} parent=19 // pred_check
          %p283 = pneg %p133
        $region67: #{_lambda_.37} parent=19 // pred_check_branch
          %285 = sbr.rel (%p283) target = $region69
        $region68: #{_lambda_.37} parent=19 // pred_region
          %s286 = sand.u32 %s123, 1
          %s287 = sand.u32 %s123, 1
          %s288 = smul.addr %s287, 8
          %s289 = scalar_lea.vmem [#allocation4], %s288
          %s290 = smul.u32 2, %s17
          %s291 = smul.addr %s290, 2
          %s292 = sadd.s32 %s18, %s291
          %s293 = smul.addr %s292, 4
          %s294 = scalar_lea.vmem %s3, %s293
          // Predicated region
          $region70: #{_lambda_.37} parent=68 // pred_check
            _
          $region71: #{_lambda_.37} parent=68 // pred_check_branch
            %296 = sbr.rel (0) target = $region73
          $region72: #{_lambda_.37} parent=68 // pred_region
            // Predicated region
            $region74: #{_lambda_.37} parent=72 // pred_check
              _
            $region75: #{_lambda_.37} parent=72 // pred_check_branch
              %298 = sbr.rel target = $region77
            $region76: #{_lambda_.37} parent=72 // pred_region
              // Predicated region
              $region89: #{_lambda_.37} parent=76 // pred_check
                _
              $region90: #{_lambda_.37} parent=76 // pred_check_branch
                %315 = sbr.rel (0) target = $region92
              $region91: #{_lambda_.37} parent=76 // pred_region
                loop: start=0, step=1, limit=1
                $region93: #{_lambda_.37} parent=91 // loop_pre_header
                  _
                $region94: #{_lambda_.37} parent=91 // loop_header
                  %s317 = sphi 0, %s321
                  %p318 = scmp.ge.s32.totalorder %s317, 1
                  %s322 = sphi %s294, %s294
                  %s323 = sphi %s289, %s289
                $region95: #{_lambda_.37} parent=91 // loop_header_branch
                  %320 = sbr.rel (%p318) target = $region99
                $region96: #{_lambda_.37} parent=91 // loop_body
                  _
                $region97: #{_lambda_.37} parent=91 // loop_footer
                  %s321 = sadd.s32 1, %s317
                $region98: #{_lambda_.37} parent=91 // loop_footer_branch
                  %316 = sbr.rel target = $region94
                $region99: #{_lambda_.37} parent=91 // loop_exit
                  _
                loop: start=0, step=1, limit=1
                $region100: #{_lambda_.37} parent=91 // loop_pre_header
                  _
                $region101: #{_lambda_.37} parent=91 // loop_header
                  %s326 = sphi 0, %s330
                  %p327 = scmp.ge.s32.totalorder %s326, 1
                  %s331 = sphi %s294, %s294
                  %s332 = sphi %s289, %s289
                $region102: #{_lambda_.37} parent=91 // loop_header_branch
                  %329 = sbr.rel (%p327) target = $region106
                $region103: #{_lambda_.37} parent=91 // loop_body
                  %v333 = vld [vmem:[%s331] sm:$0xf]
                  %334 = vst [vmem:[%s332] sm:$0xf] %v333
                  %v335 = vld [vmem:[%s331 + $0x8] sm:$0xf]
                  %336 = vst [vmem:[%s332 + $0x4] sm:$0xf] %v335
                $region104: #{_lambda_.37} parent=91 // loop_footer
                  %s330 = sadd.s32 1, %s326
                $region105: #{_lambda_.37} parent=91 // loop_footer_branch
                  %325 = sbr.rel target = $region101
                $region106: #{_lambda_.37} parent=91 // loop_exit
                  _
              $region92: #{_lambda_.37} parent=76 // pred_fallthru
                _
            $region77: #{_lambda_.37} parent=72 // pred_fallthru
              _
            // Predicated region
            $region78: #{_lambda_.37} parent=72 // pred_check
              _
            $region79: #{_lambda_.37} parent=72 // pred_check_branch
              %300 = sbr.rel (0) target = $region81
            $region80: #{_lambda_.37} parent=72 // pred_region
              loop: start=0, step=1, limit=1
              $region82: #{_lambda_.37} parent=80 // loop_pre_header
                _
              $region83: #{_lambda_.37} parent=80 // loop_header
                %s303 = sphi 0, %s307
                %p304 = scmp.ge.s32.totalorder %s303, 1
                %s308 = sphi %s294, %s294
                %s309 = sphi %s289, %s289
              $region84: #{_lambda_.37} parent=80 // loop_header_branch
                %306 = sbr.rel (%p304) target = $region88
              $region85: #{_lambda_.37} parent=80 // loop_body
                %v310 = vld [vmem:[%s308] sm:$0xf]
                %311 = vst [vmem:[%s309] sm:$0xf] %v310
                %v312 = vld [vmem:[%s308 + $0x8] sm:$0xf]
                %313 = vst [vmem:[%s309 + $0x4] sm:$0xf] %v312
              $region86: #{_lambda_.37} parent=80 // loop_footer
                %s307 = sadd.s32 1, %s303
              $region87: #{_lambda_.37} parent=80 // loop_footer_branch
                %302 = sbr.rel target = $region83
              $region88: #{_lambda_.37} parent=80 // loop_exit
                _
            $region81: #{_lambda_.37} parent=72 // pred_fallthru
              _
          $region73: #{_lambda_.37} parent=68 // pred_fallthru
            _
          %337 = vnop
        $region69: #{_lambda_.37} parent=19 // pred_fallthru
          _
      $region20: #{_lambda_.37} parent=5 // pred_fallthru
        _
      %p338 = scmp.le.s32.totalorder 1, %s10
      %p339 = scmp.lt.s32.totalorder %s10, 3
      %p340 = pnand %p338, %p339
      %p341 = pneg %p340
      // Predicated region
      $region107: #{_lambda_.37} parent=5 // pred_check
        _
      $region108: #{_lambda_.37} parent=5 // pred_check_branch
        %343 = sbr.rel (%p340) target = $region110
      $region109: #{_lambda_.37} parent=5 // pred_region
        %s344 = ssub.s32 %s10, 1
        %s345 = sand.u32 %s72, 1
        %s346 = sand.u32 %s72, 1
        %s347 = smul.addr %s346, 32
        %s348 = scalar_lea.vmem [#allocation3], %s347
        // Predicated region
        $region111: #{_lambda_.37} parent=109 // pred_check
          %p349 = pneg %p85
        $region112: #{_lambda_.37} parent=109 // pred_check_branch
          %351 = sbr.rel (%p349) target = $region114
        $region113: #{_lambda_.37} parent=109 // pred_region
          _
        $region114: #{_lambda_.37} parent=109 // pred_fallthru
          _
        %s352 = sand.u32 %s126, 1
        %s353 = sand.u32 %s126, 1
        %s354 = smul.addr %s353, 8
        %s355 = scalar_lea.vmem [#allocation4], %s354
        // Predicated region
        $region115: #{_lambda_.37} parent=109 // pred_check
          %p356 = pneg %p139
        $region116: #{_lambda_.37} parent=109 // pred_check_branch
          %358 = sbr.rel (%p356) target = $region118
        $region117: #{_lambda_.37} parent=109 // pred_region
          _
        $region118: #{_lambda_.37} parent=109 // pred_fallthru
          _
        %s359 = smul.u32 2, %s20
        %p360 = scmp.lt.s32.totalorder %s359, 1
        %s361 = scalar_select %p360, %s359, 1
        %p362 = scmp.lt.s32.totalorder %s22, 0
        %s363 = scalar_select %p362, %s22, 0
        %s364 = sadd.s32 %s363, %s361
        %s365 = smul.addr %s364, 4
        %s366 = scalar_lea.vmem %s0, %s365
        %p367 = pneg %p57
        %p368 = pneg %p54
        %s369 = sand.u32 %s72, 1
        %s370 = sand.u32 %s72, 1
        %s371 = smul.addr %s370, 32
        %s372 = scalar_lea.vmem [#allocation3], %s371
        %p373 = pneg %p85
        %p374 = pneg %p82
        %p375 = scmp.lt.s32.totalorder %s21, 1
        %s376 = scalar_select %p375, %s21, 1
        %s377 = scalar_lea.vmem %s2, %s376
        %p378 = pneg %p111
        %p379 = pneg %p108
        %s380 = sand.u32 %s126, 1
        %s381 = sand.u32 %s126, 1
        %s382 = smul.addr %s381, 8
        %s383 = scalar_lea.vmem [#allocation4], %s382
        %p384 = pneg %p139
        %p385 = pneg %p136
        %p386 = pneg %p167
        %p387 = pneg %p164
        %s388 = sand.u32 %s154, 1
        %s389 = sand.u32 %s154, 1
        %s390 = smul.addr %s389, 8
        %s391 = scalar_lea.vmem [#allocation5], %s390
        %s392 = smul.u32 2, %s20
        %p393 = scmp.lt.s32.totalorder %s392, 1
        %s394 = scalar_select %p393, %s392, 1
        %p395 = scmp.lt.s32.totalorder %s22, 0
        %s396 = scalar_select %p395, %s22, 0
        %s397 = sadd.s32 %s396, %s394
        %s398 = smul.addr %s397, 4
        %s399 = scalar_lea.vmem %s0, %s398
        %s400 = smul.u32 2, %s20
        %s401 = smul.u32 8, %s22
        %p402 = scmp.lt.s32.totalorder %s21, 1
        %s403 = scalar_select %p402, %s21, 1
        %s404 = scalar_lea.vmem %s2, %s403
        %s405 = smul.u32 2, %s20
        %s406 = smul.u32 2, %s20
        %p408 = scmp.eq.s32.totalorder %s22, 0
        // Predicated region
        $region119: #{_lambda_.37} parent=109 // pred_check
          %p409 = pneg %p408
        $region120: #{_lambda_.37} parent=109 // pred_check_branch
          %411 = sbr.rel (%p409) target = $region122
        $region121: #{_lambda_.37} parent=109 // pred_region
          %412 = vst [vmem:[#allocation2] sm:$0xff] 0.0
          %413 = vst [vmem:[#allocation2 + $0x8] sm:$0xff] 0.0
        $region122: #{_lambda_.37} parent=109 // pred_fallthru
          _
        %v414 = vld [vmem:[#allocation2] sm:$0xff]
        %v415 = vld [vmem:[#allocation2 + $0x8] sm:$0xff]
        %v416 = vld [vmem:[%s399] sm:$0xf]
        %v417 = vld [vmem:[%s399 + $0x4] sm:$0xf]
        %v418 = vld [vmem:[%s348] sm:$0xf]
        %v419 = vld [vmem:[%s348 + $0x4] sm:$0xf]
        %v420 = vld [vmem:[%s348 + $0x8] sm:$0xf]
        %v421 = vld [vmem:[%s348 + $0xc] sm:$0xf]
        %v422 = vld [vmem:[%s348 + $0x10] sm:$0xf]
        %v423 = vld [vmem:[%s348 + $0x14] sm:$0xf]
        %v424 = vld [vmem:[%s348 + $0x18] sm:$0xf]
        %v425 = vld [vmem:[%s348 + $0x1c] sm:$0xf]
        %v428 = vunpack.c.l.b16 %v416
        %v429 = vunpack.c.l.b16 %v417
        %v430 = vpack.c.b16 %v429, %v428
        %v439 = vunpack.c.l.b16 %v418
        %v440 = vunpack.c.l.b16 %v419
        %v441 = vunpack.c.l.b16 %v420
        %v442 = vunpack.c.l.b16 %v421
        %v443 = vunpack.c.l.b16 %v422
        %v444 = vunpack.c.l.b16 %v423
        %v445 = vunpack.c.l.b16 %v424
        %v446 = vunpack.c.l.b16 %v425
        %v447 = vpack.c.b16 %v440, %v439
        %v448 = vpack.c.b16 %v442, %v441
        %v449 = vpack.c.b16 %v444, %v443
        %v450 = vpack.c.b16 %v446, %v445
        %vm455 = vcmask 523264
        %v457 = vsel %vm455, %v430, 0
        %459 = vmatprep.subr.bf16.mxu0 0
        %460 = vmatpush1.bf16.msra.mxu0 %v447
        %461 = vmatprep.subr.bf16.mxu0 0
        %462 = vmatpush1.bf16.msra.mxu0 %v448
        %463 = vmatprep.subr.bf16.mxu0 0
        %464 = vmatpush1.bf16.msra.mxu0 %v449
        %465 = vmatprep.subr.bf16.mxu0 0
        %466 = vmatpush1.bf16.msra.mxu0 %v450
        %467 = vmatprep.subr.bf16.mxu0 0
        %468 = vmatpush1.bf16.msra.mxu0 0
        %469 = vmatprep.subr.bf16.mxu0 0
        %470 = vmatpush1.bf16.msra.mxu0 0
        %471 = vmatprep.subr.bf16.mxu0 0
        %472 = vmatpush1.bf16.msra.mxu0 0
        %473 = vmatprep.subr.bf16.mxu0 0
        %474 = vmatpush1.bf16.msra.mxu0 0
        %475 = vmatprep.subr.bf16.mxu0 0
        %476 = vmatpush1.bf16.msra.mxu0 0
        %477 = vmatprep.subr.bf16.mxu0 0
        %478 = vmatpush1.bf16.msra.mxu0 0
        %479 = vmatprep.subr.bf16.mxu0 0
        %480 = vmatpush1.bf16.msra.mxu0 0
        %481 = vmatprep.subr.bf16.mxu0 0
        %482 = vmatpush1.bf16.msra.mxu0 0
        %483 = vmatprep.subr.bf16.mxu0 0
        %484 = vmatpush1.bf16.msra.mxu0 0
        %485 = vmatprep.subr.bf16.mxu0 0
        %486 = vmatpush1.bf16.msra.mxu0 0
        %487 = vmatprep.subr.bf16.mxu0 0
        %488 = vmatpush1.bf16.msra.mxu0 0
        %489 = vmatprep.subr.bf16.mxu0 0
        %490 = vmatpush1.bf16.msra.mxu0 0
        %491 = vmatprep.mubr.bf16.mxu0 0
        %492 = vmatmul.mubr.bf16.gmra.mrb[0].mxu0 %v457
        %v493 = vpop.f32.mrb[0].mxu0
        %v494 = vadd.f32 0.0, %v493
        %v495 = vpop.f32.mrb[0].mxu0
        %v496 = vpop.f32.mrb[0].mxu0
        %v497 = vadd.f32 0.0, %v496
        %v498 = vpop.f32.mrb[0].mxu0
        %499 = vdwg.mxu0
        %v500 = vadd.f32 %v414, %v494
        %v501 = vadd.f32 %v415, %v497
        %502 = vst [vmem:[#allocation2] sm:$0xff] %v500
        %503 = vst [vmem:[#allocation2 + $0x8] sm:$0xff] %v501
        // Predicated region
        $region123: #{_lambda_.37} parent=109 // pred_check
          %p504 = pneg %p408
        $region124: #{_lambda_.37} parent=109 // pred_check_branch
          %506 = sbr.rel (%p504) target = $region126
        $region125: #{_lambda_.37} parent=109 // pred_region
          %v507 = vld [vmem:[#allocation2] sm:$0xff]
          %v508 = vld [vmem:[#allocation2 + $0x8] sm:$0xff]
          %v509 = vld [vmem:[%s404] sm:$0x1]
          %v511 = vlaneseq
          %v512 = vshrl.u32 %v511, 7
          %v513 = vsub.s32 0, %v512
          %v514 = vrot.slane %v509, %v513
          %v516 = vadd.f32 %v507, %v514
          %v517 = vadd.f32 %v508, %v514
          %v518 = vld [vmem:[%s355] sm:$0xf]
          %v519 = vld [vmem:[%s355 + $0x4] sm:$0xf]
          %v520 = vunpack.c.l.bf16 %v518
          %v521 = vunpack.c.l.bf16 %v519
          %v522 = vadd.f32 %v516, %v520
          %v523 = vadd.f32 %v517, %v521
          %v524 = vmax.f32 %v522, 0.0
          %v525 = vmax.f32 %v523, 0.0
          %v526 = vpack.c.bf16 %v525, %v524
          %v528 = vunpack.c.l.b16 %v526
          %v529 = vunpack.c.h.b16 %v526
          %v530 = vpack.c.b16 %v528, %v528
          %v531 = vpack.c.b16 %v529, %v529
          %534 = vst [vmem:[%s391] sm:$0xf] %v530
          %535 = vst [vmem:[%s391 + $0x4] sm:$0xf] %v531
        $region126: #{_lambda_.37} parent=109 // pred_fallthru
          _
        %s536 = sand.u32 %s154, 1
        %s537 = sand.u32 %s154, 1
        %s538 = smul.addr %s537, 8
        %s539 = scalar_lea.vmem [#allocation5], %s538
        // Predicated region
        $region127: #{_lambda_.37} parent=109 // pred_check
          %p540 = pneg %p164
        $region128: #{_lambda_.37} parent=109 // pred_check_branch
          %542 = sbr.rel (%p540) target = $region130
        $region129: #{_lambda_.37} parent=109 // pred_region
          %s543 = smul.u32 2, %s20
          %s544 = smul.addr %s543, 2
          %s545 = sadd.s32 %s21, %s544
          %s546 = smul.addr %s545, 4
          %s547 = scalar_lea.vmem %s4, %s546
          // Predicated region
          $region131: #{_lambda_.37} parent=129 // pred_check
            _
          $region132: #{_lambda_.37} parent=129 // pred_check_branch
            %549 = sbr.rel (0) target = $region134
          $region133: #{_lambda_.37} parent=129 // pred_region
            // Predicated region
            $region135: #{_lambda_.37} parent=133 // pred_check
              _
            $region136: #{_lambda_.37} parent=133 // pred_check_branch
              %551 = sbr.rel target = $region138
            $region137: #{_lambda_.37} parent=133 // pred_region
              // Predicated region
              $region150: #{_lambda_.37} parent=137 // pred_check
                _
              $region151: #{_lambda_.37} parent=137 // pred_check_branch
                %568 = sbr.rel (0) target = $region153
              $region152: #{_lambda_.37} parent=137 // pred_region
                loop: start=0, step=1, limit=1
                $region154: #{_lambda_.37} parent=152 // loop_pre_header
                  _
                $region155: #{_lambda_.37} parent=152 // loop_header
                  %s570 = sphi 0, %s574
                  %p571 = scmp.ge.s32.totalorder %s570, 1
                  %s575 = sphi %s539, %s539
                  %s576 = sphi %s547, %s547
                $region156: #{_lambda_.37} parent=152 // loop_header_branch
                  %573 = sbr.rel (%p571) target = $region160
                $region157: #{_lambda_.37} parent=152 // loop_body
                  _
                $region158: #{_lambda_.37} parent=152 // loop_footer
                  %s574 = sadd.s32 1, %s570
                $region159: #{_lambda_.37} parent=152 // loop_footer_branch
                  %569 = sbr.rel target = $region155
                $region160: #{_lambda_.37} parent=152 // loop_exit
                  _
                loop: start=0, step=1, limit=1
                $region161: #{_lambda_.37} parent=152 // loop_pre_header
                  _
                $region162: #{_lambda_.37} parent=152 // loop_header
                  %s579 = sphi 0, %s583
                  %p580 = scmp.ge.s32.totalorder %s579, 1
                  %s584 = sphi %s539, %s539
                  %s585 = sphi %s547, %s547
                $region163: #{_lambda_.37} parent=152 // loop_header_branch
                  %582 = sbr.rel (%p580) target = $region167
                $region164: #{_lambda_.37} parent=152 // loop_body
                  %v586 = vld [vmem:[%s584] sm:$0xf]
                  %587 = vst [vmem:[%s585] sm:$0xf] %v586
                  %v588 = vld [vmem:[%s584 + $0x4] sm:$0xf]
                  %589 = vst [vmem:[%s585 + $0x8] sm:$0xf] %v588
                $region165: #{_lambda_.37} parent=152 // loop_footer
                  %s583 = sadd.s32 1, %s579
                $region166: #{_lambda_.37} parent=152 // loop_footer_branch
                  %578 = sbr.rel target = $region162
                $region167: #{_lambda_.37} parent=152 // loop_exit
                  _
              $region153: #{_lambda_.37} parent=137 // pred_fallthru
                _
            $region138: #{_lambda_.37} parent=133 // pred_fallthru
              _
            // Predicated region
            $region139: #{_lambda_.37} parent=133 // pred_check
              _
            $region140: #{_lambda_.37} parent=133 // pred_check_branch
              %553 = sbr.rel (0) target = $region142
            $region141: #{_lambda_.37} parent=133 // pred_region
              loop: start=0, step=1, limit=1
              $region143: #{_lambda_.37} parent=141 // loop_pre_header
                _
              $region144: #{_lambda_.37} parent=141 // loop_header
                %s556 = sphi 0, %s560
                %p557 = scmp.ge.s32.totalorder %s556, 1
                %s561 = sphi %s539, %s539
                %s562 = sphi %s547, %s547
              $region145: #{_lambda_.37} parent=141 // loop_header_branch
                %559 = sbr.rel (%p557) target = $region149
              $region146: #{_lambda_.37} parent=141 // loop_body
                %v563 = vld [vmem:[%s561] sm:$0xf]
                %564 = vst [vmem:[%s562] sm:$0xf] %v563
                %v565 = vld [vmem:[%s561 + $0x4] sm:$0xf]
                %566 = vst [vmem:[%s562 + $0x8] sm:$0xf] %v565
              $region147: #{_lambda_.37} parent=141 // loop_footer
                %s560 = sadd.s32 1, %s556
              $region148: #{_lambda_.37} parent=141 // loop_footer_branch
                %555 = sbr.rel target = $region144
              $region149: #{_lambda_.37} parent=141 // loop_exit
                _
            $region142: #{_lambda_.37} parent=133 // pred_fallthru
              _
          $region134: #{_lambda_.37} parent=129 // pred_fallthru
            _
          %590 = vnop
        $region130: #{_lambda_.37} parent=109 // pred_fallthru
          _
      $region110: #{_lambda_.37} parent=5 // pred_fallthru
        _
      %p591 = scmp.le.s32.totalorder 2, %s10
      // Predicated region
      $region168: #{_lambda_.37} parent=5 // pred_check
        %p592 = pneg %p591
      $region169: #{_lambda_.37} parent=5 // pred_check_branch
        %594 = sbr.rel (%p592) target = $region171
      $region170: #{_lambda_.37} parent=5 // pred_region
        %s595 = ssub.s32 %s10, 2
        // Predicated region
        $region172: #{_lambda_.37} parent=170 // pred_check
          %p596 = pneg %p170
        $region173: #{_lambda_.37} parent=170 // pred_check_branch
          %598 = sbr.rel (%p596) target = $region175
        $region174: #{_lambda_.37} parent=170 // pred_region
          %s599 = sand.u32 %s155, 1
          %s600 = sand.u32 %s155, 1
          %s601 = smul.addr %s600, 8
          %s602 = scalar_lea.vmem [#allocation5], %s601
        $region175: #{_lambda_.37} parent=170 // pred_fallthru
          _
      $region171: #{_lambda_.37} parent=5 // pred_fallthru
        _
    $region6: #{_lambda_.37} parent=1 // loop_footer
      %s14 = sadd.s32 1, %s10
    $region7: #{_lambda_.37} parent=1 // loop_footer_branch
      %9 = sbr.rel target = $region3
    $region8: #{_lambda_.37} parent=1 // loop_exit
      _

// kernel: _lambda_.35
$region0: #{_lambda_.35}
  #allocation0 [shape = 'u32[]', space=smem, size = 0x4, offset = 0x4, fixed_abs, tag = 'smem constant byte address 0x4 - core index']
  #allocation1 [shape = 'u32[144,128]{1,0:T(1,128)}', space=vmem, size = 0x12000, scoped, tag = 'internal scratch']
  #allocation2 [shape = 'f32[16,128]{1,0:T(8,128)}', space=vmem, size = 0x2000, scoped, tag = 'scratch operand']
  %s0 = inlined_call_operand.vmem [shape: bf16[16,576], index: 0, kind: input, shape index: {}]
  %s1 = inlined_call_operand.vmem [shape: bf16[576,128], index: 1, kind: input, shape index: {}]
  %s2 = inlined_call_operand.vmem [shape: f32[1,128], index: 2, kind: input, shape index: {}]
  %s3 = inlined_call_operand.vmem [shape: bf16[16,128], index: 3, kind: output, shape index: {}]
  %s4 = sld [smem:[#allocation0]]
  $region30: #{_lambda_.35} parent=0
    _
  %s6 = ssub.s32 1, %s4
  %s7 = scalar_select 0, %s6, %s4
  // Predicated region
  $region2: #{_lambda_.35} parent=0 // pred_check
    _
  $region3: #{_lambda_.35} parent=0 // pred_check_branch
    %9 = sbr.rel (0) target = $region5
  $region4: #{_lambda_.35} parent=0 // pred_region
    _
  $region5: #{_lambda_.35} parent=0 // pred_fallthru
    _
  // Predicated region
  $region6: #{_lambda_.35} parent=0 // pred_check
    _
  $region7: #{_lambda_.35} parent=0 // pred_check_branch
    %11 = sbr.rel (0) target = $region9
  $region8: #{_lambda_.35} parent=0 // pred_region
    _
  $region9: #{_lambda_.35} parent=0 // pred_fallthru
    _
  // Predicated region
  $region10: #{_lambda_.35} parent=0 // pred_check
    _
  $region11: #{_lambda_.35} parent=0 // pred_check_branch
    %13 = sbr.rel (0) target = $region13
  $region12: #{_lambda_.35} parent=0 // pred_region
    _
  $region13: #{_lambda_.35} parent=0 // pred_fallthru
    _
  %p15 = scmp.eq.s32.totalorder 0, 0
  // Predicated region
  $region14: #{_lambda_.35} parent=0 // pred_check
    %p16 = pneg %p15
  $region15: #{_lambda_.35} parent=0 // pred_check_branch
    %18 = sbr.rel (%p16) target = $region17
  $region16: #{_lambda_.35} parent=0 // pred_region
    %19 = vst [vmem:[#allocation2] sm:$0xff] 0.0
    %20 = vst [vmem:[#allocation2 + $0x8] sm:$0xff] 0.0
  $region17: #{_lambda_.35} parent=0 // pred_fallthru
    _
  %v21 = vld [vmem:[#allocation2] sm:$0xff]
  %v22 = vld [vmem:[#allocation2 + $0x8] sm:$0xff]
  %v23 = vld [vmem:[%s0] sm:$0xff]
  %v24 = vld [vmem:[%s0 + $0x8] sm:$0xff]
  %v25 = vld [vmem:[%s0 + $0x10] sm:$0xf]
  %v26 = vld [vmem:[%s0 + $0x14] sm:$0xff]
  %v27 = vld [vmem:[%s0 + $0x1c] sm:$0xff]
  %v28 = vld [vmem:[%s0 + $0x24] sm:$0xf]
  %v29 = vld [vmem:[%s1] sm:$0xf]
  %v30 = vld [vmem:[%s1 + $0x4] sm:$0xf]
  %v31 = vld [vmem:[%s1 + $0x8] sm:$0xf]
  %v32 = vld [vmem:[%s1 + $0xc] sm:$0xf]
  %v33 = vld [vmem:[%s1 + $0x10] sm:$0xf]
  %v34 = vld [vmem:[%s1 + $0x14] sm:$0xf]
  %v35 = vld [vmem:[%s1 + $0x18] sm:$0xf]
  %v36 = vld [vmem:[%s1 + $0x1c] sm:$0xf]
  %v37 = vld [vmem:[%s1 + $0x20] sm:$0xf]
  %v38 = vld [vmem:[%s1 + $0x24] sm:$0xf]
  %v39 = vld [vmem:[%s1 + $0x28] sm:$0xf]
  %v40 = vld [vmem:[%s1 + $0x2c] sm:$0xf]
  %v41 = vld [vmem:[%s1 + $0x30] sm:$0xf]
  %v42 = vld [vmem:[%s1 + $0x34] sm:$0xf]
  %v43 = vld [vmem:[%s1 + $0x38] sm:$0xf]
  %v44 = vld [vmem:[%s1 + $0x3c] sm:$0xf]
  %v45 = vld [vmem:[%s1 + $0x40] sm:$0xf]
  %v46 = vld [vmem:[%s1 + $0x44] sm:$0xf]
  %v47 = vld [vmem:[%s1 + $0x48] sm:$0xf]
  %v48 = vld [vmem:[%s1 + $0x4c] sm:$0xf]
  %v49 = vld [vmem:[%s1 + $0x50] sm:$0xf]
  %v50 = vld [vmem:[%s1 + $0x54] sm:$0xf]
  %v51 = vld [vmem:[%s1 + $0x58] sm:$0xf]
  %v52 = vld [vmem:[%s1 + $0x5c] sm:$0xf]
  %v53 = vld [vmem:[%s1 + $0x60] sm:$0xf]
  %v54 = vld [vmem:[%s1 + $0x64] sm:$0xf]
  %v55 = vld [vmem:[%s1 + $0x68] sm:$0xf]
  %v56 = vld [vmem:[%s1 + $0x6c] sm:$0xf]
  %v57 = vld [vmem:[%s1 + $0x70] sm:$0xf]
  %v58 = vld [vmem:[%s1 + $0x74] sm:$0xf]
  %v59 = vld [vmem:[%s1 + $0x78] sm:$0xf]
  %v60 = vld [vmem:[%s1 + $0x7c] sm:$0xf]
  %v61 = vld [vmem:[%s1 + $0x80] sm:$0xf]
  %v62 = vld [vmem:[%s1 + $0x84] sm:$0xf]
  %v63 = vld [vmem:[%s1 + $0x88] sm:$0xf]
  %v64 = vld [vmem:[%s1 + $0x8c] sm:$0xf]
  %v65 = vld [vmem:[%s1 + $0x90] sm:$0xf]
  %v66 = vld [vmem:[%s1 + $0x94] sm:$0xf]
  %v67 = vld [vmem:[%s1 + $0x98] sm:$0xf]
  %v68 = vld [vmem:[%s1 + $0x9c] sm:$0xf]
  %v69 = vld [vmem:[%s1 + $0xa0] sm:$0xf]
  %v70 = vld [vmem:[%s1 + $0xa4] sm:$0xf]
  %v71 = vld [vmem:[%s1 + $0xa8] sm:$0xf]
  %v72 = vld [vmem:[%s1 + $0xac] sm:$0xf]
  %v73 = vld [vmem:[%s1 + $0xb0] sm:$0xf]
  %v74 = vld [vmem:[%s1 + $0xb4] sm:$0xf]
  %v75 = vld [vmem:[%s1 + $0xb8] sm:$0xf]
  %v76 = vld [vmem:[%s1 + $0xbc] sm:$0xf]
  %v77 = vld [vmem:[%s1 + $0xc0] sm:$0xf]
  %v78 = vld [vmem:[%s1 + $0xc4] sm:$0xf]
  %v79 = vld [vmem:[%s1 + $0xc8] sm:$0xf]
  %v80 = vld [vmem:[%s1 + $0xcc] sm:$0xf]
  %v81 = vld [vmem:[%s1 + $0xd0] sm:$0xf]
  %v82 = vld [vmem:[%s1 + $0xd4] sm:$0xf]
  %v83 = vld [vmem:[%s1 + $0xd8] sm:$0xf]
  %v84 = vld [vmem:[%s1 + $0xdc] sm:$0xf]
  %v85 = vld [vmem:[%s1 + $0xe0] sm:$0xf]
  %v86 = vld [vmem:[%s1 + $0xe4] sm:$0xf]
  %v87 = vld [vmem:[%s1 + $0xe8] sm:$0xf]
  %v88 = vld [vmem:[%s1 + $0xec] sm:$0xf]
  %v89 = vld [vmem:[%s1 + $0xf0] sm:$0xf]
  %v90 = vld [vmem:[%s1 + $0xf4] sm:$0xf]
  %v91 = vld [vmem:[%s1 + $0xf8] sm:$0xf]
  %v92 = vld [vmem:[%s1 + $0xfc] sm:$0xf]
  %v93 = vld [vmem:[%s1 + $0x100] sm:$0xf]
  %v94 = vld [vmem:[%s1 + $0x104] sm:$0xf]
  %v95 = vld [vmem:[%s1 + $0x108] sm:$0xf]
  %v96 = vld [vmem:[%s1 + $0x10c] sm:$0xf]
  %v97 = vld [vmem:[%s1 + $0x110] sm:$0xf]
  %v98 = vld [vmem:[%s1 + $0x114] sm:$0xf]
  %v99 = vld [vmem:[%s1 + $0x118] sm:$0xf]
  %v100 = vld [vmem:[%s1 + $0x11c] sm:$0xf]
  %v107 = vunpack.c.l.b16 %v23
  %v108 = vunpack.c.h.b16 %v23
  %v109 = vunpack.c.l.b16 %v24
  %v110 = vunpack.c.h.b16 %v24
  %v111 = vunpack.c.l.b16 %v25
  %v112 = vunpack.c.l.b16 %v26
  %v113 = vunpack.c.h.b16 %v26
  %v114 = vunpack.c.l.b16 %v27
  %v115 = vunpack.c.h.b16 %v27
  %v116 = vunpack.c.l.b16 %v28
  %v117 = vpack.c.b16 %v112, %v107
  %v118 = vpack.c.b16 %v113, %v108
  %v119 = vpack.c.b16 %v114, %v109
  %v120 = vpack.c.b16 %v115, %v110
  %v121 = vpack.c.b16 %v116, %v111
  %v198 = vunpack.c.l.b16 %v29
  %v199 = vunpack.c.l.b16 %v30
  %v200 = vunpack.c.l.b16 %v31
  %v201 = vunpack.c.l.b16 %v32
  %v202 = vunpack.c.l.b16 %v33
  %v203 = vunpack.c.l.b16 %v34
  %v204 = vunpack.c.l.b16 %v35
  %v205 = vunpack.c.l.b16 %v36
  %v206 = vunpack.c.l.b16 %v37
  %v207 = vunpack.c.l.b16 %v38
  %v208 = vunpack.c.l.b16 %v39
  %v209 = vunpack.c.l.b16 %v40
  %v210 = vunpack.c.l.b16 %v41
  %v211 = vunpack.c.l.b16 %v42
  %v212 = vunpack.c.l.b16 %v43
  %v213 = vunpack.c.l.b16 %v44
  %v214 = vunpack.c.l.b16 %v45
  %v215 = vunpack.c.l.b16 %v46
  %v216 = vunpack.c.l.b16 %v47
  %v217 = vunpack.c.l.b16 %v48
  %v218 = vunpack.c.l.b16 %v49
  %v219 = vunpack.c.l.b16 %v50
  %v220 = vunpack.c.l.b16 %v51
  %v221 = vunpack.c.l.b16 %v52
  %v222 = vunpack.c.l.b16 %v53
  %v223 = vunpack.c.l.b16 %v54
  %v224 = vunpack.c.l.b16 %v55
  %v225 = vunpack.c.l.b16 %v56
  %v226 = vunpack.c.l.b16 %v57
  %v227 = vunpack.c.l.b16 %v58
  %v228 = vunpack.c.l.b16 %v59
  %v229 = vunpack.c.l.b16 %v60
  %v230 = vunpack.c.l.b16 %v61
  %v231 = vunpack.c.l.b16 %v62
  %v232 = vunpack.c.l.b16 %v63
  %v233 = vunpack.c.l.b16 %v64
  %v234 = vunpack.c.l.b16 %v65
  %v235 = vunpack.c.l.b16 %v66
  %v236 = vunpack.c.l.b16 %v67
  %v237 = vunpack.c.l.b16 %v68
  %v238 = vunpack.c.l.b16 %v69
  %v239 = vunpack.c.l.b16 %v70
  %v240 = vunpack.c.l.b16 %v71
  %v241 = vunpack.c.l.b16 %v72
  %v242 = vunpack.c.l.b16 %v73
  %v243 = vunpack.c.l.b16 %v74
  %v244 = vunpack.c.l.b16 %v75
  %v245 = vunpack.c.l.b16 %v76
  %v246 = vunpack.c.l.b16 %v77
  %v247 = vunpack.c.l.b16 %v78
  %v248 = vunpack.c.l.b16 %v79
  %v249 = vunpack.c.l.b16 %v80
  %v250 = vunpack.c.l.b16 %v81
  %v251 = vunpack.c.l.b16 %v82
  %v252 = vunpack.c.l.b16 %v83
  %v253 = vunpack.c.l.b16 %v84
  %v254 = vunpack.c.l.b16 %v85
  %v255 = vunpack.c.l.b16 %v86
  %v256 = vunpack.c.l.b16 %v87
  %v257 = vunpack.c.l.b16 %v88
  %v258 = vunpack.c.l.b16 %v89
  %v259 = vunpack.c.l.b16 %v90
  %v260 = vunpack.c.l.b16 %v91
  %v261 = vunpack.c.l.b16 %v92
  %v262 = vunpack.c.l.b16 %v93
  %v263 = vunpack.c.l.b16 %v94
  %v264 = vunpack.c.l.b16 %v95
  %v265 = vunpack.c.l.b16 %v96
  %v266 = vunpack.c.l.b16 %v97
  %v267 = vunpack.c.l.b16 %v98
  %v268 = vunpack.c.l.b16 %v99
  %v269 = vunpack.c.l.b16 %v100
  %v270 = vpack.c.b16 %v199, %v198
  %v271 = vpack.c.b16 %v201, %v200
  %v272 = vpack.c.b16 %v203, %v202
  %v273 = vpack.c.b16 %v205, %v204
  %v274 = vpack.c.b16 %v207, %v206
  %v275 = vpack.c.b16 %v209, %v208
  %v276 = vpack.c.b16 %v211, %v210
  %v277 = vpack.c.b16 %v213, %v212
  %v278 = vpack.c.b16 %v215, %v214
  %v279 = vpack.c.b16 %v217, %v216
  %v280 = vpack.c.b16 %v219, %v218
  %v281 = vpack.c.b16 %v221, %v220
  %v282 = vpack.c.b16 %v223, %v222
  %v283 = vpack.c.b16 %v225, %v224
  %v284 = vpack.c.b16 %v227, %v226
  %v285 = vpack.c.b16 %v229, %v228
  %v286 = vpack.c.b16 %v231, %v230
  %v287 = vpack.c.b16 %v233, %v232
  %v288 = vpack.c.b16 %v235, %v234
  %v289 = vpack.c.b16 %v237, %v236
  %v290 = vpack.c.b16 %v239, %v238
  %v291 = vpack.c.b16 %v241, %v240
  %v292 = vpack.c.b16 %v243, %v242
  %v293 = vpack.c.b16 %v245, %v244
  %v294 = vpack.c.b16 %v247, %v246
  %v295 = vpack.c.b16 %v249, %v248
  %v296 = vpack.c.b16 %v251, %v250
  %v297 = vpack.c.b16 %v253, %v252
  %v298 = vpack.c.b16 %v255, %v254
  %v299 = vpack.c.b16 %v257, %v256
  %v300 = vpack.c.b16 %v259, %v258
  %v301 = vpack.c.b16 %v261, %v260
  %v302 = vpack.c.b16 %v263, %v262
  %v303 = vpack.c.b16 %v265, %v264
  %v304 = vpack.c.b16 %v267, %v266
  %v305 = vpack.c.b16 %v269, %v268
  %vm342 = vcmask 523264
  %v344 = vsel %vm342, %v121, 0
  %346 = vmatprep.subr.bf16.mxu0 0
  %347 = vmatpush1.bf16.msra.mxu0 %v270
  %348 = vmatprep.subr.bf16.mxu0 0
  %349 = vmatpush1.bf16.msra.mxu0 %v271
  %350 = vmatprep.subr.bf16.mxu0 0
  %351 = vmatpush1.bf16.msra.mxu0 %v272
  %352 = vmatprep.subr.bf16.mxu0 0
  %353 = vmatpush1.bf16.msra.mxu0 %v273
  %354 = vmatprep.subr.bf16.mxu0 0
  %355 = vmatpush1.bf16.msra.mxu0 %v274
  %356 = vmatprep.subr.bf16.mxu0 0
  %357 = vmatpush1.bf16.msra.mxu0 %v275
  %358 = vmatprep.subr.bf16.mxu0 0
  %359 = vmatpush1.bf16.msra.mxu0 %v276
  %360 = vmatprep.subr.bf16.mxu0 0
  %361 = vmatpush1.bf16.msra.mxu0 %v277
  %362 = vmatprep.subr.bf16.mxu0 0
  %363 = vmatpush1.bf16.msra.mxu0 %v278
  %364 = vmatprep.subr.bf16.mxu0 0
  %365 = vmatpush1.bf16.msra.mxu0 %v279
  %366 = vmatprep.subr.bf16.mxu0 0
  %367 = vmatpush1.bf16.msra.mxu0 %v280
  %368 = vmatprep.subr.bf16.mxu0 0
  %369 = vmatpush1.bf16.msra.mxu0 %v281
  %370 = vmatprep.subr.bf16.mxu0 0
  %371 = vmatpush1.bf16.msra.mxu0 %v282
  %372 = vmatprep.subr.bf16.mxu0 0
  %373 = vmatpush1.bf16.msra.mxu0 %v283
  %374 = vmatprep.subr.bf16.mxu0 0
  %375 = vmatpush1.bf16.msra.mxu0 %v284
  %376 = vmatprep.subr.bf16.mxu0 0
  %377 = vmatpush1.bf16.msra.mxu0 %v285
  %378 = vmatprep.mubr.bf16.mxu0 %v118
  %379 = vmatmul.mubr.bf16.gmra.mrb[0].mxu0 %v117
  %v380 = vpop.f32.mrb[0].mxu0
  %v381 = vadd.f32 0.0, %v380
  %v382 = vpop.f32.mrb[0].mxu0
  %v383 = vpop.f32.mrb[0].mxu0
  %v384 = vadd.f32 0.0, %v383
  %v385 = vpop.f32.mrb[0].mxu0
  %386 = vdwg.mxu0
  %387 = vmatprep.subr.bf16.mxu0 0
  %388 = vmatpush1.bf16.msra.mxu0 %v286
  %389 = vmatprep.subr.bf16.mxu0 0
  %390 = vmatpush1.bf16.msra.mxu0 %v287
  %391 = vmatprep.subr.bf16.mxu0 0
  %392 = vmatpush1.bf16.msra.mxu0 %v288
  %393 = vmatprep.subr.bf16.mxu0 0
  %394 = vmatpush1.bf16.msra.mxu0 %v289
  %395 = vmatprep.subr.bf16.mxu0 0
  %396 = vmatpush1.bf16.msra.mxu0 %v290
  %397 = vmatprep.subr.bf16.mxu0 0
  %398 = vmatpush1.bf16.msra.mxu0 %v291
  %399 = vmatprep.subr.bf16.mxu0 0
  %400 = vmatpush1.bf16.msra.mxu0 %v292
  %401 = vmatprep.subr.bf16.mxu0 0
  %402 = vmatpush1.bf16.msra.mxu0 %v293
  %403 = vmatprep.subr.bf16.mxu0 0
  %404 = vmatpush1.bf16.msra.mxu0 %v294
  %405 = vmatprep.subr.bf16.mxu0 0
  %406 = vmatpush1.bf16.msra.mxu0 %v295
  %407 = vmatprep.subr.bf16.mxu0 0
  %408 = vmatpush1.bf16.msra.mxu0 %v296
  %409 = vmatprep.subr.bf16.mxu0 0
  %410 = vmatpush1.bf16.msra.mxu0 %v297
  %411 = vmatprep.subr.bf16.mxu0 0
  %412 = vmatpush1.bf16.msra.mxu0 %v298
  %413 = vmatprep.subr.bf16.mxu0 0
  %414 = vmatpush1.bf16.msra.mxu0 %v299
  %415 = vmatprep.subr.bf16.mxu0 0
  %416 = vmatpush1.bf16.msra.mxu0 %v300
  %417 = vmatprep.subr.bf16.mxu0 0
  %418 = vmatpush1.bf16.msra.mxu0 %v301
  %419 = vmatprep.mubr.bf16.mxu0 %v120
  %420 = vmatmul.mubr.bf16.gmra.mrb[0].mxu0 %v119
  %v421 = vpop.f32.mrb[0].mxu0
  %v422 = vadd.f32 %v381, %v421
  %v423 = vpop.f32.mrb[0].mxu0
  %v424 = vpop.f32.mrb[0].mxu0
  %v425 = vadd.f32 %v384, %v424
  %v426 = vpop.f32.mrb[0].mxu0
  %427 = vdwg.mxu0
  %428 = vmatprep.subr.bf16.mxu0 0
  %429 = vmatpush1.bf16.msra.mxu0 %v302
  %430 = vmatprep.subr.bf16.mxu0 0
  %431 = vmatpush1.bf16.msra.mxu0 %v303
  %432 = vmatprep.subr.bf16.mxu0 0
  %433 = vmatpush1.bf16.msra.mxu0 %v304
  %434 = vmatprep.subr.bf16.mxu0 0
  %435 = vmatpush1.bf16.msra.mxu0 %v305
  %436 = vmatprep.subr.bf16.mxu0 0
  %437 = vmatpush1.bf16.msra.mxu0 0
  %438 = vmatprep.subr.bf16.mxu0 0
  %439 = vmatpush1.bf16.msra.mxu0 0
  %440 = vmatprep.subr.bf16.mxu0 0
  %441 = vmatpush1.bf16.msra.mxu0 0
  %442 = vmatprep.subr.bf16.mxu0 0
  %443 = vmatpush1.bf16.msra.mxu0 0
  %444 = vmatprep.subr.bf16.mxu0 0
  %445 = vmatpush1.bf16.msra.mxu0 0
  %446 = vmatprep.subr.bf16.mxu0 0
  %447 = vmatpush1.bf16.msra.mxu0 0
  %448 = vmatprep.subr.bf16.mxu0 0
  %449 = vmatpush1.bf16.msra.mxu0 0
  %450 = vmatprep.subr.bf16.mxu0 0
  %451 = vmatpush1.bf16.msra.mxu0 0
  %452 = vmatprep.subr.bf16.mxu0 0
  %453 = vmatpush1.bf16.msra.mxu0 0
  %454 = vmatprep.subr.bf16.mxu0 0
  %455 = vmatpush1.bf16.msra.mxu0 0
  %456 = vmatprep.subr.bf16.mxu0 0
  %457 = vmatpush1.bf16.msra.mxu0 0
  %458 = vmatprep.subr.bf16.mxu0 0
  %459 = vmatpush1.bf16.msra.mxu0 0
  %460 = vmatprep.mubr.bf16.mxu0 0
  %461 = vmatmul.mubr.bf16.gmra.mrb[0].mxu0 %v344
  %v462 = vpop.f32.mrb[0].mxu0
  %v463 = vadd.f32 %v422, %v462
  %v464 = vpop.f32.mrb[0].mxu0
  %v465 = vpop.f32.mrb[0].mxu0
  %v466 = vadd.f32 %v425, %v465
  %v467 = vpop.f32.mrb[0].mxu0
  %468 = vdwg.mxu0
  %v469 = vadd.f32 %v21, %v463
  %v470 = vadd.f32 %v22, %v466
  %471 = vst [vmem:[#allocation2] sm:$0xff] %v469
  %472 = vst [vmem:[#allocation2 + $0x8] sm:$0xff] %v470
  // Predicated region
  $region18: #{_lambda_.35} parent=0 // pred_check
    %p473 = pneg %p15
  $region19: #{_lambda_.35} parent=0 // pred_check_branch
    %475 = sbr.rel (%p473) target = $region21
  $region20: #{_lambda_.35} parent=0 // pred_region
    %v476 = vld [vmem:[#allocation2] sm:$0xff]
    %v477 = vld [vmem:[#allocation2 + $0x8] sm:$0xff]
    %v478 = vld [vmem:[%s2] sm:$0x1]
    %v480 = vlaneseq
    %v481 = vshrl.u32 %v480, 7
    %v482 = vsub.s32 0, %v481
    %v483 = vrot.slane %v478, %v482
    %v485 = vadd.f32 %v476, %v483
    %v486 = vadd.f32 %v477, %v483
    %v487 = vmax.f32 %v485, 0.0
    %v488 = vmax.f32 %v486, 0.0
    %v489 = vpack.c.bf16 %v488, %v487
    %v491 = vunpack.c.l.b16 %v489
    %v492 = vunpack.c.h.b16 %v489
    %v493 = vpack.c.b16 %v491, %v491
    %v494 = vpack.c.b16 %v492, %v492
    %497 = vst [vmem:[%s3] sm:$0xf] %v493
    %498 = vst [vmem:[%s3 + $0x4] sm:$0xf] %v494
  $region21: #{_lambda_.35} parent=0 // pred_fallthru
    _
  // Predicated region
  $region22: #{_lambda_.35} parent=0 // pred_check
    _
  $region23: #{_lambda_.35} parent=0 // pred_check_branch
    %500 = sbr.rel (0) target = $region25
  $region24: #{_lambda_.35} parent=0 // pred_region
    _
  $region25: #{_lambda_.35} parent=0 // pred_fallthru
    _
  // Predicated region
  $region26: #{_lambda_.35} parent=0 // pred_check
    _
  $region27: #{_lambda_.35} parent=0 // pred_check_branch
    %502 = sbr.rel (0) target = $region29
  $region28: #{_lambda_.35} parent=0 // pred_region
    _
  $region29: #{_lambda_.35} parent=0 // pred_fallthru
    _

</llo_original>
